<compile_context>
chip_gen: v5e
topology: v5e:2x2
jax: 0.10.0
libtpu: 0.0.40
codegen_flags: <defaults>
</compile_context>

<pallas_src>
import functools
import math

import numpy as np

import jax
import jax.numpy as jnp
from jax import lax
from jax.experimental import pallas as pl
from jax.experimental.pallas import tpu as pltpu

EPS = 1e-5  # torch.nn.InstanceNorm2d default eps


# ----------------------------------------------------------------------------
# Small helpers
# ----------------------------------------------------------------------------
def _vmem_limit(block_bytes):
    """Generation-aware scoped-VMEM limit (review: query the chip, don't clamp
    everything to 64 MiB).  Falls back to a v7x-safe 64 MiB capacity."""
    try:
        cap = int(pltpu.get_tpu_info().vmem_capacity_bytes)
    except Exception:  # pragma: no cover - conservative fallback
        cap = 64 << 20
    need = 2 * int(block_bytes) + (4 << 20)
    return int(min(max(need, 16 << 20), int(cap * 0.85)))


def _padded_sizes(h, w):
    """Row stride, content length and padded-flat length for an (h, w) image."""
    wp = w + 2
    return wp, h * wp, (h + 3) * wp


def _valid_mask(h, w):
    """(1, H*(W+2)) f32 mask: 1 on valid columns, 0 on the 2 wrap columns."""
    wp = w + 2
    col = np.arange(h * wp) % wp
    return jnp.asarray((col < w).astype(np.float32)[None, :])


def _pool_mats(h, w):
    """(4, Lpad_in, Lpad_out) bf16 0/1 selection matrices mapping the
    padded-flat (h, w) layout to the padded-flat (h//2, w//2) layout for the
    four taps of a 2x2 max-pool (pad positions map from nothing -> stay 0)."""
    h2, w2 = h // 2, w // 2
    s_in, _, lp_in = _padded_sizes(h, w)
    s_out, _, lp_out = _padded_sizes(h2, w2)
    g = np.zeros((4, lp_in, lp_out), np.float32)
    for dy in range(2):
        for dx in range(2):
            k = dy * 2 + dx
            for i in range(h2):
                for j in range(w2):
                    src = (2 * i + dy + 1) * s_in + (2 * j + dx + 1)
                    dst = (i + 1) * s_out + (j + 1)
                    g[k, src, dst] = 1.0
    return jnp.asarray(g, jnp.bfloat16)


def _bilinear_axis(n_lo, n_hi):
    """(n_hi, n_lo) weights of F.interpolate(scale=2, bilinear,
    align_corners=False), plus a 1-pixel 'reflect' pad when n_hi = 2*n_lo+1."""
    a = np.zeros((n_hi, n_lo), np.float32)
    for d in range(2 * n_lo):
        src = max(d * 0.5 - 0.25, 0.0)
        i0 = min(int(np.floor(src)), n_lo - 1)
        frac = src - i0
        i1 = min(i0 + 1, n_lo - 1)
        a[d, i0] += 1.0 - frac
        a[d, i1] += frac
    if n_hi == 2 * n_lo + 1:
        a[2 * n_lo] = a[2 * n_lo - 2]
    return a


def _upsample_mat(h_lo, w_lo, h_hi, w_hi):
    """(Lpad_lo, Lpad_hi) bf16: padded-flat bilinear 2x upsample (+ optional
    reflect pad to the skip's size) expressed as one constant matrix."""
    ah = _bilinear_axis(h_lo, h_hi)
    aw = _bilinear_axis(w_lo, w_hi)
    s_lo, _, lp_lo = _padded_sizes(h_lo, w_lo)
    s_hi, _, lp_hi = _padded_sizes(h_hi, w_hi)
    b = np.zeros((lp_lo, lp_hi), np.float32)
    for ii in range(h_hi):
        ys = np.nonzero(ah[ii])[0]
        for jj in range(w_hi):
            xs = np.nonzero(aw[jj])[0]
            dst = (ii + 1) * s_hi + (jj + 1)
            for i in ys:
                for j in xs:
                    b[(i + 1) * s_lo + (j + 1), dst] += ah[ii, i] * aw[jj, j]
    return jnp.asarray(b, jnp.bfloat16)


# ----------------------------------------------------------------------------
# Pallas kernels
# ----------------------------------------------------------------------------
def _conv_block_kernel(*refs, n_in, transform, h, w, cmid):
    """Fused ConvBlock for one image (padded-flat in, padded-flat out).

    refs = (x_0 [, x_1], [tmat], w1, w2, mask, out, stk1, y1p, stk2)
      x_g  : (1, Cg, Lpad_g) bf16 padded-flat input
      tmat : pool (4, Lin, Lout) or upsample (Lin, Lout) bf16 constant matrix
      w1   : (Cout, 9 * sum(Cg)) bf16 packed 3x3 weights (tap-major per input)
      w2   : (Cout, 9 * Cout)    bf16
      mask : (1, H*(W+2)) f32, 0 on the two wrap columns of each row
      out  : (1, Cout, (H+3)*(W+2)) bf16 padded-flat output
      stk1/stk2 : VMEM scratch for the stacked conv operands
      y1p  : VMEM scratch for the re-padded conv1 activation
    """
    wp = w + 2
    m = h * wp

    idx = 0
    x_refs = refs[idx:idx + n_in]
    idx += n_in
    tmat_ref = None
    if transform is not None:
        tmat_ref = refs[idx]
        idx += 1
    w1_ref, w2_ref, mask_ref, o_ref = refs[idx:idx + 4]
    stk1_ref, y1p_ref, stk2_ref = refs[idx + 4:idx + 7]

    maskf = mask_ref[...]                       # (1, M) f32
    inv_cnt = 1.0 / float(h * w)

    def instance_norm_relu(acc):
        # acc: (C, M) f32 with wrap columns already zeroed.
        mean = jnp.sum(acc, axis=1, keepdims=True) * inv_cnt
        msq = jnp.sum(acc * acc, axis=1, keepdims=True) * inv_cnt
        var = jnp.maximum(msq - mean * mean, 0.0)
        y = jnp.maximum((acc - mean) * lax.rsqrt(var + EPS), 0.0)
        # Re-zero the wrap columns so they act as valid zero padding downstream.
        return y * maskf

    # ---- optional fused spatial transform of input 0 (pool / upsample) ----
    srcs = []  # (is_ref, obj, channels); all at the OUTPUT resolution
    for g in range(n_in):
        if g == 0 and transform == "up":
            v = jnp.dot(x_refs[0][0], tmat_ref[...],
                        preferred_element_type=jnp.float32).astype(jnp.bfloat16)
            srcs.append((False, v, int(v.shape[0])))
        elif g == 0 and transform == "pool":
            xin = x_refs[0][0]
            v = jnp.dot(xin, tmat_ref[0], preferred_element_type=jnp.float32)
            for k in range(1, 4):
                v = jnp.maximum(
                    v, jnp.dot(xin, tmat_ref[k],
                               preferred_element_type=jnp.float32))
            v = v.astype(jnp.bfloat16)
            srcs.append((False, v, int(v.shape[0])))
        else:
            srcs.append((True, x_refs[g], int(x_refs[g].shape[1])))

    # ---- conv1: stack the 9 taps of every input, ONE large-K bf16 matmul ----
    row = 0
    for is_ref, obj, cg in srcs:
        for t in range(9):
            off = (t // 3) * wp + (t % 3)
            piece = obj[0, :, off:off + m] if is_ref else obj[:, off:off + m]
            stk1_ref[row:row + cg, :] = piece
            row += cg
    acc1 = jnp.dot(w1_ref[...], stk1_ref[...],
                   preferred_element_type=jnp.float32)
    y1 = instance_norm_relu(acc1 * maskf)

    # ---- re-pad the conv1 activation inside VMEM (never leaves the chip) ----
    y1p_ref[...] = jnp.zeros_like(y1p_ref)
    y1p_ref[:, w + 3:w + 3 + m] = y1.astype(jnp.bfloat16)

    # ---- conv2: same single large-K matmul ----
    row = 0
    for t in range(9):
        off = (t // 3) * wp + (t % 3)
        stk2_ref[row:row + cmid, :] = y1p_ref[:, off:off + m]
        row += cmid
    acc2 = jnp.dot(w2_ref[...], stk2_ref[...],
                   preferred_element_type=jnp.float32)
    y2 = instance_norm_relu(acc2 * maskf)

    # ---- emit the padded-flat output (zero borders, lane-dense store) ----
    o_ref[...] = jnp.zeros_like(o_ref)
    o_ref[0, :, w + 3:w + 3 + m] = y2.astype(o_ref.dtype)


def _head_kernel(x_ref, w1_ref, b1_ref, w2_ref, b2_ref, w3_ref, b3_ref, o_ref):
    """Three chained 1x1 convs (matmul + bias); intermediates stay in VMEM."""
    x = x_ref[0]                                                      # (C0, L) bf16
    t = jnp.dot(w1_ref[...], x, preferred_element_type=jnp.float32) + b1_ref[...]
    t = jnp.dot(w2_ref[...], t.astype(jnp.bfloat16),
                preferred_element_type=jnp.float32) + b2_ref[...]
    t = jnp.dot(w3_ref[...], t.astype(jnp.bfloat16),
                preferred_element_type=jnp.float32) + b3_ref[...]
    o_ref[0] = t.astype(o_ref.dtype)


# ----------------------------------------------------------------------------
# pallas_call wrappers
# ----------------------------------------------------------------------------
def conv_block_call(xs, p, out_hw, transform=None, tmat=None):
    """xs: list of padded-flat bf16 tensors (N, Cg, Lpad_g); implicit channel
    concat via the packed weight.  Returns (N, Cout, (H+3)*(W+2)) bf16."""
    n = int(xs[0].shape[0])
    h, w = out_hw
    _, m, lpad = _padded_sizes(h, w)
    cout = int(p["w2"].shape[0])
    ctot = sum(int(xg.shape[1]) for xg in xs)
    mask = _valid_mask(h, w)

    inputs = list(xs)
    in_specs = [pl.BlockSpec((1, int(xg.shape[1]), int(xg.shape[2])),
                             lambda i: (i, 0, 0)) for xg in xs]
    if transform is not None:
        inputs.append(tmat)
        nd = tmat.ndim
        in_specs.append(pl.BlockSpec(tuple(tmat.shape),
                                     lambda i, _nd=nd: (0,) * _nd))
    inputs += [p["w1"], p["w2"], mask]
    in_specs += [pl.BlockSpec(tuple(p["w1"].shape), lambda i: (0, 0)),
                 pl.BlockSpec(tuple(p["w2"].shape), lambda i: (0, 0)),
                 pl.BlockSpec((1, m), lambda i: (0, 0))]

    blk_bytes = sum(int(np.prod(a.shape)) * a.dtype.itemsize for a in inputs)
    blk_bytes += cout * lpad * 2                                   # output block
    blk_bytes += (9 * ctot * m + cout * lpad + 9 * cout * m) * 2   # scratch

    kernel = functools.partial(_conv_block_kernel, n_in=len(xs),
                               transform=transform, h=h, w=w, cmid=cout)
    return pl.pallas_call(
        kernel,
        out_shape=jax.ShapeDtypeStruct((n, cout, lpad), jnp.bfloat16),
        grid=(n,),
        in_specs=in_specs,
        out_specs=pl.BlockSpec((1, cout, lpad), lambda i: (i, 0, 0)),
        scratch_shapes=[pltpu.VMEM((9 * ctot, m), jnp.bfloat16),
                        pltpu.VMEM((cout, lpad), jnp.bfloat16),
                        pltpu.VMEM((9 * cout, m), jnp.bfloat16)],
        compiler_params=pltpu.CompilerParams(
            dimension_semantics=("parallel",),
            vmem_limit_bytes=_vmem_limit(blk_bytes)),
    )(*inputs)


def conv1x1_head(x, head_params):
    """x: (N, C0, Lpad) bf16 padded-flat.  Returns (N, out_chans, Lpad) f32.

    The whole per-image padded-flat extent is one lane-dense block (maximal
    lane tile at this size); pad positions carry bias-chain garbage that is
    sliced off in JAX afterwards.
    # TODO(synk): at real resolutions tile the lane axis at 512-2048 lanes.
    """
    n, c0, l = (int(s) for s in x.shape)
    (w1, b1), (w2, b2), (w3, b3) = head_params
    c3 = int(w3.shape[0])
    consts = [w1, b1, w2, b2, w3, b3]
    const_specs = [pl.BlockSpec(tuple(a.shape), lambda i: (0, 0)) for a in consts]
    blk_bytes = (c0 * 2 + c3 * 4) * l + sum(int(np.prod(a.shape)) * 4 for a in consts)
    return pl.pallas_call(
        _head_kernel,
        out_shape=jax.ShapeDtypeStruct((n, c3, l), jnp.float32),
        grid=(n,),
        in_specs=[pl.BlockSpec((1, c0, l), lambda i: (i, 0, 0))] + const_specs,
        out_specs=pl.BlockSpec((1, c3, l), lambda i: (i, 0, 0)),
        compiler_params=pltpu.CompilerParams(
            dimension_semantics=("parallel",),
            vmem_limit_bytes=_vmem_limit(blk_bytes)),
    )(x, *consts)


# ----------------------------------------------------------------------------
# Parameter init (deterministic, synthetic) & model
# ----------------------------------------------------------------------------
def _pack_conv3x3(key, cins, cout):
    """Pack a 3x3 conv weight over concat(cins) channels as (Cout, 9*sum(cins))
    bf16, column order = [input group g][tap t = dy*3+dx][channel c], matching
    the in-kernel stacking.  The conv bias is omitted: it is cancelled exactly
    by the following InstanceNorm2d mean subtraction."""
    ctot = sum(cins)
    bound = 1.0 / math.sqrt(9 * ctot)
    wfull = jax.random.uniform(key, (cout, ctot, 3, 3), jnp.float32, -bound, bound)
    blocks, start = [], 0
    for cj in cins:
        wj = wfull[:, start:start + cj]                        # (Cout, cj, 3, 3)
        wj = jnp.transpose(wj, (0, 2, 3, 1)).reshape(cout, 9 * cj)
        blocks.append(wj)
        start += cj
    return jnp.concatenate(blocks, axis=1).astype(jnp.bfloat16)


def _conv_block_params(key, cins, cout):
    k1, k2 = jax.random.split(key)
    return {"w1": _pack_conv3x3(k1, cins, cout),
            "w2": _pack_conv3x3(k2, (cout,), cout)}


def init_unet_params(key, in_chans, out_chans, chans, num_pool_layers):
    params = {"down": [], "up": [], "final": []}
    key, k = jax.random.split(key)
    params["down"].append(_conv_block_params(k, (in_chans,), chans))
    ch = chans
    for _ in range(num_pool_layers - 1):
        key, k = jax.random.split(key)
        params["down"].append(_conv_block_params(k, (ch,), ch * 2))
        ch *= 2
    key, k = jax.random.split(key)
    params["mid"] = _conv_block_params(k, (ch,), ch)
    for _ in range(num_pool_layers - 1):
        key, k = jax.random.split(key)
        params["up"].append(_conv_block_params(k, (ch, ch), ch // 2))
        ch //= 2
    key, k = jax.random.split(key)
    params["up"].append(_conv_block_params(k, (ch, ch), ch))
    for cin, cout in [(ch, ch // 2), (ch // 2, out_chans), (out_chans, out_chans)]:
        key, kw, kb = jax.random.split(key, 3)
        bound = 1.0 / math.sqrt(cin)
        wmat = jax.random.uniform(kw, (cout, cin), jnp.float32, -bound, bound)
        bvec = jax.random.uniform(kb, (cout, 1), jnp.float32, -bound, bound)
        params["final"].append((wmat.astype(jnp.bfloat16), bvec))
    return params


def unet_forward(x, params):
    """Input: (N, in_chans, H, W) f32  ->  Output: (N, out_chans, H, W) f32."""
    n, cin, h, w = (int(s) for s in x.shape)
    num_pool = len(params["down"])

    sizes = [(h, w)]
    for _ in range(num_pool):
        sizes.append((sizes[-1][0] // 2, sizes[-1][1] // 2))

    # One-time zero pad + flatten of the input image into the padded-flat
    # bf16 layout; every later pad/pool/upsample/concat lives inside kernels.
    _, _, lpad0 = _padded_sizes(h, w)
    out = jnp.pad(x, ((0, 0), (0, 0), (1, 2), (1, 1))).reshape(n, cin, lpad0)
    out = out.astype(jnp.bfloat16)

    stack = []
    for lvl, p in enumerate(params["down"]):
        if lvl == 0:
            out = conv_block_call([out], p, out_hw=sizes[0])
        else:
            out = conv_block_call([out], p, out_hw=sizes[lvl],
                                  transform="pool",
                                  tmat=_pool_mats(*sizes[lvl - 1]))
        stack.append((out, sizes[lvl]))

    # Bottleneck ConvBlock (its preceding 2x2 max-pool is fused in as well).
    out = conv_block_call([out], params["mid"], out_hw=sizes[num_pool],
                          transform="pool",
                          tmat=_pool_mats(*sizes[num_pool - 1]))
    cur_hw = sizes[num_pool]

    for p in params["up"]:
        skip, skip_hw = stack.pop()
        tmat = _upsample_mat(cur_hw[0], cur_hw[1], skip_hw[0], skip_hw[1])
        # torch.cat([upsampled, skip], dim=1) is realised by the packed weight.
        out = conv_block_call([out, skip], p, out_hw=skip_hw,
                              transform="up", tmat=tmat)
        cur_hw = skip_hw

    head = conv1x1_head(out, params["final"])           # (N, out_chans, Lpad0)
    hh, ww = cur_hw
    wp, m, _ = _padded_sizes(hh, ww)
    head = head[:, :, ww + 3:ww + 3 + m]
    return head.reshape(n, head.shape[1], hh, wp)[:, :, :, :ww]


# ----------------------------------------------------------------------------
# main
# ----------------------------------------------------------------------------
if __name__ == "__main__":
    in_chans, out_chans, chans, num_pool_layers, drop_prob = 4, 4, 8, 2, 0.0

    key = jax.random.PRNGKey(0)
    pkey, xkey = jax.random.split(key)
    params = init_unet_params(pkey, in_chans, out_chans, chans, num_pool_layers)

    x = jax.random.normal(xkey, (2, in_chans, 16, 16), jnp.float32)

    fwd = jax.jit(unet_forward)
    y = fwd(x, params)
    jax.block_until_ready(y)

    assert y.shape == (2, out_chans, 16, 16), y.shape
    assert bool(jnp.all(jnp.isfinite(y)))
    print("KERNEL_OK")
</pallas_src>

<mosaic_0001>
module attributes {stable_mosaic.version = 11 : i64} {
  func.func @_conv_block_kernel(%arg0: i32, %arg1: memref<1x4x342xbf16, #tpu.memory_space<vmem>>, %arg2: memref<8x36xbf16, #tpu.memory_space<vmem>>, %arg3: memref<8x72xbf16, #tpu.memory_space<vmem>>, %arg4: memref<1x288xf32, #tpu.memory_space<vmem>>, %arg5: memref<1x8x342xbf16, #tpu.memory_space<vmem>>, %arg6: memref<36x288xbf16, #tpu.memory_space<vmem>>, %arg7: memref<8x342xbf16, #tpu.memory_space<vmem>>, %arg8: memref<72x288xbf16, #tpu.memory_space<vmem>>) attributes {dimension_semantics = [#tpu.dimension_semantics<parallel>], iteration_bounds = array<i64: 2>, scalar_prefetch = 0 : i64, scratch_operands = 3 : i64, tpu.core_type = #tpu.core_type<tc>, window_params = [{transform_indices = @transform_0, window_bounds = array<i64: 1, 4, 342>}, {pipeline_mode = #tpu.pipeline_mode<synchronous>, transform_indices = @transform_1, window_bounds = array<i64: 8, 36>}, {pipeline_mode = #tpu.pipeline_mode<synchronous>, transform_indices = @transform_2, window_bounds = array<i64: 8, 72>}, {pipeline_mode = #tpu.pipeline_mode<synchronous>, transform_indices = @transform_3, window_bounds = array<i64: 1, 288>}, {transform_indices = @transform_4, window_bounds = array<i64: 1, 8, 342>}]} {
    %c0 = arith.constant 0 : index
    %c0_0 = arith.constant 0 : index
    %0 = vector.load %arg4[%c0, %c0_0] : memref<1x288xf32, #tpu.memory_space<vmem>>, vector<1x288xf32>
    %c0_1 = arith.constant 0 : index
    %c0_2 = arith.constant 0 : index
    %c0_3 = arith.constant 0 : index
    %1 = vector.load %arg1[%c0_1, %c0_2, %c0_3] : memref<1x4x342xbf16, #tpu.memory_space<vmem>>, vector<1x4x288xbf16>
    %2 = vector.shape_cast %1 : vector<1x4x288xbf16> to vector<4x288xbf16>
    %c0_4 = arith.constant 0 : index
    %c0_5 = arith.constant 0 : index
    %3 = vector.load %arg6[%c0_4, %c0_5] : memref<36x288xbf16, #tpu.memory_space<vmem>>, vector<4x288xbf16>
    tpu.vector_store %arg6[%c0_4, %c0_5], %2 {strides = array<i32>} : memref<36x288xbf16, #tpu.memory_space<vmem>>, vector<4x288xbf16>,
    %c0_6 = arith.constant 0 : index
    %c0_7 = arith.constant 0 : index
    %c1 = arith.constant 1 : index
    %4 = vector.load %arg1[%c0_6, %c0_7, %c1] : memref<1x4x342xbf16, #tpu.memory_space<vmem>>, vector<1x4x288xbf16>
    %5 = vector.shape_cast %4 : vector<1x4x288xbf16> to vector<4x288xbf16>
    %c4 = arith.constant 4 : index
    %c0_8 = arith.constant 0 : index
    %6 = vector.load %arg6[%c4, %c0_8] : memref<36x288xbf16, #tpu.memory_space<vmem>>, vector<4x288xbf16>
    tpu.vector_store %arg6[%c4, %c0_8], %5 {strides = array<i32>} : memref<36x288xbf16, #tpu.memory_space<vmem>>, vector<4x288xbf16>,
    %c0_9 = arith.constant 0 : index
    %c0_10 = arith.constant 0 : index
    %c2 = arith.constant 2 : index
    %7 = vector.load %arg1[%c0_9, %c0_10, %c2] : memref<1x4x342xbf16, #tpu.memory_space<vmem>>, vector<1x4x288xbf16>
    %8 = vector.shape_cast %7 : vector<1x4x288xbf16> to vector<4x288xbf16>
    %c8 = arith.constant 8 : index
    %c0_11 = arith.constant 0 : index
    %9 = vector.load %arg6[%c8, %c0_11] : memref<36x288xbf16, #tpu.memory_space<vmem>>, vector<4x288xbf16>
    tpu.vector_store %arg6[%c8, %c0_11], %8 {strides = array<i32>} : memref<36x288xbf16, #tpu.memory_space<vmem>>, vector<4x288xbf16>,
    %c0_12 = arith.constant 0 : index
    %c0_13 = arith.constant 0 : index
    %c18 = arith.constant 18 : index
    %10 = vector.load %arg1[%c0_12, %c0_13, %c18] : memref<1x4x342xbf16, #tpu.memory_space<vmem>>, vector<1x4x288xbf16>
    %11 = vector.shape_cast %10 : vector<1x4x288xbf16> to vector<4x288xbf16>
    %c12 = arith.constant 12 : index
    %c0_14 = arith.constant 0 : index
    %12 = vector.load %arg6[%c12, %c0_14] : memref<36x288xbf16, #tpu.memory_space<vmem>>, vector<4x288xbf16>
    tpu.vector_store %arg6[%c12, %c0_14], %11 {strides = array<i32>} : memref<36x288xbf16, #tpu.memory_space<vmem>>, vector<4x288xbf16>,
    %c0_15 = arith.constant 0 : index
    %c0_16 = arith.constant 0 : index
    %c19 = arith.constant 19 : index
    %13 = vector.load %arg1[%c0_15, %c0_16, %c19] : memref<1x4x342xbf16, #tpu.memory_space<vmem>>, vector<1x4x288xbf16>
    %14 = vector.shape_cast %13 : vector<1x4x288xbf16> to vector<4x288xbf16>
    %c16 = arith.constant 16 : index
    %c0_17 = arith.constant 0 : index
    %15 = vector.load %arg6[%c16, %c0_17] : memref<36x288xbf16, #tpu.memory_space<vmem>>, vector<4x288xbf16>
    tpu.vector_store %arg6[%c16, %c0_17], %14 {strides = array<i32>} : memref<36x288xbf16, #tpu.memory_space<vmem>>, vector<4x288xbf16>,
    %c0_18 = arith.constant 0 : index
    %c0_19 = arith.constant 0 : index
    %c20 = arith.constant 20 : index
    %16 = vector.load %arg1[%c0_18, %c0_19, %c20] : memref<1x4x342xbf16, #tpu.memory_space<vmem>>, vector<1x4x288xbf16>
    %17 = vector.shape_cast %16 : vector<1x4x288xbf16> to vector<4x288xbf16>
    %c20_20 = arith.constant 20 : index
    %c0_21 = arith.constant 0 : index
    %18 = vector.load %arg6[%c20_20, %c0_21] : memref<36x288xbf16, #tpu.memory_space<vmem>>, vector<4x288xbf16>
    tpu.vector_store %arg6[%c20_20, %c0_21], %17 {strides = array<i32>} : memref<36x288xbf16, #tpu.memory_space<vmem>>, vector<4x288xbf16>,
    %c0_22 = arith.constant 0 : index
    %c0_23 = arith.constant 0 : index
    %c36 = arith.constant 36 : index
    %19 = vector.load %arg1[%c0_22, %c0_23, %c36] : memref<1x4x342xbf16, #tpu.memory_space<vmem>>, vector<1x4x288xbf16>
    %20 = vector.shape_cast %19 : vector<1x4x288xbf16> to vector<4x288xbf16>
    %c24 = arith.constant 24 : index
    %c0_24 = arith.constant 0 : index
    %21 = vector.load %arg6[%c24, %c0_24] : memref<36x288xbf16, #tpu.memory_space<vmem>>, vector<4x288xbf16>
    tpu.vector_store %arg6[%c24, %c0_24], %20 {strides = array<i32>} : memref<36x288xbf16, #tpu.memory_space<vmem>>, vector<4x288xbf16>,
    %c0_25 = arith.constant 0 : index
    %c0_26 = arith.constant 0 : index
    %c37 = arith.constant 37 : index
    %22 = vector.load %arg1[%c0_25, %c0_26, %c37] : memref<1x4x342xbf16, #tpu.memory_space<vmem>>, vector<1x4x288xbf16>
    %23 = vector.shape_cast %22 : vector<1x4x288xbf16> to vector<4x288xbf16>
    %c28 = arith.constant 28 : index
    %c0_27 = arith.constant 0 : index
    %24 = vector.load %arg6[%c28, %c0_27] : memref<36x288xbf16, #tpu.memory_space<vmem>>, vector<4x288xbf16>
    tpu.vector_store %arg6[%c28, %c0_27], %23 {strides = array<i32>} : memref<36x288xbf16, #tpu.memory_space<vmem>>, vector<4x288xbf16>,
    %c0_28 = arith.constant 0 : index
    %c0_29 = arith.constant 0 : index
    %c38 = arith.constant 38 : index
    %25 = vector.load %arg1[%c0_28, %c0_29, %c38] : memref<1x4x342xbf16, #tpu.memory_space<vmem>>, vector<1x4x288xbf16>
    %26 = vector.shape_cast %25 : vector<1x4x288xbf16> to vector<4x288xbf16>
    %c32 = arith.constant 32 : index
    %c0_30 = arith.constant 0 : index
    %27 = vector.load %arg6[%c32, %c0_30] : memref<36x288xbf16, #tpu.memory_space<vmem>>, vector<4x288xbf16>
    tpu.vector_store %arg6[%c32, %c0_30], %26 {strides = array<i32>} : memref<36x288xbf16, #tpu.memory_space<vmem>>, vector<4x288xbf16>,
    %c0_31 = arith.constant 0 : index
    %c0_32 = arith.constant 0 : index
    %28 = vector.load %arg2[%c0_31, %c0_32] : memref<8x36xbf16, #tpu.memory_space<vmem>>, vector<8x36xbf16>
    %c0_33 = arith.constant 0 : index
    %c0_34 = arith.constant 0 : index
    %29 = vector.load %arg6[%c0_33, %c0_34] : memref<36x288xbf16, #tpu.memory_space<vmem>>, vector<36x288xbf16>
    %cst = arith.constant dense<0.000000e+00> : vector<8x288xf32>
    %30 = tpu.matmul %28, %29, %cst {dimension_numbers = #tpu.dot_dimension_numbers<[1], [0], [0], [1], [0, 0, 1, 1], [], []>} : vector<8x36xbf16>, vector<36x288xbf16>, vector<8x288xf32> -> vector<8x288xf32>
    %31 = vector.broadcast %0 : vector<1x288xf32> to vector<8x288xf32>
    %32 = arith.mulf %30, %31 : vector<8x288xf32>
    %cst_35 = arith.constant dense<0.000000e+00> : vector<8xf32>
    %33 = vector.multi_reduction <add>, %32, %cst_35 [1] : vector<8x288xf32> to vector<8xf32>
    %34 = vector.shape_cast %33 : vector<8xf32> to vector<8x1xf32>
    %cst_36 = arith.constant 3.906250e-03 : f32
    %35 = vector.broadcast %cst_36 : f32 to vector<8x1xf32>
    %36 = arith.mulf %34, %35 : vector<8x1xf32>
    %37 = arith.mulf %32, %32 : vector<8x288xf32>
    %cst_37 = arith.constant dense<0.000000e+00> : vector<8xf32>
    %38 = vector.multi_reduction <add>, %37, %cst_37 [1] : vector<8x288xf32> to vector<8xf32>
    %39 = vector.shape_cast %38 : vector<8xf32> to vector<8x1xf32>
    %cst_38 = arith.constant 3.906250e-03 : f32
    %40 = vector.broadcast %cst_38 : f32 to vector<8x1xf32>
    %41 = arith.mulf %39, %40 : vector<8x1xf32>
    %42 = arith.mulf %36, %36 : vector<8x1xf32>
    %43 = arith.subf %41, %42 : vector<8x1xf32>
    %cst_39 = arith.constant 0.000000e+00 : f32
    %44 = vector.broadcast %cst_39 : f32 to vector<8x1xf32>
    %45 = arith.maximumf %43, %44 : vector<8x1xf32>
    %46 = vector.broadcast %36 : vector<8x1xf32> to vector<8x288xf32>
    %47 = arith.subf %32, %46 : vector<8x288xf32>
    %cst_40 = arith.constant 9.99999974E-6 : f32
    %48 = vector.broadcast %cst_40 : f32 to vector<8x1xf32>
    %49 = arith.addf %45, %48 : vector<8x1xf32>
    %50 = math.rsqrt %49 : vector<8x1xf32>
    %51 = vector.broadcast %50 : vector<8x1xf32> to vector<8x288xf32>
    %52 = arith.mulf %47, %51 : vector<8x288xf32>
    %cst_41 = arith.constant 0.000000e+00 : f32
    %53 = vector.broadcast %cst_41 : f32 to vector<8x288xf32>
    %54 = arith.maximumf %52, %53 : vector<8x288xf32>
    %55 = vector.broadcast %0 : vector<1x288xf32> to vector<8x288xf32>
    %56 = arith.mulf %54, %55 : vector<8x288xf32>
    %cst_42 = arith.constant 0.000000e+00 : bf16
    %57 = vector.broadcast %cst_42 : bf16 to vector<8x342xbf16>
    %c0_43 = arith.constant 0 : index
    %c0_44 = arith.constant 0 : index
    %58 = vector.load %arg7[%c0_43, %c0_44] : memref<8x342xbf16, #tpu.memory_space<vmem>>, vector<8x342xbf16>
    tpu.vector_store %arg7[%c0_43, %c0_44], %57 {strides = array<i32>} : memref<8x342xbf16, #tpu.memory_space<vmem>>, vector<8x342xbf16>,
    %59 = arith.truncf %56 : vector<8x288xf32> to vector<8x288xbf16>
    %c0_45 = arith.constant 0 : index
    %c19_46 = arith.constant 19 : index
    %60 = vector.load %arg7[%c0_45, %c19_46] : memref<8x342xbf16, #tpu.memory_space<vmem>>, vector<8x288xbf16>
    tpu.vector_store %arg7[%c0_45, %c19_46], %59 {strides = array<i32>} : memref<8x342xbf16, #tpu.memory_space<vmem>>, vector<8x288xbf16>,
    %c0_47 = arith.constant 0 : index
    %c0_48 = arith.constant 0 : index
    %61 = vector.load %arg7[%c0_47, %c0_48] : memref<8x342xbf16, #tpu.memory_space<vmem>>, vector<8x288xbf16>
    %c0_49 = arith.constant 0 : index
    %c0_50 = arith.constant 0 : index
    %62 = vector.load %arg8[%c0_49, %c0_50] : memref<72x288xbf16, #tpu.memory_space<vmem>>, vector<8x288xbf16>
    tpu.vector_store %arg8[%c0_49, %c0_50], %61 {strides = array<i32>} : memref<72x288xbf16, #tpu.memory_space<vmem>>, vector<8x288xbf16>,
    %c0_51 = arith.constant 0 : index
    %c1_52 = arith.constant 1 : index
    %63 = vector.load %arg7[%c0_51, %c1_52] : memref<8x342xbf16, #tpu.memory_space<vmem>>, vector<8x288xbf16>
    %c8_53 = arith.constant 8 : index
    %c0_54 = arith.constant 0 : index
    %64 = vector.load %arg8[%c8_53, %c0_54] : memref<72x288xbf16, #tpu.memory_space<vmem>>, vector<8x288xbf16>
    tpu.vector_store %arg8[%c8_53, %c0_54], %63 {strides = array<i32>} : memref<72x288xbf16, #tpu.memory_space<vmem>>, vector<8x288xbf16>,
    %c0_55 = arith.constant 0 : index
    %c2_56 = arith.constant 2 : index
    %65 = vector.load %arg7[%c0_55, %c2_56] : memref<8x342xbf16, #tpu.memory_space<vmem>>, vector<8x288xbf16>
    %c16_57 = arith.constant 16 : index
    %c0_58 = arith.constant 0 : index
    %66 = vector.load %arg8[%c16_57, %c0_58] : memref<72x288xbf16, #tpu.memory_space<vmem>>, vector<8x288xbf16>
    tpu.vector_store %arg8[%c16_57, %c0_58], %65 {strides = array<i32>} : memref<72x288xbf16, #tpu.memory_space<vmem>>, vector<8x288xbf16>,
    %c0_59 = arith.constant 0 : index
    %c18_60 = arith.constant 18 : index
    %67 = vector.load %arg7[%c0_59, %c18_60] : memref<8x342xbf16, #tpu.memory_space<vmem>>, vector<8x288xbf16>
    %c24_61 = arith.constant 24 : index
    %c0_62 = arith.constant 0 : index
    %68 = vector.load %arg8[%c24_61, %c0_62] : memref<72x288xbf16, #tpu.memory_space<vmem>>, vector<8x288xbf16>
    tpu.vector_store %arg8[%c24_61, %c0_62], %67 {strides = array<i32>} : memref<72x288xbf16, #tpu.memory_space<vmem>>, vector<8x288xbf16>,
    %c0_63 = arith.constant 0 : index
    %c19_64 = arith.constant 19 : index
    %69 = vector.load %arg7[%c0_63, %c19_64] : memref<8x342xbf16, #tpu.memory_space<vmem>>, vector<8x288xbf16>
    %c32_65 = arith.constant 32 : index
    %c0_66 = arith.constant 0 : index
    %70 = vector.load %arg8[%c32_65, %c0_66] : memref<72x288xbf16, #tpu.memory_space<vmem>>, vector<8x288xbf16>
    tpu.vector_store %arg8[%c32_65, %c0_66], %69 {strides = array<i32>} : memref<72x288xbf16, #tpu.memory_space<vmem>>, vector<8x288xbf16>,
    %c0_67 = arith.constant 0 : index
    %c20_68 = arith.constant 20 : index
    %71 = vector.load %arg7[%c0_67, %c20_68] : memref<8x342xbf16, #tpu.memory_space<vmem>>, vector<8x288xbf16>
    %c40 = arith.constant 40 : index
    %c0_69 = arith.constant 0 : index
    %72 = vector.load %arg8[%c40, %c0_69] : memref<72x288xbf16, #tpu.memory_space<vmem>>, vector<8x288xbf16>
    tpu.vector_store %arg8[%c40, %c0_69], %71 {strides = array<i32>} : memref<72x288xbf16, #tpu.memory_space<vmem>>, vector<8x288xbf16>,
    %c0_70 = arith.constant 0 : index
    %c36_71 = arith.constant 36 : index
    %73 = vector.load %arg7[%c0_70, %c36_71] : memref<8x342xbf16, #tpu.memory_space<vmem>>, vector<8x288xbf16>
    %c48 = arith.constant 48 : index
    %c0_72 = arith.constant 0 : index
    %74 = vector.load %arg8[%c48, %c0_72] : memref<72x288xbf16, #tpu.memory_space<vmem>>, vector<8x288xbf16>
    tpu.vector_store %arg8[%c48, %c0_72], %73 {strides = array<i32>} : memref<72x288xbf16, #tpu.memory_space<vmem>>, vector<8x288xbf16>,
    %c0_73 = arith.constant 0 : index
    %c37_74 = arith.constant 37 : index
    %75 = vector.load %arg7[%c0_73, %c37_74] : memref<8x342xbf16, #tpu.memory_space<vmem>>, vector<8x288xbf16>
    %c56 = arith.constant 56 : index
    %c0_75 = arith.constant 0 : index
    %76 = vector.load %arg8[%c56, %c0_75] : memref<72x288xbf16, #tpu.memory_space<vmem>>, vector<8x288xbf16>
    tpu.vector_store %arg8[%c56, %c0_75], %75 {strides = array<i32>} : memref<72x288xbf16, #tpu.memory_space<vmem>>, vector<8x288xbf16>,
    %c0_76 = arith.constant 0 : index
    %c38_77 = arith.constant 38 : index
    %77 = vector.load %arg7[%c0_76, %c38_77] : memref<8x342xbf16, #tpu.memory_space<vmem>>, vector<8x288xbf16>
    %c64 = arith.constant 64 : index
    %c0_78 = arith.constant 0 : index
    %78 = vector.load %arg8[%c64, %c0_78] : memref<72x288xbf16, #tpu.memory_space<vmem>>, vector<8x288xbf16>
    tpu.vector_store %arg8[%c64, %c0_78], %77 {strides = array<i32>} : memref<72x288xbf16, #tpu.memory_space<vmem>>, vector<8x288xbf16>,
    %c0_79 = arith.constant 0 : index
    %c0_80 = arith.constant 0 : index
    %79 = vector.load %arg3[%c0_79, %c0_80] : memref<8x72xbf16, #tpu.memory_space<vmem>>, vector<8x72xbf16>
    %c0_81 = arith.constant 0 : index
    %c0_82 = arith.constant 0 : index
    %80 = vector.load %arg8[%c0_81, %c0_82] : memref<72x288xbf16, #tpu.memory_space<vmem>>, vector<72x288xbf16>
    %cst_83 = arith.constant dense<0.000000e+00> : vector<8x288xf32>
    %81 = tpu.matmul %79, %80, %cst_83 {dimension_numbers = #tpu.dot_dimension_numbers<[1], [0], [0], [1], [0, 0, 1, 1], [], []>} : vector<8x72xbf16>, vector<72x288xbf16>, vector<8x288xf32> -> vector<8x288xf32>
    %82 = vector.broadcast %0 : vector<1x288xf32> to vector<8x288xf32>
    %83 = arith.mulf %81, %82 : vector<8x288xf32>
    %cst_84 = arith.constant dense<0.000000e+00> : vector<8xf32>
    %84 = vector.multi_reduction <add>, %83, %cst_84 [1] : vector<8x288xf32> to vector<8xf32>
    %85 = vector.shape_cast %84 : vector<8xf32> to vector<8x1xf32>
    %cst_85 = arith.constant 3.906250e-03 : f32
    %86 = vector.broadcast %cst_85 : f32 to vector<8x1xf32>
    %87 = arith.mulf %85, %86 : vector<8x1xf32>
    %88 = arith.mulf %83, %83 : vector<8x288xf32>
    %cst_86 = arith.constant dense<0.000000e+00> : vector<8xf32>
    %89 = vector.multi_reduction <add>, %88, %cst_86 [1] : vector<8x288xf32> to vector<8xf32>
    %90 = vector.shape_cast %89 : vector<8xf32> to vector<8x1xf32>
    %cst_87 = arith.constant 3.906250e-03 : f32
    %91 = vector.broadcast %cst_87 : f32 to vector<8x1xf32>
    %92 = arith.mulf %90, %91 : vector<8x1xf32>
    %93 = arith.mulf %87, %87 : vector<8x1xf32>
    %94 = arith.subf %92, %93 : vector<8x1xf32>
    %cst_88 = arith.constant 0.000000e+00 : f32
    %95 = vector.broadcast %cst_88 : f32 to vector<8x1xf32>
    %96 = arith.maximumf %94, %95 : vector<8x1xf32>
    %97 = vector.broadcast %87 : vector<8x1xf32> to vector<8x288xf32>
    %98 = arith.subf %83, %97 : vector<8x288xf32>
    %cst_89 = arith.constant 9.99999974E-6 : f32
    %99 = vector.broadcast %cst_89 : f32 to vector<8x1xf32>
    %100 = arith.addf %96, %99 : vector<8x1xf32>
    %101 = math.rsqrt %100 : vector<8x1xf32>
    %102 = vector.broadcast %101 : vector<8x1xf32> to vector<8x288xf32>
    %103 = arith.mulf %98, %102 : vector<8x288xf32>
    %cst_90 = arith.constant 0.000000e+00 : f32
    %104 = vector.broadcast %cst_90 : f32 to vector<8x288xf32>
    %105 = arith.maximumf %103, %104 : vector<8x288xf32>
    %106 = vector.broadcast %0 : vector<1x288xf32> to vector<8x288xf32>
    %107 = arith.mulf %105, %106 : vector<8x288xf32>
    %cst_91 = arith.constant 0.000000e+00 : bf16
    %108 = vector.broadcast %cst_91 : bf16 to vector<1x8x342xbf16>
    %c0_92 = arith.constant 0 : index
    %c0_93 = arith.constant 0 : index
    %c0_94 = arith.constant 0 : index
    %109 = vector.load %arg5[%c0_92, %c0_93, %c0_94] : memref<1x8x342xbf16, #tpu.memory_space<vmem>>, vector<1x8x342xbf16>
    tpu.vector_store %arg5[%c0_92, %c0_93, %c0_94], %108 {strides = array<i32>} : memref<1x8x342xbf16, #tpu.memory_space<vmem>>, vector<1x8x342xbf16>,
    %110 = arith.truncf %107 : vector<8x288xf32> to vector<8x288xbf16>
    %c0_95 = arith.constant 0 : index
    %c0_96 = arith.constant 0 : index
    %c19_97 = arith.constant 19 : index
    %111 = vector.load %arg5[%c0_95, %c0_96, %c19_97] : memref<1x8x342xbf16, #tpu.memory_space<vmem>>, vector<1x8x288xbf16>
    %112 = vector.shape_cast %111 : vector<1x8x288xbf16> to vector<8x288xbf16>
    %113 = vector.shape_cast %110 : vector<8x288xbf16> to vector<1x8x288xbf16>
    tpu.vector_store %arg5[%c0_95, %c0_96, %c19_97], %113 {strides = array<i32>} : memref<1x8x342xbf16, #tpu.memory_space<vmem>>, vector<1x8x288xbf16>,
    return
  }
  func.func @transform_0(%arg0: i32) -> (i32, i32, i32) {
    %c0_i32 = arith.constant 0 : i32
    %c0_i32_0 = arith.constant 0 : i32
    %c0_i32_1 = arith.constant 0 : i32
    return %arg0, %c0_i32, %c0_i32_0 : i32, i32, i32
  }
  func.func @transform_1(%arg0: i32) -> (i32, i32) {
    %c0_i32 = arith.constant 0 : i32
    %c0_i32_0 = arith.constant 0 : i32
    %c0_i32_1 = arith.constant 0 : i32
    return %c0_i32, %c0_i32_0 : i32, i32
  }
  func.func @transform_2(%arg0: i32) -> (i32, i32) {
    %c0_i32 = arith.constant 0 : i32
    %c0_i32_0 = arith.constant 0 : i32
    %c0_i32_1 = arith.constant 0 : i32
    return %c0_i32, %c0_i32_0 : i32, i32
  }
  func.func @transform_3(%arg0: i32) -> (i32, i32) {
    %c0_i32 = arith.constant 0 : i32
    %c0_i32_0 = arith.constant 0 : i32
    %c0_i32_1 = arith.constant 0 : i32
    return %c0_i32, %c0_i32_0 : i32, i32
  }
  func.func @transform_4(%arg0: i32) -> (i32, i32, i32) {
    %c0_i32 = arith.constant 0 : i32
    %c0_i32_0 = arith.constant 0 : i32
    %c0_i32_1 = arith.constant 0 : i32
    return %arg0, %c0_i32, %c0_i32_0 : i32, i32, i32
  }
}

module attributes {stable_mosaic.version = 11 : i64} {
  func.func @_conv_block_kernel(%arg0: i32, %arg1: memref<1x8x342xbf16, #tpu.memory_space<vmem>>, %arg2: memref<4x342x110xbf16, #tpu.memory_space<vmem>>, %arg3: memref<16x72xbf16, #tpu.memory_space<vmem>>, %arg4: memref<16x144xbf16, #tpu.memory_space<vmem>>, %arg5: memref<1x80xf32, #tpu.memory_space<vmem>>, %arg6: memref<1x16x110xbf16, #tpu.memory_space<vmem>>, %arg7: memref<72x80xbf16, #tpu.memory_space<vmem>>, %arg8: memref<16x110xbf16, #tpu.memory_space<vmem>>, %arg9: memref<144x80xbf16, #tpu.memory_space<vmem>>) attributes {dimension_semantics = [#tpu.dimension_semantics<parallel>], iteration_bounds = array<i64: 2>, scalar_prefetch = 0 : i64, scratch_operands = 3 : i64, tpu.core_type = #tpu.core_type<tc>, window_params = [{transform_indices = @transform_0, window_bounds = array<i64: 1, 8, 342>}, {pipeline_mode = #tpu.pipeline_mode<synchronous>, transform_indices = @transform_1, window_bounds = array<i64: 4, 342, 110>}, {pipeline_mode = #tpu.pipeline_mode<synchronous>, transform_indices = @transform_2, window_bounds = array<i64: 16, 72>}, {pipeline_mode = #tpu.pipeline_mode<synchronous>, transform_indices = @transform_3, window_bounds = array<i64: 16, 144>}, {pipeline_mode = #tpu.pipeline_mode<synchronous>, transform_indices = @transform_4, window_bounds = array<i64: 1, 80>}, {transform_indices = @transform_5, window_bounds = array<i64: 1, 16, 110>}]} {
    %c0 = arith.constant 0 : index
    %c0_0 = arith.constant 0 : index
    %0 = vector.load %arg5[%c0, %c0_0] : memref<1x80xf32, #tpu.memory_space<vmem>>, vector<1x80xf32>
    %c0_1 = arith.constant 0 : index
    %c0_2 = arith.constant 0 : index
    %c0_3 = arith.constant 0 : index
    %1 = vector.load %arg1[%c0_1, %c0_2, %c0_3] : memref<1x8x342xbf16, #tpu.memory_space<vmem>>, vector<1x8x342xbf16>
    %2 = vector.shape_cast %1 : vector<1x8x342xbf16> to vector<8x342xbf16>
    %c0_4 = arith.constant 0 : index
    %c0_5 = arith.constant 0 : index
    %c0_6 = arith.constant 0 : index
    %3 = vector.load %arg2[%c0_4, %c0_5, %c0_6] : memref<4x342x110xbf16, #tpu.memory_space<vmem>>, vector<1x342x110xbf16>
    %4 = vector.shape_cast %3 : vector<1x342x110xbf16> to vector<342x110xbf16>
    %cst = arith.constant dense<0.000000e+00> : vector<8x110xf32>
    %5 = tpu.matmul %2, %4, %cst {dimension_numbers = #tpu.dot_dimension_numbers<[1], [0], [0], [1], [0, 0, 1, 1], [], []>} : vector<8x342xbf16>, vector<342x110xbf16>, vector<8x110xf32> -> vector<8x110xf32>
    %c1 = arith.constant 1 : index
    %c0_7 = arith.constant 0 : index
    %c0_8 = arith.constant 0 : index
    %6 = vector.load %arg2[%c1, %c0_7, %c0_8] : memref<4x342x110xbf16, #tpu.memory_space<vmem>>, vector<1x342x110xbf16>
    %7 = vector.shape_cast %6 : vector<1x342x110xbf16> to vector<342x110xbf16>
    %cst_9 = arith.constant dense<0.000000e+00> : vector<8x110xf32>
    %8 = tpu.matmul %2, %7, %cst_9 {dimension_numbers = #tpu.dot_dimension_numbers<[1], [0], [0], [1], [0, 0, 1, 1], [], []>} : vector<8x342xbf16>, vector<342x110xbf16>, vector<8x110xf32> -> vector<8x110xf32>
    %9 = arith.maximumf %5, %8 : vector<8x110xf32>
    %c2 = arith.constant 2 : index
    %c0_10 = arith.constant 0 : index
    %c0_11 = arith.constant 0 : index
    %10 = vector.load %arg2[%c2, %c0_10, %c0_11] : memref<4x342x110xbf16, #tpu.memory_space<vmem>>, vector<1x342x110xbf16>
    %11 = vector.shape_cast %10 : vector<1x342x110xbf16> to vector<342x110xbf16>
    %cst_12 = arith.constant dense<0.000000e+00> : vector<8x110xf32>
    %12 = tpu.matmul %2, %11, %cst_12 {dimension_numbers = #tpu.dot_dimension_numbers<[1], [0], [0], [1], [0, 0, 1, 1], [], []>} : vector<8x342xbf16>, vector<342x110xbf16>, vector<8x110xf32> -> vector<8x110xf32>
    %13 = arith.maximumf %9, %12 : vector<8x110xf32>
    %c3 = arith.constant 3 : index
    %c0_13 = arith.constant 0 : index
    %c0_14 = arith.constant 0 : index
    %14 = vector.load %arg2[%c3, %c0_13, %c0_14] : memref<4x342x110xbf16, #tpu.memory_space<vmem>>, vector<1x342x110xbf16>
    %15 = vector.shape_cast %14 : vector<1x342x110xbf16> to vector<342x110xbf16>
    %cst_15 = arith.constant dense<0.000000e+00> : vector<8x110xf32>
    %16 = tpu.matmul %2, %15, %cst_15 {dimension_numbers = #tpu.dot_dimension_numbers<[1], [0], [0], [1], [0, 0, 1, 1], [], []>} : vector<8x342xbf16>, vector<342x110xbf16>, vector<8x110xf32> -> vector<8x110xf32>
    %17 = arith.maximumf %13, %16 : vector<8x110xf32>
    %18 = arith.truncf %17 : vector<8x110xf32> to vector<8x110xbf16>
    %19 = vector.extract_strided_slice %18 {offsets = [0, 0], sizes = [8, 80], strides = [1, 1]} : vector<8x110xbf16> to vector<8x80xbf16>
    %c0_16 = arith.constant 0 : index
    %c0_17 = arith.constant 0 : index
    %20 = vector.load %arg7[%c0_16, %c0_17] : memref<72x80xbf16, #tpu.memory_space<vmem>>, vector<8x80xbf16>
    tpu.vector_store %arg7[%c0_16, %c0_17], %19 {strides = array<i32>} : memref<72x80xbf16, #tpu.memory_space<vmem>>, vector<8x80xbf16>,
    %21 = vector.extract_strided_slice %18 {offsets = [0, 1], sizes = [8, 80], strides = [1, 1]} : vector<8x110xbf16> to vector<8x80xbf16>
    %c8 = arith.constant 8 : index
    %c0_18 = arith.constant 0 : index
    %22 = vector.load %arg7[%c8, %c0_18] : memref<72x80xbf16, #tpu.memory_space<vmem>>, vector<8x80xbf16>
    tpu.vector_store %arg7[%c8, %c0_18], %21 {strides = array<i32>} : memref<72x80xbf16, #tpu.memory_space<vmem>>, vector<8x80xbf16>,
    %23 = vector.extract_strided_slice %18 {offsets = [0, 2], sizes = [8, 80], strides = [1, 1]} : vector<8x110xbf16> to vector<8x80xbf16>
    %c16 = arith.constant 16 : index
    %c0_19 = arith.constant 0 : index
    %24 = vector.load %arg7[%c16, %c0_19] : memref<72x80xbf16, #tpu.memory_space<vmem>>, vector<8x80xbf16>
    tpu.vector_store %arg7[%c16, %c0_19], %23 {strides = array<i32>} : memref<72x80xbf16, #tpu.memory_space<vmem>>, vector<8x80xbf16>,
    %25 = vector.extract_strided_slice %18 {offsets = [0, 10], sizes = [8, 80], strides = [1, 1]} : vector<8x110xbf16> to vector<8x80xbf16>
    %c24 = arith.constant 24 : index
    %c0_20 = arith.constant 0 : index
    %26 = vector.load %arg7[%c24, %c0_20] : memref<72x80xbf16, #tpu.memory_space<vmem>>, vector<8x80xbf16>
    tpu.vector_store %arg7[%c24, %c0_20], %25 {strides = array<i32>} : memref<72x80xbf16, #tpu.memory_space<vmem>>, vector<8x80xbf16>,
    %27 = vector.extract_strided_slice %18 {offsets = [0, 11], sizes = [8, 80], strides = [1, 1]} : vector<8x110xbf16> to vector<8x80xbf16>
    %c32 = arith.constant 32 : index
    %c0_21 = arith.constant 0 : index
    %28 = vector.load %arg7[%c32, %c0_21] : memref<72x80xbf16, #tpu.memory_space<vmem>>, vector<8x80xbf16>
    tpu.vector_store %arg7[%c32, %c0_21], %27 {strides = array<i32>} : memref<72x80xbf16, #tpu.memory_space<vmem>>, vector<8x80xbf16>,
    %29 = vector.extract_strided_slice %18 {offsets = [0, 12], sizes = [8, 80], strides = [1, 1]} : vector<8x110xbf16> to vector<8x80xbf16>
    %c40 = arith.constant 40 : index
    %c0_22 = arith.constant 0 : index
    %30 = vector.load %arg7[%c40, %c0_22] : memref<72x80xbf16, #tpu.memory_space<vmem>>, vector<8x80xbf16>
    tpu.vector_store %arg7[%c40, %c0_22], %29 {strides = array<i32>} : memref<72x80xbf16, #tpu.memory_space<vmem>>, vector<8x80xbf16>,
    %31 = vector.extract_strided_slice %18 {offsets = [0, 20], sizes = [8, 80], strides = [1, 1]} : vector<8x110xbf16> to vector<8x80xbf16>
    %c48 = arith.constant 48 : index
    %c0_23 = arith.constant 0 : index
    %32 = vector.load %arg7[%c48, %c0_23] : memref<72x80xbf16, #tpu.memory_space<vmem>>, vector<8x80xbf16>
    tpu.vector_store %arg7[%c48, %c0_23], %31 {strides = array<i32>} : memref<72x80xbf16, #tpu.memory_space<vmem>>, vector<8x80xbf16>,
    %33 = vector.extract_strided_slice %18 {offsets = [0, 21], sizes = [8, 80], strides = [1, 1]} : vector<8x110xbf16> to vector<8x80xbf16>
    %c56 = arith.constant 56 : index
    %c0_24 = arith.constant 0 : index
    %34 = vector.load %arg7[%c56, %c0_24] : memref<72x80xbf16, #tpu.memory_space<vmem>>, vector<8x80xbf16>
    tpu.vector_store %arg7[%c56, %c0_24], %33 {strides = array<i32>} : memref<72x80xbf16, #tpu.memory_space<vmem>>, vector<8x80xbf16>,
    %35 = vector.extract_strided_slice %18 {offsets = [0, 22], sizes = [8, 80], strides = [1, 1]} : vector<8x110xbf16> to vector<8x80xbf16>
    %c64 = arith.constant 64 : index
    %c0_25 = arith.constant 0 : index
    %36 = vector.load %arg7[%c64, %c0_25] : memref<72x80xbf16, #tpu.memory_space<vmem>>, vector<8x80xbf16>
    tpu.vector_store %arg7[%c64, %c0_25], %35 {strides = array<i32>} : memref<72x80xbf16, #tpu.memory_space<vmem>>, vector<8x80xbf16>,
    %c0_26 = arith.constant 0 : index
    %c0_27 = arith.constant 0 : index
    %37 = vector.load %arg3[%c0_26, %c0_27] : memref<16x72xbf16, #tpu.memory_space<vmem>>, vector<16x72xbf16>
    %c0_28 = arith.constant 0 : index
    %c0_29 = arith.constant 0 : index
    %38 = vector.load %arg7[%c0_28, %c0_29] : memref<72x80xbf16, #tpu.memory_space<vmem>>, vector<72x80xbf16>
    %cst_30 = arith.constant dense<0.000000e+00> : vector<16x80xf32>
    %39 = tpu.matmul %37, %38, %cst_30 {dimension_numbers = #tpu.dot_dimension_numbers<[1], [0], [0], [1], [0, 0, 1, 1], [], []>} : vector<16x72xbf16>, vector<72x80xbf16>, vector<16x80xf32> -> vector<16x80xf32>
    %40 = vector.broadcast %0 : vector<1x80xf32> to vector<16x80xf32>
    %41 = arith.mulf %39, %40 : vector<16x80xf32>
    %cst_31 = arith.constant dense<0.000000e+00> : vector<16xf32>
    %42 = vector.multi_reduction <add>, %41, %cst_31 [1] : vector<16x80xf32> to vector<16xf32>
    %43 = vector.shape_cast %42 : vector<16xf32> to vector<16x1xf32>
    %cst_32 = arith.constant 1.562500e-02 : f32
    %44 = vector.broadcast %cst_32 : f32 to vector<16x1xf32>
    %45 = arith.mulf %43, %44 : vector<16x1xf32>
    %46 = arith.mulf %41, %41 : vector<16x80xf32>
    %cst_33 = arith.constant dense<0.000000e+00> : vector<16xf32>
    %47 = vector.multi_reduction <add>, %46, %cst_33 [1] : vector<16x80xf32> to vector<16xf32>
    %48 = vector.shape_cast %47 : vector<16xf32> to vector<16x1xf32>
    %cst_34 = arith.constant 1.562500e-02 : f32
    %49 = vector.broadcast %cst_34 : f32 to vector<16x1xf32>
    %50 = arith.mulf %48, %49 : vector<16x1xf32>
    %51 = arith.mulf %45, %45 : vector<16x1xf32>
    %52 = arith.subf %50, %51 : vector<16x1xf32>
    %cst_35 = arith.constant 0.000000e+00 : f32
    %53 = vector.broadcast %cst_35 : f32 to vector<16x1xf32>
    %54 = arith.maximumf %52, %53 : vector<16x1xf32>
    %55 = vector.broadcast %45 : vector<16x1xf32> to vector<16x80xf32>
    %56 = arith.subf %41, %55 : vector<16x80xf32>
    %cst_36 = arith.constant 9.99999974E-6 : f32
    %57 = vector.broadcast %cst_36 : f32 to vector<16x1xf32>
    %58 = arith.addf %54, %57 : vector<16x1xf32>
    %59 = math.rsqrt %58 : vector<16x1xf32>
    %60 = vector.broadcast %59 : vector<16x1xf32> to vector<16x80xf32>
    %61 = arith.mulf %56, %60 : vector<16x80xf32>
    %cst_37 = arith.constant 0.000000e+00 : f32
    %62 = vector.broadcast %cst_37 : f32 to vector<16x80xf32>
    %63 = arith.maximumf %61, %62 : vector<16x80xf32>
    %64 = vector.broadcast %0 : vector<1x80xf32> to vector<16x80xf32>
    %65 = arith.mulf %63, %64 : vector<16x80xf32>
    %cst_38 = arith.constant 0.000000e+00 : bf16
    %66 = vector.broadcast %cst_38 : bf16 to vector<16x110xbf16>
    %c0_39 = arith.constant 0 : index
    %c0_40 = arith.constant 0 : index
    %67 = vector.load %arg8[%c0_39, %c0_40] : memref<16x110xbf16, #tpu.memory_space<vmem>>, vector<16x110xbf16>
    tpu.vector_store %arg8[%c0_39, %c0_40], %66 {strides = array<i32>} : memref<16x110xbf16, #tpu.memory_space<vmem>>, vector<16x110xbf16>,
    %68 = arith.truncf %65 : vector<16x80xf32> to vector<16x80xbf16>
    %c0_41 = arith.constant 0 : index
    %c11 = arith.constant 11 : index
    %69 = vector.load %arg8[%c0_41, %c11] : memref<16x110xbf16, #tpu.memory_space<vmem>>, vector<16x80xbf16>
    tpu.vector_store %arg8[%c0_41, %c11], %68 {strides = array<i32>} : memref<16x110xbf16, #tpu.memory_space<vmem>>, vector<16x80xbf16>,
    %c0_42 = arith.constant 0 : index
    %c0_43 = arith.constant 0 : index
    %70 = vector.load %arg8[%c0_42, %c0_43] : memref<16x110xbf16, #tpu.memory_space<vmem>>, vector<16x80xbf16>
    %c0_44 = arith.constant 0 : index
    %c0_45 = arith.constant 0 : index
    %71 = vector.load %arg9[%c0_44, %c0_45] : memref<144x80xbf16, #tpu.memory_space<vmem>>, vector<16x80xbf16>
    tpu.vector_store %arg9[%c0_44, %c0_45], %70 {strides = array<i32>} : memref<144x80xbf16, #tpu.memory_space<vmem>>, vector<16x80xbf16>,
    %c0_46 = arith.constant 0 : index
    %c1_47 = arith.constant 1 : index
    %72 = vector.load %arg8[%c0_46, %c1_47] : memref<16x110xbf16, #tpu.memory_space<vmem>>, vector<16x80xbf16>
    %c16_48 = arith.constant 16 : index
    %c0_49 = arith.constant 0 : index
    %73 = vector.load %arg9[%c16_48, %c0_49] : memref<144x80xbf16, #tpu.memory_space<vmem>>, vector<16x80xbf16>
    tpu.vector_store %arg9[%c16_48, %c0_49], %72 {strides = array<i32>} : memref<144x80xbf16, #tpu.memory_space<vmem>>, vector<16x80xbf16>,
    %c0_50 = arith.constant 0 : index
    %c2_51 = arith.constant 2 : index
    %74 = vector.load %arg8[%c0_50, %c2_51] : memref<16x110xbf16, #tpu.memory_space<vmem>>, vector<16x80xbf16>
    %c32_52 = arith.constant 32 : index
    %c0_53 = arith.constant 0 : index
    %75 = vector.load %arg9[%c32_52, %c0_53] : memref<144x80xbf16, #tpu.memory_space<vmem>>, vector<16x80xbf16>
    tpu.vector_store %arg9[%c32_52, %c0_53], %74 {strides = array<i32>} : memref<144x80xbf16, #tpu.memory_space<vmem>>, vector<16x80xbf16>,
    %c0_54 = arith.constant 0 : index
    %c10 = arith.constant 10 : index
    %76 = vector.load %arg8[%c0_54, %c10] : memref<16x110xbf16, #tpu.memory_space<vmem>>, vector<16x80xbf16>
    %c48_55 = arith.constant 48 : index
    %c0_56 = arith.constant 0 : index
    %77 = vector.load %arg9[%c48_55, %c0_56] : memref<144x80xbf16, #tpu.memory_space<vmem>>, vector<16x80xbf16>
    tpu.vector_store %arg9[%c48_55, %c0_56], %76 {strides = array<i32>} : memref<144x80xbf16, #tpu.memory_space<vmem>>, vector<16x80xbf16>,
    %c0_57 = arith.constant 0 : index
    %c11_58 = arith.constant 11 : index
    %78 = vector.load %arg8[%c0_57, %c11_58] : memref<16x110xbf16, #tpu.memory_space<vmem>>, vector<16x80xbf16>
    %c64_59 = arith.constant 64 : index
    %c0_60 = arith.constant 0 : index
    %79 = vector.load %arg9[%c64_59, %c0_60] : memref<144x80xbf16, #tpu.memory_space<vmem>>, vector<16x80xbf16>
    tpu.vector_store %arg9[%c64_59, %c0_60], %78 {strides = array<i32>} : memref<144x80xbf16, #tpu.memory_space<vmem>>, vector<16x80xbf16>,
    %c0_61 = arith.constant 0 : index
    %c12 = arith.constant 12 : index
    %80 = vector.load %arg8[%c0_61, %c12] : memref<16x110xbf16, #tpu.memory_space<vmem>>, vector<16x80xbf16>
    %c80 = arith.constant 80 : index
    %c0_62 = arith.constant 0 : index
    %81 = vector.load %arg9[%c80, %c0_62] : memref<144x80xbf16, #tpu.memory_space<vmem>>, vector<16x80xbf16>
    tpu.vector_store %arg9[%c80, %c0_62], %80 {strides = array<i32>} : memref<144x80xbf16, #tpu.memory_space<vmem>>, vector<16x80xbf16>,
    %c0_63 = arith.constant 0 : index
    %c20 = arith.constant 20 : index
    %82 = vector.load %arg8[%c0_63, %c20] : memref<16x110xbf16, #tpu.memory_space<vmem>>, vector<16x80xbf16>
    %c96 = arith.constant 96 : index
    %c0_64 = arith.constant 0 : index
    %83 = vector.load %arg9[%c96, %c0_64] : memref<144x80xbf16, #tpu.memory_space<vmem>>, vector<16x80xbf16>
    tpu.vector_store %arg9[%c96, %c0_64], %82 {strides = array<i32>} : memref<144x80xbf16, #tpu.memory_space<vmem>>, vector<16x80xbf16>,
    %c0_65 = arith.constant 0 : index
    %c21 = arith.constant 21 : index
    %84 = vector.load %arg8[%c0_65, %c21] : memref<16x110xbf16, #tpu.memory_space<vmem>>, vector<16x80xbf16>
    %c112 = arith.constant 112 : index
    %c0_66 = arith.constant 0 : index
    %85 = vector.load %arg9[%c112, %c0_66] : memref<144x80xbf16, #tpu.memory_space<vmem>>, vector<16x80xbf16>
    tpu.vector_store %arg9[%c112, %c0_66], %84 {strides = array<i32>} : memref<144x80xbf16, #tpu.memory_space<vmem>>, vector<16x80xbf16>,
    %c0_67 = arith.constant 0 : index
    %c22 = arith.constant 22 : index
    %86 = vector.load %arg8[%c0_67, %c22] : memref<16x110xbf16, #tpu.memory_space<vmem>>, vector<16x80xbf16>
    %c128 = arith.constant 128 : index
    %c0_68 = arith.constant 0 : index
    %87 = vector.load %arg9[%c128, %c0_68] : memref<144x80xbf16, #tpu.memory_space<vmem>>, vector<16x80xbf16>
    tpu.vector_store %arg9[%c128, %c0_68], %86 {strides = array<i32>} : memref<144x80xbf16, #tpu.memory_space<vmem>>, vector<16x80xbf16>,
    %c0_69 = arith.constant 0 : index
    %c0_70 = arith.constant 0 : index
    %88 = vector.load %arg4[%c0_69, %c0_70] : memref<16x144xbf16, #tpu.memory_space<vmem>>, vector<16x144xbf16>
    %c0_71 = arith.constant 0 : index
    %c0_72 = arith.constant 0 : index
    %89 = vector.load %arg9[%c0_71, %c0_72] : memref<144x80xbf16, #tpu.memory_space<vmem>>, vector<144x80xbf16>
    %cst_73 = arith.constant dense<0.000000e+00> : vector<16x80xf32>
    %90 = tpu.matmul %88, %89, %cst_73 {dimension_numbers = #tpu.dot_dimension_numbers<[1], [0], [0], [1], [0, 0, 1, 1], [], []>} : vector<16x144xbf16>, vector<144x80xbf16>, vector<16x80xf32> -> vector<16x80xf32>
    %91 = vector.broadcast %0 : vector<1x80xf32> to vector<16x80xf32>
    %92 = arith.mulf %90, %91 : vector<16x80xf32>
    %cst_74 = arith.constant dense<0.000000e+00> : vector<16xf32>
    %93 = vector.multi_reduction <add>, %92, %cst_74 [1] : vector<16x80xf32> to vector<16xf32>
    %94 = vector.shape_cast %93 : vector<16xf32> to vector<16x1xf32>
    %cst_75 = arith.constant 1.562500e-02 : f32
    %95 = vector.broadcast %cst_75 : f32 to vector<16x1xf32>
    %96 = arith.mulf %94, %95 : vector<16x1xf32>
    %97 = arith.mulf %92, %92 : vector<16x80xf32>
    %cst_76 = arith.constant dense<0.000000e+00> : vector<16xf32>
    %98 = vector.multi_reduction <add>, %97, %cst_76 [1] : vector<16x80xf32> to vector<16xf32>
    %99 = vector.shape_cast %98 : vector<16xf32> to vector<16x1xf32>
    %cst_77 = arith.constant 1.562500e-02 : f32
    %100 = vector.broadcast %cst_77 : f32 to vector<16x1xf32>
    %101 = arith.mulf %99, %100 : vector<16x1xf32>
    %102 = arith.mulf %96, %96 : vector<16x1xf32>
    %103 = arith.subf %101, %102 : vector<16x1xf32>
    %cst_78 = arith.constant 0.000000e+00 : f32
    %104 = vector.broadcast %cst_78 : f32 to vector<16x1xf32>
    %105 = arith.maximumf %103, %104 : vector<16x1xf32>
    %106 = vector.broadcast %96 : vector<16x1xf32> to vector<16x80xf32>
    %107 = arith.subf %92, %106 : vector<16x80xf32>
    %cst_79 = arith.constant 9.99999974E-6 : f32
    %108 = vector.broadcast %cst_79 : f32 to vector<16x1xf32>
    %109 = arith.addf %105, %108 : vector<16x1xf32>
    %110 = math.rsqrt %109 : vector<16x1xf32>
    %111 = vector.broadcast %110 : vector<16x1xf32> to vector<16x80xf32>
    %112 = arith.mulf %107, %111 : vector<16x80xf32>
    %cst_80 = arith.constant 0.000000e+00 : f32
    %113 = vector.broadcast %cst_80 : f32 to vector<16x80xf32>
    %114 = arith.maximumf %112, %113 : vector<16x80xf32>
    %115 = vector.broadcast %0 : vector<1x80xf32> to vector<16x80xf32>
    %116 = arith.mulf %114, %115 : vector<16x80xf32>
    %cst_81 = arith.constant 0.000000e+00 : bf16
    %117 = vector.broadcast %cst_81 : bf16 to vector<1x16x110xbf16>
    %c0_82 = arith.constant 0 : index
    %c0_83 = arith.constant 0 : index
    %c0_84 = arith.constant 0 : index
    %118 = vector.load %arg6[%c0_82, %c0_83, %c0_84] : memref<1x16x110xbf16, #tpu.memory_space<vmem>>, vector<1x16x110xbf16>
    tpu.vector_store %arg6[%c0_82, %c0_83, %c0_84], %117 {strides = array<i32>} : memref<1x16x110xbf16, #tpu.memory_space<vmem>>, vector<1x16x110xbf16>,
    %119 = arith.truncf %116 : vector<16x80xf32> to vector<16x80xbf16>
    %c0_85 = arith.constant 0 : index
    %c0_86 = arith.constant 0 : index
    %c11_87 = arith.constant 11 : index
    %120 = vector.load %arg6[%c0_85, %c0_86, %c11_87] : memref<1x16x110xbf16, #tpu.memory_space<vmem>>, vector<1x16x80xbf16>
    %121 = vector.shape_cast %120 : vector<1x16x80xbf16> to vector<16x80xbf16>
    %122 = vector.shape_cast %119 : vector<16x80xbf16> to vector<1x16x80xbf16>
    tpu.vector_store %arg6[%c0_85, %c0_86, %c11_87], %122 {strides = array<i32>} : memref<1x16x110xbf16, #tpu.memory_space<vmem>>, vector<1x16x80xbf16>,
    return
  }
  func.func @transform_0(%arg0: i32) -> (i32, i32, i32) {
    %c0_i32 = arith.constant 0 : i32
    %c0_i32_0 = arith.constant 0 : i32
    %c0_i32_1 = arith.constant 0 : i32
    return %arg0, %c0_i32, %c0_i32_0 : i32, i32, i32
  }
  func.func @transform_1(%arg0: i32) -> (i32, i32, i32) {
    %c0_i32 = arith.constant 0 : i32
    %c0_i32_0 = arith.constant 0 : i32
    %c0_i32_1 = arith.constant 0 : i32
    %c0_i32_2 = arith.constant 0 : i32
    return %c0_i32, %c0_i32_0, %c0_i32_1 : i32, i32, i32
  }
  func.func @transform_2(%arg0: i32) -> (i32, i32) {
    %c0_i32 = arith.constant 0 : i32
    %c0_i32_0 = arith.constant 0 : i32
    %c0_i32_1 = arith.constant 0 : i32
    return %c0_i32, %c0_i32_0 : i32, i32
  }
  func.func @transform_3(%arg0: i32) -> (i32, i32) {
    %c0_i32 = arith.constant 0 : i32
    %c0_i32_0 = arith.constant 0 : i32
    %c0_i32_1 = arith.constant 0 : i32
    return %c0_i32, %c0_i32_0 : i32, i32
  }
  func.func @transform_4(%arg0: i32) -> (i32, i32) {
    %c0_i32 = arith.constant 0 : i32
    %c0_i32_0 = arith.constant 0 : i32
    %c0_i32_1 = arith.constant 0 : i32
    return %c0_i32, %c0_i32_0 : i32, i32
  }
  func.func @transform_5(%arg0: i32) -> (i32, i32, i32) {
    %c0_i32 = arith.constant 0 : i32
    %c0_i32_0 = arith.constant 0 : i32
    %c0_i32_1 = arith.constant 0 : i32
    return %arg0, %c0_i32, %c0_i32_0 : i32, i32, i32
  }
}

module attributes {stable_mosaic.version = 11 : i64} {
  func.func @_conv_block_kernel(%arg0: i32, %arg1: memref<1x16x110xbf16, #tpu.memory_space<vmem>>, %arg2: memref<4x110x42xbf16, #tpu.memory_space<vmem>>, %arg3: memref<16x144xbf16, #tpu.memory_space<vmem>>, %arg4: memref<16x144xbf16, #tpu.memory_space<vmem>>, %arg5: memref<1x24xf32, #tpu.memory_space<vmem>>, %arg6: memref<1x16x42xbf16, #tpu.memory_space<vmem>>, %arg7: memref<144x24xbf16, #tpu.memory_space<vmem>>, %arg8: memref<16x42xbf16, #tpu.memory_space<vmem>>, %arg9: memref<144x24xbf16, #tpu.memory_space<vmem>>) attributes {dimension_semantics = [#tpu.dimension_semantics<parallel>], iteration_bounds = array<i64: 2>, scalar_prefetch = 0 : i64, scratch_operands = 3 : i64, tpu.core_type = #tpu.core_type<tc>, window_params = [{transform_indices = @transform_0, window_bounds = array<i64: 1, 16, 110>}, {pipeline_mode = #tpu.pipeline_mode<synchronous>, transform_indices = @transform_1, window_bounds = array<i64: 4, 110, 42>}, {pipeline_mode = #tpu.pipeline_mode<synchronous>, transform_indices = @transform_2, window_bounds = array<i64: 16, 144>}, {pipeline_mode = #tpu.pipeline_mode<synchronous>, transform_indices = @transform_3, window_bounds = array<i64: 16, 144>}, {pipeline_mode = #tpu.pipeline_mode<synchronous>, transform_indices = @transform_4, window_bounds = array<i64: 1, 24>}, {transform_indices = @transform_5, window_bounds = array<i64: 1, 16, 42>}]} {
    %c0 = arith.constant 0 : index
    %c0_0 = arith.constant 0 : index
    %0 = vector.load %arg5[%c0, %c0_0] : memref<1x24xf32, #tpu.memory_space<vmem>>, vector<1x24xf32>
    %c0_1 = arith.constant 0 : index
    %c0_2 = arith.constant 0 : index
    %c0_3 = arith.constant 0 : index
    %1 = vector.load %arg1[%c0_1, %c0_2, %c0_3] : memref<1x16x110xbf16, #tpu.memory_space<vmem>>, vector<1x16x110xbf16>
    %2 = vector.shape_cast %1 : vector<1x16x110xbf16> to vector<16x110xbf16>
    %c0_4 = arith.constant 0 : index
    %c0_5 = arith.constant 0 : index
    %c0_6 = arith.constant 0 : index
    %3 = vector.load %arg2[%c0_4, %c0_5, %c0_6] : memref<4x110x42xbf16, #tpu.memory_space<vmem>>, vector<1x110x42xbf16>
    %4 = vector.shape_cast %3 : vector<1x110x42xbf16> to vector<110x42xbf16>
    %cst = arith.constant dense<0.000000e+00> : vector<16x42xf32>
    %5 = tpu.matmul %2, %4, %cst {dimension_numbers = #tpu.dot_dimension_numbers<[1], [0], [0], [1], [0, 0, 1, 1], [], []>} : vector<16x110xbf16>, vector<110x42xbf16>, vector<16x42xf32> -> vector<16x42xf32>
    %c1 = arith.constant 1 : index
    %c0_7 = arith.constant 0 : index
    %c0_8 = arith.constant 0 : index
    %6 = vector.load %arg2[%c1, %c0_7, %c0_8] : memref<4x110x42xbf16, #tpu.memory_space<vmem>>, vector<1x110x42xbf16>
    %7 = vector.shape_cast %6 : vector<1x110x42xbf16> to vector<110x42xbf16>
    %cst_9 = arith.constant dense<0.000000e+00> : vector<16x42xf32>
    %8 = tpu.matmul %2, %7, %cst_9 {dimension_numbers = #tpu.dot_dimension_numbers<[1], [0], [0], [1], [0, 0, 1, 1], [], []>} : vector<16x110xbf16>, vector<110x42xbf16>, vector<16x42xf32> -> vector<16x42xf32>
    %9 = arith.maximumf %5, %8 : vector<16x42xf32>
    %c2 = arith.constant 2 : index
    %c0_10 = arith.constant 0 : index
    %c0_11 = arith.constant 0 : index
    %10 = vector.load %arg2[%c2, %c0_10, %c0_11] : memref<4x110x42xbf16, #tpu.memory_space<vmem>>, vector<1x110x42xbf16>
    %11 = vector.shape_cast %10 : vector<1x110x42xbf16> to vector<110x42xbf16>
    %cst_12 = arith.constant dense<0.000000e+00> : vector<16x42xf32>
    %12 = tpu.matmul %2, %11, %cst_12 {dimension_numbers = #tpu.dot_dimension_numbers<[1], [0], [0], [1], [0, 0, 1, 1], [], []>} : vector<16x110xbf16>, vector<110x42xbf16>, vector<16x42xf32> -> vector<16x42xf32>
    %13 = arith.maximumf %9, %12 : vector<16x42xf32>
    %c3 = arith.constant 3 : index
    %c0_13 = arith.constant 0 : index
    %c0_14 = arith.constant 0 : index
    %14 = vector.load %arg2[%c3, %c0_13, %c0_14] : memref<4x110x42xbf16, #tpu.memory_space<vmem>>, vector<1x110x42xbf16>
    %15 = vector.shape_cast %14 : vector<1x110x42xbf16> to vector<110x42xbf16>
    %cst_15 = arith.constant dense<0.000000e+00> : vector<16x42xf32>
    %16 = tpu.matmul %2, %15, %cst_15 {dimension_numbers = #tpu.dot_dimension_numbers<[1], [0], [0], [1], [0, 0, 1, 1], [], []>} : vector<16x110xbf16>, vector<110x42xbf16>, vector<16x42xf32> -> vector<16x42xf32>
    %17 = arith.maximumf %13, %16 : vector<16x42xf32>
    %18 = arith.truncf %17 : vector<16x42xf32> to vector<16x42xbf16>
    %19 = vector.extract_strided_slice %18 {offsets = [0, 0], sizes = [16, 24], strides = [1, 1]} : vector<16x42xbf16> to vector<16x24xbf16>
    %c0_16 = arith.constant 0 : index
    %c0_17 = arith.constant 0 : index
    %20 = vector.load %arg7[%c0_16, %c0_17] : memref<144x24xbf16, #tpu.memory_space<vmem>>, vector<16x24xbf16>
    tpu.vector_store %arg7[%c0_16, %c0_17], %19 {strides = array<i32>} : memref<144x24xbf16, #tpu.memory_space<vmem>>, vector<16x24xbf16>,
    %21 = vector.extract_strided_slice %18 {offsets = [0, 1], sizes = [16, 24], strides = [1, 1]} : vector<16x42xbf16> to vector<16x24xbf16>
    %c16 = arith.constant 16 : index
    %c0_18 = arith.constant 0 : index
    %22 = vector.load %arg7[%c16, %c0_18] : memref<144x24xbf16, #tpu.memory_space<vmem>>, vector<16x24xbf16>
    tpu.vector_store %arg7[%c16, %c0_18], %21 {strides = array<i32>} : memref<144x24xbf16, #tpu.memory_space<vmem>>, vector<16x24xbf16>,
    %23 = vector.extract_strided_slice %18 {offsets = [0, 2], sizes = [16, 24], strides = [1, 1]} : vector<16x42xbf16> to vector<16x24xbf16>
    %c32 = arith.constant 32 : index
    %c0_19 = arith.constant 0 : index
    %24 = vector.load %arg7[%c32, %c0_19] : memref<144x24xbf16, #tpu.memory_space<vmem>>, vector<16x24xbf16>
    tpu.vector_store %arg7[%c32, %c0_19], %23 {strides = array<i32>} : memref<144x24xbf16, #tpu.memory_space<vmem>>, vector<16x24xbf16>,
    %25 = vector.extract_strided_slice %18 {offsets = [0, 6], sizes = [16, 24], strides = [1, 1]} : vector<16x42xbf16> to vector<16x24xbf16>
    %c48 = arith.constant 48 : index
    %c0_20 = arith.constant 0 : index
    %26 = vector.load %arg7[%c48, %c0_20] : memref<144x24xbf16, #tpu.memory_space<vmem>>, vector<16x24xbf16>
    tpu.vector_store %arg7[%c48, %c0_20], %25 {strides = array<i32>} : memref<144x24xbf16, #tpu.memory_space<vmem>>, vector<16x24xbf16>,
    %27 = vector.extract_strided_slice %18 {offsets = [0, 7], sizes = [16, 24], strides = [1, 1]} : vector<16x42xbf16> to vector<16x24xbf16>
    %c64 = arith.constant 64 : index
    %c0_21 = arith.constant 0 : index
    %28 = vector.load %arg7[%c64, %c0_21] : memref<144x24xbf16, #tpu.memory_space<vmem>>, vector<16x24xbf16>
    tpu.vector_store %arg7[%c64, %c0_21], %27 {strides = array<i32>} : memref<144x24xbf16, #tpu.memory_space<vmem>>, vector<16x24xbf16>,
    %29 = vector.extract_strided_slice %18 {offsets = [0, 8], sizes = [16, 24], strides = [1, 1]} : vector<16x42xbf16> to vector<16x24xbf16>
    %c80 = arith.constant 80 : index
    %c0_22 = arith.constant 0 : index
    %30 = vector.load %arg7[%c80, %c0_22] : memref<144x24xbf16, #tpu.memory_space<vmem>>, vector<16x24xbf16>
    tpu.vector_store %arg7[%c80, %c0_22], %29 {strides = array<i32>} : memref<144x24xbf16, #tpu.memory_space<vmem>>, vector<16x24xbf16>,
    %31 = vector.extract_strided_slice %18 {offsets = [0, 12], sizes = [16, 24], strides = [1, 1]} : vector<16x42xbf16> to vector<16x24xbf16>
    %c96 = arith.constant 96 : index
    %c0_23 = arith.constant 0 : index
    %32 = vector.load %arg7[%c96, %c0_23] : memref<144x24xbf16, #tpu.memory_space<vmem>>, vector<16x24xbf16>
    tpu.vector_store %arg7[%c96, %c0_23], %31 {strides = array<i32>} : memref<144x24xbf16, #tpu.memory_space<vmem>>, vector<16x24xbf16>,
    %33 = vector.extract_strided_slice %18 {offsets = [0, 13], sizes = [16, 24], strides = [1, 1]} : vector<16x42xbf16> to vector<16x24xbf16>
    %c112 = arith.constant 112 : index
    %c0_24 = arith.constant 0 : index
    %34 = vector.load %arg7[%c112, %c0_24] : memref<144x24xbf16, #tpu.memory_space<vmem>>, vector<16x24xbf16>
    tpu.vector_store %arg7[%c112, %c0_24], %33 {strides = array<i32>} : memref<144x24xbf16, #tpu.memory_space<vmem>>, vector<16x24xbf16>,
    %35 = vector.extract_strided_slice %18 {offsets = [0, 14], sizes = [16, 24], strides = [1, 1]} : vector<16x42xbf16> to vector<16x24xbf16>
    %c128 = arith.constant 128 : index
    %c0_25 = arith.constant 0 : index
    %36 = vector.load %arg7[%c128, %c0_25] : memref<144x24xbf16, #tpu.memory_space<vmem>>, vector<16x24xbf16>
    tpu.vector_store %arg7[%c128, %c0_25], %35 {strides = array<i32>} : memref<144x24xbf16, #tpu.memory_space<vmem>>, vector<16x24xbf16>,
    %c0_26 = arith.constant 0 : index
    %c0_27 = arith.constant 0 : index
    %37 = vector.load %arg3[%c0_26, %c0_27] : memref<16x144xbf16, #tpu.memory_space<vmem>>, vector<16x144xbf16>
    %c0_28 = arith.constant 0 : index
    %c0_29 = arith.constant 0 : index
    %38 = vector.load %arg7[%c0_28, %c0_29] : memref<144x24xbf16, #tpu.memory_space<vmem>>, vector<144x24xbf16>
    %cst_30 = arith.constant dense<0.000000e+00> : vector<16x24xf32>
    %39 = tpu.matmul %37, %38, %cst_30 {dimension_numbers = #tpu.dot_dimension_numbers<[1], [0], [0], [1], [0, 0, 1, 1], [], []>} : vector<16x144xbf16>, vector<144x24xbf16>, vector<16x24xf32> -> vector<16x24xf32>
    %40 = vector.broadcast %0 : vector<1x24xf32> to vector<16x24xf32>
    %41 = arith.mulf %39, %40 : vector<16x24xf32>
    %cst_31 = arith.constant dense<0.000000e+00> : vector<16xf32>
    %42 = vector.multi_reduction <add>, %41, %cst_31 [1] : vector<16x24xf32> to vector<16xf32>
    %43 = vector.shape_cast %42 : vector<16xf32> to vector<16x1xf32>
    %cst_32 = arith.constant 6.250000e-02 : f32
    %44 = vector.broadcast %cst_32 : f32 to vector<16x1xf32>
    %45 = arith.mulf %43, %44 : vector<16x1xf32>
    %46 = arith.mulf %41, %41 : vector<16x24xf32>
    %cst_33 = arith.constant dense<0.000000e+00> : vector<16xf32>
    %47 = vector.multi_reduction <add>, %46, %cst_33 [1] : vector<16x24xf32> to vector<16xf32>
    %48 = vector.shape_cast %47 : vector<16xf32> to vector<16x1xf32>
    %cst_34 = arith.constant 6.250000e-02 : f32
    %49 = vector.broadcast %cst_34 : f32 to vector<16x1xf32>
    %50 = arith.mulf %48, %49 : vector<16x1xf32>
    %51 = arith.mulf %45, %45 : vector<16x1xf32>
    %52 = arith.subf %50, %51 : vector<16x1xf32>
    %cst_35 = arith.constant 0.000000e+00 : f32
    %53 = vector.broadcast %cst_35 : f32 to vector<16x1xf32>
    %54 = arith.maximumf %52, %53 : vector<16x1xf32>
    %55 = vector.broadcast %45 : vector<16x1xf32> to vector<16x24xf32>
    %56 = arith.subf %41, %55 : vector<16x24xf32>
    %cst_36 = arith.constant 9.99999974E-6 : f32
    %57 = vector.broadcast %cst_36 : f32 to vector<16x1xf32>
    %58 = arith.addf %54, %57 : vector<16x1xf32>
    %59 = math.rsqrt %58 : vector<16x1xf32>
    %60 = vector.broadcast %59 : vector<16x1xf32> to vector<16x24xf32>
    %61 = arith.mulf %56, %60 : vector<16x24xf32>
    %cst_37 = arith.constant 0.000000e+00 : f32
    %62 = vector.broadcast %cst_37 : f32 to vector<16x24xf32>
    %63 = arith.maximumf %61, %62 : vector<16x24xf32>
    %64 = vector.broadcast %0 : vector<1x24xf32> to vector<16x24xf32>
    %65 = arith.mulf %63, %64 : vector<16x24xf32>
    %cst_38 = arith.constant 0.000000e+00 : bf16
    %66 = vector.broadcast %cst_38 : bf16 to vector<16x42xbf16>
    %c0_39 = arith.constant 0 : index
    %c0_40 = arith.constant 0 : index
    %67 = vector.load %arg8[%c0_39, %c0_40] : memref<16x42xbf16, #tpu.memory_space<vmem>>, vector<16x42xbf16>
    tpu.vector_store %arg8[%c0_39, %c0_40], %66 {strides = array<i32>} : memref<16x42xbf16, #tpu.memory_space<vmem>>, vector<16x42xbf16>,
    %68 = arith.truncf %65 : vector<16x24xf32> to vector<16x24xbf16>
    %c0_41 = arith.constant 0 : index
    %c7 = arith.constant 7 : index
    %69 = vector.load %arg8[%c0_41, %c7] : memref<16x42xbf16, #tpu.memory_space<vmem>>, vector<16x24xbf16>
    tpu.vector_store %arg8[%c0_41, %c7], %68 {strides = array<i32>} : memref<16x42xbf16, #tpu.memory_space<vmem>>, vector<16x24xbf16>,
    %c0_42 = arith.constant 0 : index
    %c0_43 = arith.constant 0 : index
    %70 = vector.load %arg8[%c0_42, %c0_43] : memref<16x42xbf16, #tpu.memory_space<vmem>>, vector<16x24xbf16>
    %c0_44 = arith.constant 0 : index
    %c0_45 = arith.constant 0 : index
    %71 = vector.load %arg9[%c0_44, %c0_45] : memref<144x24xbf16, #tpu.memory_space<vmem>>, vector<16x24xbf16>
    tpu.vector_store %arg9[%c0_44, %c0_45], %70 {strides = array<i32>} : memref<144x24xbf16, #tpu.memory_space<vmem>>, vector<16x24xbf16>,
    %c0_46 = arith.constant 0 : index
    %c1_47 = arith.constant 1 : index
    %72 = vector.load %arg8[%c0_46, %c1_47] : memref<16x42xbf16, #tpu.memory_space<vmem>>, vector<16x24xbf16>
    %c16_48 = arith.constant 16 : index
    %c0_49 = arith.constant 0 : index
    %73 = vector.load %arg9[%c16_48, %c0_49] : memref<144x24xbf16, #tpu.memory_space<vmem>>, vector<16x24xbf16>
    tpu.vector_store %arg9[%c16_48, %c0_49], %72 {strides = array<i32>} : memref<144x24xbf16, #tpu.memory_space<vmem>>, vector<16x24xbf16>,
    %c0_50 = arith.constant 0 : index
    %c2_51 = arith.constant 2 : index
    %74 = vector.load %arg8[%c0_50, %c2_51] : memref<16x42xbf16, #tpu.memory_space<vmem>>, vector<16x24xbf16>
    %c32_52 = arith.constant 32 : index
    %c0_53 = arith.constant 0 : index
    %75 = vector.load %arg9[%c32_52, %c0_53] : memref<144x24xbf16, #tpu.memory_space<vmem>>, vector<16x24xbf16>
    tpu.vector_store %arg9[%c32_52, %c0_53], %74 {strides = array<i32>} : memref<144x24xbf16, #tpu.memory_space<vmem>>, vector<16x24xbf16>,
    %c0_54 = arith.constant 0 : index
    %c6 = arith.constant 6 : index
    %76 = vector.load %arg8[%c0_54, %c6] : memref<16x42xbf16, #tpu.memory_space<vmem>>, vector<16x24xbf16>
    %c48_55 = arith.constant 48 : index
    %c0_56 = arith.constant 0 : index
    %77 = vector.load %arg9[%c48_55, %c0_56] : memref<144x24xbf16, #tpu.memory_space<vmem>>, vector<16x24xbf16>
    tpu.vector_store %arg9[%c48_55, %c0_56], %76 {strides = array<i32>} : memref<144x24xbf16, #tpu.memory_space<vmem>>, vector<16x24xbf16>,
    %c0_57 = arith.constant 0 : index
    %c7_58 = arith.constant 7 : index
    %78 = vector.load %arg8[%c0_57, %c7_58] : memref<16x42xbf16, #tpu.memory_space<vmem>>, vector<16x24xbf16>
    %c64_59 = arith.constant 64 : index
    %c0_60 = arith.constant 0 : index
    %79 = vector.load %arg9[%c64_59, %c0_60] : memref<144x24xbf16, #tpu.memory_space<vmem>>, vector<16x24xbf16>
    tpu.vector_store %arg9[%c64_59, %c0_60], %78 {strides = array<i32>} : memref<144x24xbf16, #tpu.memory_space<vmem>>, vector<16x24xbf16>,
    %c0_61 = arith.constant 0 : index
    %c8 = arith.constant 8 : index
    %80 = vector.load %arg8[%c0_61, %c8] : memref<16x42xbf16, #tpu.memory_space<vmem>>, vector<16x24xbf16>
    %c80_62 = arith.constant 80 : index
    %c0_63 = arith.constant 0 : index
    %81 = vector.load %arg9[%c80_62, %c0_63] : memref<144x24xbf16, #tpu.memory_space<vmem>>, vector<16x24xbf16>
    tpu.vector_store %arg9[%c80_62, %c0_63], %80 {strides = array<i32>} : memref<144x24xbf16, #tpu.memory_space<vmem>>, vector<16x24xbf16>,
    %c0_64 = arith.constant 0 : index
    %c12 = arith.constant 12 : index
    %82 = vector.load %arg8[%c0_64, %c12] : memref<16x42xbf16, #tpu.memory_space<vmem>>, vector<16x24xbf16>
    %c96_65 = arith.constant 96 : index
    %c0_66 = arith.constant 0 : index
    %83 = vector.load %arg9[%c96_65, %c0_66] : memref<144x24xbf16, #tpu.memory_space<vmem>>, vector<16x24xbf16>
    tpu.vector_store %arg9[%c96_65, %c0_66], %82 {strides = array<i32>} : memref<144x24xbf16, #tpu.memory_space<vmem>>, vector<16x24xbf16>,
    %c0_67 = arith.constant 0 : index
    %c13 = arith.constant 13 : index
    %84 = vector.load %arg8[%c0_67, %c13] : memref<16x42xbf16, #tpu.memory_space<vmem>>, vector<16x24xbf16>
    %c112_68 = arith.constant 112 : index
    %c0_69 = arith.constant 0 : index
    %85 = vector.load %arg9[%c112_68, %c0_69] : memref<144x24xbf16, #tpu.memory_space<vmem>>, vector<16x24xbf16>
    tpu.vector_store %arg9[%c112_68, %c0_69], %84 {strides = array<i32>} : memref<144x24xbf16, #tpu.memory_space<vmem>>, vector<16x24xbf16>,
    %c0_70 = arith.constant 0 : index
    %c14 = arith.constant 14 : index
    %86 = vector.load %arg8[%c0_70, %c14] : memref<16x42xbf16, #tpu.memory_space<vmem>>, vector<16x24xbf16>
    %c128_71 = arith.constant 128 : index
    %c0_72 = arith.constant 0 : index
    %87 = vector.load %arg9[%c128_71, %c0_72] : memref<144x24xbf16, #tpu.memory_space<vmem>>, vector<16x24xbf16>
    tpu.vector_store %arg9[%c128_71, %c0_72], %86 {strides = array<i32>} : memref<144x24xbf16, #tpu.memory_space<vmem>>, vector<16x24xbf16>,
    %c0_73 = arith.constant 0 : index
    %c0_74 = arith.constant 0 : index
    %88 = vector.load %arg4[%c0_73, %c0_74] : memref<16x144xbf16, #tpu.memory_space<vmem>>, vector<16x144xbf16>
    %c0_75 = arith.constant 0 : index
    %c0_76 = arith.constant 0 : index
    %89 = vector.load %arg9[%c0_75, %c0_76] : memref<144x24xbf16, #tpu.memory_space<vmem>>, vector<144x24xbf16>
    %cst_77 = arith.constant dense<0.000000e+00> : vector<16x24xf32>
    %90 = tpu.matmul %88, %89, %cst_77 {dimension_numbers = #tpu.dot_dimension_numbers<[1], [0], [0], [1], [0, 0, 1, 1], [], []>} : vector<16x144xbf16>, vector<144x24xbf16>, vector<16x24xf32> -> vector<16x24xf32>
    %91 = vector.broadcast %0 : vector<1x24xf32> to vector<16x24xf32>
    %92 = arith.mulf %90, %91 : vector<16x24xf32>
    %cst_78 = arith.constant dense<0.000000e+00> : vector<16xf32>
    %93 = vector.multi_reduction <add>, %92, %cst_78 [1] : vector<16x24xf32> to vector<16xf32>
    %94 = vector.shape_cast %93 : vector<16xf32> to vector<16x1xf32>
    %cst_79 = arith.constant 6.250000e-02 : f32
    %95 = vector.broadcast %cst_79 : f32 to vector<16x1xf32>
    %96 = arith.mulf %94, %95 : vector<16x1xf32>
    %97 = arith.mulf %92, %92 : vector<16x24xf32>
    %cst_80 = arith.constant dense<0.000000e+00> : vector<16xf32>
    %98 = vector.multi_reduction <add>, %97, %cst_80 [1] : vector<16x24xf32> to vector<16xf32>
    %99 = vector.shape_cast %98 : vector<16xf32> to vector<16x1xf32>
    %cst_81 = arith.constant 6.250000e-02 : f32
    %100 = vector.broadcast %cst_81 : f32 to vector<16x1xf32>
    %101 = arith.mulf %99, %100 : vector<16x1xf32>
    %102 = arith.mulf %96, %96 : vector<16x1xf32>
    %103 = arith.subf %101, %102 : vector<16x1xf32>
    %cst_82 = arith.constant 0.000000e+00 : f32
    %104 = vector.broadcast %cst_82 : f32 to vector<16x1xf32>
    %105 = arith.maximumf %103, %104 : vector<16x1xf32>
    %106 = vector.broadcast %96 : vector<16x1xf32> to vector<16x24xf32>
    %107 = arith.subf %92, %106 : vector<16x24xf32>
    %cst_83 = arith.constant 9.99999974E-6 : f32
    %108 = vector.broadcast %cst_83 : f32 to vector<16x1xf32>
    %109 = arith.addf %105, %108 : vector<16x1xf32>
    %110 = math.rsqrt %109 : vector<16x1xf32>
    %111 = vector.broadcast %110 : vector<16x1xf32> to vector<16x24xf32>
    %112 = arith.mulf %107, %111 : vector<16x24xf32>
    %cst_84 = arith.constant 0.000000e+00 : f32
    %113 = vector.broadcast %cst_84 : f32 to vector<16x24xf32>
    %114 = arith.maximumf %112, %113 : vector<16x24xf32>
    %115 = vector.broadcast %0 : vector<1x24xf32> to vector<16x24xf32>
    %116 = arith.mulf %114, %115 : vector<16x24xf32>
    %cst_85 = arith.constant 0.000000e+00 : bf16
    %117 = vector.broadcast %cst_85 : bf16 to vector<1x16x42xbf16>
    %c0_86 = arith.constant 0 : index
    %c0_87 = arith.constant 0 : index
    %c0_88 = arith.constant 0 : index
    %118 = vector.load %arg6[%c0_86, %c0_87, %c0_88] : memref<1x16x42xbf16, #tpu.memory_space<vmem>>, vector<1x16x42xbf16>
    tpu.vector_store %arg6[%c0_86, %c0_87, %c0_88], %117 {strides = array<i32>} : memref<1x16x42xbf16, #tpu.memory_space<vmem>>, vector<1x16x42xbf16>,
    %119 = arith.truncf %116 : vector<16x24xf32> to vector<16x24xbf16>
    %c0_89 = arith.constant 0 : index
    %c0_90 = arith.constant 0 : index
    %c7_91 = arith.constant 7 : index
    %120 = vector.load %arg6[%c0_89, %c0_90, %c7_91] : memref<1x16x42xbf16, #tpu.memory_space<vmem>>, vector<1x16x24xbf16>
    %121 = vector.shape_cast %120 : vector<1x16x24xbf16> to vector<16x24xbf16>
    %122 = vector.shape_cast %119 : vector<16x24xbf16> to vector<1x16x24xbf16>
    tpu.vector_store %arg6[%c0_89, %c0_90, %c7_91], %122 {strides = array<i32>} : memref<1x16x42xbf16, #tpu.memory_space<vmem>>, vector<1x16x24xbf16>,
    return
  }
  func.func @transform_0(%arg0: i32) -> (i32, i32, i32) {
    %c0_i32 = arith.constant 0 : i32
    %c0_i32_0 = arith.constant 0 : i32
    %c0_i32_1 = arith.constant 0 : i32
    return %arg0, %c0_i32, %c0_i32_0 : i32, i32, i32
  }
  func.func @transform_1(%arg0: i32) -> (i32, i32, i32) {
    %c0_i32 = arith.constant 0 : i32
    %c0_i32_0 = arith.constant 0 : i32
    %c0_i32_1 = arith.constant 0 : i32
    %c0_i32_2 = arith.constant 0 : i32
    return %c0_i32, %c0_i32_0, %c0_i32_1 : i32, i32, i32
  }
  func.func @transform_2(%arg0: i32) -> (i32, i32) {
    %c0_i32 = arith.constant 0 : i32
    %c0_i32_0 = arith.constant 0 : i32
    %c0_i32_1 = arith.constant 0 : i32
    return %c0_i32, %c0_i32_0 : i32, i32
  }
  func.func @transform_3(%arg0: i32) -> (i32, i32) {
    %c0_i32 = arith.constant 0 : i32
    %c0_i32_0 = arith.constant 0 : i32
    %c0_i32_1 = arith.constant 0 : i32
    return %c0_i32, %c0_i32_0 : i32, i32
  }
  func.func @transform_4(%arg0: i32) -> (i32, i32) {
    %c0_i32 = arith.constant 0 : i32
    %c0_i32_0 = arith.constant 0 : i32
    %c0_i32_1 = arith.constant 0 : i32
    return %c0_i32, %c0_i32_0 : i32, i32
  }
  func.func @transform_5(%arg0: i32) -> (i32, i32, i32) {
    %c0_i32 = arith.constant 0 : i32
    %c0_i32_0 = arith.constant 0 : i32
    %c0_i32_1 = arith.constant 0 : i32
    return %arg0, %c0_i32, %c0_i32_0 : i32, i32, i32
  }
}

module attributes {stable_mosaic.version = 11 : i64} {
  func.func @_conv_block_kernel(%arg0: i32, %arg1: memref<1x16x42xbf16, #tpu.memory_space<vmem>>, %arg2: memref<1x16x110xbf16, #tpu.memory_space<vmem>>, %arg3: memref<42x110xbf16, #tpu.memory_space<vmem>>, %arg4: memref<8x288xbf16, #tpu.memory_space<vmem>>, %arg5: memref<8x72xbf16, #tpu.memory_space<vmem>>, %arg6: memref<1x80xf32, #tpu.memory_space<vmem>>, %arg7: memref<1x8x110xbf16, #tpu.memory_space<vmem>>, %arg8: memref<288x80xbf16, #tpu.memory_space<vmem>>, %arg9: memref<8x110xbf16, #tpu.memory_space<vmem>>, %arg10: memref<72x80xbf16, #tpu.memory_space<vmem>>) attributes {dimension_semantics = [#tpu.dimension_semantics<parallel>], iteration_bounds = array<i64: 2>, scalar_prefetch = 0 : i64, scratch_operands = 3 : i64, tpu.core_type = #tpu.core_type<tc>, window_params = [{transform_indices = @transform_0, window_bounds = array<i64: 1, 16, 42>}, {transform_indices = @transform_1, window_bounds = array<i64: 1, 16, 110>}, {pipeline_mode = #tpu.pipeline_mode<synchronous>, transform_indices = @transform_2, window_bounds = array<i64: 42, 110>}, {pipeline_mode = #tpu.pipeline_mode<synchronous>, transform_indices = @transform_3, window_bounds = array<i64: 8, 288>}, {pipeline_mode = #tpu.pipeline_mode<synchronous>, transform_indices = @transform_4, window_bounds = array<i64: 8, 72>}, {pipeline_mode = #tpu.pipeline_mode<synchronous>, transform_indices = @transform_5, window_bounds = array<i64: 1, 80>}, {transform_indices = @transform_6, window_bounds = array<i64: 1, 8, 110>}]} {
    %c0 = arith.constant 0 : index
    %c0_0 = arith.constant 0 : index
    %0 = vector.load %arg6[%c0, %c0_0] : memref<1x80xf32, #tpu.memory_space<vmem>>, vector<1x80xf32>
    %c0_1 = arith.constant 0 : index
    %c0_2 = arith.constant 0 : index
    %c0_3 = arith.constant 0 : index
    %1 = vector.load %arg1[%c0_1, %c0_2, %c0_3] : memref<1x16x42xbf16, #tpu.memory_space<vmem>>, vector<1x16x42xbf16>
    %2 = vector.shape_cast %1 : vector<1x16x42xbf16> to vector<16x42xbf16>
    %c0_4 = arith.constant 0 : index
    %c0_5 = arith.constant 0 : index
    %3 = vector.load %arg3[%c0_4, %c0_5] : memref<42x110xbf16, #tpu.memory_space<vmem>>, vector<42x110xbf16>
    %cst = arith.constant dense<0.000000e+00> : vector<16x110xf32>
    %4 = tpu.matmul %2, %3, %cst {dimension_numbers = #tpu.dot_dimension_numbers<[1], [0], [0], [1], [0, 0, 1, 1], [], []>} : vector<16x42xbf16>, vector<42x110xbf16>, vector<16x110xf32> -> vector<16x110xf32>
    %5 = arith.truncf %4 : vector<16x110xf32> to vector<16x110xbf16>
    %6 = vector.extract_strided_slice %5 {offsets = [0, 0], sizes = [16, 80], strides = [1, 1]} : vector<16x110xbf16> to vector<16x80xbf16>
    %c0_6 = arith.constant 0 : index
    %c0_7 = arith.constant 0 : index
    %7 = vector.load %arg8[%c0_6, %c0_7] : memref<288x80xbf16, #tpu.memory_space<vmem>>, vector<16x80xbf16>
    tpu.vector_store %arg8[%c0_6, %c0_7], %6 {strides = array<i32>} : memref<288x80xbf16, #tpu.memory_space<vmem>>, vector<16x80xbf16>,
    %8 = vector.extract_strided_slice %5 {offsets = [0, 1], sizes = [16, 80], strides = [1, 1]} : vector<16x110xbf16> to vector<16x80xbf16>
    %c16 = arith.constant 16 : index
    %c0_8 = arith.constant 0 : index
    %9 = vector.load %arg8[%c16, %c0_8] : memref<288x80xbf16, #tpu.memory_space<vmem>>, vector<16x80xbf16>
    tpu.vector_store %arg8[%c16, %c0_8], %8 {strides = array<i32>} : memref<288x80xbf16, #tpu.memory_space<vmem>>, vector<16x80xbf16>,
    %10 = vector.extract_strided_slice %5 {offsets = [0, 2], sizes = [16, 80], strides = [1, 1]} : vector<16x110xbf16> to vector<16x80xbf16>
    %c32 = arith.constant 32 : index
    %c0_9 = arith.constant 0 : index
    %11 = vector.load %arg8[%c32, %c0_9] : memref<288x80xbf16, #tpu.memory_space<vmem>>, vector<16x80xbf16>
    tpu.vector_store %arg8[%c32, %c0_9], %10 {strides = array<i32>} : memref<288x80xbf16, #tpu.memory_space<vmem>>, vector<16x80xbf16>,
    %12 = vector.extract_strided_slice %5 {offsets = [0, 10], sizes = [16, 80], strides = [1, 1]} : vector<16x110xbf16> to vector<16x80xbf16>
    %c48 = arith.constant 48 : index
    %c0_10 = arith.constant 0 : index
    %13 = vector.load %arg8[%c48, %c0_10] : memref<288x80xbf16, #tpu.memory_space<vmem>>, vector<16x80xbf16>
    tpu.vector_store %arg8[%c48, %c0_10], %12 {strides = array<i32>} : memref<288x80xbf16, #tpu.memory_space<vmem>>, vector<16x80xbf16>,
    %14 = vector.extract_strided_slice %5 {offsets = [0, 11], sizes = [16, 80], strides = [1, 1]} : vector<16x110xbf16> to vector<16x80xbf16>
    %c64 = arith.constant 64 : index
    %c0_11 = arith.constant 0 : index
    %15 = vector.load %arg8[%c64, %c0_11] : memref<288x80xbf16, #tpu.memory_space<vmem>>, vector<16x80xbf16>
    tpu.vector_store %arg8[%c64, %c0_11], %14 {strides = array<i32>} : memref<288x80xbf16, #tpu.memory_space<vmem>>, vector<16x80xbf16>,
    %16 = vector.extract_strided_slice %5 {offsets = [0, 12], sizes = [16, 80], strides = [1, 1]} : vector<16x110xbf16> to vector<16x80xbf16>
    %c80 = arith.constant 80 : index
    %c0_12 = arith.constant 0 : index
    %17 = vector.load %arg8[%c80, %c0_12] : memref<288x80xbf16, #tpu.memory_space<vmem>>, vector<16x80xbf16>
    tpu.vector_store %arg8[%c80, %c0_12], %16 {strides = array<i32>} : memref<288x80xbf16, #tpu.memory_space<vmem>>, vector<16x80xbf16>,
    %18 = vector.extract_strided_slice %5 {offsets = [0, 20], sizes = [16, 80], strides = [1, 1]} : vector<16x110xbf16> to vector<16x80xbf16>
    %c96 = arith.constant 96 : index
    %c0_13 = arith.constant 0 : index
    %19 = vector.load %arg8[%c96, %c0_13] : memref<288x80xbf16, #tpu.memory_space<vmem>>, vector<16x80xbf16>
    tpu.vector_store %arg8[%c96, %c0_13], %18 {strides = array<i32>} : memref<288x80xbf16, #tpu.memory_space<vmem>>, vector<16x80xbf16>,
    %20 = vector.extract_strided_slice %5 {offsets = [0, 21], sizes = [16, 80], strides = [1, 1]} : vector<16x110xbf16> to vector<16x80xbf16>
    %c112 = arith.constant 112 : index
    %c0_14 = arith.constant 0 : index
    %21 = vector.load %arg8[%c112, %c0_14] : memref<288x80xbf16, #tpu.memory_space<vmem>>, vector<16x80xbf16>
    tpu.vector_store %arg8[%c112, %c0_14], %20 {strides = array<i32>} : memref<288x80xbf16, #tpu.memory_space<vmem>>, vector<16x80xbf16>,
    %22 = vector.extract_strided_slice %5 {offsets = [0, 22], sizes = [16, 80], strides = [1, 1]} : vector<16x110xbf16> to vector<16x80xbf16>
    %c128 = arith.constant 128 : index
    %c0_15 = arith.constant 0 : index
    %23 = vector.load %arg8[%c128, %c0_15] : memref<288x80xbf16, #tpu.memory_space<vmem>>, vector<16x80xbf16>
    tpu.vector_store %arg8[%c128, %c0_15], %22 {strides = array<i32>} : memref<288x80xbf16, #tpu.memory_space<vmem>>, vector<16x80xbf16>,
    %c0_16 = arith.constant 0 : index
    %c0_17 = arith.constant 0 : index
    %c0_18 = arith.constant 0 : index
    %24 = vector.load %arg2[%c0_16, %c0_17, %c0_18] : memref<1x16x110xbf16, #tpu.memory_space<vmem>>, vector<1x16x80xbf16>
    %25 = vector.shape_cast %24 : vector<1x16x80xbf16> to vector<16x80xbf16>
    %c144 = arith.constant 144 : index
    %c0_19 = arith.constant 0 : index
    %26 = vector.load %arg8[%c144, %c0_19] : memref<288x80xbf16, #tpu.memory_space<vmem>>, vector<16x80xbf16>
    tpu.vector_store %arg8[%c144, %c0_19], %25 {strides = array<i32>} : memref<288x80xbf16, #tpu.memory_space<vmem>>, vector<16x80xbf16>,
    %c0_20 = arith.constant 0 : index
    %c0_21 = arith.constant 0 : index
    %c1 = arith.constant 1 : index
    %27 = vector.load %arg2[%c0_20, %c0_21, %c1] : memref<1x16x110xbf16, #tpu.memory_space<vmem>>, vector<1x16x80xbf16>
    %28 = vector.shape_cast %27 : vector<1x16x80xbf16> to vector<16x80xbf16>
    %c160 = arith.constant 160 : index
    %c0_22 = arith.constant 0 : index
    %29 = vector.load %arg8[%c160, %c0_22] : memref<288x80xbf16, #tpu.memory_space<vmem>>, vector<16x80xbf16>
    tpu.vector_store %arg8[%c160, %c0_22], %28 {strides = array<i32>} : memref<288x80xbf16, #tpu.memory_space<vmem>>, vector<16x80xbf16>,
    %c0_23 = arith.constant 0 : index
    %c0_24 = arith.constant 0 : index
    %c2 = arith.constant 2 : index
    %30 = vector.load %arg2[%c0_23, %c0_24, %c2] : memref<1x16x110xbf16, #tpu.memory_space<vmem>>, vector<1x16x80xbf16>
    %31 = vector.shape_cast %30 : vector<1x16x80xbf16> to vector<16x80xbf16>
    %c176 = arith.constant 176 : index
    %c0_25 = arith.constant 0 : index
    %32 = vector.load %arg8[%c176, %c0_25] : memref<288x80xbf16, #tpu.memory_space<vmem>>, vector<16x80xbf16>
    tpu.vector_store %arg8[%c176, %c0_25], %31 {strides = array<i32>} : memref<288x80xbf16, #tpu.memory_space<vmem>>, vector<16x80xbf16>,
    %c0_26 = arith.constant 0 : index
    %c0_27 = arith.constant 0 : index
    %c10 = arith.constant 10 : index
    %33 = vector.load %arg2[%c0_26, %c0_27, %c10] : memref<1x16x110xbf16, #tpu.memory_space<vmem>>, vector<1x16x80xbf16>
    %34 = vector.shape_cast %33 : vector<1x16x80xbf16> to vector<16x80xbf16>
    %c192 = arith.constant 192 : index
    %c0_28 = arith.constant 0 : index
    %35 = vector.load %arg8[%c192, %c0_28] : memref<288x80xbf16, #tpu.memory_space<vmem>>, vector<16x80xbf16>
    tpu.vector_store %arg8[%c192, %c0_28], %34 {strides = array<i32>} : memref<288x80xbf16, #tpu.memory_space<vmem>>, vector<16x80xbf16>,
    %c0_29 = arith.constant 0 : index
    %c0_30 = arith.constant 0 : index
    %c11 = arith.constant 11 : index
    %36 = vector.load %arg2[%c0_29, %c0_30, %c11] : memref<1x16x110xbf16, #tpu.memory_space<vmem>>, vector<1x16x80xbf16>
    %37 = vector.shape_cast %36 : vector<1x16x80xbf16> to vector<16x80xbf16>
    %c208 = arith.constant 208 : index
    %c0_31 = arith.constant 0 : index
    %38 = vector.load %arg8[%c208, %c0_31] : memref<288x80xbf16, #tpu.memory_space<vmem>>, vector<16x80xbf16>
    tpu.vector_store %arg8[%c208, %c0_31], %37 {strides = array<i32>} : memref<288x80xbf16, #tpu.memory_space<vmem>>, vector<16x80xbf16>,
    %c0_32 = arith.constant 0 : index
    %c0_33 = arith.constant 0 : index
    %c12 = arith.constant 12 : index
    %39 = vector.load %arg2[%c0_32, %c0_33, %c12] : memref<1x16x110xbf16, #tpu.memory_space<vmem>>, vector<1x16x80xbf16>
    %40 = vector.shape_cast %39 : vector<1x16x80xbf16> to vector<16x80xbf16>
    %c224 = arith.constant 224 : index
    %c0_34 = arith.constant 0 : index
    %41 = vector.load %arg8[%c224, %c0_34] : memref<288x80xbf16, #tpu.memory_space<vmem>>, vector<16x80xbf16>
    tpu.vector_store %arg8[%c224, %c0_34], %40 {strides = array<i32>} : memref<288x80xbf16, #tpu.memory_space<vmem>>, vector<16x80xbf16>,
    %c0_35 = arith.constant 0 : index
    %c0_36 = arith.constant 0 : index
    %c20 = arith.constant 20 : index
    %42 = vector.load %arg2[%c0_35, %c0_36, %c20] : memref<1x16x110xbf16, #tpu.memory_space<vmem>>, vector<1x16x80xbf16>
    %43 = vector.shape_cast %42 : vector<1x16x80xbf16> to vector<16x80xbf16>
    %c240 = arith.constant 240 : index
    %c0_37 = arith.constant 0 : index
    %44 = vector.load %arg8[%c240, %c0_37] : memref<288x80xbf16, #tpu.memory_space<vmem>>, vector<16x80xbf16>
    tpu.vector_store %arg8[%c240, %c0_37], %43 {strides = array<i32>} : memref<288x80xbf16, #tpu.memory_space<vmem>>, vector<16x80xbf16>,
    %c0_38 = arith.constant 0 : index
    %c0_39 = arith.constant 0 : index
    %c21 = arith.constant 21 : index
    %45 = vector.load %arg2[%c0_38, %c0_39, %c21] : memref<1x16x110xbf16, #tpu.memory_space<vmem>>, vector<1x16x80xbf16>
    %46 = vector.shape_cast %45 : vector<1x16x80xbf16> to vector<16x80xbf16>
    %c256 = arith.constant 256 : index
    %c0_40 = arith.constant 0 : index
    %47 = vector.load %arg8[%c256, %c0_40] : memref<288x80xbf16, #tpu.memory_space<vmem>>, vector<16x80xbf16>
    tpu.vector_store %arg8[%c256, %c0_40], %46 {strides = array<i32>} : memref<288x80xbf16, #tpu.memory_space<vmem>>, vector<16x80xbf16>,
    %c0_41 = arith.constant 0 : index
    %c0_42 = arith.constant 0 : index
    %c22 = arith.constant 22 : index
    %48 = vector.load %arg2[%c0_41, %c0_42, %c22] : memref<1x16x110xbf16, #tpu.memory_space<vmem>>, vector<1x16x80xbf16>
    %49 = vector.shape_cast %48 : vector<1x16x80xbf16> to vector<16x80xbf16>
    %c272 = arith.constant 272 : index
    %c0_43 = arith.constant 0 : index
    %50 = vector.load %arg8[%c272, %c0_43] : memref<288x80xbf16, #tpu.memory_space<vmem>>, vector<16x80xbf16>
    tpu.vector_store %arg8[%c272, %c0_43], %49 {strides = array<i32>} : memref<288x80xbf16, #tpu.memory_space<vmem>>, vector<16x80xbf16>,
    %c0_44 = arith.constant 0 : index
    %c0_45 = arith.constant 0 : index
    %51 = vector.load %arg4[%c0_44, %c0_45] : memref<8x288xbf16, #tpu.memory_space<vmem>>, vector<8x288xbf16>
    %c0_46 = arith.constant 0 : index
    %c0_47 = arith.constant 0 : index
    %52 = vector.load %arg8[%c0_46, %c0_47] : memref<288x80xbf16, #tpu.memory_space<vmem>>, vector<288x80xbf16>
    %cst_48 = arith.constant dense<0.000000e+00> : vector<8x80xf32>
    %53 = tpu.matmul %51, %52, %cst_48 {dimension_numbers = #tpu.dot_dimension_numbers<[1], [0], [0], [1], [0, 0, 1, 1], [], []>} : vector<8x288xbf16>, vector<288x80xbf16>, vector<8x80xf32> -> vector<8x80xf32>
    %54 = vector.broadcast %0 : vector<1x80xf32> to vector<8x80xf32>
    %55 = arith.mulf %53, %54 : vector<8x80xf32>
    %cst_49 = arith.constant dense<0.000000e+00> : vector<8xf32>
    %56 = vector.multi_reduction <add>, %55, %cst_49 [1] : vector<8x80xf32> to vector<8xf32>
    %57 = vector.shape_cast %56 : vector<8xf32> to vector<8x1xf32>
    %cst_50 = arith.constant 1.562500e-02 : f32
    %58 = vector.broadcast %cst_50 : f32 to vector<8x1xf32>
    %59 = arith.mulf %57, %58 : vector<8x1xf32>
    %60 = arith.mulf %55, %55 : vector<8x80xf32>
    %cst_51 = arith.constant dense<0.000000e+00> : vector<8xf32>
    %61 = vector.multi_reduction <add>, %60, %cst_51 [1] : vector<8x80xf32> to vector<8xf32>
    %62 = vector.shape_cast %61 : vector<8xf32> to vector<8x1xf32>
    %cst_52 = arith.constant 1.562500e-02 : f32
    %63 = vector.broadcast %cst_52 : f32 to vector<8x1xf32>
    %64 = arith.mulf %62, %63 : vector<8x1xf32>
    %65 = arith.mulf %59, %59 : vector<8x1xf32>
    %66 = arith.subf %64, %65 : vector<8x1xf32>
    %cst_53 = arith.constant 0.000000e+00 : f32
    %67 = vector.broadcast %cst_53 : f32 to vector<8x1xf32>
    %68 = arith.maximumf %66, %67 : vector<8x1xf32>
    %69 = vector.broadcast %59 : vector<8x1xf32> to vector<8x80xf32>
    %70 = arith.subf %55, %69 : vector<8x80xf32>
    %cst_54 = arith.constant 9.99999974E-6 : f32
    %71 = vector.broadcast %cst_54 : f32 to vector<8x1xf32>
    %72 = arith.addf %68, %71 : vector<8x1xf32>
    %73 = math.rsqrt %72 : vector<8x1xf32>
    %74 = vector.broadcast %73 : vector<8x1xf32> to vector<8x80xf32>
    %75 = arith.mulf %70, %74 : vector<8x80xf32>
    %cst_55 = arith.constant 0.000000e+00 : f32
    %76 = vector.broadcast %cst_55 : f32 to vector<8x80xf32>
    %77 = arith.maximumf %75, %76 : vector<8x80xf32>
    %78 = vector.broadcast %0 : vector<1x80xf32> to vector<8x80xf32>
    %79 = arith.mulf %77, %78 : vector<8x80xf32>
    %cst_56 = arith.constant 0.000000e+00 : bf16
    %80 = vector.broadcast %cst_56 : bf16 to vector<8x110xbf16>
    %c0_57 = arith.constant 0 : index
    %c0_58 = arith.constant 0 : index
    %81 = vector.load %arg9[%c0_57, %c0_58] : memref<8x110xbf16, #tpu.memory_space<vmem>>, vector<8x110xbf16>
    tpu.vector_store %arg9[%c0_57, %c0_58], %80 {strides = array<i32>} : memref<8x110xbf16, #tpu.memory_space<vmem>>, vector<8x110xbf16>,
    %82 = arith.truncf %79 : vector<8x80xf32> to vector<8x80xbf16>
    %c0_59 = arith.constant 0 : index
    %c11_60 = arith.constant 11 : index
    %83 = vector.load %arg9[%c0_59, %c11_60] : memref<8x110xbf16, #tpu.memory_space<vmem>>, vector<8x80xbf16>
    tpu.vector_store %arg9[%c0_59, %c11_60], %82 {strides = array<i32>} : memref<8x110xbf16, #tpu.memory_space<vmem>>, vector<8x80xbf16>,
    %c0_61 = arith.constant 0 : index
    %c0_62 = arith.constant 0 : index
    %84 = vector.load %arg9[%c0_61, %c0_62] : memref<8x110xbf16, #tpu.memory_space<vmem>>, vector<8x80xbf16>
    %c0_63 = arith.constant 0 : index
    %c0_64 = arith.constant 0 : index
    %85 = vector.load %arg10[%c0_63, %c0_64] : memref<72x80xbf16, #tpu.memory_space<vmem>>, vector<8x80xbf16>
    tpu.vector_store %arg10[%c0_63, %c0_64], %84 {strides = array<i32>} : memref<72x80xbf16, #tpu.memory_space<vmem>>, vector<8x80xbf16>,
    %c0_65 = arith.constant 0 : index
    %c1_66 = arith.constant 1 : index
    %86 = vector.load %arg9[%c0_65, %c1_66] : memref<8x110xbf16, #tpu.memory_space<vmem>>, vector<8x80xbf16>
    %c8 = arith.constant 8 : index
    %c0_67 = arith.constant 0 : index
    %87 = vector.load %arg10[%c8, %c0_67] : memref<72x80xbf16, #tpu.memory_space<vmem>>, vector<8x80xbf16>
    tpu.vector_store %arg10[%c8, %c0_67], %86 {strides = array<i32>} : memref<72x80xbf16, #tpu.memory_space<vmem>>, vector<8x80xbf16>,
    %c0_68 = arith.constant 0 : index
    %c2_69 = arith.constant 2 : index
    %88 = vector.load %arg9[%c0_68, %c2_69] : memref<8x110xbf16, #tpu.memory_space<vmem>>, vector<8x80xbf16>
    %c16_70 = arith.constant 16 : index
    %c0_71 = arith.constant 0 : index
    %89 = vector.load %arg10[%c16_70, %c0_71] : memref<72x80xbf16, #tpu.memory_space<vmem>>, vector<8x80xbf16>
    tpu.vector_store %arg10[%c16_70, %c0_71], %88 {strides = array<i32>} : memref<72x80xbf16, #tpu.memory_space<vmem>>, vector<8x80xbf16>,
    %c0_72 = arith.constant 0 : index
    %c10_73 = arith.constant 10 : index
    %90 = vector.load %arg9[%c0_72, %c10_73] : memref<8x110xbf16, #tpu.memory_space<vmem>>, vector<8x80xbf16>
    %c24 = arith.constant 24 : index
    %c0_74 = arith.constant 0 : index
    %91 = vector.load %arg10[%c24, %c0_74] : memref<72x80xbf16, #tpu.memory_space<vmem>>, vector<8x80xbf16>
    tpu.vector_store %arg10[%c24, %c0_74], %90 {strides = array<i32>} : memref<72x80xbf16, #tpu.memory_space<vmem>>, vector<8x80xbf16>,
    %c0_75 = arith.constant 0 : index
    %c11_76 = arith.constant 11 : index
    %92 = vector.load %arg9[%c0_75, %c11_76] : memref<8x110xbf16, #tpu.memory_space<vmem>>, vector<8x80xbf16>
    %c32_77 = arith.constant 32 : index
    %c0_78 = arith.constant 0 : index
    %93 = vector.load %arg10[%c32_77, %c0_78] : memref<72x80xbf16, #tpu.memory_space<vmem>>, vector<8x80xbf16>
    tpu.vector_store %arg10[%c32_77, %c0_78], %92 {strides = array<i32>} : memref<72x80xbf16, #tpu.memory_space<vmem>>, vector<8x80xbf16>,
    %c0_79 = arith.constant 0 : index
    %c12_80 = arith.constant 12 : index
    %94 = vector.load %arg9[%c0_79, %c12_80] : memref<8x110xbf16, #tpu.memory_space<vmem>>, vector<8x80xbf16>
    %c40 = arith.constant 40 : index
    %c0_81 = arith.constant 0 : index
    %95 = vector.load %arg10[%c40, %c0_81] : memref<72x80xbf16, #tpu.memory_space<vmem>>, vector<8x80xbf16>
    tpu.vector_store %arg10[%c40, %c0_81], %94 {strides = array<i32>} : memref<72x80xbf16, #tpu.memory_space<vmem>>, vector<8x80xbf16>,
    %c0_82 = arith.constant 0 : index
    %c20_83 = arith.constant 20 : index
    %96 = vector.load %arg9[%c0_82, %c20_83] : memref<8x110xbf16, #tpu.memory_space<vmem>>, vector<8x80xbf16>
    %c48_84 = arith.constant 48 : index
    %c0_85 = arith.constant 0 : index
    %97 = vector.load %arg10[%c48_84, %c0_85] : memref<72x80xbf16, #tpu.memory_space<vmem>>, vector<8x80xbf16>
    tpu.vector_store %arg10[%c48_84, %c0_85], %96 {strides = array<i32>} : memref<72x80xbf16, #tpu.memory_space<vmem>>, vector<8x80xbf16>,
    %c0_86 = arith.constant 0 : index
    %c21_87 = arith.constant 21 : index
    %98 = vector.load %arg9[%c0_86, %c21_87] : memref<8x110xbf16, #tpu.memory_space<vmem>>, vector<8x80xbf16>
    %c56 = arith.constant 56 : index
    %c0_88 = arith.constant 0 : index
    %99 = vector.load %arg10[%c56, %c0_88] : memref<72x80xbf16, #tpu.memory_space<vmem>>, vector<8x80xbf16>
    tpu.vector_store %arg10[%c56, %c0_88], %98 {strides = array<i32>} : memref<72x80xbf16, #tpu.memory_space<vmem>>, vector<8x80xbf16>,
    %c0_89 = arith.constant 0 : index
    %c22_90 = arith.constant 22 : index
    %100 = vector.load %arg9[%c0_89, %c22_90] : memref<8x110xbf16, #tpu.memory_space<vmem>>, vector<8x80xbf16>
    %c64_91 = arith.constant 64 : index
    %c0_92 = arith.constant 0 : index
    %101 = vector.load %arg10[%c64_91, %c0_92] : memref<72x80xbf16, #tpu.memory_space<vmem>>, vector<8x80xbf16>
    tpu.vector_store %arg10[%c64_91, %c0_92], %100 {strides = array<i32>} : memref<72x80xbf16, #tpu.memory_space<vmem>>, vector<8x80xbf16>,
    %c0_93 = arith.constant 0 : index
    %c0_94 = arith.constant 0 : index
    %102 = vector.load %arg5[%c0_93, %c0_94] : memref<8x72xbf16, #tpu.memory_space<vmem>>, vector<8x72xbf16>
    %c0_95 = arith.constant 0 : index
    %c0_96 = arith.constant 0 : index
    %103 = vector.load %arg10[%c0_95, %c0_96] : memref<72x80xbf16, #tpu.memory_space<vmem>>, vector<72x80xbf16>
    %cst_97 = arith.constant dense<0.000000e+00> : vector<8x80xf32>
    %104 = tpu.matmul %102, %103, %cst_97 {dimension_numbers = #tpu.dot_dimension_numbers<[1], [0], [0], [1], [0, 0, 1, 1], [], []>} : vector<8x72xbf16>, vector<72x80xbf16>, vector<8x80xf32> -> vector<8x80xf32>
    %105 = vector.broadcast %0 : vector<1x80xf32> to vector<8x80xf32>
    %106 = arith.mulf %104, %105 : vector<8x80xf32>
    %cst_98 = arith.constant dense<0.000000e+00> : vector<8xf32>
    %107 = vector.multi_reduction <add>, %106, %cst_98 [1] : vector<8x80xf32> to vector<8xf32>
    %108 = vector.shape_cast %107 : vector<8xf32> to vector<8x1xf32>
    %cst_99 = arith.constant 1.562500e-02 : f32
    %109 = vector.broadcast %cst_99 : f32 to vector<8x1xf32>
    %110 = arith.mulf %108, %109 : vector<8x1xf32>
    %111 = arith.mulf %106, %106 : vector<8x80xf32>
    %cst_100 = arith.constant dense<0.000000e+00> : vector<8xf32>
    %112 = vector.multi_reduction <add>, %111, %cst_100 [1] : vector<8x80xf32> to vector<8xf32>
    %113 = vector.shape_cast %112 : vector<8xf32> to vector<8x1xf32>
    %cst_101 = arith.constant 1.562500e-02 : f32
    %114 = vector.broadcast %cst_101 : f32 to vector<8x1xf32>
    %115 = arith.mulf %113, %114 : vector<8x1xf32>
    %116 = arith.mulf %110, %110 : vector<8x1xf32>
    %117 = arith.subf %115, %116 : vector<8x1xf32>
    %cst_102 = arith.constant 0.000000e+00 : f32
    %118 = vector.broadcast %cst_102 : f32 to vector<8x1xf32>
    %119 = arith.maximumf %117, %118 : vector<8x1xf32>
    %120 = vector.broadcast %110 : vector<8x1xf32> to vector<8x80xf32>
    %121 = arith.subf %106, %120 : vector<8x80xf32>
    %cst_103 = arith.constant 9.99999974E-6 : f32
    %122 = vector.broadcast %cst_103 : f32 to vector<8x1xf32>
    %123 = arith.addf %119, %122 : vector<8x1xf32>
    %124 = math.rsqrt %123 : vector<8x1xf32>
    %125 = vector.broadcast %124 : vector<8x1xf32> to vector<8x80xf32>
    %126 = arith.mulf %121, %125 : vector<8x80xf32>
    %cst_104 = arith.constant 0.000000e+00 : f32
    %127 = vector.broadcast %cst_104 : f32 to vector<8x80xf32>
    %128 = arith.maximumf %126, %127 : vector<8x80xf32>
    %129 = vector.broadcast %0 : vector<1x80xf32> to vector<8x80xf32>
    %130 = arith.mulf %128, %129 : vector<8x80xf32>
    %cst_105 = arith.constant 0.000000e+00 : bf16
    %131 = vector.broadcast %cst_105 : bf16 to vector<1x8x110xbf16>
    %c0_106 = arith.constant 0 : index
    %c0_107 = arith.constant 0 : index
    %c0_108 = arith.constant 0 : index
    %132 = vector.load %arg7[%c0_106, %c0_107, %c0_108] : memref<1x8x110xbf16, #tpu.memory_space<vmem>>, vector<1x8x110xbf16>
    tpu.vector_store %arg7[%c0_106, %c0_107, %c0_108], %131 {strides = array<i32>} : memref<1x8x110xbf16, #tpu.memory_space<vmem>>, vector<1x8x110xbf16>,
    %133 = arith.truncf %130 : vector<8x80xf32> to vector<8x80xbf16>
    %c0_109 = arith.constant 0 : index
    %c0_110 = arith.constant 0 : index
    %c11_111 = arith.constant 11 : index
    %134 = vector.load %arg7[%c0_109, %c0_110, %c11_111] : memref<1x8x110xbf16, #tpu.memory_space<vmem>>, vector<1x8x80xbf16>
    %135 = vector.shape_cast %134 : vector<1x8x80xbf16> to vector<8x80xbf16>
    %136 = vector.shape_cast %133 : vector<8x80xbf16> to vector<1x8x80xbf16>
    tpu.vector_store %arg7[%c0_109, %c0_110, %c11_111], %136 {strides = array<i32>} : memref<1x8x110xbf16, #tpu.memory_space<vmem>>, vector<1x8x80xbf16>,
    return
  }
  func.func @transform_0(%arg0: i32) -> (i32, i32, i32) {
    %c0_i32 = arith.constant 0 : i32
    %c0_i32_0 = arith.constant 0 : i32
    %c0_i32_1 = arith.constant 0 : i32
    return %arg0, %c0_i32, %c0_i32_0 : i32, i32, i32
  }
  func.func @transform_1(%arg0: i32) -> (i32, i32, i32) {
    %c0_i32 = arith.constant 0 : i32
    %c0_i32_0 = arith.constant 0 : i32
    %c0_i32_1 = arith.constant 0 : i32
    return %arg0, %c0_i32, %c0_i32_0 : i32, i32, i32
  }
  func.func @transform_2(%arg0: i32) -> (i32, i32) {
    %c0_i32 = arith.constant 0 : i32
    %c0_i32_0 = arith.constant 0 : i32
    %c0_i32_1 = arith.constant 0 : i32
    return %c0_i32, %c0_i32_0 : i32, i32
  }
  func.func @transform_3(%arg0: i32) -> (i32, i32) {
    %c0_i32 = arith.constant 0 : i32
    %c0_i32_0 = arith.constant 0 : i32
    %c0_i32_1 = arith.constant 0 : i32
    return %c0_i32, %c0_i32_0 : i32, i32
  }
  func.func @transform_4(%arg0: i32) -> (i32, i32) {
    %c0_i32 = arith.constant 0 : i32
    %c0_i32_0 = arith.constant 0 : i32
    %c0_i32_1 = arith.constant 0 : i32
    return %c0_i32, %c0_i32_0 : i32, i32
  }
  func.func @transform_5(%arg0: i32) -> (i32, i32) {
    %c0_i32 = arith.constant 0 : i32
    %c0_i32_0 = arith.constant 0 : i32
    %c0_i32_1 = arith.constant 0 : i32
    return %c0_i32, %c0_i32_0 : i32, i32
  }
  func.func @transform_6(%arg0: i32) -> (i32, i32, i32) {
    %c0_i32 = arith.constant 0 : i32
    %c0_i32_0 = arith.constant 0 : i32
    %c0_i32_1 = arith.constant 0 : i32
    return %arg0, %c0_i32, %c0_i32_0 : i32, i32, i32
  }
}

module attributes {stable_mosaic.version = 11 : i64} {
  func.func @_conv_block_kernel(%arg0: i32, %arg1: memref<1x8x110xbf16, #tpu.memory_space<vmem>>, %arg2: memref<1x8x342xbf16, #tpu.memory_space<vmem>>, %arg3: memref<110x342xbf16, #tpu.memory_space<vmem>>, %arg4: memref<8x144xbf16, #tpu.memory_space<vmem>>, %arg5: memref<8x72xbf16, #tpu.memory_space<vmem>>, %arg6: memref<1x288xf32, #tpu.memory_space<vmem>>, %arg7: memref<1x8x342xbf16, #tpu.memory_space<vmem>>, %arg8: memref<144x288xbf16, #tpu.memory_space<vmem>>, %arg9: memref<8x342xbf16, #tpu.memory_space<vmem>>, %arg10: memref<72x288xbf16, #tpu.memory_space<vmem>>) attributes {dimension_semantics = [#tpu.dimension_semantics<parallel>], iteration_bounds = array<i64: 2>, scalar_prefetch = 0 : i64, scratch_operands = 3 : i64, tpu.core_type = #tpu.core_type<tc>, window_params = [{transform_indices = @transform_0, window_bounds = array<i64: 1, 8, 110>}, {transform_indices = @transform_1, window_bounds = array<i64: 1, 8, 342>}, {pipeline_mode = #tpu.pipeline_mode<synchronous>, transform_indices = @transform_2, window_bounds = array<i64: 110, 342>}, {pipeline_mode = #tpu.pipeline_mode<synchronous>, transform_indices = @transform_3, window_bounds = array<i64: 8, 144>}, {pipeline_mode = #tpu.pipeline_mode<synchronous>, transform_indices = @transform_4, window_bounds = array<i64: 8, 72>}, {pipeline_mode = #tpu.pipeline_mode<synchronous>, transform_indices = @transform_5, window_bounds = array<i64: 1, 288>}, {transform_indices = @transform_6, window_bounds = array<i64: 1, 8, 342>}]} {
    %c0 = arith.constant 0 : index
    %c0_0 = arith.constant 0 : index
    %0 = vector.load %arg6[%c0, %c0_0] : memref<1x288xf32, #tpu.memory_space<vmem>>, vector<1x288xf32>
    %c0_1 = arith.constant 0 : index
    %c0_2 = arith.constant 0 : index
    %c0_3 = arith.constant 0 : index
    %1 = vector.load %arg1[%c0_1, %c0_2, %c0_3] : memref<1x8x110xbf16, #tpu.memory_space<vmem>>, vector<1x8x110xbf16>
    %2 = vector.shape_cast %1 : vector<1x8x110xbf16> to vector<8x110xbf16>
    %c0_4 = arith.constant 0 : index
    %c0_5 = arith.constant 0 : index
    %3 = vector.load %arg3[%c0_4, %c0_5] : memref<110x342xbf16, #tpu.memory_space<vmem>>, vector<110x342xbf16>
    %cst = arith.constant dense<0.000000e+00> : vector<8x342xf32>
    %4 = tpu.matmul %2, %3, %cst {dimension_numbers = #tpu.dot_dimension_numbers<[1], [0], [0], [1], [0, 0, 1, 1], [], []>} : vector<8x110xbf16>, vector<110x342xbf16>, vector<8x342xf32> -> vector<8x342xf32>
    %5 = arith.truncf %4 : vector<8x342xf32> to vector<8x342xbf16>
    %6 = vector.extract_strided_slice %5 {offsets = [0, 0], sizes = [8, 288], strides = [1, 1]} : vector<8x342xbf16> to vector<8x288xbf16>
    %c0_6 = arith.constant 0 : index
    %c0_7 = arith.constant 0 : index
    %7 = vector.load %arg8[%c0_6, %c0_7] : memref<144x288xbf16, #tpu.memory_space<vmem>>, vector<8x288xbf16>
    tpu.vector_store %arg8[%c0_6, %c0_7], %6 {strides = array<i32>} : memref<144x288xbf16, #tpu.memory_space<vmem>>, vector<8x288xbf16>,
    %8 = vector.extract_strided_slice %5 {offsets = [0, 1], sizes = [8, 288], strides = [1, 1]} : vector<8x342xbf16> to vector<8x288xbf16>
    %c8 = arith.constant 8 : index
    %c0_8 = arith.constant 0 : index
    %9 = vector.load %arg8[%c8, %c0_8] : memref<144x288xbf16, #tpu.memory_space<vmem>>, vector<8x288xbf16>
    tpu.vector_store %arg8[%c8, %c0_8], %8 {strides = array<i32>} : memref<144x288xbf16, #tpu.memory_space<vmem>>, vector<8x288xbf16>,
    %10 = vector.extract_strided_slice %5 {offsets = [0, 2], sizes = [8, 288], strides = [1, 1]} : vector<8x342xbf16> to vector<8x288xbf16>
    %c16 = arith.constant 16 : index
    %c0_9 = arith.constant 0 : index
    %11 = vector.load %arg8[%c16, %c0_9] : memref<144x288xbf16, #tpu.memory_space<vmem>>, vector<8x288xbf16>
    tpu.vector_store %arg8[%c16, %c0_9], %10 {strides = array<i32>} : memref<144x288xbf16, #tpu.memory_space<vmem>>, vector<8x288xbf16>,
    %12 = vector.extract_strided_slice %5 {offsets = [0, 18], sizes = [8, 288], strides = [1, 1]} : vector<8x342xbf16> to vector<8x288xbf16>
    %c24 = arith.constant 24 : index
    %c0_10 = arith.constant 0 : index
    %13 = vector.load %arg8[%c24, %c0_10] : memref<144x288xbf16, #tpu.memory_space<vmem>>, vector<8x288xbf16>
    tpu.vector_store %arg8[%c24, %c0_10], %12 {strides = array<i32>} : memref<144x288xbf16, #tpu.memory_space<vmem>>, vector<8x288xbf16>,
    %14 = vector.extract_strided_slice %5 {offsets = [0, 19], sizes = [8, 288], strides = [1, 1]} : vector<8x342xbf16> to vector<8x288xbf16>
    %c32 = arith.constant 32 : index
    %c0_11 = arith.constant 0 : index
    %15 = vector.load %arg8[%c32, %c0_11] : memref<144x288xbf16, #tpu.memory_space<vmem>>, vector<8x288xbf16>
    tpu.vector_store %arg8[%c32, %c0_11], %14 {strides = array<i32>} : memref<144x288xbf16, #tpu.memory_space<vmem>>, vector<8x288xbf16>,
    %16 = vector.extract_strided_slice %5 {offsets = [0, 20], sizes = [8, 288], strides = [1, 1]} : vector<8x342xbf16> to vector<8x288xbf16>
    %c40 = arith.constant 40 : index
    %c0_12 = arith.constant 0 : index
    %17 = vector.load %arg8[%c40, %c0_12] : memref<144x288xbf16, #tpu.memory_space<vmem>>, vector<8x288xbf16>
    tpu.vector_store %arg8[%c40, %c0_12], %16 {strides = array<i32>} : memref<144x288xbf16, #tpu.memory_space<vmem>>, vector<8x288xbf16>,
    %18 = vector.extract_strided_slice %5 {offsets = [0, 36], sizes = [8, 288], strides = [1, 1]} : vector<8x342xbf16> to vector<8x288xbf16>
    %c48 = arith.constant 48 : index
    %c0_13 = arith.constant 0 : index
    %19 = vector.load %arg8[%c48, %c0_13] : memref<144x288xbf16, #tpu.memory_space<vmem>>, vector<8x288xbf16>
    tpu.vector_store %arg8[%c48, %c0_13], %18 {strides = array<i32>} : memref<144x288xbf16, #tpu.memory_space<vmem>>, vector<8x288xbf16>,
    %20 = vector.extract_strided_slice %5 {offsets = [0, 37], sizes = [8, 288], strides = [1, 1]} : vector<8x342xbf16> to vector<8x288xbf16>
    %c56 = arith.constant 56 : index
    %c0_14 = arith.constant 0 : index
    %21 = vector.load %arg8[%c56, %c0_14] : memref<144x288xbf16, #tpu.memory_space<vmem>>, vector<8x288xbf16>
    tpu.vector_store %arg8[%c56, %c0_14], %20 {strides = array<i32>} : memref<144x288xbf16, #tpu.memory_space<vmem>>, vector<8x288xbf16>,
    %22 = vector.extract_strided_slice %5 {offsets = [0, 38], sizes = [8, 288], strides = [1, 1]} : vector<8x342xbf16> to vector<8x288xbf16>
    %c64 = arith.constant 64 : index
    %c0_15 = arith.constant 0 : index
    %23 = vector.load %arg8[%c64, %c0_15] : memref<144x288xbf16, #tpu.memory_space<vmem>>, vector<8x288xbf16>
    tpu.vector_store %arg8[%c64, %c0_15], %22 {strides = array<i32>} : memref<144x288xbf16, #tpu.memory_space<vmem>>, vector<8x288xbf16>,
    %c0_16 = arith.constant 0 : index
    %c0_17 = arith.constant 0 : index
    %c0_18 = arith.constant 0 : index
    %24 = vector.load %arg2[%c0_16, %c0_17, %c0_18] : memref<1x8x342xbf16, #tpu.memory_space<vmem>>, vector<1x8x288xbf16>
    %25 = vector.shape_cast %24 : vector<1x8x288xbf16> to vector<8x288xbf16>
    %c72 = arith.constant 72 : index
    %c0_19 = arith.constant 0 : index
    %26 = vector.load %arg8[%c72, %c0_19] : memref<144x288xbf16, #tpu.memory_space<vmem>>, vector<8x288xbf16>
    tpu.vector_store %arg8[%c72, %c0_19], %25 {strides = array<i32>} : memref<144x288xbf16, #tpu.memory_space<vmem>>, vector<8x288xbf16>,
    %c0_20 = arith.constant 0 : index
    %c0_21 = arith.constant 0 : index
    %c1 = arith.constant 1 : index
    %27 = vector.load %arg2[%c0_20, %c0_21, %c1] : memref<1x8x342xbf16, #tpu.memory_space<vmem>>, vector<1x8x288xbf16>
    %28 = vector.shape_cast %27 : vector<1x8x288xbf16> to vector<8x288xbf16>
    %c80 = arith.constant 80 : index
    %c0_22 = arith.constant 0 : index
    %29 = vector.load %arg8[%c80, %c0_22] : memref<144x288xbf16, #tpu.memory_space<vmem>>, vector<8x288xbf16>
    tpu.vector_store %arg8[%c80, %c0_22], %28 {strides = array<i32>} : memref<144x288xbf16, #tpu.memory_space<vmem>>, vector<8x288xbf16>,
    %c0_23 = arith.constant 0 : index
    %c0_24 = arith.constant 0 : index
    %c2 = arith.constant 2 : index
    %30 = vector.load %arg2[%c0_23, %c0_24, %c2] : memref<1x8x342xbf16, #tpu.memory_space<vmem>>, vector<1x8x288xbf16>
    %31 = vector.shape_cast %30 : vector<1x8x288xbf16> to vector<8x288xbf16>
    %c88 = arith.constant 88 : index
    %c0_25 = arith.constant 0 : index
    %32 = vector.load %arg8[%c88, %c0_25] : memref<144x288xbf16, #tpu.memory_space<vmem>>, vector<8x288xbf16>
    tpu.vector_store %arg8[%c88, %c0_25], %31 {strides = array<i32>} : memref<144x288xbf16, #tpu.memory_space<vmem>>, vector<8x288xbf16>,
    %c0_26 = arith.constant 0 : index
    %c0_27 = arith.constant 0 : index
    %c18 = arith.constant 18 : index
    %33 = vector.load %arg2[%c0_26, %c0_27, %c18] : memref<1x8x342xbf16, #tpu.memory_space<vmem>>, vector<1x8x288xbf16>
    %34 = vector.shape_cast %33 : vector<1x8x288xbf16> to vector<8x288xbf16>
    %c96 = arith.constant 96 : index
    %c0_28 = arith.constant 0 : index
    %35 = vector.load %arg8[%c96, %c0_28] : memref<144x288xbf16, #tpu.memory_space<vmem>>, vector<8x288xbf16>
    tpu.vector_store %arg8[%c96, %c0_28], %34 {strides = array<i32>} : memref<144x288xbf16, #tpu.memory_space<vmem>>, vector<8x288xbf16>,
    %c0_29 = arith.constant 0 : index
    %c0_30 = arith.constant 0 : index
    %c19 = arith.constant 19 : index
    %36 = vector.load %arg2[%c0_29, %c0_30, %c19] : memref<1x8x342xbf16, #tpu.memory_space<vmem>>, vector<1x8x288xbf16>
    %37 = vector.shape_cast %36 : vector<1x8x288xbf16> to vector<8x288xbf16>
    %c104 = arith.constant 104 : index
    %c0_31 = arith.constant 0 : index
    %38 = vector.load %arg8[%c104, %c0_31] : memref<144x288xbf16, #tpu.memory_space<vmem>>, vector<8x288xbf16>
    tpu.vector_store %arg8[%c104, %c0_31], %37 {strides = array<i32>} : memref<144x288xbf16, #tpu.memory_space<vmem>>, vector<8x288xbf16>,
    %c0_32 = arith.constant 0 : index
    %c0_33 = arith.constant 0 : index
    %c20 = arith.constant 20 : index
    %39 = vector.load %arg2[%c0_32, %c0_33, %c20] : memref<1x8x342xbf16, #tpu.memory_space<vmem>>, vector<1x8x288xbf16>
    %40 = vector.shape_cast %39 : vector<1x8x288xbf16> to vector<8x288xbf16>
    %c112 = arith.constant 112 : index
    %c0_34 = arith.constant 0 : index
    %41 = vector.load %arg8[%c112, %c0_34] : memref<144x288xbf16, #tpu.memory_space<vmem>>, vector<8x288xbf16>
    tpu.vector_store %arg8[%c112, %c0_34], %40 {strides = array<i32>} : memref<144x288xbf16, #tpu.memory_space<vmem>>, vector<8x288xbf16>,
    %c0_35 = arith.constant 0 : index
    %c0_36 = arith.constant 0 : index
    %c36 = arith.constant 36 : index
    %42 = vector.load %arg2[%c0_35, %c0_36, %c36] : memref<1x8x342xbf16, #tpu.memory_space<vmem>>, vector<1x8x288xbf16>
    %43 = vector.shape_cast %42 : vector<1x8x288xbf16> to vector<8x288xbf16>
    %c120 = arith.constant 120 : index
    %c0_37 = arith.constant 0 : index
    %44 = vector.load %arg8[%c120, %c0_37] : memref<144x288xbf16, #tpu.memory_space<vmem>>, vector<8x288xbf16>
    tpu.vector_store %arg8[%c120, %c0_37], %43 {strides = array<i32>} : memref<144x288xbf16, #tpu.memory_space<vmem>>, vector<8x288xbf16>,
    %c0_38 = arith.constant 0 : index
    %c0_39 = arith.constant 0 : index
    %c37 = arith.constant 37 : index
    %45 = vector.load %arg2[%c0_38, %c0_39, %c37] : memref<1x8x342xbf16, #tpu.memory_space<vmem>>, vector<1x8x288xbf16>
    %46 = vector.shape_cast %45 : vector<1x8x288xbf16> to vector<8x288xbf16>
    %c128 = arith.constant 128 : index
    %c0_40 = arith.constant 0 : index
    %47 = vector.load %arg8[%c128, %c0_40] : memref<144x288xbf16, #tpu.memory_space<vmem>>, vector<8x288xbf16>
    tpu.vector_store %arg8[%c128, %c0_40], %46 {strides = array<i32>} : memref<144x288xbf16, #tpu.memory_space<vmem>>, vector<8x288xbf16>,
    %c0_41 = arith.constant 0 : index
    %c0_42 = arith.constant 0 : index
    %c38 = arith.constant 38 : index
    %48 = vector.load %arg2[%c0_41, %c0_42, %c38] : memref<1x8x342xbf16, #tpu.memory_space<vmem>>, vector<1x8x288xbf16>
    %49 = vector.shape_cast %48 : vector<1x8x288xbf16> to vector<8x288xbf16>
    %c136 = arith.constant 136 : index
    %c0_43 = arith.constant 0 : index
    %50 = vector.load %arg8[%c136, %c0_43] : memref<144x288xbf16, #tpu.memory_space<vmem>>, vector<8x288xbf16>
    tpu.vector_store %arg8[%c136, %c0_43], %49 {strides = array<i32>} : memref<144x288xbf16, #tpu.memory_space<vmem>>, vector<8x288xbf16>,
    %c0_44 = arith.constant 0 : index
    %c0_45 = arith.constant 0 : index
    %51 = vector.load %arg4[%c0_44, %c0_45] : memref<8x144xbf16, #tpu.memory_space<vmem>>, vector<8x144xbf16>
    %c0_46 = arith.constant 0 : index
    %c0_47 = arith.constant 0 : index
    %52 = vector.load %arg8[%c0_46, %c0_47] : memref<144x288xbf16, #tpu.memory_space<vmem>>, vector<144x288xbf16>
    %cst_48 = arith.constant dense<0.000000e+00> : vector<8x288xf32>
    %53 = tpu.matmul %51, %52, %cst_48 {dimension_numbers = #tpu.dot_dimension_numbers<[1], [0], [0], [1], [0, 0, 1, 1], [], []>} : vector<8x144xbf16>, vector<144x288xbf16>, vector<8x288xf32> -> vector<8x288xf32>
    %54 = vector.broadcast %0 : vector<1x288xf32> to vector<8x288xf32>
    %55 = arith.mulf %53, %54 : vector<8x288xf32>
    %cst_49 = arith.constant dense<0.000000e+00> : vector<8xf32>
    %56 = vector.multi_reduction <add>, %55, %cst_49 [1] : vector<8x288xf32> to vector<8xf32>
    %57 = vector.shape_cast %56 : vector<8xf32> to vector<8x1xf32>
    %cst_50 = arith.constant 3.906250e-03 : f32
    %58 = vector.broadcast %cst_50 : f32 to vector<8x1xf32>
    %59 = arith.mulf %57, %58 : vector<8x1xf32>
    %60 = arith.mulf %55, %55 : vector<8x288xf32>
    %cst_51 = arith.constant dense<0.000000e+00> : vector<8xf32>
    %61 = vector.multi_reduction <add>, %60, %cst_51 [1] : vector<8x288xf32> to vector<8xf32>
    %62 = vector.shape_cast %61 : vector<8xf32> to vector<8x1xf32>
    %cst_52 = arith.constant 3.906250e-03 : f32
    %63 = vector.broadcast %cst_52 : f32 to vector<8x1xf32>
    %64 = arith.mulf %62, %63 : vector<8x1xf32>
    %65 = arith.mulf %59, %59 : vector<8x1xf32>
    %66 = arith.subf %64, %65 : vector<8x1xf32>
    %cst_53 = arith.constant 0.000000e+00 : f32
    %67 = vector.broadcast %cst_53 : f32 to vector<8x1xf32>
    %68 = arith.maximumf %66, %67 : vector<8x1xf32>
    %69 = vector.broadcast %59 : vector<8x1xf32> to vector<8x288xf32>
    %70 = arith.subf %55, %69 : vector<8x288xf32>
    %cst_54 = arith.constant 9.99999974E-6 : f32
    %71 = vector.broadcast %cst_54 : f32 to vector<8x1xf32>
    %72 = arith.addf %68, %71 : vector<8x1xf32>
    %73 = math.rsqrt %72 : vector<8x1xf32>
    %74 = vector.broadcast %73 : vector<8x1xf32> to vector<8x288xf32>
    %75 = arith.mulf %70, %74 : vector<8x288xf32>
    %cst_55 = arith.constant 0.000000e+00 : f32
    %76 = vector.broadcast %cst_55 : f32 to vector<8x288xf32>
    %77 = arith.maximumf %75, %76 : vector<8x288xf32>
    %78 = vector.broadcast %0 : vector<1x288xf32> to vector<8x288xf32>
    %79 = arith.mulf %77, %78 : vector<8x288xf32>
    %cst_56 = arith.constant 0.000000e+00 : bf16
    %80 = vector.broadcast %cst_56 : bf16 to vector<8x342xbf16>
    %c0_57 = arith.constant 0 : index
    %c0_58 = arith.constant 0 : index
    %81 = vector.load %arg9[%c0_57, %c0_58] : memref<8x342xbf16, #tpu.memory_space<vmem>>, vector<8x342xbf16>
    tpu.vector_store %arg9[%c0_57, %c0_58], %80 {strides = array<i32>} : memref<8x342xbf16, #tpu.memory_space<vmem>>, vector<8x342xbf16>,
    %82 = arith.truncf %79 : vector<8x288xf32> to vector<8x288xbf16>
    %c0_59 = arith.constant 0 : index
    %c19_60 = arith.constant 19 : index
    %83 = vector.load %arg9[%c0_59, %c19_60] : memref<8x342xbf16, #tpu.memory_space<vmem>>, vector<8x288xbf16>
    tpu.vector_store %arg9[%c0_59, %c19_60], %82 {strides = array<i32>} : memref<8x342xbf16, #tpu.memory_space<vmem>>, vector<8x288xbf16>,
    %c0_61 = arith.constant 0 : index
    %c0_62 = arith.constant 0 : index
    %84 = vector.load %arg9[%c0_61, %c0_62] : memref<8x342xbf16, #tpu.memory_space<vmem>>, vector<8x288xbf16>
    %c0_63 = arith.constant 0 : index
    %c0_64 = arith.constant 0 : index
    %85 = vector.load %arg10[%c0_63, %c0_64] : memref<72x288xbf16, #tpu.memory_space<vmem>>, vector<8x288xbf16>
    tpu.vector_store %arg10[%c0_63, %c0_64], %84 {strides = array<i32>} : memref<72x288xbf16, #tpu.memory_space<vmem>>, vector<8x288xbf16>,
    %c0_65 = arith.constant 0 : index
    %c1_66 = arith.constant 1 : index
    %86 = vector.load %arg9[%c0_65, %c1_66] : memref<8x342xbf16, #tpu.memory_space<vmem>>, vector<8x288xbf16>
    %c8_67 = arith.constant 8 : index
    %c0_68 = arith.constant 0 : index
    %87 = vector.load %arg10[%c8_67, %c0_68] : memref<72x288xbf16, #tpu.memory_space<vmem>>, vector<8x288xbf16>
    tpu.vector_store %arg10[%c8_67, %c0_68], %86 {strides = array<i32>} : memref<72x288xbf16, #tpu.memory_space<vmem>>, vector<8x288xbf16>,
    %c0_69 = arith.constant 0 : index
    %c2_70 = arith.constant 2 : index
    %88 = vector.load %arg9[%c0_69, %c2_70] : memref<8x342xbf16, #tpu.memory_space<vmem>>, vector<8x288xbf16>
    %c16_71 = arith.constant 16 : index
    %c0_72 = arith.constant 0 : index
    %89 = vector.load %arg10[%c16_71, %c0_72] : memref<72x288xbf16, #tpu.memory_space<vmem>>, vector<8x288xbf16>
    tpu.vector_store %arg10[%c16_71, %c0_72], %88 {strides = array<i32>} : memref<72x288xbf16, #tpu.memory_space<vmem>>, vector<8x288xbf16>,
    %c0_73 = arith.constant 0 : index
    %c18_74 = arith.constant 18 : index
    %90 = vector.load %arg9[%c0_73, %c18_74] : memref<8x342xbf16, #tpu.memory_space<vmem>>, vector<8x288xbf16>
    %c24_75 = arith.constant 24 : index
    %c0_76 = arith.constant 0 : index
    %91 = vector.load %arg10[%c24_75, %c0_76] : memref<72x288xbf16, #tpu.memory_space<vmem>>, vector<8x288xbf16>
    tpu.vector_store %arg10[%c24_75, %c0_76], %90 {strides = array<i32>} : memref<72x288xbf16, #tpu.memory_space<vmem>>, vector<8x288xbf16>,
    %c0_77 = arith.constant 0 : index
    %c19_78 = arith.constant 19 : index
    %92 = vector.load %arg9[%c0_77, %c19_78] : memref<8x342xbf16, #tpu.memory_space<vmem>>, vector<8x288xbf16>
    %c32_79 = arith.constant 32 : index
    %c0_80 = arith.constant 0 : index
    %93 = vector.load %arg10[%c32_79, %c0_80] : memref<72x288xbf16, #tpu.memory_space<vmem>>, vector<8x288xbf16>
    tpu.vector_store %arg10[%c32_79, %c0_80], %92 {strides = array<i32>} : memref<72x288xbf16, #tpu.memory_space<vmem>>, vector<8x288xbf16>,
    %c0_81 = arith.constant 0 : index
    %c20_82 = arith.constant 20 : index
    %94 = vector.load %arg9[%c0_81, %c20_82] : memref<8x342xbf16, #tpu.memory_space<vmem>>, vector<8x288xbf16>
    %c40_83 = arith.constant 40 : index
    %c0_84 = arith.constant 0 : index
    %95 = vector.load %arg10[%c40_83, %c0_84] : memref<72x288xbf16, #tpu.memory_space<vmem>>, vector<8x288xbf16>
    tpu.vector_store %arg10[%c40_83, %c0_84], %94 {strides = array<i32>} : memref<72x288xbf16, #tpu.memory_space<vmem>>, vector<8x288xbf16>,
    %c0_85 = arith.constant 0 : index
    %c36_86 = arith.constant 36 : index
    %96 = vector.load %arg9[%c0_85, %c36_86] : memref<8x342xbf16, #tpu.memory_space<vmem>>, vector<8x288xbf16>
    %c48_87 = arith.constant 48 : index
    %c0_88 = arith.constant 0 : index
    %97 = vector.load %arg10[%c48_87, %c0_88] : memref<72x288xbf16, #tpu.memory_space<vmem>>, vector<8x288xbf16>
    tpu.vector_store %arg10[%c48_87, %c0_88], %96 {strides = array<i32>} : memref<72x288xbf16, #tpu.memory_space<vmem>>, vector<8x288xbf16>,
    %c0_89 = arith.constant 0 : index
    %c37_90 = arith.constant 37 : index
    %98 = vector.load %arg9[%c0_89, %c37_90] : memref<8x342xbf16, #tpu.memory_space<vmem>>, vector<8x288xbf16>
    %c56_91 = arith.constant 56 : index
    %c0_92 = arith.constant 0 : index
    %99 = vector.load %arg10[%c56_91, %c0_92] : memref<72x288xbf16, #tpu.memory_space<vmem>>, vector<8x288xbf16>
    tpu.vector_store %arg10[%c56_91, %c0_92], %98 {strides = array<i32>} : memref<72x288xbf16, #tpu.memory_space<vmem>>, vector<8x288xbf16>,
    %c0_93 = arith.constant 0 : index
    %c38_94 = arith.constant 38 : index
    %100 = vector.load %arg9[%c0_93, %c38_94] : memref<8x342xbf16, #tpu.memory_space<vmem>>, vector<8x288xbf16>
    %c64_95 = arith.constant 64 : index
    %c0_96 = arith.constant 0 : index
    %101 = vector.load %arg10[%c64_95, %c0_96] : memref<72x288xbf16, #tpu.memory_space<vmem>>, vector<8x288xbf16>
    tpu.vector_store %arg10[%c64_95, %c0_96], %100 {strides = array<i32>} : memref<72x288xbf16, #tpu.memory_space<vmem>>, vector<8x288xbf16>,
    %c0_97 = arith.constant 0 : index
    %c0_98 = arith.constant 0 : index
    %102 = vector.load %arg5[%c0_97, %c0_98] : memref<8x72xbf16, #tpu.memory_space<vmem>>, vector<8x72xbf16>
    %c0_99 = arith.constant 0 : index
    %c0_100 = arith.constant 0 : index
    %103 = vector.load %arg10[%c0_99, %c0_100] : memref<72x288xbf16, #tpu.memory_space<vmem>>, vector<72x288xbf16>
    %cst_101 = arith.constant dense<0.000000e+00> : vector<8x288xf32>
    %104 = tpu.matmul %102, %103, %cst_101 {dimension_numbers = #tpu.dot_dimension_numbers<[1], [0], [0], [1], [0, 0, 1, 1], [], []>} : vector<8x72xbf16>, vector<72x288xbf16>, vector<8x288xf32> -> vector<8x288xf32>
    %105 = vector.broadcast %0 : vector<1x288xf32> to vector<8x288xf32>
    %106 = arith.mulf %104, %105 : vector<8x288xf32>
    %cst_102 = arith.constant dense<0.000000e+00> : vector<8xf32>
    %107 = vector.multi_reduction <add>, %106, %cst_102 [1] : vector<8x288xf32> to vector<8xf32>
    %108 = vector.shape_cast %107 : vector<8xf32> to vector<8x1xf32>
    %cst_103 = arith.constant 3.906250e-03 : f32
    %109 = vector.broadcast %cst_103 : f32 to vector<8x1xf32>
    %110 = arith.mulf %108, %109 : vector<8x1xf32>
    %111 = arith.mulf %106, %106 : vector<8x288xf32>
    %cst_104 = arith.constant dense<0.000000e+00> : vector<8xf32>
    %112 = vector.multi_reduction <add>, %111, %cst_104 [1] : vector<8x288xf32> to vector<8xf32>
    %113 = vector.shape_cast %112 : vector<8xf32> to vector<8x1xf32>
    %cst_105 = arith.constant 3.906250e-03 : f32
    %114 = vector.broadcast %cst_105 : f32 to vector<8x1xf32>
    %115 = arith.mulf %113, %114 : vector<8x1xf32>
    %116 = arith.mulf %110, %110 : vector<8x1xf32>
    %117 = arith.subf %115, %116 : vector<8x1xf32>
    %cst_106 = arith.constant 0.000000e+00 : f32
    %118 = vector.broadcast %cst_106 : f32 to vector<8x1xf32>
    %119 = arith.maximumf %117, %118 : vector<8x1xf32>
    %120 = vector.broadcast %110 : vector<8x1xf32> to vector<8x288xf32>
    %121 = arith.subf %106, %120 : vector<8x288xf32>
    %cst_107 = arith.constant 9.99999974E-6 : f32
    %122 = vector.broadcast %cst_107 : f32 to vector<8x1xf32>
    %123 = arith.addf %119, %122 : vector<8x1xf32>
    %124 = math.rsqrt %123 : vector<8x1xf32>
    %125 = vector.broadcast %124 : vector<8x1xf32> to vector<8x288xf32>
    %126 = arith.mulf %121, %125 : vector<8x288xf32>
    %cst_108 = arith.constant 0.000000e+00 : f32
    %127 = vector.broadcast %cst_108 : f32 to vector<8x288xf32>
    %128 = arith.maximumf %126, %127 : vector<8x288xf32>
    %129 = vector.broadcast %0 : vector<1x288xf32> to vector<8x288xf32>
    %130 = arith.mulf %128, %129 : vector<8x288xf32>
    %cst_109 = arith.constant 0.000000e+00 : bf16
    %131 = vector.broadcast %cst_109 : bf16 to vector<1x8x342xbf16>
    %c0_110 = arith.constant 0 : index
    %c0_111 = arith.constant 0 : index
    %c0_112 = arith.constant 0 : index
    %132 = vector.load %arg7[%c0_110, %c0_111, %c0_112] : memref<1x8x342xbf16, #tpu.memory_space<vmem>>, vector<1x8x342xbf16>
    tpu.vector_store %arg7[%c0_110, %c0_111, %c0_112], %131 {strides = array<i32>} : memref<1x8x342xbf16, #tpu.memory_space<vmem>>, vector<1x8x342xbf16>,
    %133 = arith.truncf %130 : vector<8x288xf32> to vector<8x288xbf16>
    %c0_113 = arith.constant 0 : index
    %c0_114 = arith.constant 0 : index
    %c19_115 = arith.constant 19 : index
    %134 = vector.load %arg7[%c0_113, %c0_114, %c19_115] : memref<1x8x342xbf16, #tpu.memory_space<vmem>>, vector<1x8x288xbf16>
    %135 = vector.shape_cast %134 : vector<1x8x288xbf16> to vector<8x288xbf16>
    %136 = vector.shape_cast %133 : vector<8x288xbf16> to vector<1x8x288xbf16>
    tpu.vector_store %arg7[%c0_113, %c0_114, %c19_115], %136 {strides = array<i32>} : memref<1x8x342xbf16, #tpu.memory_space<vmem>>, vector<1x8x288xbf16>,
    return
  }
  func.func @transform_0(%arg0: i32) -> (i32, i32, i32) {
    %c0_i32 = arith.constant 0 : i32
    %c0_i32_0 = arith.constant 0 : i32
    %c0_i32_1 = arith.constant 0 : i32
    return %arg0, %c0_i32, %c0_i32_0 : i32, i32, i32
  }
  func.func @transform_1(%arg0: i32) -> (i32, i32, i32) {
    %c0_i32 = arith.constant 0 : i32
    %c0_i32_0 = arith.constant 0 : i32
    %c0_i32_1 = arith.constant 0 : i32
    return %arg0, %c0_i32, %c0_i32_0 : i32, i32, i32
  }
  func.func @transform_2(%arg0: i32) -> (i32, i32) {
    %c0_i32 = arith.constant 0 : i32
    %c0_i32_0 = arith.constant 0 : i32
    %c0_i32_1 = arith.constant 0 : i32
    return %c0_i32, %c0_i32_0 : i32, i32
  }
  func.func @transform_3(%arg0: i32) -> (i32, i32) {
    %c0_i32 = arith.constant 0 : i32
    %c0_i32_0 = arith.constant 0 : i32
    %c0_i32_1 = arith.constant 0 : i32
    return %c0_i32, %c0_i32_0 : i32, i32
  }
  func.func @transform_4(%arg0: i32) -> (i32, i32) {
    %c0_i32 = arith.constant 0 : i32
    %c0_i32_0 = arith.constant 0 : i32
    %c0_i32_1 = arith.constant 0 : i32
    return %c0_i32, %c0_i32_0 : i32, i32
  }
  func.func @transform_5(%arg0: i32) -> (i32, i32) {
    %c0_i32 = arith.constant 0 : i32
    %c0_i32_0 = arith.constant 0 : i32
    %c0_i32_1 = arith.constant 0 : i32
    return %c0_i32, %c0_i32_0 : i32, i32
  }
  func.func @transform_6(%arg0: i32) -> (i32, i32, i32) {
    %c0_i32 = arith.constant 0 : i32
    %c0_i32_0 = arith.constant 0 : i32
    %c0_i32_1 = arith.constant 0 : i32
    return %arg0, %c0_i32, %c0_i32_0 : i32, i32, i32
  }
}

module attributes {stable_mosaic.version = 11 : i64} {
  func.func @_head_kernel(%arg0: i32, %arg1: memref<1x8x342xbf16, #tpu.memory_space<vmem>>, %arg2: memref<4x8xbf16, #tpu.memory_space<vmem>>, %arg3: memref<4x1xf32, #tpu.memory_space<vmem>>, %arg4: memref<4x4xbf16, #tpu.memory_space<vmem>>, %arg5: memref<4x1xf32, #tpu.memory_space<vmem>>, %arg6: memref<4x4xbf16, #tpu.memory_space<vmem>>, %arg7: memref<4x1xf32, #tpu.memory_space<vmem>>, %arg8: memref<1x4x342xf32, #tpu.memory_space<vmem>>) attributes {dimension_semantics = [#tpu.dimension_semantics<parallel>], iteration_bounds = array<i64: 2>, scalar_prefetch = 0 : i64, scratch_operands = 0 : i64, tpu.core_type = #tpu.core_type<tc>, window_params = [{transform_indices = @transform_0, window_bounds = array<i64: 1, 8, 342>}, {pipeline_mode = #tpu.pipeline_mode<synchronous>, transform_indices = @transform_1, window_bounds = array<i64: 4, 8>}, {pipeline_mode = #tpu.pipeline_mode<synchronous>, transform_indices = @transform_2, window_bounds = array<i64: 4, 1>}, {pipeline_mode = #tpu.pipeline_mode<synchronous>, transform_indices = @transform_3, window_bounds = array<i64: 4, 4>}, {pipeline_mode = #tpu.pipeline_mode<synchronous>, transform_indices = @transform_4, window_bounds = array<i64: 4, 1>}, {pipeline_mode = #tpu.pipeline_mode<synchronous>, transform_indices = @transform_5, window_bounds = array<i64: 4, 4>}, {pipeline_mode = #tpu.pipeline_mode<synchronous>, transform_indices = @transform_6, window_bounds = array<i64: 4, 1>}, {transform_indices = @transform_7, window_bounds = array<i64: 1, 4, 342>}]} {
    %c0 = arith.constant 0 : index
    %c0_0 = arith.constant 0 : index
    %c0_1 = arith.constant 0 : index
    %0 = vector.load %arg1[%c0, %c0_0, %c0_1] : memref<1x8x342xbf16, #tpu.memory_space<vmem>>, vector<1x8x342xbf16>
    %1 = vector.shape_cast %0 : vector<1x8x342xbf16> to vector<8x342xbf16>
    %c0_2 = arith.constant 0 : index
    %c0_3 = arith.constant 0 : index
    %2 = vector.load %arg2[%c0_2, %c0_3] : memref<4x8xbf16, #tpu.memory_space<vmem>>, vector<4x8xbf16>
    %cst = arith.constant dense<0.000000e+00> : vector<4x342xf32>
    %3 = tpu.matmul %2, %1, %cst {dimension_numbers = #tpu.dot_dimension_numbers<[1], [0], [0], [1], [0, 0, 1, 1], [], []>} : vector<4x8xbf16>, vector<8x342xbf16>, vector<4x342xf32> -> vector<4x342xf32>
    %c0_4 = arith.constant 0 : index
    %c0_5 = arith.constant 0 : index
    %4 = vector.load %arg3[%c0_4, %c0_5] : memref<4x1xf32, #tpu.memory_space<vmem>>, vector<4x1xf32>
    %5 = vector.broadcast %4 : vector<4x1xf32> to vector<4x342xf32>
    %6 = arith.addf %3, %5 : vector<4x342xf32>
    %c0_6 = arith.constant 0 : index
    %c0_7 = arith.constant 0 : index
    %7 = vector.load %arg4[%c0_6, %c0_7] : memref<4x4xbf16, #tpu.memory_space<vmem>>, vector<4x4xbf16>
    %8 = arith.truncf %6 : vector<4x342xf32> to vector<4x342xbf16>
    %cst_8 = arith.constant dense<0.000000e+00> : vector<4x342xf32>
    %9 = tpu.matmul %7, %8, %cst_8 {dimension_numbers = #tpu.dot_dimension_numbers<[1], [0], [0], [1], [0, 0, 1, 1], [], []>} : vector<4x4xbf16>, vector<4x342xbf16>, vector<4x342xf32> -> vector<4x342xf32>
    %c0_9 = arith.constant 0 : index
    %c0_10 = arith.constant 0 : index
    %10 = vector.load %arg5[%c0_9, %c0_10] : memref<4x1xf32, #tpu.memory_space<vmem>>, vector<4x1xf32>
    %11 = vector.broadcast %10 : vector<4x1xf32> to vector<4x342xf32>
    %12 = arith.addf %9, %11 : vector<4x342xf32>
    %c0_11 = arith.constant 0 : index
    %c0_12 = arith.constant 0 : index
    %13 = vector.load %arg6[%c0_11, %c0_12] : memref<4x4xbf16, #tpu.memory_space<vmem>>, vector<4x4xbf16>
    %14 = arith.truncf %12 : vector<4x342xf32> to vector<4x342xbf16>
    %cst_13 = arith.constant dense<0.000000e+00> : vector<4x342xf32>
    %15 = tpu.matmul %13, %14, %cst_13 {dimension_numbers = #tpu.dot_dimension_numbers<[1], [0], [0], [1], [0, 0, 1, 1], [], []>} : vector<4x4xbf16>, vector<4x342xbf16>, vector<4x342xf32> -> vector<4x342xf32>
    %c0_14 = arith.constant 0 : index
    %c0_15 = arith.constant 0 : index
    %16 = vector.load %arg7[%c0_14, %c0_15] : memref<4x1xf32, #tpu.memory_space<vmem>>, vector<4x1xf32>
    %17 = vector.broadcast %16 : vector<4x1xf32> to vector<4x342xf32>
    %18 = arith.addf %15, %17 : vector<4x342xf32>
    %c0_16 = arith.constant 0 : index
    %c0_17 = arith.constant 0 : index
    %c0_18 = arith.constant 0 : index
    %19 = vector.load %arg8[%c0_16, %c0_17, %c0_18] : memref<1x4x342xf32, #tpu.memory_space<vmem>>, vector<1x4x342xf32>
    %20 = vector.shape_cast %19 : vector<1x4x342xf32> to vector<4x342xf32>
    %21 = vector.shape_cast %18 : vector<4x342xf32> to vector<1x4x342xf32>
    tpu.vector_store %arg8[%c0_16, %c0_17, %c0_18], %21 {strides = array<i32>} : memref<1x4x342xf32, #tpu.memory_space<vmem>>, vector<1x4x342xf32>,
    return
  }
  func.func @transform_0(%arg0: i32) -> (i32, i32, i32) {
    %c0_i32 = arith.constant 0 : i32
    %c0_i32_0 = arith.constant 0 : i32
    %c0_i32_1 = arith.constant 0 : i32
    return %arg0, %c0_i32, %c0_i32_0 : i32, i32, i32
  }
  func.func @transform_1(%arg0: i32) -> (i32, i32) {
    %c0_i32 = arith.constant 0 : i32
    %c0_i32_0 = arith.constant 0 : i32
    %c0_i32_1 = arith.constant 0 : i32
    return %c0_i32, %c0_i32_0 : i32, i32
  }
  func.func @transform_2(%arg0: i32) -> (i32, i32) {
    %c0_i32 = arith.constant 0 : i32
    %c0_i32_0 = arith.constant 0 : i32
    %c0_i32_1 = arith.constant 0 : i32
    return %c0_i32, %c0_i32_0 : i32, i32
  }
  func.func @transform_3(%arg0: i32) -> (i32, i32) {
    %c0_i32 = arith.constant 0 : i32
    %c0_i32_0 = arith.constant 0 : i32
    %c0_i32_1 = arith.constant 0 : i32
    return %c0_i32, %c0_i32_0 : i32, i32
  }
  func.func @transform_4(%arg0: i32) -> (i32, i32) {
    %c0_i32 = arith.constant 0 : i32
    %c0_i32_0 = arith.constant 0 : i32
    %c0_i32_1 = arith.constant 0 : i32
    return %c0_i32, %c0_i32_0 : i32, i32
  }
  func.func @transform_5(%arg0: i32) -> (i32, i32) {
    %c0_i32 = arith.constant 0 : i32
    %c0_i32_0 = arith.constant 0 : i32
    %c0_i32_1 = arith.constant 0 : i32
    return %c0_i32, %c0_i32_0 : i32, i32
  }
  func.func @transform_6(%arg0: i32) -> (i32, i32) {
    %c0_i32 = arith.constant 0 : i32
    %c0_i32_0 = arith.constant 0 : i32
    %c0_i32_1 = arith.constant 0 : i32
    return %c0_i32, %c0_i32_0 : i32, i32
  }
  func.func @transform_7(%arg0: i32) -> (i32, i32, i32) {
    %c0_i32 = arith.constant 0 : i32
    %c0_i32_0 = arith.constant 0 : i32
    %c0_i32_1 = arith.constant 0 : i32
    return %arg0, %c0_i32, %c0_i32_0 : i32, i32, i32
  }
}

</mosaic_0001>

<llo_original>
// kernel: unet_forward.6
$region0: #{unet_forward.6}
  #allocation0 [shape = 'u32[]', space=smem, size = 0x4, offset = 0x4, fixed_abs, tag = 'smem constant byte address 0x4 - core index']
  #allocation1 [shape = 'u32[72,128]{1,0:T(1,128)}', space=vmem, size = 0x9000, scoped, tag = 'internal scratch']
  #allocation2 [shape = 'bf16[36,288]{1,0:T(8,128)(2,1)}', space=vmem, size = 0x7800, scoped, tag = 'scratch operand']
  #allocation3 [shape = 'bf16[8,342]{1,0:T(8,128)(2,1)}', space=vmem, size = 0x1800, scoped, tag = 'scratch operand']
  #allocation4 [shape = 'bf16[72,288]{1,0:T(8,128)(2,1)}', space=vmem, size = 0xd800, scoped, tag = 'scratch operand']
  %s0 = inlined_call_operand.vmem [shape: bf16[2,4,342], index: 0, kind: input, shape index: {}]
  %s1 = inlined_call_operand.vmem [shape: bf16[8,36], index: 1, kind: input, shape index: {}]
  %s2 = inlined_call_operand.hbm [shape: bf16[8,72], index: 2, kind: input, shape index: {}]
  %s3 = inlined_call_operand.vmem [shape: f32[1,288], index: 3, kind: input, shape index: {}]
  %s4 = inlined_call_operand.vmem [shape: bf16[2,8,342], index: 4, kind: output, shape index: {}]
  %s5 = sld [smem:[#allocation0]]
  $region53: #{unet_forward.6} parent=0
    _
  %s7 = ssub.s32 1, %s5
  %s8 = scalar_select 0, %s7, %s5
  $region1: #{unet_forward.6} parent=0
    #allocation5 [shape = 'u8[2048]{0}', space=vmem, size = 0x800, scoped, tag = 'input window, operand 2, single buffered']
    #allocation6 [shape = 's32[2]{0}', space=sflag, size = 0x8, scoped, tag = 'scoped memory for unet_forward.6']
    %9 = vsyncpa [#allocation6], 0
    loop: start=0, step=1, limit=4
    $region2: #{unet_forward.6} parent=1 // loop_pre_header
      _
    $region3: #{unet_forward.6} parent=1 // loop_header
      %s11 = sphi 0, %s15
      %p12 = scmp.ge.s32.totalorder %s11, 4
      %s21 = sphi 0, %s23
      %s24 = sphi 0, %s21
      %s25 = sphi 0, %s24
      %s41 = sphi 0, %s25
      %s45 = sphi 0, %s45
      %s47 = sphi 0, %s45
      %s48 = sphi 0, %s47
      %s62 = sphi 0, %s48
      %s66 = sphi 0, %s66
      %s68 = sphi 0, %s66
      %s69 = sphi 0, %s68
      %s83 = sphi 0, %s69
      %s87 = sphi 0, %s87
      %s89 = sphi 0, %s87
      %s90 = sphi 0, %s89
      %s104 = sphi 0, %s90
      %s110 = sphi 0, %s112
      %s113 = sphi 0, %s110
      %s114 = sphi 0, %s113
      %s130 = sphi 0, %s114
    $region4: #{unet_forward.6} parent=1 // loop_header_branch
      %14 = sbr.rel (%p12) target = $region8
    $region5: #{unet_forward.6} parent=1 // loop_body
      %s16 = ssub.s32 %s11, 1
      %s17 = ssub.s32 %s11, 2
      %s18 = sadd.s32 %s11, 1
      %s19 = ssub.s32 %s11, %s18
      %p20 = scmp.eq.s32.totalorder %s19, 0
      %s22 = sadd.s32 %s21, 1
      %s23 = scalar_select %p20, %s21, %s22
      %p26 = pneg %p20
      %p27 = scmp.eq.s32.totalorder %s11, 1
      %p28 = por %p26, %p27
      %p29 = scmp.ne.s32.totalorder %s21, %s24
      %p30 = scmp.eq.s32.totalorder %s11, 0
      %p31 = por %p29, %p30
      %p32 = scmp.ne.s32.totalorder %s21, %s24
      %p33 = scmp.eq.s32.totalorder %s16, 1
      %p34 = por %p32, %p33
      %p35 = scmp.ne.s32.totalorder %s24, %s25
      %p36 = scmp.eq.s32.totalorder %s16, 0
      %p37 = por %p35, %p36
      %p38 = scmp.ne.s32.totalorder %s24, %s25
      %p39 = scmp.eq.s32.totalorder %s17, 1
      %p40 = por %p38, %p39
      %p42 = scmp.ne.s32.totalorder %s25, %s41
      %p43 = scmp.eq.s32.totalorder %s17, 0
      %p44 = por %p42, %p43
      %s46 = sadd.s32 %s45, 1
      %p49 = scmp.eq.s32.totalorder %s11, 1
      %p50 = scmp.ne.s32.totalorder %s45, %s47
      %p51 = scmp.eq.s32.totalorder %s11, 0
      %p52 = por %p50, %p51
      %p53 = scmp.ne.s32.totalorder %s45, %s47
      %p54 = scmp.eq.s32.totalorder %s16, 1
      %p55 = por %p53, %p54
      %p56 = scmp.ne.s32.totalorder %s47, %s48
      %p57 = scmp.eq.s32.totalorder %s16, 0
      %p58 = por %p56, %p57
      %p59 = scmp.ne.s32.totalorder %s47, %s48
      %p60 = scmp.eq.s32.totalorder %s17, 1
      %p61 = por %p59, %p60
      %p63 = scmp.ne.s32.totalorder %s48, %s62
      %p64 = scmp.eq.s32.totalorder %s17, 0
      %p65 = por %p63, %p64
      %s67 = sadd.s32 %s66, 1
      %p70 = scmp.eq.s32.totalorder %s11, 1
      %p71 = scmp.ne.s32.totalorder %s66, %s68
      %p72 = scmp.eq.s32.totalorder %s11, 0
      %p73 = por %p71, %p72
      %p74 = scmp.ne.s32.totalorder %s66, %s68
      %p75 = scmp.eq.s32.totalorder %s16, 1
      %p76 = por %p74, %p75
      %p77 = scmp.ne.s32.totalorder %s68, %s69
      %p78 = scmp.eq.s32.totalorder %s16, 0
      %p79 = por %p77, %p78
      %p80 = scmp.ne.s32.totalorder %s68, %s69
      %p81 = scmp.eq.s32.totalorder %s17, 1
      %p82 = por %p80, %p81
      %p84 = scmp.ne.s32.totalorder %s69, %s83
      %p85 = scmp.eq.s32.totalorder %s17, 0
      %p86 = por %p84, %p85
      %s88 = sadd.s32 %s87, 1
      %p91 = scmp.eq.s32.totalorder %s11, 1
      %p92 = scmp.ne.s32.totalorder %s87, %s89
      %p93 = scmp.eq.s32.totalorder %s11, 0
      %p94 = por %p92, %p93
      %p95 = scmp.ne.s32.totalorder %s87, %s89
      %p96 = scmp.eq.s32.totalorder %s16, 1
      %p97 = por %p95, %p96
      %p98 = scmp.ne.s32.totalorder %s89, %s90
      %p99 = scmp.eq.s32.totalorder %s16, 0
      %p100 = por %p98, %p99
      %p101 = scmp.ne.s32.totalorder %s89, %s90
      %p102 = scmp.eq.s32.totalorder %s17, 1
      %p103 = por %p101, %p102
      %p105 = scmp.ne.s32.totalorder %s90, %s104
      %p106 = scmp.eq.s32.totalorder %s17, 0
      %p107 = por %p105, %p106
      %s108 = ssub.s32 %s11, %s18
      %p109 = scmp.eq.s32.totalorder %s108, 0
      %s111 = sadd.s32 %s110, 1
      %s112 = scalar_select %p109, %s110, %s111
      %p115 = pneg %p109
      %p116 = scmp.eq.s32.totalorder %s11, 1
      %p117 = por %p115, %p116
      %p118 = scmp.ne.s32.totalorder %s110, %s113
      %p119 = scmp.eq.s32.totalorder %s11, 0
      %p120 = por %p118, %p119
      %p121 = scmp.ne.s32.totalorder %s110, %s113
      %p122 = scmp.eq.s32.totalorder %s16, 1
      %p123 = por %p121, %p122
      %p124 = scmp.ne.s32.totalorder %s113, %s114
      %p125 = scmp.eq.s32.totalorder %s16, 0
      %p126 = por %p124, %p125
      %p127 = scmp.ne.s32.totalorder %s113, %s114
      %p128 = scmp.eq.s32.totalorder %s17, 1
      %p129 = por %p127, %p128
      %p131 = scmp.ne.s32.totalorder %s114, %s130
      %p132 = scmp.eq.s32.totalorder %s17, 0
      %p133 = por %p131, %p132
      %p134 = scmp.le.s32.totalorder 1, %s11
      %p135 = scmp.lt.s32.totalorder %s11, 3
      %p136 = pnand %p134, %p135
      %p137 = pneg %p136
      // Predicated region
      $region9: #{unet_forward.6} parent=5 // pred_check
        _
      $region10: #{unet_forward.6} parent=5 // pred_check_branch
        %139 = sbr.rel (%p136) target = $region12
      $region11: #{unet_forward.6} parent=5 // pred_region
        %s140 = ssub.s32 %s11, 1
        // Predicated region
        $region13: #{unet_forward.6} parent=11 // pred_check
          %p141 = pneg %p58
        $region14: #{unet_forward.6} parent=11 // pred_check_branch
          %143 = sbr.rel (%p141) target = $region16
        $region15: #{unet_forward.6} parent=11 // pred_region
          _
        $region16: #{unet_forward.6} parent=11 // pred_fallthru
          _
        // Predicated region
        $region17: #{unet_forward.6} parent=11 // pred_check
          %p144 = pneg %p79
        $region18: #{unet_forward.6} parent=11 // pred_check_branch
          %146 = sbr.rel (%p144) target = $region20
        $region19: #{unet_forward.6} parent=11 // pred_region
          %148 = vsyncadd [#allocation6], 0
          %s150 = sshll.u32 %s2, 4
          %s151 = int_to_ptr.hbm [resolvable:$true] %s150
          %s152 = sshll.u32 [#allocation5], 4
          %s153 = int_to_ptr.vmem [resolvable:$true] %s152
          %155 = dma.hbm_to_vmem [thread:$0]  %s151, 64, %s153, [#allocation6]
        $region20: #{unet_forward.6} parent=11 // pred_fallthru
          _
        // Predicated region
        $region21: #{unet_forward.6} parent=11 // pred_check
          %p156 = pneg %p100
        $region22: #{unet_forward.6} parent=11 // pred_check_branch
          %158 = sbr.rel (%p156) target = $region24
        $region23: #{unet_forward.6} parent=11 // pred_region
          _
        $region24: #{unet_forward.6} parent=11 // pred_fallthru
          _
      $region12: #{unet_forward.6} parent=5 // pred_fallthru
        _
      %p159 = scmp.lt.s32.totalorder %s11, 2
      // Predicated region
      $region25: #{unet_forward.6} parent=5 // pred_check
        %p160 = pneg %p159
      $region26: #{unet_forward.6} parent=5 // pred_check_branch
        %162 = sbr.rel (%p160) target = $region28
      $region27: #{unet_forward.6} parent=5 // pred_region
        // Predicated region
        $region29: #{unet_forward.6} parent=27 // pred_check
          %p163 = pneg %p31
        $region30: #{unet_forward.6} parent=27 // pred_check_branch
          %165 = sbr.rel (%p163) target = $region32
        $region31: #{unet_forward.6} parent=27 // pred_region
          %p166 = scmp.lt.s32.totalorder %s11, 1
          %s167 = scalar_select %p166, %s11, 1
          %s168 = smul.addr %s167, 3
          %s169 = smul.addr %s168, 2
          %s170 = scalar_lea.vmem %s0, %s169
        $region32: #{unet_forward.6} parent=27 // pred_fallthru
          _
      $region28: #{unet_forward.6} parent=5 // pred_fallthru
        _
      %p171 = scmp.le.s32.totalorder 1, %s11
      %p172 = scmp.lt.s32.totalorder %s11, 3
      %p173 = pnand %p171, %p172
      %p174 = pneg %p173
      // Predicated region
      $region33: #{unet_forward.6} parent=5 // pred_check
        _
      $region34: #{unet_forward.6} parent=5 // pred_check_branch
        %176 = sbr.rel (%p173) target = $region36
      $region35: #{unet_forward.6} parent=5 // pred_region
        %s177 = ssub.s32 %s11, 1
        // Predicated region
        $region37: #{unet_forward.6} parent=35 // pred_check
          %p178 = pneg %p79
        $region38: #{unet_forward.6} parent=35 // pred_check_branch
          %180 = sbr.rel (%p178) target = $region40
        $region39: #{unet_forward.6} parent=35 // pred_region
          %182 = dma.done [#allocation6], 64
        $region40: #{unet_forward.6} parent=35 // pred_fallthru
          _
        %p183 = scmp.lt.s32.totalorder %s16, 1
        %s184 = scalar_select %p183, %s16, 1
        %s185 = smul.addr %s184, 3
        %s186 = smul.addr %s185, 2
        %s187 = scalar_lea.vmem %s0, %s186
        %p188 = pneg %p37
        %p189 = pneg %p34
        %p190 = pneg %p58
        %p191 = pneg %p55
        %p192 = pneg %p79
        %p193 = pneg %p76
        %p194 = pneg %p100
        %p195 = pneg %p97
        %p196 = pneg %p126
        %p197 = pneg %p123
        %p198 = scmp.lt.s32.totalorder %s16, 1
        %s199 = scalar_select %p198, %s16, 1
        %s200 = smul.addr %s199, 3
        %s201 = smul.addr %s200, 4
        %s202 = scalar_lea.vmem %s4, %s201
        %p203 = scmp.lt.s32.totalorder %s16, 1
        %s204 = scalar_select %p203, %s16, 1
        %s205 = smul.addr %s204, 3
        %s206 = smul.addr %s205, 2
        %s207 = scalar_lea.vmem %s0, %s206
        %p208 = scmp.lt.s32.totalorder %s16, 1
        %s209 = scalar_select %p208, %s16, 1
        %s210 = smul.addr %s209, 3
        %s211 = smul.addr %s210, 4
        %s212 = scalar_lea.vmem %s4, %s211
        %v214 = vld [vmem:[%s3] sm:$0x7]
        %v215 = vld [vmem:[%s207] sm:$0x3f]
        %217 = vst [vmem:[#allocation1] ss:$2 sm:$0xff] %v215
        %v218 = vld.sshfl [vmem:[#allocation1] sm:$0xff pattern:$0x75643120]
        %v219 = vld.sshfl [vmem:[#allocation1 + $0x8] sm:$0xff pattern:$0x75643120]
        %222 = vst [vmem:[#allocation2] sm:$0x33] %v218
        %vm223 = vcmask 254976
        %224 = vst.msk [vmem:[#allocation2 + $0x8] sm:$0x3] %vm223, %v219
        %v225 = vld [vmem:[%s207] sm:$0x3f]
        %s227 = scalar_lea.vmem [#allocation1], 1
        %228 = vst [vmem:[%s227] ss:$2 sm:$0xff] %v225
        %v229 = vld.sshfl [vmem:[#allocation1] sm:$0xff pattern:$0x75643120]
        %v231 = vld.sshfl [vmem:[#allocation1 + $0x8] sm:$0xff pattern:$0x75643120]
        %233 = vrot.lane.b32.xlu0 %v229, 127
        %v234 = vpop.permute.xlu0 %233
        %235 = vrot.lane.b32.xlu0 %v231, 127
        %v236 = vpop.permute.xlu0 %235
        %v237 = vrot.slane %v234, 4
        %v238 = vrot.slane %v236, 4
        %vm239 = vcmask 1043456
        %v240 = vsel %vm239, %v237, %v238
        %vm241 = vcmask 1039360
        %v242 = vsel %vm241, %v234, %v240
        %245 = vst [vmem:[#allocation2] sm:$0xcc] %v242
        %vm246 = vcmask 257026
        %247 = vst.msk [vmem:[#allocation2 + $0x8] sm:$0xc] %vm246, %v236
        %v248 = vld [vmem:[%s207] sm:$0x3f]
        %250 = vst [vmem:[#allocation1] ss:$2 sm:$0xff] %v248
        %v251 = vld.sshfl [vmem:[#allocation1] sm:$0xff pattern:$0x75643120]
        %v253 = vld.sshfl [vmem:[#allocation1 + $0x8] sm:$0xff pattern:$0x75643120]
        %255 = vrot.lane.b32.xlu0 %v251, 126
        %v256 = vpop.permute.xlu0 %255
        %257 = vrot.lane.b32.xlu0 %v253, 126
        %v258 = vpop.permute.xlu0 %257
        %v259 = vrot.slane %v256, 4
        %v260 = vrot.slane %v258, 4
        %v261 = vsel %vm239, %v259, %v260
        %vm262 = vcmask 1031168
        %v263 = vsel %vm262, %v256, %v261
        %266 = vst [vmem:[#allocation2 + $0xc] sm:$0x33] %v263
        %267 = vst.msk [vmem:[#allocation2 + $0x14] sm:$0x3] %vm223, %v258
        %v268 = vld [vmem:[%s207] sm:$0x3f]
        %s270 = scalar_lea.vmem [#allocation1], 1
        %271 = vst [vmem:[%s270] ss:$2 sm:$0xff] %v268
        %v272 = vld.sshfl [vmem:[#allocation1] sm:$0xff pattern:$0x75643120]
        %v274 = vld.sshfl [vmem:[#allocation1 + $0x8] sm:$0xff pattern:$0x75643120]
        %276 = vrot.lane.b32.xlu0 %v272, 110
        %v277 = vpop.permute.xlu0 %276
        %278 = vrot.lane.b32.xlu0 %v274, 110
        %v279 = vpop.permute.xlu0 %278
        %v280 = vrot.slane %v277, 4
        %v281 = vrot.slane %v279, 4
        %v282 = vsel %vm239, %v280, %v281
        %vm283 = vcmask 900096
        %v284 = vsel %vm283, %v277, %v282
        %287 = vst [vmem:[#allocation2 + $0xc] sm:$0xcc] %v284
        %288 = vst.msk [vmem:[#allocation2 + $0x14] sm:$0xc] %vm246, %v279
        %v289 = vld [vmem:[%s207] sm:$0x3f]
        %291 = vst [vmem:[#allocation1] ss:$2 sm:$0xff] %v289
        %v292 = vld.sshfl [vmem:[#allocation1] sm:$0xff pattern:$0x75643120]
        %v294 = vld.sshfl [vmem:[#allocation1 + $0x8] sm:$0xff pattern:$0x75643120]
        %296 = vrot.lane.b32.xlu0 %v292, 109
        %v297 = vpop.permute.xlu0 %296
        %298 = vrot.lane.b32.xlu0 %v294, 109
        %v299 = vpop.permute.xlu0 %298
        %v300 = vrot.slane %v297, 4
        %v301 = vrot.slane %v299, 4
        %v302 = vsel %vm239, %v300, %v301
        %vm303 = vcmask 891904
        %v304 = vsel %vm303, %v297, %v302
        %307 = vst [vmem:[#allocation2 + $0x18] sm:$0x33] %v304
        %308 = vst.msk [vmem:[#allocation2 + $0x20] sm:$0x3] %vm223, %v299
        %v309 = vld [vmem:[%s207] sm:$0x3f]
        %s311 = scalar_lea.vmem [#allocation1], 1
        %312 = vst [vmem:[%s311] ss:$2 sm:$0xff] %v309
        %v313 = vld.sshfl [vmem:[#allocation1] sm:$0xff pattern:$0x75643120]
        %v315 = vld.sshfl [vmem:[#allocation1 + $0x8] sm:$0xff pattern:$0x75643120]
        %317 = vrot.lane.b32.xlu0 %v313, 108
        %v318 = vpop.permute.xlu0 %317
        %319 = vrot.lane.b32.xlu0 %v315, 108
        %v320 = vpop.permute.xlu0 %319
        %v321 = vrot.slane %v318, 4
        %v322 = vrot.slane %v320, 4
        %v323 = vsel %vm239, %v321, %v322
        %vm324 = vcmask 883712
        %v325 = vsel %vm324, %v318, %v323
        %328 = vst [vmem:[#allocation2 + $0x18] sm:$0xcc] %v325
        %329 = vst.msk [vmem:[#allocation2 + $0x20] sm:$0xc] %vm246, %v320
        %v330 = vld [vmem:[%s207] sm:$0x3f]
        %332 = vst [vmem:[#allocation1] ss:$2 sm:$0xff] %v330
        %v333 = vld.sshfl [vmem:[#allocation1] sm:$0xff pattern:$0x75643120]
        %v335 = vld.sshfl [vmem:[#allocation1 + $0x8] sm:$0xff pattern:$0x75643120]
        %337 = vrot.lane.b32.xlu0 %v333, 92
        %v338 = vpop.permute.xlu0 %337
        %339 = vrot.lane.b32.xlu0 %v335, 92
        %v340 = vpop.permute.xlu0 %339
        %v341 = vrot.slane %v338, 4
        %v342 = vrot.slane %v340, 4
        %v343 = vsel %vm239, %v341, %v342
        %vm344 = vcmask 752640
        %v345 = vsel %vm344, %v338, %v343
        %348 = vst [vmem:[#allocation2 + $0x24] sm:$0x33] %v345
        %349 = vst.msk [vmem:[#allocation2 + $0x2c] sm:$0x3] %vm223, %v340
        %v350 = vld [vmem:[%s207] sm:$0x3f]
        %s352 = scalar_lea.vmem [#allocation1], 1
        %353 = vst [vmem:[%s352] ss:$2 sm:$0xff] %v350
        %v354 = vld.sshfl [vmem:[#allocation1] sm:$0xff pattern:$0x75643120]
        %v356 = vld.sshfl [vmem:[#allocation1 + $0x8] sm:$0xff pattern:$0x75643120]
        %358 = vrot.lane.b32.xlu0 %v354, 91
        %v359 = vpop.permute.xlu0 %358
        %360 = vrot.lane.b32.xlu0 %v356, 91
        %v361 = vpop.permute.xlu0 %360
        %v362 = vrot.slane %v359, 4
        %v363 = vrot.slane %v361, 4
        %v364 = vsel %vm239, %v362, %v363
        %vm365 = vcmask 744448
        %v366 = vsel %vm365, %v359, %v364
        %369 = vst [vmem:[#allocation2 + $0x24] sm:$0xcc] %v366
        %370 = vst.msk [vmem:[#allocation2 + $0x2c] sm:$0xc] %vm246, %v361
        %v371 = vld [vmem:[%s207] sm:$0x3f]
        %373 = vst [vmem:[#allocation1] ss:$2 sm:$0xff] %v371
        %v374 = vld.sshfl [vmem:[#allocation1] sm:$0xff pattern:$0x75643120]
        %v376 = vld.sshfl [vmem:[#allocation1 + $0x8] sm:$0xff pattern:$0x75643120]
        %378 = vrot.lane.b32.xlu0 %v374, 90
        %v379 = vpop.permute.xlu0 %378
        %380 = vrot.lane.b32.xlu0 %v376, 90
        %v381 = vpop.permute.xlu0 %380
        %v382 = vrot.slane %v379, 4
        %v383 = vrot.slane %v381, 4
        %v384 = vsel %vm239, %v382, %v383
        %vm385 = vcmask 736256
        %v386 = vsel %vm385, %v379, %v384
        %389 = vst [vmem:[#allocation2 + $0x30] sm:$0x33] %v386
        %390 = vst.msk [vmem:[#allocation2 + $0x38] sm:$0x3] %vm223, %v381
        %v391 = vld [vmem:[%s1] sm:$0xf]
        %v392 = vld [vmem:[#allocation2] sm:$0xff]
        %v393 = vld [vmem:[#allocation2 + $0x8] sm:$0xf]
        %v394 = vld [vmem:[#allocation2 + $0xc] sm:$0xff]
        %v395 = vld [vmem:[#allocation2 + $0x14] sm:$0xf]
        %v396 = vld [vmem:[#allocation2 + $0x18] sm:$0xff]
        %v397 = vld [vmem:[#allocation2 + $0x20] sm:$0xf]
        %v398 = vld [vmem:[#allocation2 + $0x24] sm:$0xff]
        %v399 = vld [vmem:[#allocation2 + $0x2c] sm:$0xf]
        %v400 = vld [vmem:[#allocation2 + $0x30] sm:$0x33]
        %v401 = vld [vmem:[#allocation2 + $0x38] sm:$0x3]
        %v412 = vunpack.c.l.b16 %v392
        %v413 = vunpack.c.h.b16 %v392
        %v414 = vunpack.c.l.b16 %v393
        %v415 = vunpack.c.l.b16 %v394
        %v416 = vunpack.c.h.b16 %v394
        %v417 = vunpack.c.l.b16 %v395
        %v418 = vunpack.c.l.b16 %v396
        %v419 = vunpack.c.h.b16 %v396
        %v420 = vunpack.c.l.b16 %v397
        %v421 = vunpack.c.l.b16 %v398
        %v422 = vunpack.c.h.b16 %v398
        %v423 = vunpack.c.l.b16 %v399
        %v424 = vunpack.c.l.b16 %v400
        %v425 = vunpack.c.h.b16 %v400
        %v426 = vunpack.c.l.b16 %v401
        %v427 = vpack.c.b16 %v415, %v412
        %v428 = vpack.c.b16 %v416, %v413
        %v429 = vpack.c.b16 %v417, %v414
        %v430 = vpack.c.b16 %v421, %v418
        %v431 = vpack.c.b16 %v422, %v419
        %v432 = vpack.c.b16 %v423, %v420
        %v433 = vpack.c.b16 %v424, %v424
        %v434 = vpack.c.b16 %v425, %v425
        %v435 = vpack.c.b16 %v426, %v426
        %vm442 = vcmask 293888
        %v444 = vsel %vm442, %v391, 0
        %vm446 = vcmask 1041408
        %v448 = vsel %vm446, %v433, 0
        %v451 = vsel %vm446, %v434, 0
        %v454 = vsel %vm446, %v435, 0
        %456 = vmatpush.bf16.msra.mxu0 0
        %457 = vmatpush.bf16.msra.mxu0 0
        %458 = vmatpush.bf16.msra.mxu0 0
        %459 = vmatpush.bf16.msra.mxu0 0
        %460 = vmatpush.bf16.msra.mxu0 0
        %461 = vmatpush.bf16.msra.mxu0 %v448
        %462 = vmatpush.bf16.msra.mxu0 %v430
        %463 = vmatpush.bf16.msra.mxu0 %v427
        %464 = vmatmul.bf16.gmra.mxu0 %v444
        %v465 = vpop.f32.mrf.mxu0
        %v466 = vadd.f32 0.0, %v465
        %v467 = vpop.f32.mrf.mxu0
        %468 = vdwg.mxu0
        %469 = vmatpush.bf16.msra.mxu0 0
        %470 = vmatpush.bf16.msra.mxu0 0
        %471 = vmatpush.bf16.msra.mxu0 0
        %472 = vmatpush.bf16.msra.mxu0 0
        %473 = vmatpush.bf16.msra.mxu0 0
        %474 = vmatpush.bf16.msra.mxu0 %v451
        %475 = vmatpush.bf16.msra.mxu0 %v431
        %476 = vmatpush.bf16.msra.mxu0 %v428
        %477 = vmatmul.bf16.gmra.mxu0 %v444
        %v478 = vpop.f32.mrf.mxu0
        %v479 = vadd.f32 0.0, %v478
        %v480 = vpop.f32.mrf.mxu0
        %481 = vdwg.mxu0
        %482 = vmatpush.bf16.msra.mxu0 0
        %483 = vmatpush.bf16.msra.mxu0 0
        %484 = vmatpush.bf16.msra.mxu0 0
        %485 = vmatpush.bf16.msra.mxu0 0
        %486 = vmatpush.bf16.msra.mxu0 0
        %487 = vmatpush.bf16.msra.mxu0 %v454
        %488 = vmatpush.bf16.msra.mxu0 %v432
        %489 = vmatpush.bf16.msra.mxu0 %v429
        %490 = vmatmul.bf16.gmra.mxu0 %v444
        %v491 = vpop.f32.mrf.mxu0
        %v492 = vadd.f32 0.0, %v491
        %v493 = vpop.f32.mrf.mxu0
        %494 = vdwg.mxu0
        %v496 = vperm.slane %v214, 0
        %v497 = vperm.slane %v214, 1
        %v498 = vperm.slane %v214, 2
        %v502 = vmul.f32 %v466, %v496
        %v503 = vmul.f32 %v479, %v497
        %v504 = vmul.f32 %v492, %v498
        %v505 = vadd.f32 %v502, %v503
        %vm506 = vcmask 261120
        %v507 = vsel %vm506, %v504, 0.0
        %v508 = vadd.f32 %v505, %v507
        %509 = vadd.xlane.f32.xlu0 %v508
        %v510 = vpop.xlane.xlu0 %509
        %v511 = vmul.f32 %v510, 0.00390625
        %v512 = vmul.f32 %v502, %v502
        %v513 = vmul.f32 %v503, %v503
        %v514 = vmul.f32 %v504, %v504
        %v515 = vadd.f32 %v512, %v513
        %v516 = vsel %vm506, %v514, 0.0
        %v517 = vadd.f32 %v515, %v516
        %518 = vadd.xlane.f32.xlu0 %v517
        %v519 = vpop.xlane.xlu0 %518
        %v520 = vmul.f32 %v519, 0.00390625
        %v521 = vmul.f32 %v511, %v511
        %v522 = vsub.f32 %v520, %v521
        %v523 = vmax.f32 %v522, 0.0
        %v524 = vsub.f32 %v502, %v511
        %v525 = vsub.f32 %v503, %v511
        %v526 = vsub.f32 %v504, %v511
        %v527 = vadd.f32 %v523, 1e-05
        %v528 = vrsqrt.pop %v527
        %v529 = vmul.f32 %v528, %v527
        %v530 = vmul.f32 %v529, %v528
        %v531 = vmul.f32 0.5, %v530
        %v532 = vsub.f32 1.5, %v531
        %v533 = vmul.f32 %v528, %v532
        %vm534 = vweird.f32 %v527
        %vm535 = vweird.f32 %v528
        %vm536 = vmor %vm534, %vm535
        %v537 = vsel %vm536, %v528, %v533
        %v538 = vmul.f32 %v524, %v537
        %v539 = vmul.f32 %v525, %v537
        %v540 = vmul.f32 %v526, %v537
        %v541 = vmax.f32 %v538, 0.0
        %v542 = vmax.f32 %v539, 0.0
        %v543 = vmax.f32 %v540, 0.0
        %v544 = vmul.f32 %v541, %v496
        %v545 = vmul.f32 %v542, %v497
        %v546 = vmul.f32 %v543, %v498
        %547 = vst [vmem:[#allocation3] sm:$0xff] 0
        %vm548 = vcmask 699392
        %549 = vst.msk [vmem:[#allocation3 + $0x8] sm:$0xf] %vm548, 0
        %v550 = vpack.c.bf16 %v545, %v544
        %v551 = vpack.c.bf16 %v546, %v546
        %554 = vrot.lane.b32.xlu0 %v550, 19
        %v555 = vpop.permute.xlu0 %554
        %556 = vrot.lane.b32.xlu0 %v551, 19
        %v557 = vpop.permute.xlu0 %556
        %v558 = vrot.slane %v555, 4
        %vm559 = vcmask 154624
        %v560 = vsel %vm559, %v558, %v555
        %v561 = vsel %vm559, %v558, %v557
        %vm564 = vcmask 1043608
        %vm565 = vcmask 1047556
        %vm566 = vmor %vm565, %vm564
        %567 = vst.msk [vmem:[#allocation3] sm:$0xff] %vm566, %v560
        %vm568 = vcmask 412672
        %569 = vst.msk [vmem:[#allocation3 + $0x8] sm:$0xf] %vm568, %v561
        %v570 = vld [vmem:[#allocation3] sm:$0xff]
        %v571 = vld [vmem:[#allocation3 + $0x8] sm:$0xf]
        %572 = vst [vmem:[#allocation4] sm:$0xff] %v570
        %vm573 = vcmask 257024
        %574 = vst.msk [vmem:[#allocation4 + $0x8] sm:$0xf] %vm573, %v571
        %v575 = vld [vmem:[#allocation3] sm:$0xff]
        %v576 = vld [vmem:[#allocation3 + $0x8] sm:$0xf]
        %579 = vrot.lane.b32.xlu0 %v575, 127
        %v580 = vpop.permute.xlu0 %579
        %581 = vrot.lane.b32.xlu0 %v576, 127
        %v582 = vpop.permute.xlu0 %581
        %v583 = vrot.slane %v580, 4
        %v584 = vrot.slane %v582, 4
        %v585 = vsel %vm239, %v583, %v584
        %v586 = vsel %vm241, %v580, %v585
        %589 = vst [vmem:[#allocation4 + $0xc] sm:$0xff] %v586
        %590 = vst.msk [vmem:[#allocation4 + $0x14] sm:$0xf] %vm573, %v582
        %v591 = vld [vmem:[#allocation3] sm:$0xff]
        %v592 = vld [vmem:[#allocation3 + $0x8] sm:$0xf]
        %595 = vrot.lane.b32.xlu0 %v591, 126
        %v596 = vpop.permute.xlu0 %595
        %597 = vrot.lane.b32.xlu0 %v592, 126
        %v598 = vpop.permute.xlu0 %597
        %v599 = vrot.slane %v596, 4
        %v600 = vrot.slane %v598, 4
        %v601 = vsel %vm239, %v599, %v600
        %v602 = vsel %vm262, %v596, %v601
        %605 = vst [vmem:[#allocation4 + $0x18] sm:$0xff] %v602
        %606 = vst.msk [vmem:[#allocation4 + $0x20] sm:$0xf] %vm573, %v598
        %v607 = vld [vmem:[#allocation3] sm:$0xff]
        %v608 = vld [vmem:[#allocation3 + $0x8] sm:$0xf]
        %611 = vrot.lane.b32.xlu0 %v607, 110
        %v612 = vpop.permute.xlu0 %611
        %613 = vrot.lane.b32.xlu0 %v608, 110
        %v614 = vpop.permute.xlu0 %613
        %v615 = vrot.slane %v612, 4
        %v616 = vrot.slane %v614, 4
        %v617 = vsel %vm239, %v615, %v616
        %v618 = vsel %vm283, %v612, %v617
        %621 = vst [vmem:[#allocation4 + $0x24] sm:$0xff] %v618
        %622 = vst.msk [vmem:[#allocation4 + $0x2c] sm:$0xf] %vm573, %v614
        %v623 = vld [vmem:[#allocation3] sm:$0xff]
        %v624 = vld [vmem:[#allocation3 + $0x8] sm:$0xf]
        %627 = vrot.lane.b32.xlu0 %v623, 109
        %v628 = vpop.permute.xlu0 %627
        %629 = vrot.lane.b32.xlu0 %v624, 109
        %v630 = vpop.permute.xlu0 %629
        %v631 = vrot.slane %v628, 4
        %v632 = vrot.slane %v630, 4
        %v633 = vsel %vm239, %v631, %v632
        %v634 = vsel %vm303, %v628, %v633
        %637 = vst [vmem:[#allocation4 + $0x30] sm:$0xff] %v634
        %638 = vst.msk [vmem:[#allocation4 + $0x38] sm:$0xf] %vm573, %v630
        %v639 = vld [vmem:[#allocation3] sm:$0xff]
        %v640 = vld [vmem:[#allocation3 + $0x8] sm:$0xf]
        %643 = vrot.lane.b32.xlu0 %v639, 108
        %v644 = vpop.permute.xlu0 %643
        %645 = vrot.lane.b32.xlu0 %v640, 108
        %v646 = vpop.permute.xlu0 %645
        %v647 = vrot.slane %v644, 4
        %v648 = vrot.slane %v646, 4
        %v649 = vsel %vm239, %v647, %v648
        %v650 = vsel %vm324, %v644, %v649
        %653 = vst [vmem:[#allocation4 + $0x3c] sm:$0xff] %v650
        %654 = vst.msk [vmem:[#allocation4 + $0x44] sm:$0xf] %vm573, %v646
        %v655 = vld [vmem:[#allocation3] sm:$0xff]
        %v656 = vld [vmem:[#allocation3 + $0x8] sm:$0xf]
        %659 = vrot.lane.b32.xlu0 %v655, 92
        %v660 = vpop.permute.xlu0 %659
        %661 = vrot.lane.b32.xlu0 %v656, 92
        %v662 = vpop.permute.xlu0 %661
        %v663 = vrot.slane %v660, 4
        %v664 = vrot.slane %v662, 4
        %v665 = vsel %vm239, %v663, %v664
        %v666 = vsel %vm344, %v660, %v665
        %669 = vst [vmem:[#allocation4 + $0x48] sm:$0xff] %v666
        %670 = vst.msk [vmem:[#allocation4 + $0x50] sm:$0xf] %vm573, %v662
        %v671 = vld [vmem:[#allocation3] sm:$0xff]
        %v672 = vld [vmem:[#allocation3 + $0x8] sm:$0xf]
        %675 = vrot.lane.b32.xlu0 %v671, 91
        %v676 = vpop.permute.xlu0 %675
        %677 = vrot.lane.b32.xlu0 %v672, 91
        %v678 = vpop.permute.xlu0 %677
        %v679 = vrot.slane %v676, 4
        %v680 = vrot.slane %v678, 4
        %v681 = vsel %vm239, %v679, %v680
        %v682 = vsel %vm365, %v676, %v681
        %685 = vst [vmem:[#allocation4 + $0x54] sm:$0xff] %v682
        %686 = vst.msk [vmem:[#allocation4 + $0x5c] sm:$0xf] %vm573, %v678
        %v687 = vld [vmem:[#allocation3] sm:$0xff]
        %v688 = vld [vmem:[#allocation3 + $0x8] sm:$0xf]
        %691 = vrot.lane.b32.xlu0 %v687, 90
        %v692 = vpop.permute.xlu0 %691
        %693 = vrot.lane.b32.xlu0 %v688, 90
        %v694 = vpop.permute.xlu0 %693
        %v695 = vrot.slane %v692, 4
        %v696 = vrot.slane %v694, 4
        %v697 = vsel %vm239, %v695, %v696
        %v698 = vsel %vm385, %v692, %v697
        %701 = vst [vmem:[#allocation4 + $0x60] sm:$0xff] %v698
        %702 = vst.msk [vmem:[#allocation4 + $0x68] sm:$0xf] %vm573, %v694
        %v703 = vld [vmem:[#allocation5] sm:$0xf]
        %v704 = vld [vmem:[#allocation4] sm:$0xff]
        %v705 = vld [vmem:[#allocation4 + $0x8] sm:$0xf]
        %v706 = vld [vmem:[#allocation4 + $0xc] sm:$0xff]
        %v707 = vld [vmem:[#allocation4 + $0x14] sm:$0xf]
        %v708 = vld [vmem:[#allocation4 + $0x18] sm:$0xff]
        %v709 = vld [vmem:[#allocation4 + $0x20] sm:$0xf]
        %v710 = vld [vmem:[#allocation4 + $0x24] sm:$0xff]
        %v711 = vld [vmem:[#allocation4 + $0x2c] sm:$0xf]
        %v712 = vld [vmem:[#allocation4 + $0x30] sm:$0xff]
        %v713 = vld [vmem:[#allocation4 + $0x38] sm:$0xf]
        %v714 = vld [vmem:[#allocation4 + $0x3c] sm:$0xff]
        %v715 = vld [vmem:[#allocation4 + $0x44] sm:$0xf]
        %v716 = vld [vmem:[#allocation4 + $0x48] sm:$0xff]
        %v717 = vld [vmem:[#allocation4 + $0x50] sm:$0xf]
        %v718 = vld [vmem:[#allocation4 + $0x54] sm:$0xff]
        %v719 = vld [vmem:[#allocation4 + $0x5c] sm:$0xf]
        %v720 = vld [vmem:[#allocation4 + $0x60] sm:$0xff]
        %v721 = vld [vmem:[#allocation4 + $0x68] sm:$0xf]
        %v740 = vunpack.c.l.b16 %v704
        %v741 = vunpack.c.h.b16 %v704
        %v742 = vunpack.c.l.b16 %v705
        %v743 = vunpack.c.l.b16 %v706
        %v744 = vunpack.c.h.b16 %v706
        %v745 = vunpack.c.l.b16 %v707
        %v746 = vunpack.c.l.b16 %v708
        %v747 = vunpack.c.h.b16 %v708
        %v748 = vunpack.c.l.b16 %v709
        %v749 = vunpack.c.l.b16 %v710
        %v750 = vunpack.c.h.b16 %v710
        %v751 = vunpack.c.l.b16 %v711
        %v752 = vunpack.c.l.b16 %v712
        %v753 = vunpack.c.h.b16 %v712
        %v754 = vunpack.c.l.b16 %v713
        %v755 = vunpack.c.l.b16 %v714
        %v756 = vunpack.c.h.b16 %v714
        %v757 = vunpack.c.l.b16 %v715
        %v758 = vunpack.c.l.b16 %v716
        %v759 = vunpack.c.h.b16 %v716
        %v760 = vunpack.c.l.b16 %v717
        %v761 = vunpack.c.l.b16 %v718
        %v762 = vunpack.c.h.b16 %v718
        %v763 = vunpack.c.l.b16 %v719
        %v764 = vunpack.c.l.b16 %v720
        %v765 = vunpack.c.h.b16 %v720
        %v766 = vunpack.c.l.b16 %v721
        %v767 = vpack.c.b16 %v743, %v740
        %v768 = vpack.c.b16 %v744, %v741
        %v769 = vpack.c.b16 %v745, %v742
        %v770 = vpack.c.b16 %v749, %v746
        %v771 = vpack.c.b16 %v750, %v747
        %v772 = vpack.c.b16 %v751, %v748
        %v773 = vpack.c.b16 %v755, %v752
        %v774 = vpack.c.b16 %v756, %v753
        %v775 = vpack.c.b16 %v757, %v754
        %v776 = vpack.c.b16 %v761, %v758
        %v777 = vpack.c.b16 %v762, %v759
        %v778 = vpack.c.b16 %v763, %v760
        %v779 = vpack.c.b16 %v764, %v764
        %v780 = vpack.c.b16 %v765, %v765
        %v781 = vpack.c.b16 %v766, %v766
        %vm794 = vcmask 588800
        %v796 = vsel %vm794, %v703, 0
        %vm798 = vcmask 1043456
        %v800 = vsel %vm798, %v779, 0
        %v803 = vsel %vm798, %v780, 0
        %v806 = vsel %vm798, %v781, 0
        %808 = vmatpush.bf16.msra.mxu0 0
        %809 = vmatpush.bf16.msra.mxu0 0
        %810 = vmatpush.bf16.msra.mxu0 0
        %811 = vmatpush.bf16.msra.mxu0 %v800
        %812 = vmatpush.bf16.msra.mxu0 %v776
        %813 = vmatpush.bf16.msra.mxu0 %v773
        %814 = vmatpush.bf16.msra.mxu0 %v770
        %815 = vmatpush.bf16.msra.mxu0 %v767
        %816 = vmatmul.bf16.gmra.mxu0 %v796
        %v817 = vpop.f32.mrf.mxu0
        %v818 = vadd.f32 0.0, %v817
        %v819 = vpop.f32.mrf.mxu0
        %820 = vdwg.mxu0
        %821 = vmatpush.bf16.msra.mxu0 0
        %822 = vmatpush.bf16.msra.mxu0 0
        %823 = vmatpush.bf16.msra.mxu0 0
        %824 = vmatpush.bf16.msra.mxu0 %v803
        %825 = vmatpush.bf16.msra.mxu0 %v777
        %826 = vmatpush.bf16.msra.mxu0 %v774
        %827 = vmatpush.bf16.msra.mxu0 %v771
        %828 = vmatpush.bf16.msra.mxu0 %v768
        %829 = vmatmul.bf16.gmra.mxu0 %v796
        %v830 = vpop.f32.mrf.mxu0
        %v831 = vadd.f32 0.0, %v830
        %v832 = vpop.f32.mrf.mxu0
        %833 = vdwg.mxu0
        %834 = vmatpush.bf16.msra.mxu0 0
        %835 = vmatpush.bf16.msra.mxu0 0
        %836 = vmatpush.bf16.msra.mxu0 0
        %837 = vmatpush.bf16.msra.mxu0 %v806
        %838 = vmatpush.bf16.msra.mxu0 %v778
        %839 = vmatpush.bf16.msra.mxu0 %v775
        %840 = vmatpush.bf16.msra.mxu0 %v772
        %841 = vmatpush.bf16.msra.mxu0 %v769
        %842 = vmatmul.bf16.gmra.mxu0 %v796
        %v843 = vpop.f32.mrf.mxu0
        %v844 = vadd.f32 0.0, %v843
        %v845 = vpop.f32.mrf.mxu0
        %846 = vdwg.mxu0
        %v847 = vmul.f32 %v818, %v496
        %v848 = vmul.f32 %v831, %v497
        %v849 = vmul.f32 %v844, %v498
        %v850 = vadd.f32 %v847, %v848
        %v851 = vsel %vm506, %v849, 0.0
        %v852 = vadd.f32 %v850, %v851
        %853 = vadd.xlane.f32.xlu0 %v852
        %v854 = vpop.xlane.xlu0 %853
        %v855 = vmul.f32 %v854, 0.00390625
        %v856 = vmul.f32 %v847, %v847
        %v857 = vmul.f32 %v848, %v848
        %v858 = vmul.f32 %v849, %v849
        %v859 = vadd.f32 %v856, %v857
        %v860 = vsel %vm506, %v858, 0.0
        %v861 = vadd.f32 %v859, %v860
        %862 = vadd.xlane.f32.xlu0 %v861
        %v863 = vpop.xlane.xlu0 %862
        %v864 = vmul.f32 %v863, 0.00390625
        %v865 = vmul.f32 %v855, %v855
        %v866 = vsub.f32 %v864, %v865
        %v867 = vmax.f32 %v866, 0.0
        %v868 = vsub.f32 %v847, %v855
        %v869 = vsub.f32 %v848, %v855
        %v870 = vsub.f32 %v849, %v855
        %v871 = vadd.f32 %v867, 1e-05
        %v872 = vrsqrt.pop %v871
        %v873 = vmul.f32 %v872, %v871
        %v874 = vmul.f32 %v873, %v872
        %v875 = vmul.f32 0.5, %v874
        %v876 = vsub.f32 1.5, %v875
        %v877 = vmul.f32 %v872, %v876
        %vm878 = vweird.f32 %v871
        %vm879 = vweird.f32 %v872
        %vm880 = vmor %vm878, %vm879
        %v881 = vsel %vm880, %v872, %v877
        %v882 = vmul.f32 %v868, %v881
        %v883 = vmul.f32 %v869, %v881
        %v884 = vmul.f32 %v870, %v881
        %v885 = vmax.f32 %v882, 0.0
        %v886 = vmax.f32 %v883, 0.0
        %v887 = vmax.f32 %v884, 0.0
        %v888 = vmul.f32 %v885, %v496
        %v889 = vmul.f32 %v886, %v497
        %v890 = vmul.f32 %v887, %v498
        %891 = vst [vmem:[%s212] sm:$0xff] 0
        %892 = vst.msk [vmem:[%s212 + $0x8] sm:$0xf] %vm548, 0
        %v893 = vpack.c.bf16 %v889, %v888
        %v894 = vpack.c.bf16 %v890, %v890
        %897 = vrot.lane.b32.xlu0 %v893, 19
        %v898 = vpop.permute.xlu0 %897
        %899 = vrot.lane.b32.xlu0 %v894, 19
        %v900 = vpop.permute.xlu0 %899
        %v901 = vrot.slane %v898, 4
        %v902 = vsel %vm559, %v901, %v898
        %v903 = vsel %vm559, %v901, %v900
        %906 = vst.msk [vmem:[%s212] sm:$0xff] %vm566, %v902
        %907 = vst.msk [vmem:[%s212 + $0x8] sm:$0xf] %vm568, %v903
        %p908 = scmp.lt.s32.totalorder %s16, 1
        %s909 = scalar_select %p908, %s16, 1
        %s910 = smul.addr %s909, 3
        %s911 = smul.addr %s910, 4
        %s912 = scalar_lea.vmem %s4, %s911
        // Predicated region
        $region41: #{unet_forward.6} parent=35 // pred_check
          %p913 = pneg %p123
        $region42: #{unet_forward.6} parent=35 // pred_check_branch
          %915 = sbr.rel (%p913) target = $region44
        $region43: #{unet_forward.6} parent=35 // pred_region
          _
        $region44: #{unet_forward.6} parent=35 // pred_fallthru
          _
      $region36: #{unet_forward.6} parent=5 // pred_fallthru
        _
      %p916 = scmp.le.s32.totalorder 2, %s11
      // Predicated region
      $region45: #{unet_forward.6} parent=5 // pred_check
        %p917 = pneg %p916
      $region46: #{unet_forward.6} parent=5 // pred_check_branch
        %919 = sbr.rel (%p917) target = $region48
      $region47: #{unet_forward.6} parent=5 // pred_region
        %s920 = ssub.s32 %s11, 2
        // Predicated region
        $region49: #{unet_forward.6} parent=47 // pred_check
          %p921 = pneg %p129
        $region50: #{unet_forward.6} parent=47 // pred_check_branch
          %923 = sbr.rel (%p921) target = $region52
        $region51: #{unet_forward.6} parent=47 // pred_region
          %p924 = scmp.lt.s32.totalorder %s17, 1
          %s925 = scalar_select %p924, %s17, 1
          %s926 = smul.addr %s925, 3
          %s927 = smul.addr %s926, 4
          %s928 = scalar_lea.vmem %s4, %s927
        $region52: #{unet_forward.6} parent=47 // pred_fallthru
          _
      $region48: #{unet_forward.6} parent=5 // pred_fallthru
        _
    $region6: #{unet_forward.6} parent=1 // loop_footer
      %s15 = sadd.s32 1, %s11
    $region7: #{unet_forward.6} parent=1 // loop_footer_branch
      %10 = sbr.rel target = $region3
    $region8: #{unet_forward.6} parent=1 // loop_exit
      _
    %929 = vsyncpa [#allocation6], 1
    %s930 = scalar_lea.sflag [#allocation6], 1
    %931 = vsyncpa %s930, 1

// kernel: unet_forward.9
$region0: #{unet_forward.9}
  #allocation0 [shape = 'u32[]', space=smem, size = 0x4, offset = 0x4, fixed_abs, tag = 'smem constant byte address 0x4 - core index']
  #allocation1 [shape = 'u32[72,128]{1,0:T(1,128)}', space=vmem, size = 0x9000, scoped, tag = 'internal scratch']
  #allocation2 [shape = 'bf16[288,80]{1,0:T(8,128)(2,1)}', space=vmem, size = 0x12000, scoped, tag = 'scratch operand']
  #allocation3 [shape = 'bf16[8,110]{1,0:T(8,128)(2,1)}', space=vmem, size = 0x800, scoped, tag = 'scratch operand']
  #allocation4 [shape = 'bf16[72,80]{1,0:T(8,128)(2,1)}', space=vmem, size = 0x4800, scoped, tag = 'scratch operand']
  %s0 = inlined_call_operand.vmem [shape: bf16[2,16,42], index: 0, kind: input, shape index: {}]
  %s1 = inlined_call_operand.vmem [shape: bf16[2,16,110], index: 1, kind: input, shape index: {}]
  %s2 = inlined_call_operand.vmem [shape: bf16[42,110], index: 2, kind: input, shape index: {}]
  %s3 = inlined_call_operand.hbm [shape: bf16[8,288], index: 3, kind: input, shape index: {}]
  %s4 = inlined_call_operand.hbm [shape: bf16[8,72], index: 4, kind: input, shape index: {}]
  %s5 = inlined_call_operand.vmem [shape: f32[1,80], index: 5, kind: input, shape index: {}]
  %s6 = inlined_call_operand.vmem [shape: bf16[2,8,110], index: 6, kind: output, shape index: {}]
  %s7 = sld [smem:[#allocation0]]
  $region65: #{unet_forward.9} parent=0
    _
  %s9 = ssub.s32 1, %s7
  %s10 = scalar_select 0, %s9, %s7
  $region1: #{unet_forward.9} parent=0
    #allocation5 [shape = 'u8[6144]{0}', space=vmem, size = 0x1800, scoped, tag = 'input window, operand 3, single buffered']
    #allocation6 [shape = 's32[2]{0}', space=sflag, size = 0x8, scoped, tag = 'scoped memory for unet_forward.9']
    #allocation7 [shape = 'u8[2048]{0}', space=vmem, size = 0x800, scoped, tag = 'input window, operand 4, single buffered']
    #allocation8 [shape = 's32[1]{0}', space=sflag, size = 0x4, scoped, tag = 'scoped memory for unet_forward.9']
    %11 = vsyncpa [#allocation6], 0
    %12 = vsyncpa [#allocation8], 0
    loop: start=0, step=1, limit=4
    $region2: #{unet_forward.9} parent=1 // loop_pre_header
      _
    $region3: #{unet_forward.9} parent=1 // loop_header
      %s14 = sphi 0, %s18
      %p15 = scmp.ge.s32.totalorder %s14, 4
      %s24 = sphi 0, %s26
      %s27 = sphi 0, %s24
      %s28 = sphi 0, %s27
      %s44 = sphi 0, %s28
      %s50 = sphi 0, %s52
      %s53 = sphi 0, %s50
      %s54 = sphi 0, %s53
      %s70 = sphi 0, %s54
      %s74 = sphi 0, %s74
      %s76 = sphi 0, %s74
      %s77 = sphi 0, %s76
      %s91 = sphi 0, %s77
      %s95 = sphi 0, %s95
      %s97 = sphi 0, %s95
      %s98 = sphi 0, %s97
      %s112 = sphi 0, %s98
      %s116 = sphi 0, %s116
      %s118 = sphi 0, %s116
      %s119 = sphi 0, %s118
      %s133 = sphi 0, %s119
      %s137 = sphi 0, %s137
      %s139 = sphi 0, %s137
      %s140 = sphi 0, %s139
      %s154 = sphi 0, %s140
      %s160 = sphi 0, %s162
      %s163 = sphi 0, %s160
      %s164 = sphi 0, %s163
      %s180 = sphi 0, %s164
    $region4: #{unet_forward.9} parent=1 // loop_header_branch
      %17 = sbr.rel (%p15) target = $region8
    $region5: #{unet_forward.9} parent=1 // loop_body
      %s19 = ssub.s32 %s14, 1
      %s20 = ssub.s32 %s14, 2
      %s21 = sadd.s32 %s14, 1
      %s22 = ssub.s32 %s14, %s21
      %p23 = scmp.eq.s32.totalorder %s22, 0
      %s25 = sadd.s32 %s24, 1
      %s26 = scalar_select %p23, %s24, %s25
      %p29 = pneg %p23
      %p30 = scmp.eq.s32.totalorder %s14, 1
      %p31 = por %p29, %p30
      %p32 = scmp.ne.s32.totalorder %s24, %s27
      %p33 = scmp.eq.s32.totalorder %s14, 0
      %p34 = por %p32, %p33
      %p35 = scmp.ne.s32.totalorder %s24, %s27
      %p36 = scmp.eq.s32.totalorder %s19, 1
      %p37 = por %p35, %p36
      %p38 = scmp.ne.s32.totalorder %s27, %s28
      %p39 = scmp.eq.s32.totalorder %s19, 0
      %p40 = por %p38, %p39
      %p41 = scmp.ne.s32.totalorder %s27, %s28
      %p42 = scmp.eq.s32.totalorder %s20, 1
      %p43 = por %p41, %p42
      %p45 = scmp.ne.s32.totalorder %s28, %s44
      %p46 = scmp.eq.s32.totalorder %s20, 0
      %p47 = por %p45, %p46
      %s48 = ssub.s32 %s14, %s21
      %p49 = scmp.eq.s32.totalorder %s48, 0
      %s51 = sadd.s32 %s50, 1
      %s52 = scalar_select %p49, %s50, %s51
      %p55 = pneg %p49
      %p56 = scmp.eq.s32.totalorder %s14, 1
      %p57 = por %p55, %p56
      %p58 = scmp.ne.s32.totalorder %s50, %s53
      %p59 = scmp.eq.s32.totalorder %s14, 0
      %p60 = por %p58, %p59
      %p61 = scmp.ne.s32.totalorder %s50, %s53
      %p62 = scmp.eq.s32.totalorder %s19, 1
      %p63 = por %p61, %p62
      %p64 = scmp.ne.s32.totalorder %s53, %s54
      %p65 = scmp.eq.s32.totalorder %s19, 0
      %p66 = por %p64, %p65
      %p67 = scmp.ne.s32.totalorder %s53, %s54
      %p68 = scmp.eq.s32.totalorder %s20, 1
      %p69 = por %p67, %p68
      %p71 = scmp.ne.s32.totalorder %s54, %s70
      %p72 = scmp.eq.s32.totalorder %s20, 0
      %p73 = por %p71, %p72
      %s75 = sadd.s32 %s74, 1
      %p78 = scmp.eq.s32.totalorder %s14, 1
      %p79 = scmp.ne.s32.totalorder %s74, %s76
      %p80 = scmp.eq.s32.totalorder %s14, 0
      %p81 = por %p79, %p80
      %p82 = scmp.ne.s32.totalorder %s74, %s76
      %p83 = scmp.eq.s32.totalorder %s19, 1
      %p84 = por %p82, %p83
      %p85 = scmp.ne.s32.totalorder %s76, %s77
      %p86 = scmp.eq.s32.totalorder %s19, 0
      %p87 = por %p85, %p86
      %p88 = scmp.ne.s32.totalorder %s76, %s77
      %p89 = scmp.eq.s32.totalorder %s20, 1
      %p90 = por %p88, %p89
      %p92 = scmp.ne.s32.totalorder %s77, %s91
      %p93 = scmp.eq.s32.totalorder %s20, 0
      %p94 = por %p92, %p93
      %s96 = sadd.s32 %s95, 1
      %p99 = scmp.eq.s32.totalorder %s14, 1
      %p100 = scmp.ne.s32.totalorder %s95, %s97
      %p101 = scmp.eq.s32.totalorder %s14, 0
      %p102 = por %p100, %p101
      %p103 = scmp.ne.s32.totalorder %s95, %s97
      %p104 = scmp.eq.s32.totalorder %s19, 1
      %p105 = por %p103, %p104
      %p106 = scmp.ne.s32.totalorder %s97, %s98
      %p107 = scmp.eq.s32.totalorder %s19, 0
      %p108 = por %p106, %p107
      %p109 = scmp.ne.s32.totalorder %s97, %s98
      %p110 = scmp.eq.s32.totalorder %s20, 1
      %p111 = por %p109, %p110
      %p113 = scmp.ne.s32.totalorder %s98, %s112
      %p114 = scmp.eq.s32.totalorder %s20, 0
      %p115 = por %p113, %p114
      %s117 = sadd.s32 %s116, 1
      %p120 = scmp.eq.s32.totalorder %s14, 1
      %p121 = scmp.ne.s32.totalorder %s116, %s118
      %p122 = scmp.eq.s32.totalorder %s14, 0
      %p123 = por %p121, %p122
      %p124 = scmp.ne.s32.totalorder %s116, %s118
      %p125 = scmp.eq.s32.totalorder %s19, 1
      %p126 = por %p124, %p125
      %p127 = scmp.ne.s32.totalorder %s118, %s119
      %p128 = scmp.eq.s32.totalorder %s19, 0
      %p129 = por %p127, %p128
      %p130 = scmp.ne.s32.totalorder %s118, %s119
      %p131 = scmp.eq.s32.totalorder %s20, 1
      %p132 = por %p130, %p131
      %p134 = scmp.ne.s32.totalorder %s119, %s133
      %p135 = scmp.eq.s32.totalorder %s20, 0
      %p136 = por %p134, %p135
      %s138 = sadd.s32 %s137, 1
      %p141 = scmp.eq.s32.totalorder %s14, 1
      %p142 = scmp.ne.s32.totalorder %s137, %s139
      %p143 = scmp.eq.s32.totalorder %s14, 0
      %p144 = por %p142, %p143
      %p145 = scmp.ne.s32.totalorder %s137, %s139
      %p146 = scmp.eq.s32.totalorder %s19, 1
      %p147 = por %p145, %p146
      %p148 = scmp.ne.s32.totalorder %s139, %s140
      %p149 = scmp.eq.s32.totalorder %s19, 0
      %p150 = por %p148, %p149
      %p151 = scmp.ne.s32.totalorder %s139, %s140
      %p152 = scmp.eq.s32.totalorder %s20, 1
      %p153 = por %p151, %p152
      %p155 = scmp.ne.s32.totalorder %s140, %s154
      %p156 = scmp.eq.s32.totalorder %s20, 0
      %p157 = por %p155, %p156
      %s158 = ssub.s32 %s14, %s21
      %p159 = scmp.eq.s32.totalorder %s158, 0
      %s161 = sadd.s32 %s160, 1
      %s162 = scalar_select %p159, %s160, %s161
      %p165 = pneg %p159
      %p166 = scmp.eq.s32.totalorder %s14, 1
      %p167 = por %p165, %p166
      %p168 = scmp.ne.s32.totalorder %s160, %s163
      %p169 = scmp.eq.s32.totalorder %s14, 0
      %p170 = por %p168, %p169
      %p171 = scmp.ne.s32.totalorder %s160, %s163
      %p172 = scmp.eq.s32.totalorder %s19, 1
      %p173 = por %p171, %p172
      %p174 = scmp.ne.s32.totalorder %s163, %s164
      %p175 = scmp.eq.s32.totalorder %s19, 0
      %p176 = por %p174, %p175
      %p177 = scmp.ne.s32.totalorder %s163, %s164
      %p178 = scmp.eq.s32.totalorder %s20, 1
      %p179 = por %p177, %p178
      %p181 = scmp.ne.s32.totalorder %s164, %s180
      %p182 = scmp.eq.s32.totalorder %s20, 0
      %p183 = por %p181, %p182
      %p184 = scmp.le.s32.totalorder 1, %s14
      %p185 = scmp.lt.s32.totalorder %s14, 3
      %p186 = pnand %p184, %p185
      %p187 = pneg %p186
      // Predicated region
      $region9: #{unet_forward.9} parent=5 // pred_check
        _
      $region10: #{unet_forward.9} parent=5 // pred_check_branch
        %189 = sbr.rel (%p186) target = $region12
      $region11: #{unet_forward.9} parent=5 // pred_region
        %s190 = ssub.s32 %s14, 1
        // Predicated region
        $region13: #{unet_forward.9} parent=11 // pred_check
          %p191 = pneg %p87
        $region14: #{unet_forward.9} parent=11 // pred_check_branch
          %193 = sbr.rel (%p191) target = $region16
        $region15: #{unet_forward.9} parent=11 // pred_region
          _
        $region16: #{unet_forward.9} parent=11 // pred_fallthru
          _
        // Predicated region
        $region17: #{unet_forward.9} parent=11 // pred_check
          %p194 = pneg %p108
        $region18: #{unet_forward.9} parent=11 // pred_check_branch
          %196 = sbr.rel (%p194) target = $region20
        $region19: #{unet_forward.9} parent=11 // pred_region
          %198 = vsyncadd [#allocation6], 0
          %s200 = sshll.u32 %s3, 4
          %s201 = int_to_ptr.hbm [resolvable:$true] %s200
          %s202 = sshll.u32 [#allocation5], 4
          %s203 = int_to_ptr.vmem [resolvable:$true] %s202
          %205 = dma.hbm_to_vmem [thread:$0]  %s201, 192, %s203, [#allocation6]
        $region20: #{unet_forward.9} parent=11 // pred_fallthru
          _
        // Predicated region
        $region21: #{unet_forward.9} parent=11 // pred_check
          %p206 = pneg %p129
        $region22: #{unet_forward.9} parent=11 // pred_check_branch
          %208 = sbr.rel (%p206) target = $region24
        $region23: #{unet_forward.9} parent=11 // pred_region
          %210 = vsyncadd [#allocation8], 0
          %s212 = sshll.u32 %s4, 4
          %s213 = int_to_ptr.hbm [resolvable:$true] %s212
          %s214 = sshll.u32 [#allocation7], 4
          %s215 = int_to_ptr.vmem [resolvable:$true] %s214
          %217 = dma.hbm_to_vmem [thread:$0]  %s213, 64, %s215, [#allocation8]
        $region24: #{unet_forward.9} parent=11 // pred_fallthru
          _
        // Predicated region
        $region25: #{unet_forward.9} parent=11 // pred_check
          %p218 = pneg %p150
        $region26: #{unet_forward.9} parent=11 // pred_check_branch
          %220 = sbr.rel (%p218) target = $region28
        $region27: #{unet_forward.9} parent=11 // pred_region
          _
        $region28: #{unet_forward.9} parent=11 // pred_fallthru
          _
      $region12: #{unet_forward.9} parent=5 // pred_fallthru
        _
      %p221 = scmp.lt.s32.totalorder %s14, 2
      // Predicated region
      $region29: #{unet_forward.9} parent=5 // pred_check
        %p222 = pneg %p221
      $region30: #{unet_forward.9} parent=5 // pred_check_branch
        %224 = sbr.rel (%p222) target = $region32
      $region31: #{unet_forward.9} parent=5 // pred_region
        // Predicated region
        $region33: #{unet_forward.9} parent=31 // pred_check
          %p225 = pneg %p34
        $region34: #{unet_forward.9} parent=31 // pred_check_branch
          %227 = sbr.rel (%p225) target = $region36
        $region35: #{unet_forward.9} parent=31 // pred_region
          %p228 = scmp.lt.s32.totalorder %s14, 1
          %s229 = scalar_select %p228, %s14, 1
          %s230 = smul.addr %s229, 2
          %s231 = smul.addr %s230, 4
          %s232 = scalar_lea.vmem %s0, %s231
        $region36: #{unet_forward.9} parent=31 // pred_fallthru
          _
        // Predicated region
        $region37: #{unet_forward.9} parent=31 // pred_check
          %p233 = pneg %p60
        $region38: #{unet_forward.9} parent=31 // pred_check_branch
          %235 = sbr.rel (%p233) target = $region40
        $region39: #{unet_forward.9} parent=31 // pred_region
          %p236 = scmp.lt.s32.totalorder %s14, 1
          %s237 = scalar_select %p236, %s14, 1
          %s238 = smul.addr %s237, 2
          %s239 = smul.addr %s238, 4
          %s240 = scalar_lea.vmem %s1, %s239
        $region40: #{unet_forward.9} parent=31 // pred_fallthru
          _
      $region32: #{unet_forward.9} parent=5 // pred_fallthru
        _
      %p241 = scmp.le.s32.totalorder 1, %s14
      %p242 = scmp.lt.s32.totalorder %s14, 3
      %p243 = pnand %p241, %p242
      %p244 = pneg %p243
      // Predicated region
      $region41: #{unet_forward.9} parent=5 // pred_check
        _
      $region42: #{unet_forward.9} parent=5 // pred_check_branch
        %246 = sbr.rel (%p243) target = $region44
      $region43: #{unet_forward.9} parent=5 // pred_region
        %s247 = ssub.s32 %s14, 1
        // Predicated region
        $region45: #{unet_forward.9} parent=43 // pred_check
          %p248 = pneg %p108
        $region46: #{unet_forward.9} parent=43 // pred_check_branch
          %250 = sbr.rel (%p248) target = $region48
        $region47: #{unet_forward.9} parent=43 // pred_region
          %252 = dma.done [#allocation6], 192
        $region48: #{unet_forward.9} parent=43 // pred_fallthru
          _
        // Predicated region
        $region49: #{unet_forward.9} parent=43 // pred_check
          %p253 = pneg %p129
        $region50: #{unet_forward.9} parent=43 // pred_check_branch
          %255 = sbr.rel (%p253) target = $region52
        $region51: #{unet_forward.9} parent=43 // pred_region
          %257 = dma.done [#allocation8], 64
        $region52: #{unet_forward.9} parent=43 // pred_fallthru
          _
        %p258 = scmp.lt.s32.totalorder %s19, 1
        %s259 = scalar_select %p258, %s19, 1
        %s260 = smul.addr %s259, 2
        %s261 = smul.addr %s260, 4
        %s262 = scalar_lea.vmem %s0, %s261
        %p263 = pneg %p40
        %p264 = pneg %p37
        %p265 = scmp.lt.s32.totalorder %s19, 1
        %s266 = scalar_select %p265, %s19, 1
        %s267 = smul.addr %s266, 2
        %s268 = smul.addr %s267, 4
        %s269 = scalar_lea.vmem %s1, %s268
        %p270 = pneg %p66
        %p271 = pneg %p63
        %p272 = pneg %p87
        %p273 = pneg %p84
        %p274 = pneg %p108
        %p275 = pneg %p105
        %p276 = pneg %p129
        %p277 = pneg %p126
        %p278 = pneg %p150
        %p279 = pneg %p147
        %p280 = pneg %p176
        %p281 = pneg %p173
        %p282 = scmp.lt.s32.totalorder %s19, 1
        %s283 = scalar_select %p282, %s19, 1
        %s284 = smul.addr %s283, 4
        %s285 = scalar_lea.vmem %s6, %s284
        %p286 = scmp.lt.s32.totalorder %s19, 1
        %s287 = scalar_select %p286, %s19, 1
        %s288 = smul.addr %s287, 2
        %s289 = smul.addr %s288, 4
        %s290 = scalar_lea.vmem %s0, %s289
        %p291 = scmp.lt.s32.totalorder %s19, 1
        %s292 = scalar_select %p291, %s19, 1
        %s293 = smul.addr %s292, 2
        %s294 = smul.addr %s293, 4
        %s295 = scalar_lea.vmem %s1, %s294
        %p296 = scmp.lt.s32.totalorder %s19, 1
        %s297 = scalar_select %p296, %s19, 1
        %s298 = smul.addr %s297, 4
        %s299 = scalar_lea.vmem %s6, %s298
        %v301 = vld [vmem:[%s5] sm:$0x1]
        %v302 = vld [vmem:[%s290] sm:$0xf]
        %v303 = vld [vmem:[%s290 + $0x4] sm:$0xf]
        %v304 = vld [vmem:[%s2] sm:$0xf]
        %v305 = vld [vmem:[%s2 + $0x4] sm:$0xf]
        %v306 = vld [vmem:[%s2 + $0x8] sm:$0xf]
        %v307 = vld [vmem:[%s2 + $0xc] sm:$0xf]
        %v308 = vld [vmem:[%s2 + $0x10] sm:$0xf]
        %v309 = vld [vmem:[%s2 + $0x14] sm:$0x1]
        %v312 = vunpack.c.l.b16 %v302
        %v313 = vunpack.c.l.b16 %v303
        %v314 = vpack.c.b16 %v313, %v312
        %v321 = vunpack.c.l.b16 %v304
        %v322 = vunpack.c.l.b16 %v305
        %v323 = vunpack.c.l.b16 %v306
        %v324 = vunpack.c.l.b16 %v307
        %v325 = vunpack.c.l.b16 %v308
        %v326 = vunpack.c.l.b16 %v309
        %v327 = vpack.c.b16 %v322, %v321
        %v328 = vpack.c.b16 %v324, %v323
        %v329 = vpack.c.b16 %v326, %v325
        %vm332 = vcmask 343040
        %v334 = vsel %vm332, %v314, 0
        %vm336 = vcmask 1044480
        %v338 = vsel %vm336, %v329, 0
        %340 = vmatpush.bf16.msra.mxu0 0
        %341 = vmatpush.bf16.msra.mxu0 0
        %342 = vmatpush.bf16.msra.mxu0 0
        %343 = vmatpush.bf16.msra.mxu0 0
        %344 = vmatpush.bf16.msra.mxu0 0
        %345 = vmatpush.bf16.msra.mxu0 %v338
        %346 = vmatpush.bf16.msra.mxu0 %v328
        %347 = vmatpush.bf16.msra.mxu0 %v327
        %348 = vmatmul.bf16.gmra.mxu0 %v334
        %v349 = vpop.f32.mrf.mxu0
        %v350 = vadd.f32 0.0, %v349
        %v351 = vpop.f32.mrf.mxu0
        %v352 = vadd.f32 0.0, %v351
        %353 = vdwg.mxu0
        %v354 = vpack.c.bf16 %v350, %v350
        %v355 = vpack.c.bf16 %v352, %v352
        %vm356 = vcmask 650240
        %357 = vst.msk [vmem:[#allocation2] sm:$0xf] %vm356, %v354
        %358 = vst.msk [vmem:[#allocation2 + $0x4] sm:$0xf] %vm356, %v355
        %361 = vrot.lane.b32.xlu0 %v354, 127
        %v362 = vpop.permute.xlu0 %361
        %363 = vrot.lane.b32.xlu0 %v355, 127
        %v364 = vpop.permute.xlu0 %363
        %367 = vst.msk [vmem:[#allocation2 + $0x8] sm:$0xf] %vm356, %v362
        %368 = vst.msk [vmem:[#allocation2 + $0xc] sm:$0xf] %vm356, %v364
        %369 = vrot.lane.b32.xlu0 %v354, 126
        %v370 = vpop.permute.xlu0 %369
        %371 = vrot.lane.b32.xlu0 %v355, 126
        %v372 = vpop.permute.xlu0 %371
        %375 = vst.msk [vmem:[#allocation2 + $0x10] sm:$0xf] %vm356, %v370
        %376 = vst.msk [vmem:[#allocation2 + $0x14] sm:$0xf] %vm356, %v372
        %377 = vrot.lane.b32.xlu0 %v354, 118
        %v378 = vpop.permute.xlu0 %377
        %379 = vrot.lane.b32.xlu0 %v355, 118
        %v380 = vpop.permute.xlu0 %379
        %383 = vst.msk [vmem:[#allocation2 + $0x18] sm:$0xf] %vm356, %v378
        %384 = vst.msk [vmem:[#allocation2 + $0x1c] sm:$0xf] %vm356, %v380
        %385 = vrot.lane.b32.xlu0 %v354, 117
        %v386 = vpop.permute.xlu0 %385
        %387 = vrot.lane.b32.xlu0 %v355, 117
        %v388 = vpop.permute.xlu0 %387
        %391 = vst.msk [vmem:[#allocation2 + $0x20] sm:$0xf] %vm356, %v386
        %392 = vst.msk [vmem:[#allocation2 + $0x24] sm:$0xf] %vm356, %v388
        %393 = vrot.lane.b32.xlu0 %v354, 116
        %v394 = vpop.permute.xlu0 %393
        %395 = vrot.lane.b32.xlu0 %v355, 116
        %v396 = vpop.permute.xlu0 %395
        %399 = vst.msk [vmem:[#allocation2 + $0x28] sm:$0xf] %vm356, %v394
        %400 = vst.msk [vmem:[#allocation2 + $0x2c] sm:$0xf] %vm356, %v396
        %401 = vrot.lane.b32.xlu0 %v354, 108
        %v402 = vpop.permute.xlu0 %401
        %403 = vrot.lane.b32.xlu0 %v355, 108
        %v404 = vpop.permute.xlu0 %403
        %407 = vst.msk [vmem:[#allocation2 + $0x30] sm:$0xf] %vm356, %v402
        %408 = vst.msk [vmem:[#allocation2 + $0x34] sm:$0xf] %vm356, %v404
        %409 = vrot.lane.b32.xlu0 %v354, 107
        %v410 = vpop.permute.xlu0 %409
        %411 = vrot.lane.b32.xlu0 %v355, 107
        %v412 = vpop.permute.xlu0 %411
        %415 = vst.msk [vmem:[#allocation2 + $0x38] sm:$0xf] %vm356, %v410
        %416 = vst.msk [vmem:[#allocation2 + $0x3c] sm:$0xf] %vm356, %v412
        %417 = vrot.lane.b32.xlu0 %v354, 106
        %v418 = vpop.permute.xlu0 %417
        %419 = vrot.lane.b32.xlu0 %v355, 106
        %v420 = vpop.permute.xlu0 %419
        %423 = vst.msk [vmem:[#allocation2 + $0x40] sm:$0xf] %vm356, %v418
        %424 = vst.msk [vmem:[#allocation2 + $0x44] sm:$0xf] %vm356, %v420
        %v425 = vld [vmem:[%s295] sm:$0xf]
        %v426 = vld [vmem:[%s295 + $0x4] sm:$0xf]
        %427 = vst.msk [vmem:[#allocation2 + $0x48] sm:$0xf] %vm356, %v425
        %428 = vst.msk [vmem:[#allocation2 + $0x4c] sm:$0xf] %vm356, %v426
        %v429 = vld [vmem:[%s295] sm:$0xf]
        %v430 = vld [vmem:[%s295 + $0x4] sm:$0xf]
        %433 = vrot.lane.b32.xlu0 %v429, 127
        %v434 = vpop.permute.xlu0 %433
        %435 = vrot.lane.b32.xlu0 %v430, 127
        %v436 = vpop.permute.xlu0 %435
        %439 = vst.msk [vmem:[#allocation2 + $0x50] sm:$0xf] %vm356, %v434
        %440 = vst.msk [vmem:[#allocation2 + $0x54] sm:$0xf] %vm356, %v436
        %v441 = vld [vmem:[%s295] sm:$0xf]
        %v442 = vld [vmem:[%s295 + $0x4] sm:$0xf]
        %445 = vrot.lane.b32.xlu0 %v441, 126
        %v446 = vpop.permute.xlu0 %445
        %447 = vrot.lane.b32.xlu0 %v442, 126
        %v448 = vpop.permute.xlu0 %447
        %451 = vst.msk [vmem:[#allocation2 + $0x58] sm:$0xf] %vm356, %v446
        %452 = vst.msk [vmem:[#allocation2 + $0x5c] sm:$0xf] %vm356, %v448
        %v453 = vld [vmem:[%s295] sm:$0xf]
        %v454 = vld [vmem:[%s295 + $0x4] sm:$0xf]
        %457 = vrot.lane.b32.xlu0 %v453, 118
        %v458 = vpop.permute.xlu0 %457
        %459 = vrot.lane.b32.xlu0 %v454, 118
        %v460 = vpop.permute.xlu0 %459
        %463 = vst.msk [vmem:[#allocation2 + $0x60] sm:$0xf] %vm356, %v458
        %464 = vst.msk [vmem:[#allocation2 + $0x64] sm:$0xf] %vm356, %v460
        %v465 = vld [vmem:[%s295] sm:$0xf]
        %v466 = vld [vmem:[%s295 + $0x4] sm:$0xf]
        %469 = vrot.lane.b32.xlu0 %v465, 117
        %v470 = vpop.permute.xlu0 %469
        %471 = vrot.lane.b32.xlu0 %v466, 117
        %v472 = vpop.permute.xlu0 %471
        %475 = vst.msk [vmem:[#allocation2 + $0x68] sm:$0xf] %vm356, %v470
        %476 = vst.msk [vmem:[#allocation2 + $0x6c] sm:$0xf] %vm356, %v472
        %v477 = vld [vmem:[%s295] sm:$0xf]
        %v478 = vld [vmem:[%s295 + $0x4] sm:$0xf]
        %481 = vrot.lane.b32.xlu0 %v477, 116
        %v482 = vpop.permute.xlu0 %481
        %483 = vrot.lane.b32.xlu0 %v478, 116
        %v484 = vpop.permute.xlu0 %483
        %487 = vst.msk [vmem:[#allocation2 + $0x70] sm:$0xf] %vm356, %v482
        %488 = vst.msk [vmem:[#allocation2 + $0x74] sm:$0xf] %vm356, %v484
        %v489 = vld [vmem:[%s295] sm:$0xf]
        %v490 = vld [vmem:[%s295 + $0x4] sm:$0xf]
        %493 = vrot.lane.b32.xlu0 %v489, 108
        %v494 = vpop.permute.xlu0 %493
        %495 = vrot.lane.b32.xlu0 %v490, 108
        %v496 = vpop.permute.xlu0 %495
        %499 = vst.msk [vmem:[#allocation2 + $0x78] sm:$0xf] %vm356, %v494
        %500 = vst.msk [vmem:[#allocation2 + $0x7c] sm:$0xf] %vm356, %v496
        %v501 = vld [vmem:[%s295] sm:$0xf]
        %v502 = vld [vmem:[%s295 + $0x4] sm:$0xf]
        %505 = vrot.lane.b32.xlu0 %v501, 107
        %v506 = vpop.permute.xlu0 %505
        %507 = vrot.lane.b32.xlu0 %v502, 107
        %v508 = vpop.permute.xlu0 %507
        %511 = vst.msk [vmem:[#allocation2 + $0x80] sm:$0xf] %vm356, %v506
        %512 = vst.msk [vmem:[#allocation2 + $0x84] sm:$0xf] %vm356, %v508
        %v513 = vld [vmem:[%s295] sm:$0xf]
        %v514 = vld [vmem:[%s295 + $0x4] sm:$0xf]
        %517 = vrot.lane.b32.xlu0 %v513, 106
        %v518 = vpop.permute.xlu0 %517
        %519 = vrot.lane.b32.xlu0 %v514, 106
        %v520 = vpop.permute.xlu0 %519
        %523 = vst.msk [vmem:[#allocation2 + $0x88] sm:$0xf] %vm356, %v518
        %524 = vst.msk [vmem:[#allocation2 + $0x8c] sm:$0xf] %vm356, %v520
        %v525 = vld [vmem:[#allocation5] sm:$0xff]
        %v526 = vld [vmem:[#allocation5 + $0x8] sm:$0xf]
        %v527 = vld [vmem:[#allocation2] sm:$0xf]
        %v528 = vld [vmem:[#allocation2 + $0x4] sm:$0xf]
        %v529 = vld [vmem:[#allocation2 + $0x8] sm:$0xf]
        %v530 = vld [vmem:[#allocation2 + $0xc] sm:$0xf]
        %v531 = vld [vmem:[#allocation2 + $0x10] sm:$0xf]
        %v532 = vld [vmem:[#allocation2 + $0x14] sm:$0xf]
        %v533 = vld [vmem:[#allocation2 + $0x18] sm:$0xf]
        %v534 = vld [vmem:[#allocation2 + $0x1c] sm:$0xf]
        %v535 = vld [vmem:[#allocation2 + $0x20] sm:$0xf]
        %v536 = vld [vmem:[#allocation2 + $0x24] sm:$0xf]
        %v537 = vld [vmem:[#allocation2 + $0x28] sm:$0xf]
        %v538 = vld [vmem:[#allocation2 + $0x2c] sm:$0xf]
        %v539 = vld [vmem:[#allocation2 + $0x30] sm:$0xf]
        %v540 = vld [vmem:[#allocation2 + $0x34] sm:$0xf]
        %v541 = vld [vmem:[#allocation2 + $0x38] sm:$0xf]
        %v542 = vld [vmem:[#allocation2 + $0x3c] sm:$0xf]
        %v543 = vld [vmem:[#allocation2 + $0x40] sm:$0xf]
        %v544 = vld [vmem:[#allocation2 + $0x44] sm:$0xf]
        %v545 = vld [vmem:[#allocation2 + $0x48] sm:$0xf]
        %v546 = vld [vmem:[#allocation2 + $0x4c] sm:$0xf]
        %v547 = vld [vmem:[#allocation2 + $0x50] sm:$0xf]
        %v548 = vld [vmem:[#allocation2 + $0x54] sm:$0xf]
        %v549 = vld [vmem:[#allocation2 + $0x58] sm:$0xf]
        %v550 = vld [vmem:[#allocation2 + $0x5c] sm:$0xf]
        %v551 = vld [vmem:[#allocation2 + $0x60] sm:$0xf]
        %v552 = vld [vmem:[#allocation2 + $0x64] sm:$0xf]
        %v553 = vld [vmem:[#allocation2 + $0x68] sm:$0xf]
        %v554 = vld [vmem:[#allocation2 + $0x6c] sm:$0xf]
        %v555 = vld [vmem:[#allocation2 + $0x70] sm:$0xf]
        %v556 = vld [vmem:[#allocation2 + $0x74] sm:$0xf]
        %v557 = vld [vmem:[#allocation2 + $0x78] sm:$0xf]
        %v558 = vld [vmem:[#allocation2 + $0x7c] sm:$0xf]
        %v559 = vld [vmem:[#allocation2 + $0x80] sm:$0xf]
        %v560 = vld [vmem:[#allocation2 + $0x84] sm:$0xf]
        %v561 = vld [vmem:[#allocation2 + $0x88] sm:$0xf]
        %v562 = vld [vmem:[#allocation2 + $0x8c] sm:$0xf]
        %v565 = vunpack.c.l.b16 %v525
        %v566 = vunpack.c.h.b16 %v525
        %v567 = vunpack.c.l.b16 %v526
        %v568 = vpack.c.b16 %v565, %v565
        %v569 = vpack.c.b16 %v566, %v566
        %v570 = vpack.c.b16 %v567, %v567
        %v609 = vunpack.c.l.b16 %v527
        %v610 = vunpack.c.l.b16 %v528
        %v611 = vunpack.c.l.b16 %v529
        %v612 = vunpack.c.l.b16 %v530
        %v613 = vunpack.c.l.b16 %v531
        %v614 = vunpack.c.l.b16 %v532
        %v615 = vunpack.c.l.b16 %v533
        %v616 = vunpack.c.l.b16 %v534
        %v617 = vunpack.c.l.b16 %v535
        %v618 = vunpack.c.l.b16 %v536
        %v619 = vunpack.c.l.b16 %v537
        %v620 = vunpack.c.l.b16 %v538
        %v621 = vunpack.c.l.b16 %v539
        %v622 = vunpack.c.l.b16 %v540
        %v623 = vunpack.c.l.b16 %v541
        %v624 = vunpack.c.l.b16 %v542
        %v625 = vunpack.c.l.b16 %v543
        %v626 = vunpack.c.l.b16 %v544
        %v627 = vunpack.c.l.b16 %v545
        %v628 = vunpack.c.l.b16 %v546
        %v629 = vunpack.c.l.b16 %v547
        %v630 = vunpack.c.l.b16 %v548
        %v631 = vunpack.c.l.b16 %v549
        %v632 = vunpack.c.l.b16 %v550
        %v633 = vunpack.c.l.b16 %v551
        %v634 = vunpack.c.l.b16 %v552
        %v635 = vunpack.c.l.b16 %v553
        %v636 = vunpack.c.l.b16 %v554
        %v637 = vunpack.c.l.b16 %v555
        %v638 = vunpack.c.l.b16 %v556
        %v639 = vunpack.c.l.b16 %v557
        %v640 = vunpack.c.l.b16 %v558
        %v641 = vunpack.c.l.b16 %v559
        %v642 = vunpack.c.l.b16 %v560
        %v643 = vunpack.c.l.b16 %v561
        %v644 = vunpack.c.l.b16 %v562
        %v645 = vpack.c.b16 %v610, %v609
        %v646 = vpack.c.b16 %v612, %v611
        %v647 = vpack.c.b16 %v614, %v613
        %v648 = vpack.c.b16 %v616, %v615
        %v649 = vpack.c.b16 %v618, %v617
        %v650 = vpack.c.b16 %v620, %v619
        %v651 = vpack.c.b16 %v622, %v621
        %v652 = vpack.c.b16 %v624, %v623
        %v653 = vpack.c.b16 %v626, %v625
        %v654 = vpack.c.b16 %v628, %v627
        %v655 = vpack.c.b16 %v630, %v629
        %v656 = vpack.c.b16 %v632, %v631
        %v657 = vpack.c.b16 %v634, %v633
        %v658 = vpack.c.b16 %v636, %v635
        %v659 = vpack.c.b16 %v638, %v637
        %v660 = vpack.c.b16 %v640, %v639
        %v661 = vpack.c.b16 %v642, %v641
        %v662 = vpack.c.b16 %v644, %v643
        %vm681 = vcmask 261120
        %v683 = vsel %vm681, %v570, 0
        %685 = vmatpush.bf16.msra.mxu0 %v652
        %686 = vmatpush.bf16.msra.mxu0 %v651
        %687 = vmatpush.bf16.msra.mxu0 %v650
        %688 = vmatpush.bf16.msra.mxu0 %v649
        %689 = vmatpush.bf16.msra.mxu0 %v648
        %690 = vmatpush.bf16.msra.mxu0 %v647
        %691 = vmatpush.bf16.msra.mxu0 %v646
        %692 = vmatpush.bf16.msra.mxu0 %v645
        %693 = vmatmul.bf16.gmra.mxu0 %v568
        %v694 = vpop.f32.mrf.mxu0
        %v695 = vadd.f32 0.0, %v694
        %v696 = vpop.f32.mrf.mxu0
        %697 = vdwg.mxu0
        %698 = vmatpush.bf16.msra.mxu0 %v660
        %699 = vmatpush.bf16.msra.mxu0 %v659
        %700 = vmatpush.bf16.msra.mxu0 %v658
        %701 = vmatpush.bf16.msra.mxu0 %v657
        %702 = vmatpush.bf16.msra.mxu0 %v656
        %703 = vmatpush.bf16.msra.mxu0 %v655
        %704 = vmatpush.bf16.msra.mxu0 %v654
        %705 = vmatpush.bf16.msra.mxu0 %v653
        %706 = vmatmul.bf16.gmra.mxu0 %v569
        %v707 = vpop.f32.mrf.mxu0
        %v708 = vadd.f32 %v695, %v707
        %v709 = vpop.f32.mrf.mxu0
        %710 = vdwg.mxu0
        %711 = vmatpush.bf16.msra.mxu0 0
        %712 = vmatpush.bf16.msra.mxu0 0
        %713 = vmatpush.bf16.msra.mxu0 0
        %714 = vmatpush.bf16.msra.mxu0 0
        %715 = vmatpush.bf16.msra.mxu0 0
        %716 = vmatpush.bf16.msra.mxu0 0
        %717 = vmatpush.bf16.msra.mxu0 %v662
        %718 = vmatpush.bf16.msra.mxu0 %v661
        %719 = vmatmul.bf16.gmra.mxu0 %v683
        %v720 = vpop.f32.mrf.mxu0
        %v721 = vadd.f32 %v708, %v720
        %v722 = vpop.f32.mrf.mxu0
        %723 = vdwg.mxu0
        %v725 = vperm.slane %v301, 0
        %v727 = vmul.f32 %v721, %v725
        %vm728 = vcmask 654336
        %v729 = vsel %vm728, %v727, 0.0
        %730 = vadd.xlane.f32.xlu0 %v729
        %v731 = vpop.xlane.xlu0 %730
        %v732 = vmul.f32 %v731, 0.015625
        %v733 = vmul.f32 %v727, %v727
        %v734 = vsel %vm728, %v733, 0.0
        %735 = vadd.xlane.f32.xlu0 %v734
        %v736 = vpop.xlane.xlu0 %735
        %v737 = vmul.f32 %v736, 0.015625
        %v738 = vmul.f32 %v732, %v732
        %v739 = vsub.f32 %v737, %v738
        %v740 = vmax.f32 %v739, 0.0
        %v741 = vsub.f32 %v727, %v732
        %v742 = vadd.f32 %v740, 1e-05
        %v743 = vrsqrt.pop %v742
        %v744 = vmul.f32 %v743, %v742
        %v745 = vmul.f32 %v744, %v743
        %v746 = vmul.f32 0.5, %v745
        %v747 = vsub.f32 1.5, %v746
        %v748 = vmul.f32 %v743, %v747
        %vm749 = vweird.f32 %v742
        %vm750 = vweird.f32 %v743
        %vm751 = vmor %vm749, %vm750
        %v752 = vsel %vm751, %v743, %v748
        %v753 = vmul.f32 %v741, %v752
        %v754 = vmax.f32 %v753, 0.0
        %v755 = vmul.f32 %v754, %v725
        %vm756 = vcmask 896000
        %757 = vst.msk [vmem:[#allocation3] sm:$0xf] %vm756, 0
        %v758 = vpack.c.bf16 %v755, %v755
        %760 = vrot.lane.b32.xlu0 %v758, 11
        %v761 = vpop.permute.xlu0 %760
        %vm763 = vcmask 740440
        %764 = vst.msk [vmem:[#allocation3] sm:$0xf] %vm763, %v761
        %v765 = vld [vmem:[#allocation3] sm:$0xf]
        %766 = vst.msk [vmem:[#allocation4] sm:$0xf] %vm356, %v765
        %v767 = vld [vmem:[#allocation3] sm:$0xf]
        %769 = vrot.lane.b32.xlu0 %v767, 127
        %v770 = vpop.permute.xlu0 %769
        %772 = vst.msk [vmem:[#allocation4 + $0x4] sm:$0xf] %vm356, %v770
        %v773 = vld [vmem:[#allocation3] sm:$0xf]
        %775 = vrot.lane.b32.xlu0 %v773, 126
        %v776 = vpop.permute.xlu0 %775
        %778 = vst.msk [vmem:[#allocation4 + $0x8] sm:$0xf] %vm356, %v776
        %v779 = vld [vmem:[#allocation3] sm:$0xf]
        %781 = vrot.lane.b32.xlu0 %v779, 118
        %v782 = vpop.permute.xlu0 %781
        %784 = vst.msk [vmem:[#allocation4 + $0xc] sm:$0xf] %vm356, %v782
        %v785 = vld [vmem:[#allocation3] sm:$0xf]
        %787 = vrot.lane.b32.xlu0 %v785, 117
        %v788 = vpop.permute.xlu0 %787
        %790 = vst.msk [vmem:[#allocation4 + $0x10] sm:$0xf] %vm356, %v788
        %v791 = vld [vmem:[#allocation3] sm:$0xf]
        %793 = vrot.lane.b32.xlu0 %v791, 116
        %v794 = vpop.permute.xlu0 %793
        %796 = vst.msk [vmem:[#allocation4 + $0x14] sm:$0xf] %vm356, %v794
        %v797 = vld [vmem:[#allocation3] sm:$0xf]
        %799 = vrot.lane.b32.xlu0 %v797, 108
        %v800 = vpop.permute.xlu0 %799
        %802 = vst.msk [vmem:[#allocation4 + $0x18] sm:$0xf] %vm356, %v800
        %v803 = vld [vmem:[#allocation3] sm:$0xf]
        %805 = vrot.lane.b32.xlu0 %v803, 107
        %v806 = vpop.permute.xlu0 %805
        %808 = vst.msk [vmem:[#allocation4 + $0x1c] sm:$0xf] %vm356, %v806
        %v809 = vld [vmem:[#allocation3] sm:$0xf]
        %811 = vrot.lane.b32.xlu0 %v809, 106
        %v812 = vpop.permute.xlu0 %811
        %814 = vst.msk [vmem:[#allocation4 + $0x20] sm:$0xf] %vm356, %v812
        %v815 = vld [vmem:[#allocation7] sm:$0xf]
        %v816 = vld [vmem:[#allocation4] sm:$0xf]
        %v817 = vld [vmem:[#allocation4 + $0x4] sm:$0xf]
        %v818 = vld [vmem:[#allocation4 + $0x8] sm:$0xf]
        %v819 = vld [vmem:[#allocation4 + $0xc] sm:$0xf]
        %v820 = vld [vmem:[#allocation4 + $0x10] sm:$0xf]
        %v821 = vld [vmem:[#allocation4 + $0x14] sm:$0xf]
        %v822 = vld [vmem:[#allocation4 + $0x18] sm:$0xf]
        %v823 = vld [vmem:[#allocation4 + $0x1c] sm:$0xf]
        %v824 = vld [vmem:[#allocation4 + $0x20] sm:$0xf]
        %v834 = vunpack.c.l.b16 %v816
        %v835 = vunpack.c.l.b16 %v817
        %v836 = vunpack.c.l.b16 %v818
        %v837 = vunpack.c.l.b16 %v819
        %v838 = vunpack.c.l.b16 %v820
        %v839 = vunpack.c.l.b16 %v821
        %v840 = vunpack.c.l.b16 %v822
        %v841 = vunpack.c.l.b16 %v823
        %v842 = vunpack.c.l.b16 %v824
        %v843 = vpack.c.b16 %v835, %v834
        %v844 = vpack.c.b16 %v837, %v836
        %v845 = vpack.c.b16 %v839, %v838
        %v846 = vpack.c.b16 %v841, %v840
        %v847 = vpack.c.b16 %v842, %v842
        %vm852 = vcmask 588800
        %v854 = vsel %vm852, %v815, 0
        %vm856 = vcmask 1043456
        %v858 = vsel %vm856, %v847, 0
        %860 = vmatpush.bf16.msra.mxu0 0
        %861 = vmatpush.bf16.msra.mxu0 0
        %862 = vmatpush.bf16.msra.mxu0 0
        %863 = vmatpush.bf16.msra.mxu0 %v858
        %864 = vmatpush.bf16.msra.mxu0 %v846
        %865 = vmatpush.bf16.msra.mxu0 %v845
        %866 = vmatpush.bf16.msra.mxu0 %v844
        %867 = vmatpush.bf16.msra.mxu0 %v843
        %868 = vmatmul.bf16.gmra.mxu0 %v854
        %v869 = vpop.f32.mrf.mxu0
        %v870 = vadd.f32 0.0, %v869
        %v871 = vpop.f32.mrf.mxu0
        %872 = vdwg.mxu0
        %v873 = vmul.f32 %v870, %v725
        %v874 = vsel %vm728, %v873, 0.0
        %875 = vadd.xlane.f32.xlu0 %v874
        %v876 = vpop.xlane.xlu0 %875
        %v877 = vmul.f32 %v876, 0.015625
        %v878 = vmul.f32 %v873, %v873
        %v879 = vsel %vm728, %v878, 0.0
        %880 = vadd.xlane.f32.xlu0 %v879
        %v881 = vpop.xlane.xlu0 %880
        %v882 = vmul.f32 %v881, 0.015625
        %v883 = vmul.f32 %v877, %v877
        %v884 = vsub.f32 %v882, %v883
        %v885 = vmax.f32 %v884, 0.0
        %v886 = vsub.f32 %v873, %v877
        %v887 = vadd.f32 %v885, 1e-05
        %v888 = vrsqrt.pop %v887
        %v889 = vmul.f32 %v888, %v887
        %v890 = vmul.f32 %v889, %v888
        %v891 = vmul.f32 0.5, %v890
        %v892 = vsub.f32 1.5, %v891
        %v893 = vmul.f32 %v888, %v892
        %vm894 = vweird.f32 %v887
        %vm895 = vweird.f32 %v888
        %vm896 = vmor %vm894, %vm895
        %v897 = vsel %vm896, %v888, %v893
        %v898 = vmul.f32 %v886, %v897
        %v899 = vmax.f32 %v898, 0.0
        %v900 = vmul.f32 %v899, %v725
        %901 = vst.msk [vmem:[%s299] sm:$0xf] %vm756, 0
        %v902 = vpack.c.bf16 %v900, %v900
        %904 = vrot.lane.b32.xlu0 %v902, 11
        %v905 = vpop.permute.xlu0 %904
        %907 = vst.msk [vmem:[%s299] sm:$0xf] %vm763, %v905
        %p908 = scmp.lt.s32.totalorder %s19, 1
        %s909 = scalar_select %p908, %s19, 1
        %s910 = smul.addr %s909, 4
        %s911 = scalar_lea.vmem %s6, %s910
        // Predicated region
        $region53: #{unet_forward.9} parent=43 // pred_check
          %p912 = pneg %p173
        $region54: #{unet_forward.9} parent=43 // pred_check_branch
          %914 = sbr.rel (%p912) target = $region56
        $region55: #{unet_forward.9} parent=43 // pred_region
          _
        $region56: #{unet_forward.9} parent=43 // pred_fallthru
          _
      $region44: #{unet_forward.9} parent=5 // pred_fallthru
        _
      %p915 = scmp.le.s32.totalorder 2, %s14
      // Predicated region
      $region57: #{unet_forward.9} parent=5 // pred_check
        %p916 = pneg %p915
      $region58: #{unet_forward.9} parent=5 // pred_check_branch
        %918 = sbr.rel (%p916) target = $region60
      $region59: #{unet_forward.9} parent=5 // pred_region
        %s919 = ssub.s32 %s14, 2
        // Predicated region
        $region61: #{unet_forward.9} parent=59 // pred_check
          %p920 = pneg %p179
        $region62: #{unet_forward.9} parent=59 // pred_check_branch
          %922 = sbr.rel (%p920) target = $region64
        $region63: #{unet_forward.9} parent=59 // pred_region
          %p923 = scmp.lt.s32.totalorder %s20, 1
          %s924 = scalar_select %p923, %s20, 1
          %s925 = smul.addr %s924, 4
          %s926 = scalar_lea.vmem %s6, %s925
        $region64: #{unet_forward.9} parent=59 // pred_fallthru
          _
      $region60: #{unet_forward.9} parent=5 // pred_fallthru
        _
    $region6: #{unet_forward.9} parent=1 // loop_footer
      %s18 = sadd.s32 1, %s14
    $region7: #{unet_forward.9} parent=1 // loop_footer_branch
      %13 = sbr.rel target = $region3
    $region8: #{unet_forward.9} parent=1 // loop_exit
      _
    %927 = vsyncpa [#allocation6], 1
    %s928 = scalar_lea.sflag [#allocation6], 1
    %929 = vsyncpa %s928, 1
    %930 = vsyncpa [#allocation8], 1

// kernel: unet_forward.8
$region0: #{unet_forward.8}
  #allocation0 [shape = 'u32[]', space=smem, size = 0x4, offset = 0x4, fixed_abs, tag = 'smem constant byte address 0x4 - core index']
  #allocation1 [shape = 'u32[72,128]{1,0:T(1,128)}', space=vmem, size = 0x9000, scoped, tag = 'internal scratch']
  #allocation2 [shape = 'bf16[144,24]{1,0:T(8,128)(2,1)}', space=vmem, size = 0x9000, scoped, tag = 'scratch operand']
  #allocation3 [shape = 'bf16[16,42]{1,0:T(8,128)(2,1)}', space=vmem, size = 0x1000, scoped, tag = 'scratch operand']
  #allocation4 [shape = 'bf16[144,24]{1,0:T(8,128)(2,1)}', space=vmem, size = 0x9000, scoped, tag = 'scratch operand']
  %s0 = inlined_call_operand.vmem [shape: bf16[2,16,110], index: 0, kind: input, shape index: {}]
  %s1 = inlined_call_operand.vmem [shape: bf16[4,110,42], index: 1, kind: input, shape index: {}]
  %s2 = inlined_call_operand.vmem [shape: bf16[16,144], index: 2, kind: input, shape index: {}]
  %s3 = inlined_call_operand.vmem [shape: bf16[16,144], index: 3, kind: input, shape index: {}]
  %s4 = inlined_call_operand.hbm [shape: f32[1,24], index: 4, kind: input, shape index: {}]
  %s5 = inlined_call_operand.vmem [shape: bf16[2,16,42], index: 5, kind: output, shape index: {}]
  %s6 = sld [smem:[#allocation0]]
  $region57: #{unet_forward.8} parent=0
    _
  %s8 = ssub.s32 1, %s6
  %s9 = scalar_select 0, %s8, %s6
  $region1: #{unet_forward.8} parent=0
    #allocation5 [shape = 'u8[512]{0}', space=vmem, size = 0x400, scoped, tag = 'input window, operand 4, single buffered']
    #allocation6 [shape = 's32[2]{0}', space=sflag, size = 0x8, scoped, tag = 'scoped memory for unet_forward.8']
    %10 = vsyncpa [#allocation6], 0
    loop: start=0, step=1, limit=4
    $region2: #{unet_forward.8} parent=1 // loop_pre_header
      _
    $region3: #{unet_forward.8} parent=1 // loop_header
      %s12 = sphi 0, %s16
      %p13 = scmp.ge.s32.totalorder %s12, 4
      %s22 = sphi 0, %s24
      %s25 = sphi 0, %s22
      %s26 = sphi 0, %s25
      %s42 = sphi 0, %s26
      %s46 = sphi 0, %s46
      %s48 = sphi 0, %s46
      %s49 = sphi 0, %s48
      %s63 = sphi 0, %s49
      %s67 = sphi 0, %s67
      %s69 = sphi 0, %s67
      %s70 = sphi 0, %s69
      %s84 = sphi 0, %s70
      %s88 = sphi 0, %s88
      %s90 = sphi 0, %s88
      %s91 = sphi 0, %s90
      %s105 = sphi 0, %s91
      %s109 = sphi 0, %s109
      %s111 = sphi 0, %s109
      %s112 = sphi 0, %s111
      %s126 = sphi 0, %s112
      %s132 = sphi 0, %s134
      %s135 = sphi 0, %s132
      %s136 = sphi 0, %s135
      %s152 = sphi 0, %s136
    $region4: #{unet_forward.8} parent=1 // loop_header_branch
      %15 = sbr.rel (%p13) target = $region8
    $region5: #{unet_forward.8} parent=1 // loop_body
      %s17 = ssub.s32 %s12, 1
      %s18 = ssub.s32 %s12, 2
      %s19 = sadd.s32 %s12, 1
      %s20 = ssub.s32 %s12, %s19
      %p21 = scmp.eq.s32.totalorder %s20, 0
      %s23 = sadd.s32 %s22, 1
      %s24 = scalar_select %p21, %s22, %s23
      %p27 = pneg %p21
      %p28 = scmp.eq.s32.totalorder %s12, 1
      %p29 = por %p27, %p28
      %p30 = scmp.ne.s32.totalorder %s22, %s25
      %p31 = scmp.eq.s32.totalorder %s12, 0
      %p32 = por %p30, %p31
      %p33 = scmp.ne.s32.totalorder %s22, %s25
      %p34 = scmp.eq.s32.totalorder %s17, 1
      %p35 = por %p33, %p34
      %p36 = scmp.ne.s32.totalorder %s25, %s26
      %p37 = scmp.eq.s32.totalorder %s17, 0
      %p38 = por %p36, %p37
      %p39 = scmp.ne.s32.totalorder %s25, %s26
      %p40 = scmp.eq.s32.totalorder %s18, 1
      %p41 = por %p39, %p40
      %p43 = scmp.ne.s32.totalorder %s26, %s42
      %p44 = scmp.eq.s32.totalorder %s18, 0
      %p45 = por %p43, %p44
      %s47 = sadd.s32 %s46, 1
      %p50 = scmp.eq.s32.totalorder %s12, 1
      %p51 = scmp.ne.s32.totalorder %s46, %s48
      %p52 = scmp.eq.s32.totalorder %s12, 0
      %p53 = por %p51, %p52
      %p54 = scmp.ne.s32.totalorder %s46, %s48
      %p55 = scmp.eq.s32.totalorder %s17, 1
      %p56 = por %p54, %p55
      %p57 = scmp.ne.s32.totalorder %s48, %s49
      %p58 = scmp.eq.s32.totalorder %s17, 0
      %p59 = por %p57, %p58
      %p60 = scmp.ne.s32.totalorder %s48, %s49
      %p61 = scmp.eq.s32.totalorder %s18, 1
      %p62 = por %p60, %p61
      %p64 = scmp.ne.s32.totalorder %s49, %s63
      %p65 = scmp.eq.s32.totalorder %s18, 0
      %p66 = por %p64, %p65
      %s68 = sadd.s32 %s67, 1
      %p71 = scmp.eq.s32.totalorder %s12, 1
      %p72 = scmp.ne.s32.totalorder %s67, %s69
      %p73 = scmp.eq.s32.totalorder %s12, 0
      %p74 = por %p72, %p73
      %p75 = scmp.ne.s32.totalorder %s67, %s69
      %p76 = scmp.eq.s32.totalorder %s17, 1
      %p77 = por %p75, %p76
      %p78 = scmp.ne.s32.totalorder %s69, %s70
      %p79 = scmp.eq.s32.totalorder %s17, 0
      %p80 = por %p78, %p79
      %p81 = scmp.ne.s32.totalorder %s69, %s70
      %p82 = scmp.eq.s32.totalorder %s18, 1
      %p83 = por %p81, %p82
      %p85 = scmp.ne.s32.totalorder %s70, %s84
      %p86 = scmp.eq.s32.totalorder %s18, 0
      %p87 = por %p85, %p86
      %s89 = sadd.s32 %s88, 1
      %p92 = scmp.eq.s32.totalorder %s12, 1
      %p93 = scmp.ne.s32.totalorder %s88, %s90
      %p94 = scmp.eq.s32.totalorder %s12, 0
      %p95 = por %p93, %p94
      %p96 = scmp.ne.s32.totalorder %s88, %s90
      %p97 = scmp.eq.s32.totalorder %s17, 1
      %p98 = por %p96, %p97
      %p99 = scmp.ne.s32.totalorder %s90, %s91
      %p100 = scmp.eq.s32.totalorder %s17, 0
      %p101 = por %p99, %p100
      %p102 = scmp.ne.s32.totalorder %s90, %s91
      %p103 = scmp.eq.s32.totalorder %s18, 1
      %p104 = por %p102, %p103
      %p106 = scmp.ne.s32.totalorder %s91, %s105
      %p107 = scmp.eq.s32.totalorder %s18, 0
      %p108 = por %p106, %p107
      %s110 = sadd.s32 %s109, 1
      %p113 = scmp.eq.s32.totalorder %s12, 1
      %p114 = scmp.ne.s32.totalorder %s109, %s111
      %p115 = scmp.eq.s32.totalorder %s12, 0
      %p116 = por %p114, %p115
      %p117 = scmp.ne.s32.totalorder %s109, %s111
      %p118 = scmp.eq.s32.totalorder %s17, 1
      %p119 = por %p117, %p118
      %p120 = scmp.ne.s32.totalorder %s111, %s112
      %p121 = scmp.eq.s32.totalorder %s17, 0
      %p122 = por %p120, %p121
      %p123 = scmp.ne.s32.totalorder %s111, %s112
      %p124 = scmp.eq.s32.totalorder %s18, 1
      %p125 = por %p123, %p124
      %p127 = scmp.ne.s32.totalorder %s112, %s126
      %p128 = scmp.eq.s32.totalorder %s18, 0
      %p129 = por %p127, %p128
      %s130 = ssub.s32 %s12, %s19
      %p131 = scmp.eq.s32.totalorder %s130, 0
      %s133 = sadd.s32 %s132, 1
      %s134 = scalar_select %p131, %s132, %s133
      %p137 = pneg %p131
      %p138 = scmp.eq.s32.totalorder %s12, 1
      %p139 = por %p137, %p138
      %p140 = scmp.ne.s32.totalorder %s132, %s135
      %p141 = scmp.eq.s32.totalorder %s12, 0
      %p142 = por %p140, %p141
      %p143 = scmp.ne.s32.totalorder %s132, %s135
      %p144 = scmp.eq.s32.totalorder %s17, 1
      %p145 = por %p143, %p144
      %p146 = scmp.ne.s32.totalorder %s135, %s136
      %p147 = scmp.eq.s32.totalorder %s17, 0
      %p148 = por %p146, %p147
      %p149 = scmp.ne.s32.totalorder %s135, %s136
      %p150 = scmp.eq.s32.totalorder %s18, 1
      %p151 = por %p149, %p150
      %p153 = scmp.ne.s32.totalorder %s136, %s152
      %p154 = scmp.eq.s32.totalorder %s18, 0
      %p155 = por %p153, %p154
      %p156 = scmp.le.s32.totalorder 1, %s12
      %p157 = scmp.lt.s32.totalorder %s12, 3
      %p158 = pnand %p156, %p157
      %p159 = pneg %p158
      // Predicated region
      $region9: #{unet_forward.8} parent=5 // pred_check
        _
      $region10: #{unet_forward.8} parent=5 // pred_check_branch
        %161 = sbr.rel (%p158) target = $region12
      $region11: #{unet_forward.8} parent=5 // pred_region
        %s162 = ssub.s32 %s12, 1
        // Predicated region
        $region13: #{unet_forward.8} parent=11 // pred_check
          %p163 = pneg %p59
        $region14: #{unet_forward.8} parent=11 // pred_check_branch
          %165 = sbr.rel (%p163) target = $region16
        $region15: #{unet_forward.8} parent=11 // pred_region
          _
        $region16: #{unet_forward.8} parent=11 // pred_fallthru
          _
        // Predicated region
        $region17: #{unet_forward.8} parent=11 // pred_check
          %p166 = pneg %p80
        $region18: #{unet_forward.8} parent=11 // pred_check_branch
          %168 = sbr.rel (%p166) target = $region20
        $region19: #{unet_forward.8} parent=11 // pred_region
          _
        $region20: #{unet_forward.8} parent=11 // pred_fallthru
          _
        // Predicated region
        $region21: #{unet_forward.8} parent=11 // pred_check
          %p169 = pneg %p101
        $region22: #{unet_forward.8} parent=11 // pred_check_branch
          %171 = sbr.rel (%p169) target = $region24
        $region23: #{unet_forward.8} parent=11 // pred_region
          _
        $region24: #{unet_forward.8} parent=11 // pred_fallthru
          _
        // Predicated region
        $region25: #{unet_forward.8} parent=11 // pred_check
          %p172 = pneg %p122
        $region26: #{unet_forward.8} parent=11 // pred_check_branch
          %174 = sbr.rel (%p172) target = $region28
        $region27: #{unet_forward.8} parent=11 // pred_region
          %176 = vsyncadd [#allocation6], 0
          %s178 = sshll.u32 %s4, 4
          %s179 = int_to_ptr.hbm [resolvable:$true] %s178
          %s180 = sshll.u32 [#allocation5], 4
          %s181 = int_to_ptr.vmem [resolvable:$true] %s180
          %183 = dma.hbm_to_vmem [thread:$0]  %s179, 16, %s181, [#allocation6]
        $region28: #{unet_forward.8} parent=11 // pred_fallthru
          _
      $region12: #{unet_forward.8} parent=5 // pred_fallthru
        _
      %p184 = scmp.lt.s32.totalorder %s12, 2
      // Predicated region
      $region29: #{unet_forward.8} parent=5 // pred_check
        %p185 = pneg %p184
      $region30: #{unet_forward.8} parent=5 // pred_check_branch
        %187 = sbr.rel (%p185) target = $region32
      $region31: #{unet_forward.8} parent=5 // pred_region
        // Predicated region
        $region33: #{unet_forward.8} parent=31 // pred_check
          %p188 = pneg %p32
        $region34: #{unet_forward.8} parent=31 // pred_check_branch
          %190 = sbr.rel (%p188) target = $region36
        $region35: #{unet_forward.8} parent=31 // pred_region
          %p191 = scmp.lt.s32.totalorder %s12, 1
          %s192 = scalar_select %p191, %s12, 1
          %s193 = smul.addr %s192, 2
          %s194 = smul.addr %s193, 4
          %s195 = scalar_lea.vmem %s0, %s194
        $region36: #{unet_forward.8} parent=31 // pred_fallthru
          _
      $region32: #{unet_forward.8} parent=5 // pred_fallthru
        _
      %p196 = scmp.le.s32.totalorder 1, %s12
      %p197 = scmp.lt.s32.totalorder %s12, 3
      %p198 = pnand %p196, %p197
      %p199 = pneg %p198
      // Predicated region
      $region37: #{unet_forward.8} parent=5 // pred_check
        _
      $region38: #{unet_forward.8} parent=5 // pred_check_branch
        %201 = sbr.rel (%p198) target = $region40
      $region39: #{unet_forward.8} parent=5 // pred_region
        %s202 = ssub.s32 %s12, 1
        // Predicated region
        $region41: #{unet_forward.8} parent=39 // pred_check
          %p203 = pneg %p122
        $region42: #{unet_forward.8} parent=39 // pred_check_branch
          %205 = sbr.rel (%p203) target = $region44
        $region43: #{unet_forward.8} parent=39 // pred_region
          %207 = dma.done [#allocation6], 16
        $region44: #{unet_forward.8} parent=39 // pred_fallthru
          _
        %p208 = scmp.lt.s32.totalorder %s17, 1
        %s209 = scalar_select %p208, %s17, 1
        %s210 = smul.addr %s209, 2
        %s211 = smul.addr %s210, 4
        %s212 = scalar_lea.vmem %s0, %s211
        %p213 = pneg %p38
        %p214 = pneg %p35
        %p215 = pneg %p59
        %p216 = pneg %p56
        %p217 = pneg %p80
        %p218 = pneg %p77
        %p219 = pneg %p101
        %p220 = pneg %p98
        %p221 = pneg %p122
        %p222 = pneg %p119
        %p223 = pneg %p148
        %p224 = pneg %p145
        %p225 = scmp.lt.s32.totalorder %s17, 1
        %s226 = scalar_select %p225, %s17, 1
        %s227 = smul.addr %s226, 2
        %s228 = smul.addr %s227, 4
        %s229 = scalar_lea.vmem %s5, %s228
        %p230 = scmp.lt.s32.totalorder %s17, 1
        %s231 = scalar_select %p230, %s17, 1
        %s232 = smul.addr %s231, 2
        %s233 = smul.addr %s232, 4
        %s234 = scalar_lea.vmem %s0, %s233
        %p235 = scmp.lt.s32.totalorder %s17, 1
        %s236 = scalar_select %p235, %s17, 1
        %s237 = smul.addr %s236, 2
        %s238 = smul.addr %s237, 4
        %s239 = scalar_lea.vmem %s5, %s238
        %v241 = vld [vmem:[#allocation5] sm:$0x1]
        %v242 = vld [vmem:[%s234] sm:$0xf]
        %v243 = vld [vmem:[%s234 + $0x4] sm:$0xf]
        %v244 = vld [vmem:[%s1] sm:$0xf]
        %v245 = vld [vmem:[%s1 + $0x4] sm:$0xf]
        %v246 = vld [vmem:[%s1 + $0x8] sm:$0xf]
        %v247 = vld [vmem:[%s1 + $0xc] sm:$0xf]
        %v248 = vld [vmem:[%s1 + $0x10] sm:$0xf]
        %v249 = vld [vmem:[%s1 + $0x14] sm:$0xf]
        %v250 = vld [vmem:[%s1 + $0x18] sm:$0xf]
        %v251 = vld [vmem:[%s1 + $0x1c] sm:$0xf]
        %v252 = vld [vmem:[%s1 + $0x20] sm:$0xf]
        %v253 = vld [vmem:[%s1 + $0x24] sm:$0xf]
        %v254 = vld [vmem:[%s1 + $0x28] sm:$0xf]
        %v255 = vld [vmem:[%s1 + $0x2c] sm:$0xf]
        %v256 = vld [vmem:[%s1 + $0x30] sm:$0xf]
        %v257 = vld [vmem:[%s1 + $0x34] sm:$0x7]
        %v260 = vunpack.c.l.b16 %v242
        %v261 = vunpack.c.l.b16 %v243
        %v262 = vpack.c.b16 %v261, %v260
        %v277 = vunpack.c.l.b16 %v244
        %v278 = vunpack.c.l.b16 %v245
        %v279 = vunpack.c.l.b16 %v246
        %v280 = vunpack.c.l.b16 %v247
        %v281 = vunpack.c.l.b16 %v248
        %v282 = vunpack.c.l.b16 %v249
        %v283 = vunpack.c.l.b16 %v250
        %v284 = vunpack.c.l.b16 %v251
        %v285 = vunpack.c.l.b16 %v252
        %v286 = vunpack.c.l.b16 %v253
        %v287 = vunpack.c.l.b16 %v254
        %v288 = vunpack.c.l.b16 %v255
        %v289 = vunpack.c.l.b16 %v256
        %v290 = vunpack.c.l.b16 %v257
        %v291 = vpack.c.b16 %v278, %v277
        %v292 = vpack.c.b16 %v280, %v279
        %v293 = vpack.c.b16 %v282, %v281
        %v294 = vpack.c.b16 %v284, %v283
        %v295 = vpack.c.b16 %v286, %v285
        %v296 = vpack.c.b16 %v288, %v287
        %v297 = vpack.c.b16 %v290, %v289
        %vm304 = vcmask 900096
        %v306 = vsel %vm304, %v262, 0
        %vm308 = vcmask 1046528
        %v310 = vsel %vm308, %v297, 0
        %312 = vmatpush.bf16.msra.mxu0 0
        %313 = vmatpush.bf16.msra.mxu0 %v310
        %314 = vmatpush.bf16.msra.mxu0 %v296
        %315 = vmatpush.bf16.msra.mxu0 %v295
        %316 = vmatpush.bf16.msra.mxu0 %v294
        %317 = vmatpush.bf16.msra.mxu0 %v293
        %318 = vmatpush.bf16.msra.mxu0 %v292
        %319 = vmatpush.bf16.msra.mxu0 %v291
        %320 = vmatmul.bf16.gmra.mxu0 %v306
        %v321 = vpop.f32.mrf.mxu0
        %v322 = vadd.f32 0.0, %v321
        %v323 = vpop.f32.mrf.mxu0
        %v324 = vadd.f32 0.0, %v323
        %325 = vdwg.mxu0
        %s326 = scalar_lea.vmem %s1, 56
        %v327 = vld [vmem:[%s326] sm:$0xf]
        %v328 = vld [vmem:[%s326 + $0x4] sm:$0xf]
        %v329 = vld [vmem:[%s326 + $0x8] sm:$0xf]
        %v330 = vld [vmem:[%s326 + $0xc] sm:$0xf]
        %v331 = vld [vmem:[%s326 + $0x10] sm:$0xf]
        %v332 = vld [vmem:[%s326 + $0x14] sm:$0xf]
        %v333 = vld [vmem:[%s326 + $0x18] sm:$0xf]
        %v334 = vld [vmem:[%s326 + $0x1c] sm:$0xf]
        %v335 = vld [vmem:[%s326 + $0x20] sm:$0xf]
        %v336 = vld [vmem:[%s326 + $0x24] sm:$0xf]
        %v337 = vld [vmem:[%s326 + $0x28] sm:$0xf]
        %v338 = vld [vmem:[%s326 + $0x2c] sm:$0xf]
        %v339 = vld [vmem:[%s326 + $0x30] sm:$0xf]
        %v340 = vld [vmem:[%s326 + $0x34] sm:$0x7]
        %v355 = vunpack.c.l.b16 %v327
        %v356 = vunpack.c.l.b16 %v328
        %v357 = vunpack.c.l.b16 %v329
        %v358 = vunpack.c.l.b16 %v330
        %v359 = vunpack.c.l.b16 %v331
        %v360 = vunpack.c.l.b16 %v332
        %v361 = vunpack.c.l.b16 %v333
        %v362 = vunpack.c.l.b16 %v334
        %v363 = vunpack.c.l.b16 %v335
        %v364 = vunpack.c.l.b16 %v336
        %v365 = vunpack.c.l.b16 %v337
        %v366 = vunpack.c.l.b16 %v338
        %v367 = vunpack.c.l.b16 %v339
        %v368 = vunpack.c.l.b16 %v340
        %v369 = vpack.c.b16 %v356, %v355
        %v370 = vpack.c.b16 %v358, %v357
        %v371 = vpack.c.b16 %v360, %v359
        %v372 = vpack.c.b16 %v362, %v361
        %v373 = vpack.c.b16 %v364, %v363
        %v374 = vpack.c.b16 %v366, %v365
        %v375 = vpack.c.b16 %v368, %v367
        %v383 = vsel %vm308, %v375, 0
        %385 = vmatpush.bf16.msra.mxu0 0
        %386 = vmatpush.bf16.msra.mxu0 %v383
        %387 = vmatpush.bf16.msra.mxu0 %v374
        %388 = vmatpush.bf16.msra.mxu0 %v373
        %389 = vmatpush.bf16.msra.mxu0 %v372
        %390 = vmatpush.bf16.msra.mxu0 %v371
        %391 = vmatpush.bf16.msra.mxu0 %v370
        %392 = vmatpush.bf16.msra.mxu0 %v369
        %393 = vmatmul.bf16.gmra.mxu0 %v306
        %v394 = vpop.f32.mrf.mxu0
        %v395 = vadd.f32 0.0, %v394
        %v396 = vpop.f32.mrf.mxu0
        %v397 = vadd.f32 0.0, %v396
        %398 = vdwg.mxu0
        %v399 = vmax.f32 %v322, %v395
        %v400 = vmax.f32 %v324, %v397
        %s401 = scalar_lea.vmem %s1, 112
        %v402 = vld [vmem:[%s401] sm:$0xf]
        %v403 = vld [vmem:[%s401 + $0x4] sm:$0xf]
        %v404 = vld [vmem:[%s401 + $0x8] sm:$0xf]
        %v405 = vld [vmem:[%s401 + $0xc] sm:$0xf]
        %v406 = vld [vmem:[%s401 + $0x10] sm:$0xf]
        %v407 = vld [vmem:[%s401 + $0x14] sm:$0xf]
        %v408 = vld [vmem:[%s401 + $0x18] sm:$0xf]
        %v409 = vld [vmem:[%s401 + $0x1c] sm:$0xf]
        %v410 = vld [vmem:[%s401 + $0x20] sm:$0xf]
        %v411 = vld [vmem:[%s401 + $0x24] sm:$0xf]
        %v412 = vld [vmem:[%s401 + $0x28] sm:$0xf]
        %v413 = vld [vmem:[%s401 + $0x2c] sm:$0xf]
        %v414 = vld [vmem:[%s401 + $0x30] sm:$0xf]
        %v415 = vld [vmem:[%s401 + $0x34] sm:$0x7]
        %v430 = vunpack.c.l.b16 %v402
        %v431 = vunpack.c.l.b16 %v403
        %v432 = vunpack.c.l.b16 %v404
        %v433 = vunpack.c.l.b16 %v405
        %v434 = vunpack.c.l.b16 %v406
        %v435 = vunpack.c.l.b16 %v407
        %v436 = vunpack.c.l.b16 %v408
        %v437 = vunpack.c.l.b16 %v409
        %v438 = vunpack.c.l.b16 %v410
        %v439 = vunpack.c.l.b16 %v411
        %v440 = vunpack.c.l.b16 %v412
        %v441 = vunpack.c.l.b16 %v413
        %v442 = vunpack.c.l.b16 %v414
        %v443 = vunpack.c.l.b16 %v415
        %v444 = vpack.c.b16 %v431, %v430
        %v445 = vpack.c.b16 %v433, %v432
        %v446 = vpack.c.b16 %v435, %v434
        %v447 = vpack.c.b16 %v437, %v436
        %v448 = vpack.c.b16 %v439, %v438
        %v449 = vpack.c.b16 %v441, %v440
        %v450 = vpack.c.b16 %v443, %v442
        %v458 = vsel %vm308, %v450, 0
        %460 = vmatpush.bf16.msra.mxu0 0
        %461 = vmatpush.bf16.msra.mxu0 %v458
        %462 = vmatpush.bf16.msra.mxu0 %v449
        %463 = vmatpush.bf16.msra.mxu0 %v448
        %464 = vmatpush.bf16.msra.mxu0 %v447
        %465 = vmatpush.bf16.msra.mxu0 %v446
        %466 = vmatpush.bf16.msra.mxu0 %v445
        %467 = vmatpush.bf16.msra.mxu0 %v444
        %468 = vmatmul.bf16.gmra.mxu0 %v306
        %v469 = vpop.f32.mrf.mxu0
        %v470 = vadd.f32 0.0, %v469
        %v471 = vpop.f32.mrf.mxu0
        %v472 = vadd.f32 0.0, %v471
        %473 = vdwg.mxu0
        %v474 = vmax.f32 %v399, %v470
        %v475 = vmax.f32 %v400, %v472
        %s476 = scalar_lea.vmem %s1, 168
        %v477 = vld [vmem:[%s476] sm:$0xf]
        %v478 = vld [vmem:[%s476 + $0x4] sm:$0xf]
        %v479 = vld [vmem:[%s476 + $0x8] sm:$0xf]
        %v480 = vld [vmem:[%s476 + $0xc] sm:$0xf]
        %v481 = vld [vmem:[%s476 + $0x10] sm:$0xf]
        %v482 = vld [vmem:[%s476 + $0x14] sm:$0xf]
        %v483 = vld [vmem:[%s476 + $0x18] sm:$0xf]
        %v484 = vld [vmem:[%s476 + $0x1c] sm:$0xf]
        %v485 = vld [vmem:[%s476 + $0x20] sm:$0xf]
        %v486 = vld [vmem:[%s476 + $0x24] sm:$0xf]
        %v487 = vld [vmem:[%s476 + $0x28] sm:$0xf]
        %v488 = vld [vmem:[%s476 + $0x2c] sm:$0xf]
        %v489 = vld [vmem:[%s476 + $0x30] sm:$0xf]
        %v490 = vld [vmem:[%s476 + $0x34] sm:$0x7]
        %v505 = vunpack.c.l.b16 %v477
        %v506 = vunpack.c.l.b16 %v478
        %v507 = vunpack.c.l.b16 %v479
        %v508 = vunpack.c.l.b16 %v480
        %v509 = vunpack.c.l.b16 %v481
        %v510 = vunpack.c.l.b16 %v482
        %v511 = vunpack.c.l.b16 %v483
        %v512 = vunpack.c.l.b16 %v484
        %v513 = vunpack.c.l.b16 %v485
        %v514 = vunpack.c.l.b16 %v486
        %v515 = vunpack.c.l.b16 %v487
        %v516 = vunpack.c.l.b16 %v488
        %v517 = vunpack.c.l.b16 %v489
        %v518 = vunpack.c.l.b16 %v490
        %v519 = vpack.c.b16 %v506, %v505
        %v520 = vpack.c.b16 %v508, %v507
        %v521 = vpack.c.b16 %v510, %v509
        %v522 = vpack.c.b16 %v512, %v511
        %v523 = vpack.c.b16 %v514, %v513
        %v524 = vpack.c.b16 %v516, %v515
        %v525 = vpack.c.b16 %v518, %v517
        %v533 = vsel %vm308, %v525, 0
        %535 = vmatpush.bf16.msra.mxu0 0
        %536 = vmatpush.bf16.msra.mxu0 %v533
        %537 = vmatpush.bf16.msra.mxu0 %v524
        %538 = vmatpush.bf16.msra.mxu0 %v523
        %539 = vmatpush.bf16.msra.mxu0 %v522
        %540 = vmatpush.bf16.msra.mxu0 %v521
        %541 = vmatpush.bf16.msra.mxu0 %v520
        %542 = vmatpush.bf16.msra.mxu0 %v519
        %543 = vmatmul.bf16.gmra.mxu0 %v306
        %v544 = vpop.f32.mrf.mxu0
        %v545 = vadd.f32 0.0, %v544
        %v546 = vpop.f32.mrf.mxu0
        %v547 = vadd.f32 0.0, %v546
        %548 = vdwg.mxu0
        %v549 = vmax.f32 %v474, %v545
        %v550 = vmax.f32 %v475, %v547
        %v551 = vpack.c.bf16 %v549, %v549
        %v552 = vpack.c.bf16 %v550, %v550
        %vm553 = vcmask 191488
        %554 = vst.msk [vmem:[#allocation2] sm:$0xf] %vm553, %v551
        %555 = vst.msk [vmem:[#allocation2 + $0x4] sm:$0xf] %vm553, %v552
        %558 = vrot.lane.b32.xlu0 %v551, 127
        %v559 = vpop.permute.xlu0 %558
        %560 = vrot.lane.b32.xlu0 %v552, 127
        %v561 = vpop.permute.xlu0 %560
        %564 = vst.msk [vmem:[#allocation2 + $0x8] sm:$0xf] %vm553, %v559
        %565 = vst.msk [vmem:[#allocation2 + $0xc] sm:$0xf] %vm553, %v561
        %566 = vrot.lane.b32.xlu0 %v551, 126
        %v567 = vpop.permute.xlu0 %566
        %568 = vrot.lane.b32.xlu0 %v552, 126
        %v569 = vpop.permute.xlu0 %568
        %572 = vst.msk [vmem:[#allocation2 + $0x10] sm:$0xf] %vm553, %v567
        %573 = vst.msk [vmem:[#allocation2 + $0x14] sm:$0xf] %vm553, %v569
        %574 = vrot.lane.b32.xlu0 %v551, 122
        %v575 = vpop.permute.xlu0 %574
        %576 = vrot.lane.b32.xlu0 %v552, 122
        %v577 = vpop.permute.xlu0 %576
        %580 = vst.msk [vmem:[#allocation2 + $0x18] sm:$0xf] %vm553, %v575
        %581 = vst.msk [vmem:[#allocation2 + $0x1c] sm:$0xf] %vm553, %v577
        %582 = vrot.lane.b32.xlu0 %v551, 121
        %v583 = vpop.permute.xlu0 %582
        %584 = vrot.lane.b32.xlu0 %v552, 121
        %v585 = vpop.permute.xlu0 %584
        %588 = vst.msk [vmem:[#allocation2 + $0x20] sm:$0xf] %vm553, %v583
        %589 = vst.msk [vmem:[#allocation2 + $0x24] sm:$0xf] %vm553, %v585
        %590 = vrot.lane.b32.xlu0 %v551, 120
        %v591 = vpop.permute.xlu0 %590
        %592 = vrot.lane.b32.xlu0 %v552, 120
        %v593 = vpop.permute.xlu0 %592
        %596 = vst.msk [vmem:[#allocation2 + $0x28] sm:$0xf] %vm553, %v591
        %597 = vst.msk [vmem:[#allocation2 + $0x2c] sm:$0xf] %vm553, %v593
        %598 = vrot.lane.b32.xlu0 %v551, 116
        %v599 = vpop.permute.xlu0 %598
        %600 = vrot.lane.b32.xlu0 %v552, 116
        %v601 = vpop.permute.xlu0 %600
        %604 = vst.msk [vmem:[#allocation2 + $0x30] sm:$0xf] %vm553, %v599
        %605 = vst.msk [vmem:[#allocation2 + $0x34] sm:$0xf] %vm553, %v601
        %606 = vrot.lane.b32.xlu0 %v551, 115
        %v607 = vpop.permute.xlu0 %606
        %608 = vrot.lane.b32.xlu0 %v552, 115
        %v609 = vpop.permute.xlu0 %608
        %612 = vst.msk [vmem:[#allocation2 + $0x38] sm:$0xf] %vm553, %v607
        %613 = vst.msk [vmem:[#allocation2 + $0x3c] sm:$0xf] %vm553, %v609
        %614 = vrot.lane.b32.xlu0 %v551, 114
        %v615 = vpop.permute.xlu0 %614
        %616 = vrot.lane.b32.xlu0 %v552, 114
        %v617 = vpop.permute.xlu0 %616
        %620 = vst.msk [vmem:[#allocation2 + $0x40] sm:$0xf] %vm553, %v615
        %621 = vst.msk [vmem:[#allocation2 + $0x44] sm:$0xf] %vm553, %v617
        %v622 = vld [vmem:[%s2] sm:$0xff]
        %v623 = vld [vmem:[%s2 + $0x8] sm:$0xff]
        %v624 = vld [vmem:[#allocation2] sm:$0xf]
        %v625 = vld [vmem:[#allocation2 + $0x4] sm:$0xf]
        %v626 = vld [vmem:[#allocation2 + $0x8] sm:$0xf]
        %v627 = vld [vmem:[#allocation2 + $0xc] sm:$0xf]
        %v628 = vld [vmem:[#allocation2 + $0x10] sm:$0xf]
        %v629 = vld [vmem:[#allocation2 + $0x14] sm:$0xf]
        %v630 = vld [vmem:[#allocation2 + $0x18] sm:$0xf]
        %v631 = vld [vmem:[#allocation2 + $0x1c] sm:$0xf]
        %v632 = vld [vmem:[#allocation2 + $0x20] sm:$0xf]
        %v633 = vld [vmem:[#allocation2 + $0x24] sm:$0xf]
        %v634 = vld [vmem:[#allocation2 + $0x28] sm:$0xf]
        %v635 = vld [vmem:[#allocation2 + $0x2c] sm:$0xf]
        %v636 = vld [vmem:[#allocation2 + $0x30] sm:$0xf]
        %v637 = vld [vmem:[#allocation2 + $0x34] sm:$0xf]
        %v638 = vld [vmem:[#allocation2 + $0x38] sm:$0xf]
        %v639 = vld [vmem:[#allocation2 + $0x3c] sm:$0xf]
        %v640 = vld [vmem:[#allocation2 + $0x40] sm:$0xf]
        %v641 = vld [vmem:[#allocation2 + $0x44] sm:$0xf]
        %v644 = vunpack.c.l.b16 %v622
        %v645 = vunpack.c.h.b16 %v622
        %v646 = vunpack.c.l.b16 %v623
        %v647 = vunpack.c.h.b16 %v623
        %v648 = vpack.c.b16 %v646, %v644
        %v649 = vpack.c.b16 %v647, %v645
        %v669 = vunpack.c.l.b16 %v624
        %v670 = vunpack.c.l.b16 %v625
        %v671 = vunpack.c.l.b16 %v626
        %v672 = vunpack.c.l.b16 %v627
        %v673 = vunpack.c.l.b16 %v628
        %v674 = vunpack.c.l.b16 %v629
        %v675 = vunpack.c.l.b16 %v630
        %v676 = vunpack.c.l.b16 %v631
        %v677 = vunpack.c.l.b16 %v632
        %v678 = vunpack.c.l.b16 %v633
        %v679 = vunpack.c.l.b16 %v634
        %v680 = vunpack.c.l.b16 %v635
        %v681 = vunpack.c.l.b16 %v636
        %v682 = vunpack.c.l.b16 %v637
        %v683 = vunpack.c.l.b16 %v638
        %v684 = vunpack.c.l.b16 %v639
        %v685 = vunpack.c.l.b16 %v640
        %v686 = vunpack.c.l.b16 %v641
        %v687 = vpack.c.b16 %v670, %v669
        %v688 = vpack.c.b16 %v672, %v671
        %v689 = vpack.c.b16 %v674, %v673
        %v690 = vpack.c.b16 %v676, %v675
        %v691 = vpack.c.b16 %v678, %v677
        %v692 = vpack.c.b16 %v680, %v679
        %v693 = vpack.c.b16 %v682, %v681
        %v694 = vpack.c.b16 %v684, %v683
        %v695 = vpack.c.b16 %v686, %v685
        %vm705 = vcmask 130048
        %v707 = vsel %vm705, %v649, 0
        %709 = vmatpush.bf16.msra.mxu0 %v694
        %710 = vmatpush.bf16.msra.mxu0 %v693
        %711 = vmatpush.bf16.msra.mxu0 %v692
        %712 = vmatpush.bf16.msra.mxu0 %v691
        %713 = vmatpush.bf16.msra.mxu0 %v690
        %714 = vmatpush.bf16.msra.mxu0 %v689
        %715 = vmatpush.bf16.msra.mxu0 %v688
        %716 = vmatpush.bf16.msra.mxu0 %v687
        %717 = vmatmul.bf16.gmra.mxu0 %v648
        %v718 = vpop.f32.mrf.mxu0
        %v719 = vadd.f32 0.0, %v718
        %v720 = vpop.f32.mrf.mxu0
        %v721 = vadd.f32 0.0, %v720
        %722 = vdwg.mxu0
        %723 = vmatpush.bf16.msra.mxu0 0
        %724 = vmatpush.bf16.msra.mxu0 0
        %725 = vmatpush.bf16.msra.mxu0 0
        %726 = vmatpush.bf16.msra.mxu0 0
        %727 = vmatpush.bf16.msra.mxu0 0
        %728 = vmatpush.bf16.msra.mxu0 0
        %729 = vmatpush.bf16.msra.mxu0 0
        %730 = vmatpush.bf16.msra.mxu0 %v695
        %731 = vmatmul.bf16.gmra.mxu0 %v707
        %v732 = vpop.f32.mrf.mxu0
        %v733 = vadd.f32 %v719, %v732
        %v734 = vpop.f32.mrf.mxu0
        %v735 = vadd.f32 %v721, %v734
        %736 = vdwg.mxu0
        %v738 = vperm.slane %v241, 0
        %v740 = vmul.f32 %v733, %v738
        %v741 = vmul.f32 %v735, %v738
        %vm742 = vcmask 195584
        %v743 = vsel %vm742, %v740, 0.0
        %744 = vadd.xlane.f32.xlu0 %v743
        %v745 = vpop.xlane.xlu0 %744
        %v746 = vsel %vm742, %v741, 0.0
        %747 = vadd.xlane.f32.xlu0 %v746
        %v748 = vpop.xlane.xlu0 %747
        %v749 = vmul.f32 %v745, 0.0625
        %v750 = vmul.f32 %v748, 0.0625
        %v751 = vmul.f32 %v740, %v740
        %v752 = vmul.f32 %v741, %v741
        %v753 = vsel %vm742, %v751, 0.0
        %754 = vadd.xlane.f32.xlu0 %v753
        %v755 = vpop.xlane.xlu0 %754
        %v756 = vsel %vm742, %v752, 0.0
        %757 = vadd.xlane.f32.xlu0 %v756
        %v758 = vpop.xlane.xlu0 %757
        %v759 = vmul.f32 %v755, 0.0625
        %v760 = vmul.f32 %v758, 0.0625
        %v761 = vmul.f32 %v749, %v749
        %v762 = vmul.f32 %v750, %v750
        %v763 = vsub.f32 %v759, %v761
        %v764 = vsub.f32 %v760, %v762
        %v765 = vmax.f32 %v763, 0.0
        %v766 = vmax.f32 %v764, 0.0
        %v767 = vsub.f32 %v740, %v749
        %v768 = vsub.f32 %v741, %v750
        %v769 = vadd.f32 %v765, 1e-05
        %v770 = vadd.f32 %v766, 1e-05
        %v771 = vrsqrt.pop %v769
        %v772 = vmul.f32 %v771, %v769
        %v773 = vmul.f32 %v772, %v771
        %v774 = vmul.f32 0.5, %v773
        %v775 = vsub.f32 1.5, %v774
        %v776 = vmul.f32 %v771, %v775
        %vm777 = vweird.f32 %v769
        %vm778 = vweird.f32 %v771
        %vm779 = vmor %vm777, %vm778
        %v780 = vsel %vm779, %v771, %v776
        %v781 = vrsqrt.pop %v770
        %v782 = vmul.f32 %v781, %v770
        %v783 = vmul.f32 %v782, %v781
        %v784 = vmul.f32 0.5, %v783
        %v785 = vsub.f32 1.5, %v784
        %v786 = vmul.f32 %v781, %v785
        %vm787 = vweird.f32 %v770
        %vm788 = vweird.f32 %v781
        %vm789 = vmor %vm787, %vm788
        %v790 = vsel %vm789, %v781, %v786
        %v791 = vmul.f32 %v767, %v780
        %v792 = vmul.f32 %v768, %v790
        %v793 = vmax.f32 %v791, 0.0
        %v794 = vmax.f32 %v792, 0.0
        %v795 = vmul.f32 %v793, %v738
        %v796 = vmul.f32 %v794, %v738
        %vm797 = vcmask 338944
        %798 = vst.msk [vmem:[#allocation3] sm:$0xf] %vm797, 0
        %799 = vst.msk [vmem:[#allocation3 + $0x4] sm:$0xf] %vm797, 0
        %v800 = vpack.c.bf16 %v795, %v795
        %v801 = vpack.c.bf16 %v796, %v796
        %804 = vrot.lane.b32.xlu0 %v800, 7
        %v805 = vpop.permute.xlu0 %804
        %806 = vrot.lane.b32.xlu0 %v801, 7
        %v807 = vpop.permute.xlu0 %806
        %vm810 = vcmask 248888
        %811 = vst.msk [vmem:[#allocation3] sm:$0xf] %vm810, %v805
        %812 = vst.msk [vmem:[#allocation3 + $0x4] sm:$0xf] %vm810, %v807
        %v813 = vld [vmem:[#allocation3] sm:$0xf]
        %v814 = vld [vmem:[#allocation3 + $0x4] sm:$0xf]
        %815 = vst.msk [vmem:[#allocation4] sm:$0xf] %vm553, %v813
        %816 = vst.msk [vmem:[#allocation4 + $0x4] sm:$0xf] %vm553, %v814
        %v817 = vld [vmem:[#allocation3] sm:$0xf]
        %v818 = vld [vmem:[#allocation3 + $0x4] sm:$0xf]
        %821 = vrot.lane.b32.xlu0 %v817, 127
        %v822 = vpop.permute.xlu0 %821
        %823 = vrot.lane.b32.xlu0 %v818, 127
        %v824 = vpop.permute.xlu0 %823
        %827 = vst.msk [vmem:[#allocation4 + $0x8] sm:$0xf] %vm553, %v822
        %828 = vst.msk [vmem:[#allocation4 + $0xc] sm:$0xf] %vm553, %v824
        %v829 = vld [vmem:[#allocation3] sm:$0xf]
        %v830 = vld [vmem:[#allocation3 + $0x4] sm:$0xf]
        %833 = vrot.lane.b32.xlu0 %v829, 126
        %v834 = vpop.permute.xlu0 %833
        %835 = vrot.lane.b32.xlu0 %v830, 126
        %v836 = vpop.permute.xlu0 %835
        %839 = vst.msk [vmem:[#allocation4 + $0x10] sm:$0xf] %vm553, %v834
        %840 = vst.msk [vmem:[#allocation4 + $0x14] sm:$0xf] %vm553, %v836
        %v841 = vld [vmem:[#allocation3] sm:$0xf]
        %v842 = vld [vmem:[#allocation3 + $0x4] sm:$0xf]
        %845 = vrot.lane.b32.xlu0 %v841, 122
        %v846 = vpop.permute.xlu0 %845
        %847 = vrot.lane.b32.xlu0 %v842, 122
        %v848 = vpop.permute.xlu0 %847
        %851 = vst.msk [vmem:[#allocation4 + $0x18] sm:$0xf] %vm553, %v846
        %852 = vst.msk [vmem:[#allocation4 + $0x1c] sm:$0xf] %vm553, %v848
        %v853 = vld [vmem:[#allocation3] sm:$0xf]
        %v854 = vld [vmem:[#allocation3 + $0x4] sm:$0xf]
        %857 = vrot.lane.b32.xlu0 %v853, 121
        %v858 = vpop.permute.xlu0 %857
        %859 = vrot.lane.b32.xlu0 %v854, 121
        %v860 = vpop.permute.xlu0 %859
        %863 = vst.msk [vmem:[#allocation4 + $0x20] sm:$0xf] %vm553, %v858
        %864 = vst.msk [vmem:[#allocation4 + $0x24] sm:$0xf] %vm553, %v860
        %v865 = vld [vmem:[#allocation3] sm:$0xf]
        %v866 = vld [vmem:[#allocation3 + $0x4] sm:$0xf]
        %869 = vrot.lane.b32.xlu0 %v865, 120
        %v870 = vpop.permute.xlu0 %869
        %871 = vrot.lane.b32.xlu0 %v866, 120
        %v872 = vpop.permute.xlu0 %871
        %875 = vst.msk [vmem:[#allocation4 + $0x28] sm:$0xf] %vm553, %v870
        %876 = vst.msk [vmem:[#allocation4 + $0x2c] sm:$0xf] %vm553, %v872
        %v877 = vld [vmem:[#allocation3] sm:$0xf]
        %v878 = vld [vmem:[#allocation3 + $0x4] sm:$0xf]
        %881 = vrot.lane.b32.xlu0 %v877, 116
        %v882 = vpop.permute.xlu0 %881
        %883 = vrot.lane.b32.xlu0 %v878, 116
        %v884 = vpop.permute.xlu0 %883
        %887 = vst.msk [vmem:[#allocation4 + $0x30] sm:$0xf] %vm553, %v882
        %888 = vst.msk [vmem:[#allocation4 + $0x34] sm:$0xf] %vm553, %v884
        %v889 = vld [vmem:[#allocation3] sm:$0xf]
        %v890 = vld [vmem:[#allocation3 + $0x4] sm:$0xf]
        %893 = vrot.lane.b32.xlu0 %v889, 115
        %v894 = vpop.permute.xlu0 %893
        %895 = vrot.lane.b32.xlu0 %v890, 115
        %v896 = vpop.permute.xlu0 %895
        %899 = vst.msk [vmem:[#allocation4 + $0x38] sm:$0xf] %vm553, %v894
        %900 = vst.msk [vmem:[#allocation4 + $0x3c] sm:$0xf] %vm553, %v896
        %v901 = vld [vmem:[#allocation3] sm:$0xf]
        %v902 = vld [vmem:[#allocation3 + $0x4] sm:$0xf]
        %905 = vrot.lane.b32.xlu0 %v901, 114
        %v906 = vpop.permute.xlu0 %905
        %907 = vrot.lane.b32.xlu0 %v902, 114
        %v908 = vpop.permute.xlu0 %907
        %911 = vst.msk [vmem:[#allocation4 + $0x40] sm:$0xf] %vm553, %v906
        %912 = vst.msk [vmem:[#allocation4 + $0x44] sm:$0xf] %vm553, %v908
        %v913 = vld [vmem:[%s3] sm:$0xff]
        %v914 = vld [vmem:[%s3 + $0x8] sm:$0xff]
        %v915 = vld [vmem:[#allocation4] sm:$0xf]
        %v916 = vld [vmem:[#allocation4 + $0x4] sm:$0xf]
        %v917 = vld [vmem:[#allocation4 + $0x8] sm:$0xf]
        %v918 = vld [vmem:[#allocation4 + $0xc] sm:$0xf]
        %v919 = vld [vmem:[#allocation4 + $0x10] sm:$0xf]
        %v920 = vld [vmem:[#allocation4 + $0x14] sm:$0xf]
        %v921 = vld [vmem:[#allocation4 + $0x18] sm:$0xf]
        %v922 = vld [vmem:[#allocation4 + $0x1c] sm:$0xf]
        %v923 = vld [vmem:[#allocation4 + $0x20] sm:$0xf]
        %v924 = vld [vmem:[#allocation4 + $0x24] sm:$0xf]
        %v925 = vld [vmem:[#allocation4 + $0x28] sm:$0xf]
        %v926 = vld [vmem:[#allocation4 + $0x2c] sm:$0xf]
        %v927 = vld [vmem:[#allocation4 + $0x30] sm:$0xf]
        %v928 = vld [vmem:[#allocation4 + $0x34] sm:$0xf]
        %v929 = vld [vmem:[#allocation4 + $0x38] sm:$0xf]
        %v930 = vld [vmem:[#allocation4 + $0x3c] sm:$0xf]
        %v931 = vld [vmem:[#allocation4 + $0x40] sm:$0xf]
        %v932 = vld [vmem:[#allocation4 + $0x44] sm:$0xf]
        %v935 = vunpack.c.l.b16 %v913
        %v936 = vunpack.c.h.b16 %v913
        %v937 = vunpack.c.l.b16 %v914
        %v938 = vunpack.c.h.b16 %v914
        %v939 = vpack.c.b16 %v937, %v935
        %v940 = vpack.c.b16 %v938, %v936
        %v960 = vunpack.c.l.b16 %v915
        %v961 = vunpack.c.l.b16 %v916
        %v962 = vunpack.c.l.b16 %v917
        %v963 = vunpack.c.l.b16 %v918
        %v964 = vunpack.c.l.b16 %v919
        %v965 = vunpack.c.l.b16 %v920
        %v966 = vunpack.c.l.b16 %v921
        %v967 = vunpack.c.l.b16 %v922
        %v968 = vunpack.c.l.b16 %v923
        %v969 = vunpack.c.l.b16 %v924
        %v970 = vunpack.c.l.b16 %v925
        %v971 = vunpack.c.l.b16 %v926
        %v972 = vunpack.c.l.b16 %v927
        %v973 = vunpack.c.l.b16 %v928
        %v974 = vunpack.c.l.b16 %v929
        %v975 = vunpack.c.l.b16 %v930
        %v976 = vunpack.c.l.b16 %v931
        %v977 = vunpack.c.l.b16 %v932
        %v978 = vpack.c.b16 %v961, %v960
        %v979 = vpack.c.b16 %v963, %v962
        %v980 = vpack.c.b16 %v965, %v964
        %v981 = vpack.c.b16 %v967, %v966
        %v982 = vpack.c.b16 %v969, %v968
        %v983 = vpack.c.b16 %v971, %v970
        %v984 = vpack.c.b16 %v973, %v972
        %v985 = vpack.c.b16 %v975, %v974
        %v986 = vpack.c.b16 %v977, %v976
        %v997 = vsel %vm705, %v940, 0
        %999 = vmatpush.bf16.msra.mxu0 %v985
        %1000 = vmatpush.bf16.msra.mxu0 %v984
        %1001 = vmatpush.bf16.msra.mxu0 %v983
        %1002 = vmatpush.bf16.msra.mxu0 %v982
        %1003 = vmatpush.bf16.msra.mxu0 %v981
        %1004 = vmatpush.bf16.msra.mxu0 %v980
        %1005 = vmatpush.bf16.msra.mxu0 %v979
        %1006 = vmatpush.bf16.msra.mxu0 %v978
        %1007 = vmatmul.bf16.gmra.mxu0 %v939
        %v1008 = vpop.f32.mrf.mxu0
        %v1009 = vadd.f32 0.0, %v1008
        %v1010 = vpop.f32.mrf.mxu0
        %v1011 = vadd.f32 0.0, %v1010
        %1012 = vdwg.mxu0
        %1013 = vmatpush.bf16.msra.mxu0 0
        %1014 = vmatpush.bf16.msra.mxu0 0
        %1015 = vmatpush.bf16.msra.mxu0 0
        %1016 = vmatpush.bf16.msra.mxu0 0
        %1017 = vmatpush.bf16.msra.mxu0 0
        %1018 = vmatpush.bf16.msra.mxu0 0
        %1019 = vmatpush.bf16.msra.mxu0 0
        %1020 = vmatpush.bf16.msra.mxu0 %v986
        %1021 = vmatmul.bf16.gmra.mxu0 %v997
        %v1022 = vpop.f32.mrf.mxu0
        %v1023 = vadd.f32 %v1009, %v1022
        %v1024 = vpop.f32.mrf.mxu0
        %v1025 = vadd.f32 %v1011, %v1024
        %1026 = vdwg.mxu0
        %v1027 = vmul.f32 %v1023, %v738
        %v1028 = vmul.f32 %v1025, %v738
        %v1029 = vsel %vm742, %v1027, 0.0
        %1030 = vadd.xlane.f32.xlu0 %v1029
        %v1031 = vpop.xlane.xlu0 %1030
        %v1032 = vsel %vm742, %v1028, 0.0
        %1033 = vadd.xlane.f32.xlu0 %v1032
        %v1034 = vpop.xlane.xlu0 %1033
        %v1035 = vmul.f32 %v1031, 0.0625
        %v1036 = vmul.f32 %v1034, 0.0625
        %v1037 = vmul.f32 %v1027, %v1027
        %v1038 = vmul.f32 %v1028, %v1028
        %v1039 = vsel %vm742, %v1037, 0.0
        %1040 = vadd.xlane.f32.xlu0 %v1039
        %v1041 = vpop.xlane.xlu0 %1040
        %v1042 = vsel %vm742, %v1038, 0.0
        %1043 = vadd.xlane.f32.xlu0 %v1042
        %v1044 = vpop.xlane.xlu0 %1043
        %v1045 = vmul.f32 %v1041, 0.0625
        %v1046 = vmul.f32 %v1044, 0.0625
        %v1047 = vmul.f32 %v1035, %v1035
        %v1048 = vmul.f32 %v1036, %v1036
        %v1049 = vsub.f32 %v1045, %v1047
        %v1050 = vsub.f32 %v1046, %v1048
        %v1051 = vmax.f32 %v1049, 0.0
        %v1052 = vmax.f32 %v1050, 0.0
        %v1053 = vsub.f32 %v1027, %v1035
        %v1054 = vsub.f32 %v1028, %v1036
        %v1055 = vadd.f32 %v1051, 1e-05
        %v1056 = vadd.f32 %v1052, 1e-05
        %v1057 = vrsqrt.pop %v1055
        %v1058 = vmul.f32 %v1057, %v1055
        %v1059 = vmul.f32 %v1058, %v1057
        %v1060 = vmul.f32 0.5, %v1059
        %v1061 = vsub.f32 1.5, %v1060
        %v1062 = vmul.f32 %v1057, %v1061
        %vm1063 = vweird.f32 %v1055
        %vm1064 = vweird.f32 %v1057
        %vm1065 = vmor %vm1063, %vm1064
        %v1066 = vsel %vm1065, %v1057, %v1062
        %v1067 = vrsqrt.pop %v1056
        %v1068 = vmul.f32 %v1067, %v1056
        %v1069 = vmul.f32 %v1068, %v1067
        %v1070 = vmul.f32 0.5, %v1069
        %v1071 = vsub.f32 1.5, %v1070
        %v1072 = vmul.f32 %v1067, %v1071
        %vm1073 = vweird.f32 %v1056
        %vm1074 = vweird.f32 %v1067
        %vm1075 = vmor %vm1073, %vm1074
        %v1076 = vsel %vm1075, %v1067, %v1072
        %v1077 = vmul.f32 %v1053, %v1066
        %v1078 = vmul.f32 %v1054, %v1076
        %v1079 = vmax.f32 %v1077, 0.0
        %v1080 = vmax.f32 %v1078, 0.0
        %v1081 = vmul.f32 %v1079, %v738
        %v1082 = vmul.f32 %v1080, %v738
        %1083 = vst.msk [vmem:[%s239] sm:$0xf] %vm797, 0
        %1084 = vst.msk [vmem:[%s239 + $0x4] sm:$0xf] %vm797, 0
        %v1085 = vpack.c.bf16 %v1081, %v1081
        %v1086 = vpack.c.bf16 %v1082, %v1082
        %1089 = vrot.lane.b32.xlu0 %v1085, 7
        %v1090 = vpop.permute.xlu0 %1089
        %1091 = vrot.lane.b32.xlu0 %v1086, 7
        %v1092 = vpop.permute.xlu0 %1091
        %1095 = vst.msk [vmem:[%s239] sm:$0xf] %vm810, %v1090
        %1096 = vst.msk [vmem:[%s239 + $0x4] sm:$0xf] %vm810, %v1092
        %p1097 = scmp.lt.s32.totalorder %s17, 1
        %s1098 = scalar_select %p1097, %s17, 1
        %s1099 = smul.addr %s1098, 2
        %s1100 = smul.addr %s1099, 4
        %s1101 = scalar_lea.vmem %s5, %s1100
        // Predicated region
        $region45: #{unet_forward.8} parent=39 // pred_check
          %p1102 = pneg %p145
        $region46: #{unet_forward.8} parent=39 // pred_check_branch
          %1104 = sbr.rel (%p1102) target = $region48
        $region47: #{unet_forward.8} parent=39 // pred_region
          _
        $region48: #{unet_forward.8} parent=39 // pred_fallthru
          _
      $region40: #{unet_forward.8} parent=5 // pred_fallthru
        _
      %p1105 = scmp.le.s32.totalorder 2, %s12
      // Predicated region
      $region49: #{unet_forward.8} parent=5 // pred_check
        %p1106 = pneg %p1105
      $region50: #{unet_forward.8} parent=5 // pred_check_branch
        %1108 = sbr.rel (%p1106) target = $region52
      $region51: #{unet_forward.8} parent=5 // pred_region
        %s1109 = ssub.s32 %s12, 2
        // Predicated region
        $region53: #{unet_forward.8} parent=51 // pred_check
          %p1110 = pneg %p151
        $region54: #{unet_forward.8} parent=51 // pred_check_branch
          %1112 = sbr.rel (%p1110) target = $region56
        $region55: #{unet_forward.8} parent=51 // pred_region
          %p1113 = scmp.lt.s32.totalorder %s18, 1
          %s1114 = scalar_select %p1113, %s18, 1
          %s1115 = smul.addr %s1114, 2
          %s1116 = smul.addr %s1115, 4
          %s1117 = scalar_lea.vmem %s5, %s1116
        $region56: #{unet_forward.8} parent=51 // pred_fallthru
          _
      $region52: #{unet_forward.8} parent=5 // pred_fallthru
        _
    $region6: #{unet_forward.8} parent=1 // loop_footer
      %s16 = sadd.s32 1, %s12
    $region7: #{unet_forward.8} parent=1 // loop_footer_branch
      %11 = sbr.rel target = $region3
    $region8: #{unet_forward.8} parent=1 // loop_exit
      _
    %1118 = vsyncpa [#allocation6], 1
    %s1119 = scalar_lea.sflag [#allocation6], 1
    %1120 = vsyncpa %s1119, 1

// kernel: unet_forward.7
$region0: #{unet_forward.7}
  #allocation0 [shape = 'u32[]', space=smem, size = 0x4, offset = 0x4, fixed_abs, tag = 'smem constant byte address 0x4 - core index']
  #allocation1 [shape = 'u32[72,128]{1,0:T(1,128)}', space=vmem, size = 0x9000, scoped, tag = 'internal scratch']
  #allocation2 [shape = 'bf16[72,80]{1,0:T(8,128)(2,1)}', space=vmem, size = 0x4800, scoped, tag = 'scratch operand']
  #allocation3 [shape = 'bf16[16,110]{1,0:T(8,128)(2,1)}', space=vmem, size = 0x1000, scoped, tag = 'scratch operand']
  #allocation4 [shape = 'bf16[144,80]{1,0:T(8,128)(2,1)}', space=vmem, size = 0x9000, scoped, tag = 'scratch operand']
  %s0 = inlined_call_operand.vmem [shape: bf16[2,8,342], index: 0, kind: input, shape index: {}]
  %s1 = inlined_call_operand.hbm [shape: bf16[4,342,110], index: 1, kind: input, shape index: {}]
  %s2 = inlined_call_operand.vmem [shape: bf16[16,72], index: 2, kind: input, shape index: {}]
  %s3 = inlined_call_operand.vmem [shape: bf16[16,144], index: 3, kind: input, shape index: {}]
  %s4 = inlined_call_operand.vmem [shape: f32[1,80], index: 4, kind: input, shape index: {}]
  %s5 = inlined_call_operand.vmem [shape: bf16[2,16,110], index: 5, kind: output, shape index: {}]
  %s6 = sld [smem:[#allocation0]]
  $region57: #{unet_forward.7} parent=0
    _
  %s8 = ssub.s32 1, %s6
  %s9 = scalar_select 0, %s8, %s6
  $region1: #{unet_forward.7} parent=0
    #allocation5 [shape = 'u8[352256]{0}', space=vmem, size = 0x56000, scoped, tag = 'input window, operand 1, single buffered']
    #allocation6 [shape = 's32[2]{0}', space=sflag, size = 0x8, scoped, tag = 'scoped memory for unet_forward.7']
    %10 = vsyncpa [#allocation6], 0
    loop: start=0, step=1, limit=4
    $region2: #{unet_forward.7} parent=1 // loop_pre_header
      _
    $region3: #{unet_forward.7} parent=1 // loop_header
      %s12 = sphi 0, %s16
      %p13 = scmp.ge.s32.totalorder %s12, 4
      %s22 = sphi 0, %s24
      %s25 = sphi 0, %s22
      %s26 = sphi 0, %s25
      %s42 = sphi 0, %s26
      %s46 = sphi 0, %s46
      %s48 = sphi 0, %s46
      %s49 = sphi 0, %s48
      %s63 = sphi 0, %s49
      %s67 = sphi 0, %s67
      %s69 = sphi 0, %s67
      %s70 = sphi 0, %s69
      %s84 = sphi 0, %s70
      %s88 = sphi 0, %s88
      %s90 = sphi 0, %s88
      %s91 = sphi 0, %s90
      %s105 = sphi 0, %s91
      %s109 = sphi 0, %s109
      %s111 = sphi 0, %s109
      %s112 = sphi 0, %s111
      %s126 = sphi 0, %s112
      %s132 = sphi 0, %s134
      %s135 = sphi 0, %s132
      %s136 = sphi 0, %s135
      %s152 = sphi 0, %s136
    $region4: #{unet_forward.7} parent=1 // loop_header_branch
      %15 = sbr.rel (%p13) target = $region8
    $region5: #{unet_forward.7} parent=1 // loop_body
      %s17 = ssub.s32 %s12, 1
      %s18 = ssub.s32 %s12, 2
      %s19 = sadd.s32 %s12, 1
      %s20 = ssub.s32 %s12, %s19
      %p21 = scmp.eq.s32.totalorder %s20, 0
      %s23 = sadd.s32 %s22, 1
      %s24 = scalar_select %p21, %s22, %s23
      %p27 = pneg %p21
      %p28 = scmp.eq.s32.totalorder %s12, 1
      %p29 = por %p27, %p28
      %p30 = scmp.ne.s32.totalorder %s22, %s25
      %p31 = scmp.eq.s32.totalorder %s12, 0
      %p32 = por %p30, %p31
      %p33 = scmp.ne.s32.totalorder %s22, %s25
      %p34 = scmp.eq.s32.totalorder %s17, 1
      %p35 = por %p33, %p34
      %p36 = scmp.ne.s32.totalorder %s25, %s26
      %p37 = scmp.eq.s32.totalorder %s17, 0
      %p38 = por %p36, %p37
      %p39 = scmp.ne.s32.totalorder %s25, %s26
      %p40 = scmp.eq.s32.totalorder %s18, 1
      %p41 = por %p39, %p40
      %p43 = scmp.ne.s32.totalorder %s26, %s42
      %p44 = scmp.eq.s32.totalorder %s18, 0
      %p45 = por %p43, %p44
      %s47 = sadd.s32 %s46, 1
      %p50 = scmp.eq.s32.totalorder %s12, 1
      %p51 = scmp.ne.s32.totalorder %s46, %s48
      %p52 = scmp.eq.s32.totalorder %s12, 0
      %p53 = por %p51, %p52
      %p54 = scmp.ne.s32.totalorder %s46, %s48
      %p55 = scmp.eq.s32.totalorder %s17, 1
      %p56 = por %p54, %p55
      %p57 = scmp.ne.s32.totalorder %s48, %s49
      %p58 = scmp.eq.s32.totalorder %s17, 0
      %p59 = por %p57, %p58
      %p60 = scmp.ne.s32.totalorder %s48, %s49
      %p61 = scmp.eq.s32.totalorder %s18, 1
      %p62 = por %p60, %p61
      %p64 = scmp.ne.s32.totalorder %s49, %s63
      %p65 = scmp.eq.s32.totalorder %s18, 0
      %p66 = por %p64, %p65
      %s68 = sadd.s32 %s67, 1
      %p71 = scmp.eq.s32.totalorder %s12, 1
      %p72 = scmp.ne.s32.totalorder %s67, %s69
      %p73 = scmp.eq.s32.totalorder %s12, 0
      %p74 = por %p72, %p73
      %p75 = scmp.ne.s32.totalorder %s67, %s69
      %p76 = scmp.eq.s32.totalorder %s17, 1
      %p77 = por %p75, %p76
      %p78 = scmp.ne.s32.totalorder %s69, %s70
      %p79 = scmp.eq.s32.totalorder %s17, 0
      %p80 = por %p78, %p79
      %p81 = scmp.ne.s32.totalorder %s69, %s70
      %p82 = scmp.eq.s32.totalorder %s18, 1
      %p83 = por %p81, %p82
      %p85 = scmp.ne.s32.totalorder %s70, %s84
      %p86 = scmp.eq.s32.totalorder %s18, 0
      %p87 = por %p85, %p86
      %s89 = sadd.s32 %s88, 1
      %p92 = scmp.eq.s32.totalorder %s12, 1
      %p93 = scmp.ne.s32.totalorder %s88, %s90
      %p94 = scmp.eq.s32.totalorder %s12, 0
      %p95 = por %p93, %p94
      %p96 = scmp.ne.s32.totalorder %s88, %s90
      %p97 = scmp.eq.s32.totalorder %s17, 1
      %p98 = por %p96, %p97
      %p99 = scmp.ne.s32.totalorder %s90, %s91
      %p100 = scmp.eq.s32.totalorder %s17, 0
      %p101 = por %p99, %p100
      %p102 = scmp.ne.s32.totalorder %s90, %s91
      %p103 = scmp.eq.s32.totalorder %s18, 1
      %p104 = por %p102, %p103
      %p106 = scmp.ne.s32.totalorder %s91, %s105
      %p107 = scmp.eq.s32.totalorder %s18, 0
      %p108 = por %p106, %p107
      %s110 = sadd.s32 %s109, 1
      %p113 = scmp.eq.s32.totalorder %s12, 1
      %p114 = scmp.ne.s32.totalorder %s109, %s111
      %p115 = scmp.eq.s32.totalorder %s12, 0
      %p116 = por %p114, %p115
      %p117 = scmp.ne.s32.totalorder %s109, %s111
      %p118 = scmp.eq.s32.totalorder %s17, 1
      %p119 = por %p117, %p118
      %p120 = scmp.ne.s32.totalorder %s111, %s112
      %p121 = scmp.eq.s32.totalorder %s17, 0
      %p122 = por %p120, %p121
      %p123 = scmp.ne.s32.totalorder %s111, %s112
      %p124 = scmp.eq.s32.totalorder %s18, 1
      %p125 = por %p123, %p124
      %p127 = scmp.ne.s32.totalorder %s112, %s126
      %p128 = scmp.eq.s32.totalorder %s18, 0
      %p129 = por %p127, %p128
      %s130 = ssub.s32 %s12, %s19
      %p131 = scmp.eq.s32.totalorder %s130, 0
      %s133 = sadd.s32 %s132, 1
      %s134 = scalar_select %p131, %s132, %s133
      %p137 = pneg %p131
      %p138 = scmp.eq.s32.totalorder %s12, 1
      %p139 = por %p137, %p138
      %p140 = scmp.ne.s32.totalorder %s132, %s135
      %p141 = scmp.eq.s32.totalorder %s12, 0
      %p142 = por %p140, %p141
      %p143 = scmp.ne.s32.totalorder %s132, %s135
      %p144 = scmp.eq.s32.totalorder %s17, 1
      %p145 = por %p143, %p144
      %p146 = scmp.ne.s32.totalorder %s135, %s136
      %p147 = scmp.eq.s32.totalorder %s17, 0
      %p148 = por %p146, %p147
      %p149 = scmp.ne.s32.totalorder %s135, %s136
      %p150 = scmp.eq.s32.totalorder %s18, 1
      %p151 = por %p149, %p150
      %p153 = scmp.ne.s32.totalorder %s136, %s152
      %p154 = scmp.eq.s32.totalorder %s18, 0
      %p155 = por %p153, %p154
      %p156 = scmp.le.s32.totalorder 1, %s12
      %p157 = scmp.lt.s32.totalorder %s12, 3
      %p158 = pnand %p156, %p157
      %p159 = pneg %p158
      // Predicated region
      $region9: #{unet_forward.7} parent=5 // pred_check
        _
      $region10: #{unet_forward.7} parent=5 // pred_check_branch
        %161 = sbr.rel (%p158) target = $region12
      $region11: #{unet_forward.7} parent=5 // pred_region
        %s162 = ssub.s32 %s12, 1
        // Predicated region
        $region13: #{unet_forward.7} parent=11 // pred_check
          %p163 = pneg %p59
        $region14: #{unet_forward.7} parent=11 // pred_check_branch
          %165 = sbr.rel (%p163) target = $region16
        $region15: #{unet_forward.7} parent=11 // pred_region
          %167 = vsyncadd [#allocation6], 0
          %s168 = sshll.u32 %s1, 4
          %s169 = int_to_ptr.hbm [resolvable:$true] %s168
          %s170 = sshll.u32 [#allocation5], 4
          %s171 = int_to_ptr.vmem [resolvable:$true] %s170
          %176 = dma.hbm_to_vmem [thread:$0]  %s169, 11008, %s171, [#allocation6], 64, 64, 4
        $region16: #{unet_forward.7} parent=11 // pred_fallthru
          _
        // Predicated region
        $region17: #{unet_forward.7} parent=11 // pred_check
          %p177 = pneg %p80
        $region18: #{unet_forward.7} parent=11 // pred_check_branch
          %179 = sbr.rel (%p177) target = $region20
        $region19: #{unet_forward.7} parent=11 // pred_region
          _
        $region20: #{unet_forward.7} parent=11 // pred_fallthru
          _
        // Predicated region
        $region21: #{unet_forward.7} parent=11 // pred_check
          %p180 = pneg %p101
        $region22: #{unet_forward.7} parent=11 // pred_check_branch
          %182 = sbr.rel (%p180) target = $region24
        $region23: #{unet_forward.7} parent=11 // pred_region
          _
        $region24: #{unet_forward.7} parent=11 // pred_fallthru
          _
        // Predicated region
        $region25: #{unet_forward.7} parent=11 // pred_check
          %p183 = pneg %p122
        $region26: #{unet_forward.7} parent=11 // pred_check_branch
          %185 = sbr.rel (%p183) target = $region28
        $region27: #{unet_forward.7} parent=11 // pred_region
          _
        $region28: #{unet_forward.7} parent=11 // pred_fallthru
          _
      $region12: #{unet_forward.7} parent=5 // pred_fallthru
        _
      %p186 = scmp.lt.s32.totalorder %s12, 2
      // Predicated region
      $region29: #{unet_forward.7} parent=5 // pred_check
        %p187 = pneg %p186
      $region30: #{unet_forward.7} parent=5 // pred_check_branch
        %189 = sbr.rel (%p187) target = $region32
      $region31: #{unet_forward.7} parent=5 // pred_region
        // Predicated region
        $region33: #{unet_forward.7} parent=31 // pred_check
          %p190 = pneg %p32
        $region34: #{unet_forward.7} parent=31 // pred_check_branch
          %192 = sbr.rel (%p190) target = $region36
        $region35: #{unet_forward.7} parent=31 // pred_region
          %p193 = scmp.lt.s32.totalorder %s12, 1
          %s194 = scalar_select %p193, %s12, 1
          %s195 = smul.addr %s194, 3
          %s196 = smul.addr %s195, 4
          %s197 = scalar_lea.vmem %s0, %s196
        $region36: #{unet_forward.7} parent=31 // pred_fallthru
          _
      $region32: #{unet_forward.7} parent=5 // pred_fallthru
        _
      %p198 = scmp.le.s32.totalorder 1, %s12
      %p199 = scmp.lt.s32.totalorder %s12, 3
      %p200 = pnand %p198, %p199
      %p201 = pneg %p200
      // Predicated region
      $region37: #{unet_forward.7} parent=5 // pred_check
        _
      $region38: #{unet_forward.7} parent=5 // pred_check_branch
        %203 = sbr.rel (%p200) target = $region40
      $region39: #{unet_forward.7} parent=5 // pred_region
        %s204 = ssub.s32 %s12, 1
        // Predicated region
        $region41: #{unet_forward.7} parent=39 // pred_check
          %p205 = pneg %p59
        $region42: #{unet_forward.7} parent=39 // pred_check_branch
          %207 = sbr.rel (%p205) target = $region44
        $region43: #{unet_forward.7} parent=39 // pred_region
          %209 = dma.done [#allocation6], 11008
        $region44: #{unet_forward.7} parent=39 // pred_fallthru
          _
        %p210 = scmp.lt.s32.totalorder %s17, 1
        %s211 = scalar_select %p210, %s17, 1
        %s212 = smul.addr %s211, 3
        %s213 = smul.addr %s212, 4
        %s214 = scalar_lea.vmem %s0, %s213
        %p215 = pneg %p38
        %p216 = pneg %p35
        %p217 = pneg %p59
        %p218 = pneg %p56
        %p219 = pneg %p80
        %p220 = pneg %p77
        %p221 = pneg %p101
        %p222 = pneg %p98
        %p223 = pneg %p122
        %p224 = pneg %p119
        %p225 = pneg %p148
        %p226 = pneg %p145
        %p227 = scmp.lt.s32.totalorder %s17, 1
        %s228 = scalar_select %p227, %s17, 1
        %s229 = smul.addr %s228, 2
        %s230 = smul.addr %s229, 4
        %s231 = scalar_lea.vmem %s5, %s230
        %p232 = scmp.lt.s32.totalorder %s17, 1
        %s233 = scalar_select %p232, %s17, 1
        %s234 = smul.addr %s233, 3
        %s235 = smul.addr %s234, 4
        %s236 = scalar_lea.vmem %s0, %s235
        %p237 = scmp.lt.s32.totalorder %s17, 1
        %s238 = scalar_select %p237, %s17, 1
        %s239 = smul.addr %s238, 2
        %s240 = smul.addr %s239, 4
        %s241 = scalar_lea.vmem %s5, %s240
        %v243 = vld [vmem:[%s4] sm:$0x1]
        %v244 = vld [vmem:[%s236] sm:$0xff]
        %v245 = vld [vmem:[%s236 + $0x8] sm:$0xf]
        %v246 = vld [vmem:[#allocation5] sm:$0xf]
        %v247 = vld [vmem:[#allocation5 + $0x4] sm:$0xf]
        %v248 = vld [vmem:[#allocation5 + $0x8] sm:$0xf]
        %v249 = vld [vmem:[#allocation5 + $0xc] sm:$0xf]
        %v250 = vld [vmem:[#allocation5 + $0x10] sm:$0xf]
        %v251 = vld [vmem:[#allocation5 + $0x14] sm:$0xf]
        %v252 = vld [vmem:[#allocation5 + $0x18] sm:$0xf]
        %v253 = vld [vmem:[#allocation5 + $0x1c] sm:$0xf]
        %v254 = vld [vmem:[#allocation5 + $0x20] sm:$0xf]
        %v255 = vld [vmem:[#allocation5 + $0x24] sm:$0xf]
        %v256 = vld [vmem:[#allocation5 + $0x28] sm:$0xf]
        %v257 = vld [vmem:[#allocation5 + $0x2c] sm:$0xf]
        %v258 = vld [vmem:[#allocation5 + $0x30] sm:$0xf]
        %v259 = vld [vmem:[#allocation5 + $0x34] sm:$0xf]
        %v260 = vld [vmem:[#allocation5 + $0x38] sm:$0xf]
        %v261 = vld [vmem:[#allocation5 + $0x3c] sm:$0xf]
        %v262 = vld [vmem:[#allocation5 + $0x40] sm:$0xf]
        %v263 = vld [vmem:[#allocation5 + $0x44] sm:$0xf]
        %v264 = vld [vmem:[#allocation5 + $0x48] sm:$0xf]
        %v265 = vld [vmem:[#allocation5 + $0x4c] sm:$0xf]
        %v266 = vld [vmem:[#allocation5 + $0x50] sm:$0xf]
        %v267 = vld [vmem:[#allocation5 + $0x54] sm:$0xf]
        %v268 = vld [vmem:[#allocation5 + $0x58] sm:$0xf]
        %v269 = vld [vmem:[#allocation5 + $0x5c] sm:$0xf]
        %v270 = vld [vmem:[#allocation5 + $0x60] sm:$0xf]
        %v271 = vld [vmem:[#allocation5 + $0x64] sm:$0xf]
        %v272 = vld [vmem:[#allocation5 + $0x68] sm:$0xf]
        %v273 = vld [vmem:[#allocation5 + $0x6c] sm:$0xf]
        %v274 = vld [vmem:[#allocation5 + $0x70] sm:$0xf]
        %v275 = vld [vmem:[#allocation5 + $0x74] sm:$0xf]
        %v276 = vld [vmem:[#allocation5 + $0x78] sm:$0xf]
        %v277 = vld [vmem:[#allocation5 + $0x7c] sm:$0xf]
        %v278 = vld [vmem:[#allocation5 + $0x80] sm:$0xf]
        %v279 = vld [vmem:[#allocation5 + $0x84] sm:$0xf]
        %v280 = vld [vmem:[#allocation5 + $0x88] sm:$0xf]
        %v281 = vld [vmem:[#allocation5 + $0x8c] sm:$0xf]
        %v282 = vld [vmem:[#allocation5 + $0x90] sm:$0xf]
        %v283 = vld [vmem:[#allocation5 + $0x94] sm:$0xf]
        %v284 = vld [vmem:[#allocation5 + $0x98] sm:$0xf]
        %v285 = vld [vmem:[#allocation5 + $0x9c] sm:$0xf]
        %v286 = vld [vmem:[#allocation5 + $0xa0] sm:$0xf]
        %v287 = vld [vmem:[#allocation5 + $0xa4] sm:$0xf]
        %v288 = vld [vmem:[#allocation5 + $0xa8] sm:$0x7]
        %v291 = vunpack.c.l.b16 %v244
        %v292 = vunpack.c.h.b16 %v244
        %v293 = vunpack.c.l.b16 %v245
        %v294 = vpack.c.b16 %v291, %v291
        %v295 = vpack.c.b16 %v292, %v292
        %v296 = vpack.c.b16 %v293, %v293
        %v342 = vunpack.c.l.b16 %v246
        %v343 = vunpack.c.l.b16 %v247
        %v344 = vunpack.c.l.b16 %v248
        %v345 = vunpack.c.l.b16 %v249
        %v346 = vunpack.c.l.b16 %v250
        %v347 = vunpack.c.l.b16 %v251
        %v348 = vunpack.c.l.b16 %v252
        %v349 = vunpack.c.l.b16 %v253
        %v350 = vunpack.c.l.b16 %v254
        %v351 = vunpack.c.l.b16 %v255
        %v352 = vunpack.c.l.b16 %v256
        %v353 = vunpack.c.l.b16 %v257
        %v354 = vunpack.c.l.b16 %v258
        %v355 = vunpack.c.l.b16 %v259
        %v356 = vunpack.c.l.b16 %v260
        %v357 = vunpack.c.l.b16 %v261
        %v358 = vunpack.c.l.b16 %v262
        %v359 = vunpack.c.l.b16 %v263
        %v360 = vunpack.c.l.b16 %v264
        %v361 = vunpack.c.l.b16 %v265
        %v362 = vunpack.c.l.b16 %v266
        %v363 = vunpack.c.l.b16 %v267
        %v364 = vunpack.c.l.b16 %v268
        %v365 = vunpack.c.l.b16 %v269
        %v366 = vunpack.c.l.b16 %v270
        %v367 = vunpack.c.l.b16 %v271
        %v368 = vunpack.c.l.b16 %v272
        %v369 = vunpack.c.l.b16 %v273
        %v370 = vunpack.c.l.b16 %v274
        %v371 = vunpack.c.l.b16 %v275
        %v372 = vunpack.c.l.b16 %v276
        %v373 = vunpack.c.l.b16 %v277
        %v374 = vunpack.c.l.b16 %v278
        %v375 = vunpack.c.l.b16 %v279
        %v376 = vunpack.c.l.b16 %v280
        %v377 = vunpack.c.l.b16 %v281
        %v378 = vunpack.c.l.b16 %v282
        %v379 = vunpack.c.l.b16 %v283
        %v380 = vunpack.c.l.b16 %v284
        %v381 = vunpack.c.l.b16 %v285
        %v382 = vunpack.c.l.b16 %v286
        %v383 = vunpack.c.l.b16 %v287
        %v384 = vunpack.c.l.b16 %v288
        %v385 = vpack.c.b16 %v343, %v342
        %v386 = vpack.c.b16 %v345, %v344
        %v387 = vpack.c.b16 %v347, %v346
        %v388 = vpack.c.b16 %v349, %v348
        %v389 = vpack.c.b16 %v351, %v350
        %v390 = vpack.c.b16 %v353, %v352
        %v391 = vpack.c.b16 %v355, %v354
        %v392 = vpack.c.b16 %v357, %v356
        %v393 = vpack.c.b16 %v359, %v358
        %v394 = vpack.c.b16 %v361, %v360
        %v395 = vpack.c.b16 %v363, %v362
        %v396 = vpack.c.b16 %v365, %v364
        %v397 = vpack.c.b16 %v367, %v366
        %v398 = vpack.c.b16 %v369, %v368
        %v399 = vpack.c.b16 %v371, %v370
        %v400 = vpack.c.b16 %v373, %v372
        %v401 = vpack.c.b16 %v375, %v374
        %v402 = vpack.c.b16 %v377, %v376
        %v403 = vpack.c.b16 %v379, %v378
        %v404 = vpack.c.b16 %v381, %v380
        %v405 = vpack.c.b16 %v383, %v382
        %v406 = vpack.c.b16 %v384, %v384
        %vm428 = vcmask 703488
        %v430 = vsel %vm428, %v296, 0
        %vm432 = vcmask 1042432
        %v434 = vsel %vm432, %v406, 0
        %436 = vmatpush.bf16.msra.mxu0 %v392
        %437 = vmatpush.bf16.msra.mxu0 %v391
        %438 = vmatpush.bf16.msra.mxu0 %v390
        %439 = vmatpush.bf16.msra.mxu0 %v389
        %440 = vmatpush.bf16.msra.mxu0 %v388
        %441 = vmatpush.bf16.msra.mxu0 %v387
        %442 = vmatpush.bf16.msra.mxu0 %v386
        %443 = vmatpush.bf16.msra.mxu0 %v385
        %444 = vmatmul.bf16.gmra.mxu0 %v294
        %v445 = vpop.f32.mrf.mxu0
        %v446 = vadd.f32 0.0, %v445
        %v447 = vpop.f32.mrf.mxu0
        %448 = vdwg.mxu0
        %449 = vmatpush.bf16.msra.mxu0 %v400
        %450 = vmatpush.bf16.msra.mxu0 %v399
        %451 = vmatpush.bf16.msra.mxu0 %v398
        %452 = vmatpush.bf16.msra.mxu0 %v397
        %453 = vmatpush.bf16.msra.mxu0 %v396
        %454 = vmatpush.bf16.msra.mxu0 %v395
        %455 = vmatpush.bf16.msra.mxu0 %v394
        %456 = vmatpush.bf16.msra.mxu0 %v393
        %457 = vmatmul.bf16.gmra.mxu0 %v295
        %v458 = vpop.f32.mrf.mxu0
        %v459 = vadd.f32 %v446, %v458
        %v460 = vpop.f32.mrf.mxu0
        %461 = vdwg.mxu0
        %462 = vmatpush.bf16.msra.mxu0 0
        %463 = vmatpush.bf16.msra.mxu0 0
        %464 = vmatpush.bf16.msra.mxu0 %v434
        %465 = vmatpush.bf16.msra.mxu0 %v405
        %466 = vmatpush.bf16.msra.mxu0 %v404
        %467 = vmatpush.bf16.msra.mxu0 %v403
        %468 = vmatpush.bf16.msra.mxu0 %v402
        %469 = vmatpush.bf16.msra.mxu0 %v401
        %470 = vmatmul.bf16.gmra.mxu0 %v430
        %v471 = vpop.f32.mrf.mxu0
        %v472 = vadd.f32 %v459, %v471
        %v473 = vpop.f32.mrf.mxu0
        %474 = vdwg.mxu0
        %s475 = scalar_lea.vmem [#allocation5], 172
        %v476 = vld [vmem:[%s475] sm:$0xf]
        %v477 = vld [vmem:[%s475 + $0x4] sm:$0xf]
        %v478 = vld [vmem:[%s475 + $0x8] sm:$0xf]
        %v479 = vld [vmem:[%s475 + $0xc] sm:$0xf]
        %v480 = vld [vmem:[%s475 + $0x10] sm:$0xf]
        %v481 = vld [vmem:[%s475 + $0x14] sm:$0xf]
        %v482 = vld [vmem:[%s475 + $0x18] sm:$0xf]
        %v483 = vld [vmem:[%s475 + $0x1c] sm:$0xf]
        %v484 = vld [vmem:[%s475 + $0x20] sm:$0xf]
        %v485 = vld [vmem:[%s475 + $0x24] sm:$0xf]
        %v486 = vld [vmem:[%s475 + $0x28] sm:$0xf]
        %v487 = vld [vmem:[%s475 + $0x2c] sm:$0xf]
        %v488 = vld [vmem:[%s475 + $0x30] sm:$0xf]
        %v489 = vld [vmem:[%s475 + $0x34] sm:$0xf]
        %v490 = vld [vmem:[%s475 + $0x38] sm:$0xf]
        %v491 = vld [vmem:[%s475 + $0x3c] sm:$0xf]
        %v492 = vld [vmem:[%s475 + $0x40] sm:$0xf]
        %v493 = vld [vmem:[%s475 + $0x44] sm:$0xf]
        %v494 = vld [vmem:[%s475 + $0x48] sm:$0xf]
        %v495 = vld [vmem:[%s475 + $0x4c] sm:$0xf]
        %v496 = vld [vmem:[%s475 + $0x50] sm:$0xf]
        %v497 = vld [vmem:[%s475 + $0x54] sm:$0xf]
        %v498 = vld [vmem:[%s475 + $0x58] sm:$0xf]
        %v499 = vld [vmem:[%s475 + $0x5c] sm:$0xf]
        %v500 = vld [vmem:[%s475 + $0x60] sm:$0xf]
        %v501 = vld [vmem:[%s475 + $0x64] sm:$0xf]
        %v502 = vld [vmem:[%s475 + $0x68] sm:$0xf]
        %v503 = vld [vmem:[%s475 + $0x6c] sm:$0xf]
        %v504 = vld [vmem:[%s475 + $0x70] sm:$0xf]
        %v505 = vld [vmem:[%s475 + $0x74] sm:$0xf]
        %v506 = vld [vmem:[%s475 + $0x78] sm:$0xf]
        %v507 = vld [vmem:[%s475 + $0x7c] sm:$0xf]
        %v508 = vld [vmem:[%s475 + $0x80] sm:$0xf]
        %v509 = vld [vmem:[%s475 + $0x84] sm:$0xf]
        %v510 = vld [vmem:[%s475 + $0x88] sm:$0xf]
        %v511 = vld [vmem:[%s475 + $0x8c] sm:$0xf]
        %v512 = vld [vmem:[%s475 + $0x90] sm:$0xf]
        %v513 = vld [vmem:[%s475 + $0x94] sm:$0xf]
        %v514 = vld [vmem:[%s475 + $0x98] sm:$0xf]
        %v515 = vld [vmem:[%s475 + $0x9c] sm:$0xf]
        %v516 = vld [vmem:[%s475 + $0xa0] sm:$0xf]
        %v517 = vld [vmem:[%s475 + $0xa4] sm:$0xf]
        %v518 = vld [vmem:[%s475 + $0xa8] sm:$0x7]
        %v562 = vunpack.c.l.b16 %v476
        %v563 = vunpack.c.l.b16 %v477
        %v564 = vunpack.c.l.b16 %v478
        %v565 = vunpack.c.l.b16 %v479
        %v566 = vunpack.c.l.b16 %v480
        %v567 = vunpack.c.l.b16 %v481
        %v568 = vunpack.c.l.b16 %v482
        %v569 = vunpack.c.l.b16 %v483
        %v570 = vunpack.c.l.b16 %v484
        %v571 = vunpack.c.l.b16 %v485
        %v572 = vunpack.c.l.b16 %v486
        %v573 = vunpack.c.l.b16 %v487
        %v574 = vunpack.c.l.b16 %v488
        %v575 = vunpack.c.l.b16 %v489
        %v576 = vunpack.c.l.b16 %v490
        %v577 = vunpack.c.l.b16 %v491
        %v578 = vunpack.c.l.b16 %v492
        %v579 = vunpack.c.l.b16 %v493
        %v580 = vunpack.c.l.b16 %v494
        %v581 = vunpack.c.l.b16 %v495
        %v582 = vunpack.c.l.b16 %v496
        %v583 = vunpack.c.l.b16 %v497
        %v584 = vunpack.c.l.b16 %v498
        %v585 = vunpack.c.l.b16 %v499
        %v586 = vunpack.c.l.b16 %v500
        %v587 = vunpack.c.l.b16 %v501
        %v588 = vunpack.c.l.b16 %v502
        %v589 = vunpack.c.l.b16 %v503
        %v590 = vunpack.c.l.b16 %v504
        %v591 = vunpack.c.l.b16 %v505
        %v592 = vunpack.c.l.b16 %v506
        %v593 = vunpack.c.l.b16 %v507
        %v594 = vunpack.c.l.b16 %v508
        %v595 = vunpack.c.l.b16 %v509
        %v596 = vunpack.c.l.b16 %v510
        %v597 = vunpack.c.l.b16 %v511
        %v598 = vunpack.c.l.b16 %v512
        %v599 = vunpack.c.l.b16 %v513
        %v600 = vunpack.c.l.b16 %v514
        %v601 = vunpack.c.l.b16 %v515
        %v602 = vunpack.c.l.b16 %v516
        %v603 = vunpack.c.l.b16 %v517
        %v604 = vunpack.c.l.b16 %v518
        %v605 = vpack.c.b16 %v563, %v562
        %v606 = vpack.c.b16 %v565, %v564
        %v607 = vpack.c.b16 %v567, %v566
        %v608 = vpack.c.b16 %v569, %v568
        %v609 = vpack.c.b16 %v571, %v570
        %v610 = vpack.c.b16 %v573, %v572
        %v611 = vpack.c.b16 %v575, %v574
        %v612 = vpack.c.b16 %v577, %v576
        %v613 = vpack.c.b16 %v579, %v578
        %v614 = vpack.c.b16 %v581, %v580
        %v615 = vpack.c.b16 %v583, %v582
        %v616 = vpack.c.b16 %v585, %v584
        %v617 = vpack.c.b16 %v587, %v586
        %v618 = vpack.c.b16 %v589, %v588
        %v619 = vpack.c.b16 %v591, %v590
        %v620 = vpack.c.b16 %v593, %v592
        %v621 = vpack.c.b16 %v595, %v594
        %v622 = vpack.c.b16 %v597, %v596
        %v623 = vpack.c.b16 %v599, %v598
        %v624 = vpack.c.b16 %v601, %v600
        %v625 = vpack.c.b16 %v603, %v602
        %v626 = vpack.c.b16 %v604, %v604
        %v649 = vsel %vm432, %v626, 0
        %651 = vmatpush.bf16.msra.mxu0 %v612
        %652 = vmatpush.bf16.msra.mxu0 %v611
        %653 = vmatpush.bf16.msra.mxu0 %v610
        %654 = vmatpush.bf16.msra.mxu0 %v609
        %655 = vmatpush.bf16.msra.mxu0 %v608
        %656 = vmatpush.bf16.msra.mxu0 %v607
        %657 = vmatpush.bf16.msra.mxu0 %v606
        %658 = vmatpush.bf16.msra.mxu0 %v605
        %659 = vmatmul.bf16.gmra.mxu0 %v294
        %v660 = vpop.f32.mrf.mxu0
        %v661 = vadd.f32 0.0, %v660
        %v662 = vpop.f32.mrf.mxu0
        %663 = vdwg.mxu0
        %664 = vmatpush.bf16.msra.mxu0 %v620
        %665 = vmatpush.bf16.msra.mxu0 %v619
        %666 = vmatpush.bf16.msra.mxu0 %v618
        %667 = vmatpush.bf16.msra.mxu0 %v617
        %668 = vmatpush.bf16.msra.mxu0 %v616
        %669 = vmatpush.bf16.msra.mxu0 %v615
        %670 = vmatpush.bf16.msra.mxu0 %v614
        %671 = vmatpush.bf16.msra.mxu0 %v613
        %672 = vmatmul.bf16.gmra.mxu0 %v295
        %v673 = vpop.f32.mrf.mxu0
        %v674 = vadd.f32 %v661, %v673
        %v675 = vpop.f32.mrf.mxu0
        %676 = vdwg.mxu0
        %677 = vmatpush.bf16.msra.mxu0 0
        %678 = vmatpush.bf16.msra.mxu0 0
        %679 = vmatpush.bf16.msra.mxu0 %v649
        %680 = vmatpush.bf16.msra.mxu0 %v625
        %681 = vmatpush.bf16.msra.mxu0 %v624
        %682 = vmatpush.bf16.msra.mxu0 %v623
        %683 = vmatpush.bf16.msra.mxu0 %v622
        %684 = vmatpush.bf16.msra.mxu0 %v621
        %685 = vmatmul.bf16.gmra.mxu0 %v430
        %v686 = vpop.f32.mrf.mxu0
        %v687 = vadd.f32 %v674, %v686
        %v688 = vpop.f32.mrf.mxu0
        %689 = vdwg.mxu0
        %v690 = vmax.f32 %v472, %v687
        %s691 = scalar_lea.vmem [#allocation5], 344
        %v692 = vld [vmem:[%s691] sm:$0xf]
        %v693 = vld [vmem:[%s691 + $0x4] sm:$0xf]
        %v694 = vld [vmem:[%s691 + $0x8] sm:$0xf]
        %v695 = vld [vmem:[%s691 + $0xc] sm:$0xf]
        %v696 = vld [vmem:[%s691 + $0x10] sm:$0xf]
        %v697 = vld [vmem:[%s691 + $0x14] sm:$0xf]
        %v698 = vld [vmem:[%s691 + $0x18] sm:$0xf]
        %v699 = vld [vmem:[%s691 + $0x1c] sm:$0xf]
        %v700 = vld [vmem:[%s691 + $0x20] sm:$0xf]
        %v701 = vld [vmem:[%s691 + $0x24] sm:$0xf]
        %v702 = vld [vmem:[%s691 + $0x28] sm:$0xf]
        %v703 = vld [vmem:[%s691 + $0x2c] sm:$0xf]
        %v704 = vld [vmem:[%s691 + $0x30] sm:$0xf]
        %v705 = vld [vmem:[%s691 + $0x34] sm:$0xf]
        %v706 = vld [vmem:[%s691 + $0x38] sm:$0xf]
        %v707 = vld [vmem:[%s691 + $0x3c] sm:$0xf]
        %v708 = vld [vmem:[%s691 + $0x40] sm:$0xf]
        %v709 = vld [vmem:[%s691 + $0x44] sm:$0xf]
        %v710 = vld [vmem:[%s691 + $0x48] sm:$0xf]
        %v711 = vld [vmem:[%s691 + $0x4c] sm:$0xf]
        %v712 = vld [vmem:[%s691 + $0x50] sm:$0xf]
        %v713 = vld [vmem:[%s691 + $0x54] sm:$0xf]
        %v714 = vld [vmem:[%s691 + $0x58] sm:$0xf]
        %v715 = vld [vmem:[%s691 + $0x5c] sm:$0xf]
        %v716 = vld [vmem:[%s691 + $0x60] sm:$0xf]
        %v717 = vld [vmem:[%s691 + $0x64] sm:$0xf]
        %v718 = vld [vmem:[%s691 + $0x68] sm:$0xf]
        %v719 = vld [vmem:[%s691 + $0x6c] sm:$0xf]
        %v720 = vld [vmem:[%s691 + $0x70] sm:$0xf]
        %v721 = vld [vmem:[%s691 + $0x74] sm:$0xf]
        %v722 = vld [vmem:[%s691 + $0x78] sm:$0xf]
        %v723 = vld [vmem:[%s691 + $0x7c] sm:$0xf]
        %v724 = vld [vmem:[%s691 + $0x80] sm:$0xf]
        %v725 = vld [vmem:[%s691 + $0x84] sm:$0xf]
        %v726 = vld [vmem:[%s691 + $0x88] sm:$0xf]
        %v727 = vld [vmem:[%s691 + $0x8c] sm:$0xf]
        %v728 = vld [vmem:[%s691 + $0x90] sm:$0xf]
        %v729 = vld [vmem:[%s691 + $0x94] sm:$0xf]
        %v730 = vld [vmem:[%s691 + $0x98] sm:$0xf]
        %v731 = vld [vmem:[%s691 + $0x9c] sm:$0xf]
        %v732 = vld [vmem:[%s691 + $0xa0] sm:$0xf]
        %v733 = vld [vmem:[%s691 + $0xa4] sm:$0xf]
        %v734 = vld [vmem:[%s691 + $0xa8] sm:$0x7]
        %v778 = vunpack.c.l.b16 %v692
        %v779 = vunpack.c.l.b16 %v693
        %v780 = vunpack.c.l.b16 %v694
        %v781 = vunpack.c.l.b16 %v695
        %v782 = vunpack.c.l.b16 %v696
        %v783 = vunpack.c.l.b16 %v697
        %v784 = vunpack.c.l.b16 %v698
        %v785 = vunpack.c.l.b16 %v699
        %v786 = vunpack.c.l.b16 %v700
        %v787 = vunpack.c.l.b16 %v701
        %v788 = vunpack.c.l.b16 %v702
        %v789 = vunpack.c.l.b16 %v703
        %v790 = vunpack.c.l.b16 %v704
        %v791 = vunpack.c.l.b16 %v705
        %v792 = vunpack.c.l.b16 %v706
        %v793 = vunpack.c.l.b16 %v707
        %v794 = vunpack.c.l.b16 %v708
        %v795 = vunpack.c.l.b16 %v709
        %v796 = vunpack.c.l.b16 %v710
        %v797 = vunpack.c.l.b16 %v711
        %v798 = vunpack.c.l.b16 %v712
        %v799 = vunpack.c.l.b16 %v713
        %v800 = vunpack.c.l.b16 %v714
        %v801 = vunpack.c.l.b16 %v715
        %v802 = vunpack.c.l.b16 %v716
        %v803 = vunpack.c.l.b16 %v717
        %v804 = vunpack.c.l.b16 %v718
        %v805 = vunpack.c.l.b16 %v719
        %v806 = vunpack.c.l.b16 %v720
        %v807 = vunpack.c.l.b16 %v721
        %v808 = vunpack.c.l.b16 %v722
        %v809 = vunpack.c.l.b16 %v723
        %v810 = vunpack.c.l.b16 %v724
        %v811 = vunpack.c.l.b16 %v725
        %v812 = vunpack.c.l.b16 %v726
        %v813 = vunpack.c.l.b16 %v727
        %v814 = vunpack.c.l.b16 %v728
        %v815 = vunpack.c.l.b16 %v729
        %v816 = vunpack.c.l.b16 %v730
        %v817 = vunpack.c.l.b16 %v731
        %v818 = vunpack.c.l.b16 %v732
        %v819 = vunpack.c.l.b16 %v733
        %v820 = vunpack.c.l.b16 %v734
        %v821 = vpack.c.b16 %v779, %v778
        %v822 = vpack.c.b16 %v781, %v780
        %v823 = vpack.c.b16 %v783, %v782
        %v824 = vpack.c.b16 %v785, %v784
        %v825 = vpack.c.b16 %v787, %v786
        %v826 = vpack.c.b16 %v789, %v788
        %v827 = vpack.c.b16 %v791, %v790
        %v828 = vpack.c.b16 %v793, %v792
        %v829 = vpack.c.b16 %v795, %v794
        %v830 = vpack.c.b16 %v797, %v796
        %v831 = vpack.c.b16 %v799, %v798
        %v832 = vpack.c.b16 %v801, %v800
        %v833 = vpack.c.b16 %v803, %v802
        %v834 = vpack.c.b16 %v805, %v804
        %v835 = vpack.c.b16 %v807, %v806
        %v836 = vpack.c.b16 %v809, %v808
        %v837 = vpack.c.b16 %v811, %v810
        %v838 = vpack.c.b16 %v813, %v812
        %v839 = vpack.c.b16 %v815, %v814
        %v840 = vpack.c.b16 %v817, %v816
        %v841 = vpack.c.b16 %v819, %v818
        %v842 = vpack.c.b16 %v820, %v820
        %v865 = vsel %vm432, %v842, 0
        %867 = vmatpush.bf16.msra.mxu0 %v828
        %868 = vmatpush.bf16.msra.mxu0 %v827
        %869 = vmatpush.bf16.msra.mxu0 %v826
        %870 = vmatpush.bf16.msra.mxu0 %v825
        %871 = vmatpush.bf16.msra.mxu0 %v824
        %872 = vmatpush.bf16.msra.mxu0 %v823
        %873 = vmatpush.bf16.msra.mxu0 %v822
        %874 = vmatpush.bf16.msra.mxu0 %v821
        %875 = vmatmul.bf16.gmra.mxu0 %v294
        %v876 = vpop.f32.mrf.mxu0
        %v877 = vadd.f32 0.0, %v876
        %v878 = vpop.f32.mrf.mxu0
        %879 = vdwg.mxu0
        %880 = vmatpush.bf16.msra.mxu0 %v836
        %881 = vmatpush.bf16.msra.mxu0 %v835
        %882 = vmatpush.bf16.msra.mxu0 %v834
        %883 = vmatpush.bf16.msra.mxu0 %v833
        %884 = vmatpush.bf16.msra.mxu0 %v832
        %885 = vmatpush.bf16.msra.mxu0 %v831
        %886 = vmatpush.bf16.msra.mxu0 %v830
        %887 = vmatpush.bf16.msra.mxu0 %v829
        %888 = vmatmul.bf16.gmra.mxu0 %v295
        %v889 = vpop.f32.mrf.mxu0
        %v890 = vadd.f32 %v877, %v889
        %v891 = vpop.f32.mrf.mxu0
        %892 = vdwg.mxu0
        %893 = vmatpush.bf16.msra.mxu0 0
        %894 = vmatpush.bf16.msra.mxu0 0
        %895 = vmatpush.bf16.msra.mxu0 %v865
        %896 = vmatpush.bf16.msra.mxu0 %v841
        %897 = vmatpush.bf16.msra.mxu0 %v840
        %898 = vmatpush.bf16.msra.mxu0 %v839
        %899 = vmatpush.bf16.msra.mxu0 %v838
        %900 = vmatpush.bf16.msra.mxu0 %v837
        %901 = vmatmul.bf16.gmra.mxu0 %v430
        %v902 = vpop.f32.mrf.mxu0
        %v903 = vadd.f32 %v890, %v902
        %v904 = vpop.f32.mrf.mxu0
        %905 = vdwg.mxu0
        %v906 = vmax.f32 %v690, %v903
        %s907 = scalar_lea.vmem [#allocation5], 516
        %v908 = vld [vmem:[%s907] sm:$0xf]
        %v909 = vld [vmem:[%s907 + $0x4] sm:$0xf]
        %v910 = vld [vmem:[%s907 + $0x8] sm:$0xf]
        %v911 = vld [vmem:[%s907 + $0xc] sm:$0xf]
        %v912 = vld [vmem:[%s907 + $0x10] sm:$0xf]
        %v913 = vld [vmem:[%s907 + $0x14] sm:$0xf]
        %v914 = vld [vmem:[%s907 + $0x18] sm:$0xf]
        %v915 = vld [vmem:[%s907 + $0x1c] sm:$0xf]
        %v916 = vld [vmem:[%s907 + $0x20] sm:$0xf]
        %v917 = vld [vmem:[%s907 + $0x24] sm:$0xf]
        %v918 = vld [vmem:[%s907 + $0x28] sm:$0xf]
        %v919 = vld [vmem:[%s907 + $0x2c] sm:$0xf]
        %v920 = vld [vmem:[%s907 + $0x30] sm:$0xf]
        %v921 = vld [vmem:[%s907 + $0x34] sm:$0xf]
        %v922 = vld [vmem:[%s907 + $0x38] sm:$0xf]
        %v923 = vld [vmem:[%s907 + $0x3c] sm:$0xf]
        %v924 = vld [vmem:[%s907 + $0x40] sm:$0xf]
        %v925 = vld [vmem:[%s907 + $0x44] sm:$0xf]
        %v926 = vld [vmem:[%s907 + $0x48] sm:$0xf]
        %v927 = vld [vmem:[%s907 + $0x4c] sm:$0xf]
        %v928 = vld [vmem:[%s907 + $0x50] sm:$0xf]
        %v929 = vld [vmem:[%s907 + $0x54] sm:$0xf]
        %v930 = vld [vmem:[%s907 + $0x58] sm:$0xf]
        %v931 = vld [vmem:[%s907 + $0x5c] sm:$0xf]
        %v932 = vld [vmem:[%s907 + $0x60] sm:$0xf]
        %v933 = vld [vmem:[%s907 + $0x64] sm:$0xf]
        %v934 = vld [vmem:[%s907 + $0x68] sm:$0xf]
        %v935 = vld [vmem:[%s907 + $0x6c] sm:$0xf]
        %v936 = vld [vmem:[%s907 + $0x70] sm:$0xf]
        %v937 = vld [vmem:[%s907 + $0x74] sm:$0xf]
        %v938 = vld [vmem:[%s907 + $0x78] sm:$0xf]
        %v939 = vld [vmem:[%s907 + $0x7c] sm:$0xf]
        %v940 = vld [vmem:[%s907 + $0x80] sm:$0xf]
        %v941 = vld [vmem:[%s907 + $0x84] sm:$0xf]
        %v942 = vld [vmem:[%s907 + $0x88] sm:$0xf]
        %v943 = vld [vmem:[%s907 + $0x8c] sm:$0xf]
        %v944 = vld [vmem:[%s907 + $0x90] sm:$0xf]
        %v945 = vld [vmem:[%s907 + $0x94] sm:$0xf]
        %v946 = vld [vmem:[%s907 + $0x98] sm:$0xf]
        %v947 = vld [vmem:[%s907 + $0x9c] sm:$0xf]
        %v948 = vld [vmem:[%s907 + $0xa0] sm:$0xf]
        %v949 = vld [vmem:[%s907 + $0xa4] sm:$0xf]
        %v950 = vld [vmem:[%s907 + $0xa8] sm:$0x7]
        %v994 = vunpack.c.l.b16 %v908
        %v995 = vunpack.c.l.b16 %v909
        %v996 = vunpack.c.l.b16 %v910
        %v997 = vunpack.c.l.b16 %v911
        %v998 = vunpack.c.l.b16 %v912
        %v999 = vunpack.c.l.b16 %v913
        %v1000 = vunpack.c.l.b16 %v914
        %v1001 = vunpack.c.l.b16 %v915
        %v1002 = vunpack.c.l.b16 %v916
        %v1003 = vunpack.c.l.b16 %v917
        %v1004 = vunpack.c.l.b16 %v918
        %v1005 = vunpack.c.l.b16 %v919
        %v1006 = vunpack.c.l.b16 %v920
        %v1007 = vunpack.c.l.b16 %v921
        %v1008 = vunpack.c.l.b16 %v922
        %v1009 = vunpack.c.l.b16 %v923
        %v1010 = vunpack.c.l.b16 %v924
        %v1011 = vunpack.c.l.b16 %v925
        %v1012 = vunpack.c.l.b16 %v926
        %v1013 = vunpack.c.l.b16 %v927
        %v1014 = vunpack.c.l.b16 %v928
        %v1015 = vunpack.c.l.b16 %v929
        %v1016 = vunpack.c.l.b16 %v930
        %v1017 = vunpack.c.l.b16 %v931
        %v1018 = vunpack.c.l.b16 %v932
        %v1019 = vunpack.c.l.b16 %v933
        %v1020 = vunpack.c.l.b16 %v934
        %v1021 = vunpack.c.l.b16 %v935
        %v1022 = vunpack.c.l.b16 %v936
        %v1023 = vunpack.c.l.b16 %v937
        %v1024 = vunpack.c.l.b16 %v938
        %v1025 = vunpack.c.l.b16 %v939
        %v1026 = vunpack.c.l.b16 %v940
        %v1027 = vunpack.c.l.b16 %v941
        %v1028 = vunpack.c.l.b16 %v942
        %v1029 = vunpack.c.l.b16 %v943
        %v1030 = vunpack.c.l.b16 %v944
        %v1031 = vunpack.c.l.b16 %v945
        %v1032 = vunpack.c.l.b16 %v946
        %v1033 = vunpack.c.l.b16 %v947
        %v1034 = vunpack.c.l.b16 %v948
        %v1035 = vunpack.c.l.b16 %v949
        %v1036 = vunpack.c.l.b16 %v950
        %v1037 = vpack.c.b16 %v995, %v994
        %v1038 = vpack.c.b16 %v997, %v996
        %v1039 = vpack.c.b16 %v999, %v998
        %v1040 = vpack.c.b16 %v1001, %v1000
        %v1041 = vpack.c.b16 %v1003, %v1002
        %v1042 = vpack.c.b16 %v1005, %v1004
        %v1043 = vpack.c.b16 %v1007, %v1006
        %v1044 = vpack.c.b16 %v1009, %v1008
        %v1045 = vpack.c.b16 %v1011, %v1010
        %v1046 = vpack.c.b16 %v1013, %v1012
        %v1047 = vpack.c.b16 %v1015, %v1014
        %v1048 = vpack.c.b16 %v1017, %v1016
        %v1049 = vpack.c.b16 %v1019, %v1018
        %v1050 = vpack.c.b16 %v1021, %v1020
        %v1051 = vpack.c.b16 %v1023, %v1022
        %v1052 = vpack.c.b16 %v1025, %v1024
        %v1053 = vpack.c.b16 %v1027, %v1026
        %v1054 = vpack.c.b16 %v1029, %v1028
        %v1055 = vpack.c.b16 %v1031, %v1030
        %v1056 = vpack.c.b16 %v1033, %v1032
        %v1057 = vpack.c.b16 %v1035, %v1034
        %v1058 = vpack.c.b16 %v1036, %v1036
        %v1081 = vsel %vm432, %v1058, 0
        %1083 = vmatpush.bf16.msra.mxu0 %v1044
        %1084 = vmatpush.bf16.msra.mxu0 %v1043
        %1085 = vmatpush.bf16.msra.mxu0 %v1042
        %1086 = vmatpush.bf16.msra.mxu0 %v1041
        %1087 = vmatpush.bf16.msra.mxu0 %v1040
        %1088 = vmatpush.bf16.msra.mxu0 %v1039
        %1089 = vmatpush.bf16.msra.mxu0 %v1038
        %1090 = vmatpush.bf16.msra.mxu0 %v1037
        %1091 = vmatmul.bf16.gmra.mxu0 %v294
        %v1092 = vpop.f32.mrf.mxu0
        %v1093 = vadd.f32 0.0, %v1092
        %v1094 = vpop.f32.mrf.mxu0
        %1095 = vdwg.mxu0
        %1096 = vmatpush.bf16.msra.mxu0 %v1052
        %1097 = vmatpush.bf16.msra.mxu0 %v1051
        %1098 = vmatpush.bf16.msra.mxu0 %v1050
        %1099 = vmatpush.bf16.msra.mxu0 %v1049
        %1100 = vmatpush.bf16.msra.mxu0 %v1048
        %1101 = vmatpush.bf16.msra.mxu0 %v1047
        %1102 = vmatpush.bf16.msra.mxu0 %v1046
        %1103 = vmatpush.bf16.msra.mxu0 %v1045
        %1104 = vmatmul.bf16.gmra.mxu0 %v295
        %v1105 = vpop.f32.mrf.mxu0
        %v1106 = vadd.f32 %v1093, %v1105
        %v1107 = vpop.f32.mrf.mxu0
        %1108 = vdwg.mxu0
        %1109 = vmatpush.bf16.msra.mxu0 0
        %1110 = vmatpush.bf16.msra.mxu0 0
        %1111 = vmatpush.bf16.msra.mxu0 %v1081
        %1112 = vmatpush.bf16.msra.mxu0 %v1057
        %1113 = vmatpush.bf16.msra.mxu0 %v1056
        %1114 = vmatpush.bf16.msra.mxu0 %v1055
        %1115 = vmatpush.bf16.msra.mxu0 %v1054
        %1116 = vmatpush.bf16.msra.mxu0 %v1053
        %1117 = vmatmul.bf16.gmra.mxu0 %v430
        %v1118 = vpop.f32.mrf.mxu0
        %v1119 = vadd.f32 %v1106, %v1118
        %v1120 = vpop.f32.mrf.mxu0
        %1121 = vdwg.mxu0
        %v1122 = vmax.f32 %v906, %v1119
        %v1123 = vpack.c.bf16 %v1122, %v1122
        %vm1124 = vcmask 650240
        %1125 = vst.msk [vmem:[#allocation2] sm:$0xf] %vm1124, %v1123
        %1127 = vrot.lane.b32.xlu0 %v1123, 127
        %v1128 = vpop.permute.xlu0 %1127
        %1130 = vst.msk [vmem:[#allocation2 + $0x4] sm:$0xf] %vm1124, %v1128
        %1131 = vrot.lane.b32.xlu0 %v1123, 126
        %v1132 = vpop.permute.xlu0 %1131
        %1134 = vst.msk [vmem:[#allocation2 + $0x8] sm:$0xf] %vm1124, %v1132
        %1135 = vrot.lane.b32.xlu0 %v1123, 118
        %v1136 = vpop.permute.xlu0 %1135
        %1138 = vst.msk [vmem:[#allocation2 + $0xc] sm:$0xf] %vm1124, %v1136
        %1139 = vrot.lane.b32.xlu0 %v1123, 117
        %v1140 = vpop.permute.xlu0 %1139
        %1142 = vst.msk [vmem:[#allocation2 + $0x10] sm:$0xf] %vm1124, %v1140
        %1143 = vrot.lane.b32.xlu0 %v1123, 116
        %v1144 = vpop.permute.xlu0 %1143
        %1146 = vst.msk [vmem:[#allocation2 + $0x14] sm:$0xf] %vm1124, %v1144
        %1147 = vrot.lane.b32.xlu0 %v1123, 108
        %v1148 = vpop.permute.xlu0 %1147
        %1150 = vst.msk [vmem:[#allocation2 + $0x18] sm:$0xf] %vm1124, %v1148
        %1151 = vrot.lane.b32.xlu0 %v1123, 107
        %v1152 = vpop.permute.xlu0 %1151
        %1154 = vst.msk [vmem:[#allocation2 + $0x1c] sm:$0xf] %vm1124, %v1152
        %1155 = vrot.lane.b32.xlu0 %v1123, 106
        %v1156 = vpop.permute.xlu0 %1155
        %1158 = vst.msk [vmem:[#allocation2 + $0x20] sm:$0xf] %vm1124, %v1156
        %v1159 = vld [vmem:[%s2] sm:$0xf]
        %v1160 = vld [vmem:[%s2 + $0x4] sm:$0xf]
        %v1161 = vld [vmem:[#allocation2] sm:$0xf]
        %v1162 = vld [vmem:[#allocation2 + $0x4] sm:$0xf]
        %v1163 = vld [vmem:[#allocation2 + $0x8] sm:$0xf]
        %v1164 = vld [vmem:[#allocation2 + $0xc] sm:$0xf]
        %v1165 = vld [vmem:[#allocation2 + $0x10] sm:$0xf]
        %v1166 = vld [vmem:[#allocation2 + $0x14] sm:$0xf]
        %v1167 = vld [vmem:[#allocation2 + $0x18] sm:$0xf]
        %v1168 = vld [vmem:[#allocation2 + $0x1c] sm:$0xf]
        %v1169 = vld [vmem:[#allocation2 + $0x20] sm:$0xf]
        %v1172 = vunpack.c.l.b16 %v1159
        %v1173 = vunpack.c.l.b16 %v1160
        %v1174 = vpack.c.b16 %v1173, %v1172
        %v1184 = vunpack.c.l.b16 %v1161
        %v1185 = vunpack.c.l.b16 %v1162
        %v1186 = vunpack.c.l.b16 %v1163
        %v1187 = vunpack.c.l.b16 %v1164
        %v1188 = vunpack.c.l.b16 %v1165
        %v1189 = vunpack.c.l.b16 %v1166
        %v1190 = vunpack.c.l.b16 %v1167
        %v1191 = vunpack.c.l.b16 %v1168
        %v1192 = vunpack.c.l.b16 %v1169
        %v1193 = vpack.c.b16 %v1185, %v1184
        %v1194 = vpack.c.b16 %v1187, %v1186
        %v1195 = vpack.c.b16 %v1189, %v1188
        %v1196 = vpack.c.b16 %v1191, %v1190
        %v1197 = vpack.c.b16 %v1192, %v1192
        %vm1202 = vcmask 588800
        %v1204 = vsel %vm1202, %v1174, 0
        %vm1206 = vcmask 1043456
        %v1208 = vsel %vm1206, %v1197, 0
        %1210 = vmatpush.bf16.msra.mxu0 0
        %1211 = vmatpush.bf16.msra.mxu0 0
        %1212 = vmatpush.bf16.msra.mxu0 0
        %1213 = vmatpush.bf16.msra.mxu0 %v1208
        %1214 = vmatpush.bf16.msra.mxu0 %v1196
        %1215 = vmatpush.bf16.msra.mxu0 %v1195
        %1216 = vmatpush.bf16.msra.mxu0 %v1194
        %1217 = vmatpush.bf16.msra.mxu0 %v1193
        %1218 = vmatmul.bf16.gmra.mxu0 %v1204
        %v1219 = vpop.f32.mrf.mxu0
        %v1220 = vadd.f32 0.0, %v1219
        %v1221 = vpop.f32.mrf.mxu0
        %v1222 = vadd.f32 0.0, %v1221
        %1223 = vdwg.mxu0
        %v1225 = vperm.slane %v243, 0
        %v1227 = vmul.f32 %v1220, %v1225
        %v1228 = vmul.f32 %v1222, %v1225
        %vm1229 = vcmask 654336
        %v1230 = vsel %vm1229, %v1227, 0.0
        %1231 = vadd.xlane.f32.xlu0 %v1230
        %v1232 = vpop.xlane.xlu0 %1231
        %v1233 = vsel %vm1229, %v1228, 0.0
        %1234 = vadd.xlane.f32.xlu0 %v1233
        %v1235 = vpop.xlane.xlu0 %1234
        %v1236 = vmul.f32 %v1232, 0.015625
        %v1237 = vmul.f32 %v1235, 0.015625
        %v1238 = vmul.f32 %v1227, %v1227
        %v1239 = vmul.f32 %v1228, %v1228
        %v1240 = vsel %vm1229, %v1238, 0.0
        %1241 = vadd.xlane.f32.xlu0 %v1240
        %v1242 = vpop.xlane.xlu0 %1241
        %v1243 = vsel %vm1229, %v1239, 0.0
        %1244 = vadd.xlane.f32.xlu0 %v1243
        %v1245 = vpop.xlane.xlu0 %1244
        %v1246 = vmul.f32 %v1242, 0.015625
        %v1247 = vmul.f32 %v1245, 0.015625
        %v1248 = vmul.f32 %v1236, %v1236
        %v1249 = vmul.f32 %v1237, %v1237
        %v1250 = vsub.f32 %v1246, %v1248
        %v1251 = vsub.f32 %v1247, %v1249
        %v1252 = vmax.f32 %v1250, 0.0
        %v1253 = vmax.f32 %v1251, 0.0
        %v1254 = vsub.f32 %v1227, %v1236
        %v1255 = vsub.f32 %v1228, %v1237
        %v1256 = vadd.f32 %v1252, 1e-05
        %v1257 = vadd.f32 %v1253, 1e-05
        %v1258 = vrsqrt.pop %v1256
        %v1259 = vmul.f32 %v1258, %v1256
        %v1260 = vmul.f32 %v1259, %v1258
        %v1261 = vmul.f32 0.5, %v1260
        %v1262 = vsub.f32 1.5, %v1261
        %v1263 = vmul.f32 %v1258, %v1262
        %vm1264 = vweird.f32 %v1256
        %vm1265 = vweird.f32 %v1258
        %vm1266 = vmor %vm1264, %vm1265
        %v1267 = vsel %vm1266, %v1258, %v1263
        %v1268 = vrsqrt.pop %v1257
        %v1269 = vmul.f32 %v1268, %v1257
        %v1270 = vmul.f32 %v1269, %v1268
        %v1271 = vmul.f32 0.5, %v1270
        %v1272 = vsub.f32 1.5, %v1271
        %v1273 = vmul.f32 %v1268, %v1272
        %vm1274 = vweird.f32 %v1257
        %vm1275 = vweird.f32 %v1268
        %vm1276 = vmor %vm1274, %vm1275
        %v1277 = vsel %vm1276, %v1268, %v1273
        %v1278 = vmul.f32 %v1254, %v1267
        %v1279 = vmul.f32 %v1255, %v1277
        %v1280 = vmax.f32 %v1278, 0.0
        %v1281 = vmax.f32 %v1279, 0.0
        %v1282 = vmul.f32 %v1280, %v1225
        %v1283 = vmul.f32 %v1281, %v1225
        %vm1284 = vcmask 896000
        %1285 = vst.msk [vmem:[#allocation3] sm:$0xf] %vm1284, 0
        %1286 = vst.msk [vmem:[#allocation3 + $0x4] sm:$0xf] %vm1284, 0
        %v1287 = vpack.c.bf16 %v1282, %v1282
        %v1288 = vpack.c.bf16 %v1283, %v1283
        %1291 = vrot.lane.b32.xlu0 %v1287, 11
        %v1292 = vpop.permute.xlu0 %1291
        %1293 = vrot.lane.b32.xlu0 %v1288, 11
        %v1294 = vpop.permute.xlu0 %1293
        %vm1297 = vcmask 740440
        %1298 = vst.msk [vmem:[#allocation3] sm:$0xf] %vm1297, %v1292
        %1299 = vst.msk [vmem:[#allocation3 + $0x4] sm:$0xf] %vm1297, %v1294
        %v1300 = vld [vmem:[#allocation3] sm:$0xf]
        %v1301 = vld [vmem:[#allocation3 + $0x4] sm:$0xf]
        %1302 = vst.msk [vmem:[#allocation4] sm:$0xf] %vm1124, %v1300
        %1303 = vst.msk [vmem:[#allocation4 + $0x4] sm:$0xf] %vm1124, %v1301
        %v1304 = vld [vmem:[#allocation3] sm:$0xf]
        %v1305 = vld [vmem:[#allocation3 + $0x4] sm:$0xf]
        %1308 = vrot.lane.b32.xlu0 %v1304, 127
        %v1309 = vpop.permute.xlu0 %1308
        %1310 = vrot.lane.b32.xlu0 %v1305, 127
        %v1311 = vpop.permute.xlu0 %1310
        %1314 = vst.msk [vmem:[#allocation4 + $0x8] sm:$0xf] %vm1124, %v1309
        %1315 = vst.msk [vmem:[#allocation4 + $0xc] sm:$0xf] %vm1124, %v1311
        %v1316 = vld [vmem:[#allocation3] sm:$0xf]
        %v1317 = vld [vmem:[#allocation3 + $0x4] sm:$0xf]
        %1320 = vrot.lane.b32.xlu0 %v1316, 126
        %v1321 = vpop.permute.xlu0 %1320
        %1322 = vrot.lane.b32.xlu0 %v1317, 126
        %v1323 = vpop.permute.xlu0 %1322
        %1326 = vst.msk [vmem:[#allocation4 + $0x10] sm:$0xf] %vm1124, %v1321
        %1327 = vst.msk [vmem:[#allocation4 + $0x14] sm:$0xf] %vm1124, %v1323
        %v1328 = vld [vmem:[#allocation3] sm:$0xf]
        %v1329 = vld [vmem:[#allocation3 + $0x4] sm:$0xf]
        %1332 = vrot.lane.b32.xlu0 %v1328, 118
        %v1333 = vpop.permute.xlu0 %1332
        %1334 = vrot.lane.b32.xlu0 %v1329, 118
        %v1335 = vpop.permute.xlu0 %1334
        %1338 = vst.msk [vmem:[#allocation4 + $0x18] sm:$0xf] %vm1124, %v1333
        %1339 = vst.msk [vmem:[#allocation4 + $0x1c] sm:$0xf] %vm1124, %v1335
        %v1340 = vld [vmem:[#allocation3] sm:$0xf]
        %v1341 = vld [vmem:[#allocation3 + $0x4] sm:$0xf]
        %1344 = vrot.lane.b32.xlu0 %v1340, 117
        %v1345 = vpop.permute.xlu0 %1344
        %1346 = vrot.lane.b32.xlu0 %v1341, 117
        %v1347 = vpop.permute.xlu0 %1346
        %1350 = vst.msk [vmem:[#allocation4 + $0x20] sm:$0xf] %vm1124, %v1345
        %1351 = vst.msk [vmem:[#allocation4 + $0x24] sm:$0xf] %vm1124, %v1347
        %v1352 = vld [vmem:[#allocation3] sm:$0xf]
        %v1353 = vld [vmem:[#allocation3 + $0x4] sm:$0xf]
        %1356 = vrot.lane.b32.xlu0 %v1352, 116
        %v1357 = vpop.permute.xlu0 %1356
        %1358 = vrot.lane.b32.xlu0 %v1353, 116
        %v1359 = vpop.permute.xlu0 %1358
        %1362 = vst.msk [vmem:[#allocation4 + $0x28] sm:$0xf] %vm1124, %v1357
        %1363 = vst.msk [vmem:[#allocation4 + $0x2c] sm:$0xf] %vm1124, %v1359
        %v1364 = vld [vmem:[#allocation3] sm:$0xf]
        %v1365 = vld [vmem:[#allocation3 + $0x4] sm:$0xf]
        %1368 = vrot.lane.b32.xlu0 %v1364, 108
        %v1369 = vpop.permute.xlu0 %1368
        %1370 = vrot.lane.b32.xlu0 %v1365, 108
        %v1371 = vpop.permute.xlu0 %1370
        %1374 = vst.msk [vmem:[#allocation4 + $0x30] sm:$0xf] %vm1124, %v1369
        %1375 = vst.msk [vmem:[#allocation4 + $0x34] sm:$0xf] %vm1124, %v1371
        %v1376 = vld [vmem:[#allocation3] sm:$0xf]
        %v1377 = vld [vmem:[#allocation3 + $0x4] sm:$0xf]
        %1380 = vrot.lane.b32.xlu0 %v1376, 107
        %v1381 = vpop.permute.xlu0 %1380
        %1382 = vrot.lane.b32.xlu0 %v1377, 107
        %v1383 = vpop.permute.xlu0 %1382
        %1386 = vst.msk [vmem:[#allocation4 + $0x38] sm:$0xf] %vm1124, %v1381
        %1387 = vst.msk [vmem:[#allocation4 + $0x3c] sm:$0xf] %vm1124, %v1383
        %v1388 = vld [vmem:[#allocation3] sm:$0xf]
        %v1389 = vld [vmem:[#allocation3 + $0x4] sm:$0xf]
        %1392 = vrot.lane.b32.xlu0 %v1388, 106
        %v1393 = vpop.permute.xlu0 %1392
        %1394 = vrot.lane.b32.xlu0 %v1389, 106
        %v1395 = vpop.permute.xlu0 %1394
        %1398 = vst.msk [vmem:[#allocation4 + $0x40] sm:$0xf] %vm1124, %v1393
        %1399 = vst.msk [vmem:[#allocation4 + $0x44] sm:$0xf] %vm1124, %v1395
        %v1400 = vld [vmem:[%s3] sm:$0xff]
        %v1401 = vld [vmem:[%s3 + $0x8] sm:$0xff]
        %v1402 = vld [vmem:[#allocation4] sm:$0xf]
        %v1403 = vld [vmem:[#allocation4 + $0x4] sm:$0xf]
        %v1404 = vld [vmem:[#allocation4 + $0x8] sm:$0xf]
        %v1405 = vld [vmem:[#allocation4 + $0xc] sm:$0xf]
        %v1406 = vld [vmem:[#allocation4 + $0x10] sm:$0xf]
        %v1407 = vld [vmem:[#allocation4 + $0x14] sm:$0xf]
        %v1408 = vld [vmem:[#allocation4 + $0x18] sm:$0xf]
        %v1409 = vld [vmem:[#allocation4 + $0x1c] sm:$0xf]
        %v1410 = vld [vmem:[#allocation4 + $0x20] sm:$0xf]
        %v1411 = vld [vmem:[#allocation4 + $0x24] sm:$0xf]
        %v1412 = vld [vmem:[#allocation4 + $0x28] sm:$0xf]
        %v1413 = vld [vmem:[#allocation4 + $0x2c] sm:$0xf]
        %v1414 = vld [vmem:[#allocation4 + $0x30] sm:$0xf]
        %v1415 = vld [vmem:[#allocation4 + $0x34] sm:$0xf]
        %v1416 = vld [vmem:[#allocation4 + $0x38] sm:$0xf]
        %v1417 = vld [vmem:[#allocation4 + $0x3c] sm:$0xf]
        %v1418 = vld [vmem:[#allocation4 + $0x40] sm:$0xf]
        %v1419 = vld [vmem:[#allocation4 + $0x44] sm:$0xf]
        %v1422 = vunpack.c.l.b16 %v1400
        %v1423 = vunpack.c.h.b16 %v1400
        %v1424 = vunpack.c.l.b16 %v1401
        %v1425 = vunpack.c.h.b16 %v1401
        %v1426 = vpack.c.b16 %v1424, %v1422
        %v1427 = vpack.c.b16 %v1425, %v1423
        %v1447 = vunpack.c.l.b16 %v1402
        %v1448 = vunpack.c.l.b16 %v1403
        %v1449 = vunpack.c.l.b16 %v1404
        %v1450 = vunpack.c.l.b16 %v1405
        %v1451 = vunpack.c.l.b16 %v1406
        %v1452 = vunpack.c.l.b16 %v1407
        %v1453 = vunpack.c.l.b16 %v1408
        %v1454 = vunpack.c.l.b16 %v1409
        %v1455 = vunpack.c.l.b16 %v1410
        %v1456 = vunpack.c.l.b16 %v1411
        %v1457 = vunpack.c.l.b16 %v1412
        %v1458 = vunpack.c.l.b16 %v1413
        %v1459 = vunpack.c.l.b16 %v1414
        %v1460 = vunpack.c.l.b16 %v1415
        %v1461 = vunpack.c.l.b16 %v1416
        %v1462 = vunpack.c.l.b16 %v1417
        %v1463 = vunpack.c.l.b16 %v1418
        %v1464 = vunpack.c.l.b16 %v1419
        %v1465 = vpack.c.b16 %v1448, %v1447
        %v1466 = vpack.c.b16 %v1450, %v1449
        %v1467 = vpack.c.b16 %v1452, %v1451
        %v1468 = vpack.c.b16 %v1454, %v1453
        %v1469 = vpack.c.b16 %v1456, %v1455
        %v1470 = vpack.c.b16 %v1458, %v1457
        %v1471 = vpack.c.b16 %v1460, %v1459
        %v1472 = vpack.c.b16 %v1462, %v1461
        %v1473 = vpack.c.b16 %v1464, %v1463
        %vm1483 = vcmask 130048
        %v1485 = vsel %vm1483, %v1427, 0
        %1487 = vmatpush.bf16.msra.mxu0 %v1472
        %1488 = vmatpush.bf16.msra.mxu0 %v1471
        %1489 = vmatpush.bf16.msra.mxu0 %v1470
        %1490 = vmatpush.bf16.msra.mxu0 %v1469
        %1491 = vmatpush.bf16.msra.mxu0 %v1468
        %1492 = vmatpush.bf16.msra.mxu0 %v1467
        %1493 = vmatpush.bf16.msra.mxu0 %v1466
        %1494 = vmatpush.bf16.msra.mxu0 %v1465
        %1495 = vmatmul.bf16.gmra.mxu0 %v1426
        %v1496 = vpop.f32.mrf.mxu0
        %v1497 = vadd.f32 0.0, %v1496
        %v1498 = vpop.f32.mrf.mxu0
        %v1499 = vadd.f32 0.0, %v1498
        %1500 = vdwg.mxu0
        %1501 = vmatpush.bf16.msra.mxu0 0
        %1502 = vmatpush.bf16.msra.mxu0 0
        %1503 = vmatpush.bf16.msra.mxu0 0
        %1504 = vmatpush.bf16.msra.mxu0 0
        %1505 = vmatpush.bf16.msra.mxu0 0
        %1506 = vmatpush.bf16.msra.mxu0 0
        %1507 = vmatpush.bf16.msra.mxu0 0
        %1508 = vmatpush.bf16.msra.mxu0 %v1473
        %1509 = vmatmul.bf16.gmra.mxu0 %v1485
        %v1510 = vpop.f32.mrf.mxu0
        %v1511 = vadd.f32 %v1497, %v1510
        %v1512 = vpop.f32.mrf.mxu0
        %v1513 = vadd.f32 %v1499, %v1512
        %1514 = vdwg.mxu0
        %v1515 = vmul.f32 %v1511, %v1225
        %v1516 = vmul.f32 %v1513, %v1225
        %v1517 = vsel %vm1229, %v1515, 0.0
        %1518 = vadd.xlane.f32.xlu0 %v1517
        %v1519 = vpop.xlane.xlu0 %1518
        %v1520 = vsel %vm1229, %v1516, 0.0
        %1521 = vadd.xlane.f32.xlu0 %v1520
        %v1522 = vpop.xlane.xlu0 %1521
        %v1523 = vmul.f32 %v1519, 0.015625
        %v1524 = vmul.f32 %v1522, 0.015625
        %v1525 = vmul.f32 %v1515, %v1515
        %v1526 = vmul.f32 %v1516, %v1516
        %v1527 = vsel %vm1229, %v1525, 0.0
        %1528 = vadd.xlane.f32.xlu0 %v1527
        %v1529 = vpop.xlane.xlu0 %1528
        %v1530 = vsel %vm1229, %v1526, 0.0
        %1531 = vadd.xlane.f32.xlu0 %v1530
        %v1532 = vpop.xlane.xlu0 %1531
        %v1533 = vmul.f32 %v1529, 0.015625
        %v1534 = vmul.f32 %v1532, 0.015625
        %v1535 = vmul.f32 %v1523, %v1523
        %v1536 = vmul.f32 %v1524, %v1524
        %v1537 = vsub.f32 %v1533, %v1535
        %v1538 = vsub.f32 %v1534, %v1536
        %v1539 = vmax.f32 %v1537, 0.0
        %v1540 = vmax.f32 %v1538, 0.0
        %v1541 = vsub.f32 %v1515, %v1523
        %v1542 = vsub.f32 %v1516, %v1524
        %v1543 = vadd.f32 %v1539, 1e-05
        %v1544 = vadd.f32 %v1540, 1e-05
        %v1545 = vrsqrt.pop %v1543
        %v1546 = vmul.f32 %v1545, %v1543
        %v1547 = vmul.f32 %v1546, %v1545
        %v1548 = vmul.f32 0.5, %v1547
        %v1549 = vsub.f32 1.5, %v1548
        %v1550 = vmul.f32 %v1545, %v1549
        %vm1551 = vweird.f32 %v1543
        %vm1552 = vweird.f32 %v1545
        %vm1553 = vmor %vm1551, %vm1552
        %v1554 = vsel %vm1553, %v1545, %v1550
        %v1555 = vrsqrt.pop %v1544
        %v1556 = vmul.f32 %v1555, %v1544
        %v1557 = vmul.f32 %v1556, %v1555
        %v1558 = vmul.f32 0.5, %v1557
        %v1559 = vsub.f32 1.5, %v1558
        %v1560 = vmul.f32 %v1555, %v1559
        %vm1561 = vweird.f32 %v1544
        %vm1562 = vweird.f32 %v1555
        %vm1563 = vmor %vm1561, %vm1562
        %v1564 = vsel %vm1563, %v1555, %v1560
        %v1565 = vmul.f32 %v1541, %v1554
        %v1566 = vmul.f32 %v1542, %v1564
        %v1567 = vmax.f32 %v1565, 0.0
        %v1568 = vmax.f32 %v1566, 0.0
        %v1569 = vmul.f32 %v1567, %v1225
        %v1570 = vmul.f32 %v1568, %v1225
        %1571 = vst.msk [vmem:[%s241] sm:$0xf] %vm1284, 0
        %1572 = vst.msk [vmem:[%s241 + $0x4] sm:$0xf] %vm1284, 0
        %v1573 = vpack.c.bf16 %v1569, %v1569
        %v1574 = vpack.c.bf16 %v1570, %v1570
        %1577 = vrot.lane.b32.xlu0 %v1573, 11
        %v1578 = vpop.permute.xlu0 %1577
        %1579 = vrot.lane.b32.xlu0 %v1574, 11
        %v1580 = vpop.permute.xlu0 %1579
        %1583 = vst.msk [vmem:[%s241] sm:$0xf] %vm1297, %v1578
        %1584 = vst.msk [vmem:[%s241 + $0x4] sm:$0xf] %vm1297, %v1580
        %p1585 = scmp.lt.s32.totalorder %s17, 1
        %s1586 = scalar_select %p1585, %s17, 1
        %s1587 = smul.addr %s1586, 2
        %s1588 = smul.addr %s1587, 4
        %s1589 = scalar_lea.vmem %s5, %s1588
        // Predicated region
        $region45: #{unet_forward.7} parent=39 // pred_check
          %p1590 = pneg %p145
        $region46: #{unet_forward.7} parent=39 // pred_check_branch
          %1592 = sbr.rel (%p1590) target = $region48
        $region47: #{unet_forward.7} parent=39 // pred_region
          _
        $region48: #{unet_forward.7} parent=39 // pred_fallthru
          _
      $region40: #{unet_forward.7} parent=5 // pred_fallthru
        _
      %p1593 = scmp.le.s32.totalorder 2, %s12
      // Predicated region
      $region49: #{unet_forward.7} parent=5 // pred_check
        %p1594 = pneg %p1593
      $region50: #{unet_forward.7} parent=5 // pred_check_branch
        %1596 = sbr.rel (%p1594) target = $region52
      $region51: #{unet_forward.7} parent=5 // pred_region
        %s1597 = ssub.s32 %s12, 2
        // Predicated region
        $region53: #{unet_forward.7} parent=51 // pred_check
          %p1598 = pneg %p151
        $region54: #{unet_forward.7} parent=51 // pred_check_branch
          %1600 = sbr.rel (%p1598) target = $region56
        $region55: #{unet_forward.7} parent=51 // pred_region
          %p1601 = scmp.lt.s32.totalorder %s18, 1
          %s1602 = scalar_select %p1601, %s18, 1
          %s1603 = smul.addr %s1602, 2
          %s1604 = smul.addr %s1603, 4
          %s1605 = scalar_lea.vmem %s5, %s1604
        $region56: #{unet_forward.7} parent=51 // pred_fallthru
          _
      $region52: #{unet_forward.7} parent=5 // pred_fallthru
        _
    $region6: #{unet_forward.7} parent=1 // loop_footer
      %s16 = sadd.s32 1, %s12
    $region7: #{unet_forward.7} parent=1 // loop_footer_branch
      %11 = sbr.rel target = $region3
    $region8: #{unet_forward.7} parent=1 // loop_exit
      _
    %1606 = vsyncpa [#allocation6], 1
    %s1607 = scalar_lea.sflag [#allocation6], 1
    %1608 = vsyncpa %s1607, 1

// kernel: unet_forward.11
$region0: #{unet_forward.11}
  #allocation0 [shape = 'u32[]', space=smem, size = 0x4, offset = 0x4, fixed_abs, tag = 'smem constant byte address 0x4 - core index']
  #allocation1 [shape = 'u32[72,128]{1,0:T(1,128)}', space=vmem, size = 0x9000, scoped, tag = 'internal scratch']
  %s0 = inlined_call_operand.vmem [shape: bf16[2,8,342], index: 0, kind: input, shape index: {}]
  %s1 = inlined_call_operand.vmem [shape: bf16[4,8], index: 1, kind: input, shape index: {}]
  %s2 = inlined_call_operand.vmem [shape: f32[4,1], index: 2, kind: input, shape index: {}]
  %s3 = inlined_call_operand.vmem [shape: bf16[4,4], index: 3, kind: input, shape index: {}]
  %s4 = inlined_call_operand.vmem [shape: f32[4,1], index: 4, kind: input, shape index: {}]
  %s5 = inlined_call_operand.vmem [shape: bf16[4,4], index: 5, kind: input, shape index: {}]
  %s6 = inlined_call_operand.vmem [shape: f32[4,1], index: 6, kind: input, shape index: {}]
  %s7 = inlined_call_operand.vmem [shape: f32[2,4,342], index: 7, kind: output, shape index: {}]
  %s8 = sld [smem:[#allocation0]]
  $region61: #{unet_forward.11} parent=0
    _
  %s10 = ssub.s32 1, %s8
  %s11 = scalar_select 0, %s10, %s8
  loop: start=0, step=1, limit=4
  $region2: #{unet_forward.11} parent=0 // loop_pre_header
    _
  $region3: #{unet_forward.11} parent=0 // loop_header
    %s13 = sphi 0, %s17
    %p14 = scmp.ge.s32.totalorder %s13, 4
    %s23 = sphi 0, %s25
    %s26 = sphi 0, %s23
    %s27 = sphi 0, %s26
    %s43 = sphi 0, %s27
    %s47 = sphi 0, %s47
    %s49 = sphi 0, %s47
    %s50 = sphi 0, %s49
    %s64 = sphi 0, %s50
    %s68 = sphi 0, %s68
    %s70 = sphi 0, %s68
    %s71 = sphi 0, %s70
    %s85 = sphi 0, %s71
    %s89 = sphi 0, %s89
    %s91 = sphi 0, %s89
    %s92 = sphi 0, %s91
    %s106 = sphi 0, %s92
    %s110 = sphi 0, %s110
    %s112 = sphi 0, %s110
    %s113 = sphi 0, %s112
    %s127 = sphi 0, %s113
    %s131 = sphi 0, %s131
    %s133 = sphi 0, %s131
    %s134 = sphi 0, %s133
    %s148 = sphi 0, %s134
    %s152 = sphi 0, %s152
    %s154 = sphi 0, %s152
    %s155 = sphi 0, %s154
    %s169 = sphi 0, %s155
    %s175 = sphi 0, %s177
    %s178 = sphi 0, %s175
    %s179 = sphi 0, %s178
    %s195 = sphi 0, %s179
  $region4: #{unet_forward.11} parent=0 // loop_header_branch
    %16 = sbr.rel (%p14) target = $region8
  $region5: #{unet_forward.11} parent=0 // loop_body
    %s18 = ssub.s32 %s13, 1
    %s19 = ssub.s32 %s13, 2
    %s20 = sadd.s32 %s13, 1
    %s21 = ssub.s32 %s13, %s20
    %p22 = scmp.eq.s32.totalorder %s21, 0
    %s24 = sadd.s32 %s23, 1
    %s25 = scalar_select %p22, %s23, %s24
    %p28 = pneg %p22
    %p29 = scmp.eq.s32.totalorder %s13, 1
    %p30 = por %p28, %p29
    %p31 = scmp.ne.s32.totalorder %s23, %s26
    %p32 = scmp.eq.s32.totalorder %s13, 0
    %p33 = por %p31, %p32
    %p34 = scmp.ne.s32.totalorder %s23, %s26
    %p35 = scmp.eq.s32.totalorder %s18, 1
    %p36 = por %p34, %p35
    %p37 = scmp.ne.s32.totalorder %s26, %s27
    %p38 = scmp.eq.s32.totalorder %s18, 0
    %p39 = por %p37, %p38
    %p40 = scmp.ne.s32.totalorder %s26, %s27
    %p41 = scmp.eq.s32.totalorder %s19, 1
    %p42 = por %p40, %p41
    %p44 = scmp.ne.s32.totalorder %s27, %s43
    %p45 = scmp.eq.s32.totalorder %s19, 0
    %p46 = por %p44, %p45
    %s48 = sadd.s32 %s47, 1
    %p51 = scmp.eq.s32.totalorder %s13, 1
    %p52 = scmp.ne.s32.totalorder %s47, %s49
    %p53 = scmp.eq.s32.totalorder %s13, 0
    %p54 = por %p52, %p53
    %p55 = scmp.ne.s32.totalorder %s47, %s49
    %p56 = scmp.eq.s32.totalorder %s18, 1
    %p57 = por %p55, %p56
    %p58 = scmp.ne.s32.totalorder %s49, %s50
    %p59 = scmp.eq.s32.totalorder %s18, 0
    %p60 = por %p58, %p59
    %p61 = scmp.ne.s32.totalorder %s49, %s50
    %p62 = scmp.eq.s32.totalorder %s19, 1
    %p63 = por %p61, %p62
    %p65 = scmp.ne.s32.totalorder %s50, %s64
    %p66 = scmp.eq.s32.totalorder %s19, 0
    %p67 = por %p65, %p66
    %s69 = sadd.s32 %s68, 1
    %p72 = scmp.eq.s32.totalorder %s13, 1
    %p73 = scmp.ne.s32.totalorder %s68, %s70
    %p74 = scmp.eq.s32.totalorder %s13, 0
    %p75 = por %p73, %p74
    %p76 = scmp.ne.s32.totalorder %s68, %s70
    %p77 = scmp.eq.s32.totalorder %s18, 1
    %p78 = por %p76, %p77
    %p79 = scmp.ne.s32.totalorder %s70, %s71
    %p80 = scmp.eq.s32.totalorder %s18, 0
    %p81 = por %p79, %p80
    %p82 = scmp.ne.s32.totalorder %s70, %s71
    %p83 = scmp.eq.s32.totalorder %s19, 1
    %p84 = por %p82, %p83
    %p86 = scmp.ne.s32.totalorder %s71, %s85
    %p87 = scmp.eq.s32.totalorder %s19, 0
    %p88 = por %p86, %p87
    %s90 = sadd.s32 %s89, 1
    %p93 = scmp.eq.s32.totalorder %s13, 1
    %p94 = scmp.ne.s32.totalorder %s89, %s91
    %p95 = scmp.eq.s32.totalorder %s13, 0
    %p96 = por %p94, %p95
    %p97 = scmp.ne.s32.totalorder %s89, %s91
    %p98 = scmp.eq.s32.totalorder %s18, 1
    %p99 = por %p97, %p98
    %p100 = scmp.ne.s32.totalorder %s91, %s92
    %p101 = scmp.eq.s32.totalorder %s18, 0
    %p102 = por %p100, %p101
    %p103 = scmp.ne.s32.totalorder %s91, %s92
    %p104 = scmp.eq.s32.totalorder %s19, 1
    %p105 = por %p103, %p104
    %p107 = scmp.ne.s32.totalorder %s92, %s106
    %p108 = scmp.eq.s32.totalorder %s19, 0
    %p109 = por %p107, %p108
    %s111 = sadd.s32 %s110, 1
    %p114 = scmp.eq.s32.totalorder %s13, 1
    %p115 = scmp.ne.s32.totalorder %s110, %s112
    %p116 = scmp.eq.s32.totalorder %s13, 0
    %p117 = por %p115, %p116
    %p118 = scmp.ne.s32.totalorder %s110, %s112
    %p119 = scmp.eq.s32.totalorder %s18, 1
    %p120 = por %p118, %p119
    %p121 = scmp.ne.s32.totalorder %s112, %s113
    %p122 = scmp.eq.s32.totalorder %s18, 0
    %p123 = por %p121, %p122
    %p124 = scmp.ne.s32.totalorder %s112, %s113
    %p125 = scmp.eq.s32.totalorder %s19, 1
    %p126 = por %p124, %p125
    %p128 = scmp.ne.s32.totalorder %s113, %s127
    %p129 = scmp.eq.s32.totalorder %s19, 0
    %p130 = por %p128, %p129
    %s132 = sadd.s32 %s131, 1
    %p135 = scmp.eq.s32.totalorder %s13, 1
    %p136 = scmp.ne.s32.totalorder %s131, %s133
    %p137 = scmp.eq.s32.totalorder %s13, 0
    %p138 = por %p136, %p137
    %p139 = scmp.ne.s32.totalorder %s131, %s133
    %p140 = scmp.eq.s32.totalorder %s18, 1
    %p141 = por %p139, %p140
    %p142 = scmp.ne.s32.totalorder %s133, %s134
    %p143 = scmp.eq.s32.totalorder %s18, 0
    %p144 = por %p142, %p143
    %p145 = scmp.ne.s32.totalorder %s133, %s134
    %p146 = scmp.eq.s32.totalorder %s19, 1
    %p147 = por %p145, %p146
    %p149 = scmp.ne.s32.totalorder %s134, %s148
    %p150 = scmp.eq.s32.totalorder %s19, 0
    %p151 = por %p149, %p150
    %s153 = sadd.s32 %s152, 1
    %p156 = scmp.eq.s32.totalorder %s13, 1
    %p157 = scmp.ne.s32.totalorder %s152, %s154
    %p158 = scmp.eq.s32.totalorder %s13, 0
    %p159 = por %p157, %p158
    %p160 = scmp.ne.s32.totalorder %s152, %s154
    %p161 = scmp.eq.s32.totalorder %s18, 1
    %p162 = por %p160, %p161
    %p163 = scmp.ne.s32.totalorder %s154, %s155
    %p164 = scmp.eq.s32.totalorder %s18, 0
    %p165 = por %p163, %p164
    %p166 = scmp.ne.s32.totalorder %s154, %s155
    %p167 = scmp.eq.s32.totalorder %s19, 1
    %p168 = por %p166, %p167
    %p170 = scmp.ne.s32.totalorder %s155, %s169
    %p171 = scmp.eq.s32.totalorder %s19, 0
    %p172 = por %p170, %p171
    %s173 = ssub.s32 %s13, %s20
    %p174 = scmp.eq.s32.totalorder %s173, 0
    %s176 = sadd.s32 %s175, 1
    %s177 = scalar_select %p174, %s175, %s176
    %p180 = pneg %p174
    %p181 = scmp.eq.s32.totalorder %s13, 1
    %p182 = por %p180, %p181
    %p183 = scmp.ne.s32.totalorder %s175, %s178
    %p184 = scmp.eq.s32.totalorder %s13, 0
    %p185 = por %p183, %p184
    %p186 = scmp.ne.s32.totalorder %s175, %s178
    %p187 = scmp.eq.s32.totalorder %s18, 1
    %p188 = por %p186, %p187
    %p189 = scmp.ne.s32.totalorder %s178, %s179
    %p190 = scmp.eq.s32.totalorder %s18, 0
    %p191 = por %p189, %p190
    %p192 = scmp.ne.s32.totalorder %s178, %s179
    %p193 = scmp.eq.s32.totalorder %s19, 1
    %p194 = por %p192, %p193
    %p196 = scmp.ne.s32.totalorder %s179, %s195
    %p197 = scmp.eq.s32.totalorder %s19, 0
    %p198 = por %p196, %p197
    %p199 = scmp.le.s32.totalorder 1, %s13
    %p200 = scmp.lt.s32.totalorder %s13, 3
    %p201 = pnand %p199, %p200
    %p202 = pneg %p201
    // Predicated region
    $region9: #{unet_forward.11} parent=5 // pred_check
      _
    $region10: #{unet_forward.11} parent=5 // pred_check_branch
      %204 = sbr.rel (%p201) target = $region12
    $region11: #{unet_forward.11} parent=5 // pred_region
      %s205 = ssub.s32 %s13, 1
      // Predicated region
      $region13: #{unet_forward.11} parent=11 // pred_check
        %p206 = pneg %p60
      $region14: #{unet_forward.11} parent=11 // pred_check_branch
        %208 = sbr.rel (%p206) target = $region16
      $region15: #{unet_forward.11} parent=11 // pred_region
        _
      $region16: #{unet_forward.11} parent=11 // pred_fallthru
        _
      // Predicated region
      $region17: #{unet_forward.11} parent=11 // pred_check
        %p209 = pneg %p81
      $region18: #{unet_forward.11} parent=11 // pred_check_branch
        %211 = sbr.rel (%p209) target = $region20
      $region19: #{unet_forward.11} parent=11 // pred_region
        _
      $region20: #{unet_forward.11} parent=11 // pred_fallthru
        _
      // Predicated region
      $region21: #{unet_forward.11} parent=11 // pred_check
        %p212 = pneg %p102
      $region22: #{unet_forward.11} parent=11 // pred_check_branch
        %214 = sbr.rel (%p212) target = $region24
      $region23: #{unet_forward.11} parent=11 // pred_region
        _
      $region24: #{unet_forward.11} parent=11 // pred_fallthru
        _
      // Predicated region
      $region25: #{unet_forward.11} parent=11 // pred_check
        %p215 = pneg %p123
      $region26: #{unet_forward.11} parent=11 // pred_check_branch
        %217 = sbr.rel (%p215) target = $region28
      $region27: #{unet_forward.11} parent=11 // pred_region
        _
      $region28: #{unet_forward.11} parent=11 // pred_fallthru
        _
      // Predicated region
      $region29: #{unet_forward.11} parent=11 // pred_check
        %p218 = pneg %p144
      $region30: #{unet_forward.11} parent=11 // pred_check_branch
        %220 = sbr.rel (%p218) target = $region32
      $region31: #{unet_forward.11} parent=11 // pred_region
        _
      $region32: #{unet_forward.11} parent=11 // pred_fallthru
        _
      // Predicated region
      $region33: #{unet_forward.11} parent=11 // pred_check
        %p221 = pneg %p165
      $region34: #{unet_forward.11} parent=11 // pred_check_branch
        %223 = sbr.rel (%p221) target = $region36
      $region35: #{unet_forward.11} parent=11 // pred_region
        _
      $region36: #{unet_forward.11} parent=11 // pred_fallthru
        _
    $region12: #{unet_forward.11} parent=5 // pred_fallthru
      _
    %p224 = scmp.lt.s32.totalorder %s13, 2
    // Predicated region
    $region37: #{unet_forward.11} parent=5 // pred_check
      %p225 = pneg %p224
    $region38: #{unet_forward.11} parent=5 // pred_check_branch
      %227 = sbr.rel (%p225) target = $region40
    $region39: #{unet_forward.11} parent=5 // pred_region
      // Predicated region
      $region41: #{unet_forward.11} parent=39 // pred_check
        %p228 = pneg %p33
      $region42: #{unet_forward.11} parent=39 // pred_check_branch
        %230 = sbr.rel (%p228) target = $region44
      $region43: #{unet_forward.11} parent=39 // pred_region
        %p231 = scmp.lt.s32.totalorder %s13, 1
        %s232 = scalar_select %p231, %s13, 1
        %s233 = smul.addr %s232, 3
        %s234 = smul.addr %s233, 4
        %s235 = scalar_lea.vmem %s0, %s234
      $region44: #{unet_forward.11} parent=39 // pred_fallthru
        _
    $region40: #{unet_forward.11} parent=5 // pred_fallthru
      _
    %p236 = scmp.le.s32.totalorder 1, %s13
    %p237 = scmp.lt.s32.totalorder %s13, 3
    %p238 = pnand %p236, %p237
    %p239 = pneg %p238
    // Predicated region
    $region45: #{unet_forward.11} parent=5 // pred_check
      _
    $region46: #{unet_forward.11} parent=5 // pred_check_branch
      %241 = sbr.rel (%p238) target = $region48
    $region47: #{unet_forward.11} parent=5 // pred_region
      %s242 = ssub.s32 %s13, 1
      %p243 = scmp.lt.s32.totalorder %s18, 1
      %s244 = scalar_select %p243, %s18, 1
      %s245 = smul.addr %s244, 3
      %s246 = smul.addr %s245, 4
      %s247 = scalar_lea.vmem %s0, %s246
      %p248 = pneg %p39
      %p249 = pneg %p36
      %p250 = pneg %p60
      %p251 = pneg %p57
      %p252 = pneg %p81
      %p253 = pneg %p78
      %p254 = pneg %p102
      %p255 = pneg %p99
      %p256 = pneg %p123
      %p257 = pneg %p120
      %p258 = pneg %p144
      %p259 = pneg %p141
      %p260 = pneg %p165
      %p261 = pneg %p162
      %p262 = pneg %p191
      %p263 = pneg %p188
      %p264 = scmp.lt.s32.totalorder %s18, 1
      %s265 = scalar_select %p264, %s18, 1
      %s266 = smul.addr %s265, 3
      %s267 = smul.addr %s266, 4
      %s268 = scalar_lea.vmem %s7, %s267
      %p269 = scmp.lt.s32.totalorder %s18, 1
      %s270 = scalar_select %p269, %s18, 1
      %s271 = smul.addr %s270, 3
      %s272 = smul.addr %s271, 4
      %s273 = scalar_lea.vmem %s0, %s272
      %p274 = scmp.lt.s32.totalorder %s18, 1
      %s275 = scalar_select %p274, %s18, 1
      %s276 = smul.addr %s275, 3
      %s277 = smul.addr %s276, 4
      %s278 = scalar_lea.vmem %s7, %s277
      %v280 = vld [vmem:[%s273] sm:$0xff]
      %v281 = vld [vmem:[%s273 + $0x8] sm:$0xf]
      %v282 = vld [vmem:[%s1] sm:$0x3]
      %v283 = vld [vmem:[%s2] sm:$0xf]
      %285 = vset.pattern.permute.xlu0 0
      %286 = vperm.xlu0 %285, %v283
      %v287 = vpop.permute.xlu0 %286
      %v291 = vunpack.c.l.b16 %v280
      %v292 = vunpack.c.h.b16 %v280
      %v293 = vunpack.c.l.b16 %v281
      %v294 = vpack.c.b16 %v291, %v291
      %v295 = vpack.c.b16 %v292, %v292
      %v296 = vpack.c.b16 %v293, %v293
      %vm297 = vcmask 64512
      %v299 = vsel %vm297, %v282, 0
      %vm301 = vcmask 1043456
      %v303 = vsel %vm301, %v294, 0
      %v306 = vsel %vm301, %v295, 0
      %v309 = vsel %vm301, %v296, 0
      %311 = vmatpush.bf16.msra.mxu0 0
      %312 = vmatpush.bf16.msra.mxu0 0
      %313 = vmatpush.bf16.msra.mxu0 0
      %314 = vmatpush.bf16.msra.mxu0 0
      %315 = vmatpush.bf16.msra.mxu0 0
      %316 = vmatpush.bf16.msra.mxu0 0
      %317 = vmatpush.bf16.msra.mxu0 0
      %318 = vmatpush.bf16.msra.mxu0 %v303
      %319 = vmatmul.bf16.gmra.mxu0 %v299
      %v320 = vpop.f32.mrf.mxu0
      %v321 = vadd.f32 %v287, %v320
      %v322 = vpop.f32.mrf.mxu0
      %323 = vdwg.mxu0
      %324 = vmatpush.bf16.msra.mxu0 0
      %325 = vmatpush.bf16.msra.mxu0 0
      %326 = vmatpush.bf16.msra.mxu0 0
      %327 = vmatpush.bf16.msra.mxu0 0
      %328 = vmatpush.bf16.msra.mxu0 0
      %329 = vmatpush.bf16.msra.mxu0 0
      %330 = vmatpush.bf16.msra.mxu0 0
      %331 = vmatpush.bf16.msra.mxu0 %v306
      %332 = vmatmul.bf16.gmra.mxu0 %v299
      %v333 = vpop.f32.mrf.mxu0
      %v334 = vadd.f32 %v287, %v333
      %v335 = vpop.f32.mrf.mxu0
      %336 = vdwg.mxu0
      %337 = vmatpush.bf16.msra.mxu0 0
      %338 = vmatpush.bf16.msra.mxu0 0
      %339 = vmatpush.bf16.msra.mxu0 0
      %340 = vmatpush.bf16.msra.mxu0 0
      %341 = vmatpush.bf16.msra.mxu0 0
      %342 = vmatpush.bf16.msra.mxu0 0
      %343 = vmatpush.bf16.msra.mxu0 0
      %344 = vmatpush.bf16.msra.mxu0 %v309
      %345 = vmatmul.bf16.gmra.mxu0 %v299
      %v346 = vpop.f32.mrf.mxu0
      %v347 = vadd.f32 %v287, %v346
      %v348 = vpop.f32.mrf.mxu0
      %349 = vdwg.mxu0
      %v350 = vld [vmem:[%s3] sm:$0x3]
      %v351 = vpack.c.bf16 %v321, %v321
      %v352 = vpack.c.bf16 %v334, %v334
      %v353 = vpack.c.bf16 %v347, %v347
      %v354 = vld [vmem:[%s4] sm:$0xf]
      %356 = vset.pattern.permute.xlu0 0
      %357 = vperm.xlu0 %356, %v354
      %v358 = vpop.permute.xlu0 %357
      %vm360 = vcmask 31744
      %v362 = vsel %vm360, %v350, 0
      %vm364 = vcmask 1041408
      %v366 = vsel %vm364, %v351, 0
      %v369 = vsel %vm364, %v352, 0
      %v372 = vsel %vm364, %v353, 0
      %374 = vmatpush.bf16.msra.mxu0 0
      %375 = vmatpush.bf16.msra.mxu0 0
      %376 = vmatpush.bf16.msra.mxu0 0
      %377 = vmatpush.bf16.msra.mxu0 0
      %378 = vmatpush.bf16.msra.mxu0 0
      %379 = vmatpush.bf16.msra.mxu0 0
      %380 = vmatpush.bf16.msra.mxu0 0
      %381 = vmatpush.bf16.msra.mxu0 %v366
      %382 = vmatmul.bf16.gmra.mxu0 %v362
      %v383 = vpop.f32.mrf.mxu0
      %v384 = vadd.f32 %v358, %v383
      %v385 = vpop.f32.mrf.mxu0
      %386 = vdwg.mxu0
      %387 = vmatpush.bf16.msra.mxu0 0
      %388 = vmatpush.bf16.msra.mxu0 0
      %389 = vmatpush.bf16.msra.mxu0 0
      %390 = vmatpush.bf16.msra.mxu0 0
      %391 = vmatpush.bf16.msra.mxu0 0
      %392 = vmatpush.bf16.msra.mxu0 0
      %393 = vmatpush.bf16.msra.mxu0 0
      %394 = vmatpush.bf16.msra.mxu0 %v369
      %395 = vmatmul.bf16.gmra.mxu0 %v362
      %v396 = vpop.f32.mrf.mxu0
      %v397 = vadd.f32 %v358, %v396
      %v398 = vpop.f32.mrf.mxu0
      %399 = vdwg.mxu0
      %400 = vmatpush.bf16.msra.mxu0 0
      %401 = vmatpush.bf16.msra.mxu0 0
      %402 = vmatpush.bf16.msra.mxu0 0
      %403 = vmatpush.bf16.msra.mxu0 0
      %404 = vmatpush.bf16.msra.mxu0 0
      %405 = vmatpush.bf16.msra.mxu0 0
      %406 = vmatpush.bf16.msra.mxu0 0
      %407 = vmatpush.bf16.msra.mxu0 %v372
      %408 = vmatmul.bf16.gmra.mxu0 %v362
      %v409 = vpop.f32.mrf.mxu0
      %v410 = vadd.f32 %v358, %v409
      %v411 = vpop.f32.mrf.mxu0
      %412 = vdwg.mxu0
      %v413 = vld [vmem:[%s5] sm:$0x3]
      %v414 = vpack.c.bf16 %v384, %v384
      %v415 = vpack.c.bf16 %v397, %v397
      %v416 = vpack.c.bf16 %v410, %v410
      %v417 = vld [vmem:[%s6] sm:$0xf]
      %419 = vset.pattern.permute.xlu0 0
      %420 = vperm.xlu0 %419, %v417
      %v421 = vpop.permute.xlu0 %420
      %v424 = vsel %vm360, %v413, 0
      %v427 = vsel %vm364, %v414, 0
      %v430 = vsel %vm364, %v415, 0
      %v433 = vsel %vm364, %v416, 0
      %435 = vmatpush.bf16.msra.mxu0 0
      %436 = vmatpush.bf16.msra.mxu0 0
      %437 = vmatpush.bf16.msra.mxu0 0
      %438 = vmatpush.bf16.msra.mxu0 0
      %439 = vmatpush.bf16.msra.mxu0 0
      %440 = vmatpush.bf16.msra.mxu0 0
      %441 = vmatpush.bf16.msra.mxu0 0
      %442 = vmatpush.bf16.msra.mxu0 %v427
      %443 = vmatmul.bf16.gmra.mxu0 %v424
      %v444 = vpop.f32.mrf.mxu0
      %v445 = vadd.f32 %v421, %v444
      %v446 = vpop.f32.mrf.mxu0
      %447 = vdwg.mxu0
      %448 = vmatpush.bf16.msra.mxu0 0
      %449 = vmatpush.bf16.msra.mxu0 0
      %450 = vmatpush.bf16.msra.mxu0 0
      %451 = vmatpush.bf16.msra.mxu0 0
      %452 = vmatpush.bf16.msra.mxu0 0
      %453 = vmatpush.bf16.msra.mxu0 0
      %454 = vmatpush.bf16.msra.mxu0 0
      %455 = vmatpush.bf16.msra.mxu0 %v430
      %456 = vmatmul.bf16.gmra.mxu0 %v424
      %v457 = vpop.f32.mrf.mxu0
      %v458 = vadd.f32 %v421, %v457
      %v459 = vpop.f32.mrf.mxu0
      %460 = vdwg.mxu0
      %461 = vmatpush.bf16.msra.mxu0 0
      %462 = vmatpush.bf16.msra.mxu0 0
      %463 = vmatpush.bf16.msra.mxu0 0
      %464 = vmatpush.bf16.msra.mxu0 0
      %465 = vmatpush.bf16.msra.mxu0 0
      %466 = vmatpush.bf16.msra.mxu0 0
      %467 = vmatpush.bf16.msra.mxu0 0
      %468 = vmatpush.bf16.msra.mxu0 %v433
      %469 = vmatmul.bf16.gmra.mxu0 %v424
      %v470 = vpop.f32.mrf.mxu0
      %v471 = vadd.f32 %v421, %v470
      %v472 = vpop.f32.mrf.mxu0
      %473 = vdwg.mxu0
      %v476 = vrot.slane %v458, 4
      %v477 = vsel %vm301, %v445, %v476
      %479 = vst [vmem:[%s278] sm:$0xff] %v477
      %vm480 = vcmask 699392
      %481 = vst.msk [vmem:[%s278 + $0x8] sm:$0xf] %vm480, %v471
      %p482 = scmp.lt.s32.totalorder %s18, 1
      %s483 = scalar_select %p482, %s18, 1
      %s484 = smul.addr %s483, 3
      %s485 = smul.addr %s484, 4
      %s486 = scalar_lea.vmem %s7, %s485
      // Predicated region
      $region49: #{unet_forward.11} parent=47 // pred_check
        %p487 = pneg %p188
      $region50: #{unet_forward.11} parent=47 // pred_check_branch
        %489 = sbr.rel (%p487) target = $region52
      $region51: #{unet_forward.11} parent=47 // pred_region
        _
      $region52: #{unet_forward.11} parent=47 // pred_fallthru
        _
    $region48: #{unet_forward.11} parent=5 // pred_fallthru
      _
    %p490 = scmp.le.s32.totalorder 2, %s13
    // Predicated region
    $region53: #{unet_forward.11} parent=5 // pred_check
      %p491 = pneg %p490
    $region54: #{unet_forward.11} parent=5 // pred_check_branch
      %493 = sbr.rel (%p491) target = $region56
    $region55: #{unet_forward.11} parent=5 // pred_region
      %s494 = ssub.s32 %s13, 2
      // Predicated region
      $region57: #{unet_forward.11} parent=55 // pred_check
        %p495 = pneg %p194
      $region58: #{unet_forward.11} parent=55 // pred_check_branch
        %497 = sbr.rel (%p495) target = $region60
      $region59: #{unet_forward.11} parent=55 // pred_region
        %p498 = scmp.lt.s32.totalorder %s19, 1
        %s499 = scalar_select %p498, %s19, 1
        %s500 = smul.addr %s499, 3
        %s501 = smul.addr %s500, 4
        %s502 = scalar_lea.vmem %s7, %s501
      $region60: #{unet_forward.11} parent=55 // pred_fallthru
        _
    $region56: #{unet_forward.11} parent=5 // pred_fallthru
      _
  $region6: #{unet_forward.11} parent=0 // loop_footer
    %s17 = sadd.s32 1, %s13
  $region7: #{unet_forward.11} parent=0 // loop_footer_branch
    %12 = sbr.rel target = $region3
  $region8: #{unet_forward.11} parent=0 // loop_exit
    _

// kernel: unet_forward.10
$region0: #{unet_forward.10}
  #allocation0 [shape = 'u32[]', space=smem, size = 0x4, offset = 0x4, fixed_abs, tag = 'smem constant byte address 0x4 - core index']
  #allocation1 [shape = 'u32[72,128]{1,0:T(1,128)}', space=vmem, size = 0x9000, scoped, tag = 'internal scratch']
  #allocation2 [shape = 'bf16[144,288]{1,0:T(8,128)(2,1)}', space=vmem, size = 0x1b000, scoped, tag = 'scratch operand']
  #allocation3 [shape = 'bf16[8,342]{1,0:T(8,128)(2,1)}', space=vmem, size = 0x1800, scoped, tag = 'scratch operand']
  #allocation4 [shape = 'bf16[72,288]{1,0:T(8,128)(2,1)}', space=vmem, size = 0xd800, scoped, tag = 'scratch operand']
  %s0 = inlined_call_operand.vmem [shape: bf16[2,8,110], index: 0, kind: input, shape index: {}]
  %s1 = inlined_call_operand.vmem [shape: bf16[2,8,342], index: 1, kind: input, shape index: {}]
  %s2 = inlined_call_operand.vmem [shape: bf16[110,342], index: 2, kind: input, shape index: {}]
  %s3 = inlined_call_operand.hbm [shape: bf16[8,144], index: 3, kind: input, shape index: {}]
  %s4 = inlined_call_operand.hbm [shape: bf16[8,72], index: 4, kind: input, shape index: {}]
  %s5 = inlined_call_operand.vmem [shape: f32[1,288], index: 5, kind: input, shape index: {}]
  %s6 = inlined_call_operand.vmem [shape: bf16[2,8,342], index: 6, kind: output, shape index: {}]
  %s7 = sld [smem:[#allocation0]]
  $region65: #{unet_forward.10} parent=0
    _
  %s9 = ssub.s32 1, %s7
  %s10 = scalar_select 0, %s9, %s7
  $region1: #{unet_forward.10} parent=0
    #allocation5 [shape = 'u8[4096]{0}', space=vmem, size = 0x1000, scoped, tag = 'input window, operand 3, single buffered']
    #allocation6 [shape = 's32[2]{0}', space=sflag, size = 0x8, scoped, tag = 'scoped memory for unet_forward.10']
    #allocation7 [shape = 'u8[2048]{0}', space=vmem, size = 0x800, scoped, tag = 'input window, operand 4, single buffered']
    #allocation8 [shape = 's32[1]{0}', space=sflag, size = 0x4, scoped, tag = 'scoped memory for unet_forward.10']
    %11 = vsyncpa [#allocation6], 0
    %12 = vsyncpa [#allocation8], 0
    loop: start=0, step=1, limit=4
    $region2: #{unet_forward.10} parent=1 // loop_pre_header
      _
    $region3: #{unet_forward.10} parent=1 // loop_header
      %s14 = sphi 0, %s18
      %p15 = scmp.ge.s32.totalorder %s14, 4
      %s24 = sphi 0, %s26
      %s27 = sphi 0, %s24
      %s28 = sphi 0, %s27
      %s44 = sphi 0, %s28
      %s50 = sphi 0, %s52
      %s53 = sphi 0, %s50
      %s54 = sphi 0, %s53
      %s70 = sphi 0, %s54
      %s74 = sphi 0, %s74
      %s76 = sphi 0, %s74
      %s77 = sphi 0, %s76
      %s91 = sphi 0, %s77
      %s95 = sphi 0, %s95
      %s97 = sphi 0, %s95
      %s98 = sphi 0, %s97
      %s112 = sphi 0, %s98
      %s116 = sphi 0, %s116
      %s118 = sphi 0, %s116
      %s119 = sphi 0, %s118
      %s133 = sphi 0, %s119
      %s137 = sphi 0, %s137
      %s139 = sphi 0, %s137
      %s140 = sphi 0, %s139
      %s154 = sphi 0, %s140
      %s160 = sphi 0, %s162
      %s163 = sphi 0, %s160
      %s164 = sphi 0, %s163
      %s180 = sphi 0, %s164
    $region4: #{unet_forward.10} parent=1 // loop_header_branch
      %17 = sbr.rel (%p15) target = $region8
    $region5: #{unet_forward.10} parent=1 // loop_body
      %s19 = ssub.s32 %s14, 1
      %s20 = ssub.s32 %s14, 2
      %s21 = sadd.s32 %s14, 1
      %s22 = ssub.s32 %s14, %s21
      %p23 = scmp.eq.s32.totalorder %s22, 0
      %s25 = sadd.s32 %s24, 1
      %s26 = scalar_select %p23, %s24, %s25
      %p29 = pneg %p23
      %p30 = scmp.eq.s32.totalorder %s14, 1
      %p31 = por %p29, %p30
      %p32 = scmp.ne.s32.totalorder %s24, %s27
      %p33 = scmp.eq.s32.totalorder %s14, 0
      %p34 = por %p32, %p33
      %p35 = scmp.ne.s32.totalorder %s24, %s27
      %p36 = scmp.eq.s32.totalorder %s19, 1
      %p37 = por %p35, %p36
      %p38 = scmp.ne.s32.totalorder %s27, %s28
      %p39 = scmp.eq.s32.totalorder %s19, 0
      %p40 = por %p38, %p39
      %p41 = scmp.ne.s32.totalorder %s27, %s28
      %p42 = scmp.eq.s32.totalorder %s20, 1
      %p43 = por %p41, %p42
      %p45 = scmp.ne.s32.totalorder %s28, %s44
      %p46 = scmp.eq.s32.totalorder %s20, 0
      %p47 = por %p45, %p46
      %s48 = ssub.s32 %s14, %s21
      %p49 = scmp.eq.s32.totalorder %s48, 0
      %s51 = sadd.s32 %s50, 1
      %s52 = scalar_select %p49, %s50, %s51
      %p55 = pneg %p49
      %p56 = scmp.eq.s32.totalorder %s14, 1
      %p57 = por %p55, %p56
      %p58 = scmp.ne.s32.totalorder %s50, %s53
      %p59 = scmp.eq.s32.totalorder %s14, 0
      %p60 = por %p58, %p59
      %p61 = scmp.ne.s32.totalorder %s50, %s53
      %p62 = scmp.eq.s32.totalorder %s19, 1
      %p63 = por %p61, %p62
      %p64 = scmp.ne.s32.totalorder %s53, %s54
      %p65 = scmp.eq.s32.totalorder %s19, 0
      %p66 = por %p64, %p65
      %p67 = scmp.ne.s32.totalorder %s53, %s54
      %p68 = scmp.eq.s32.totalorder %s20, 1
      %p69 = por %p67, %p68
      %p71 = scmp.ne.s32.totalorder %s54, %s70
      %p72 = scmp.eq.s32.totalorder %s20, 0
      %p73 = por %p71, %p72
      %s75 = sadd.s32 %s74, 1
      %p78 = scmp.eq.s32.totalorder %s14, 1
      %p79 = scmp.ne.s32.totalorder %s74, %s76
      %p80 = scmp.eq.s32.totalorder %s14, 0
      %p81 = por %p79, %p80
      %p82 = scmp.ne.s32.totalorder %s74, %s76
      %p83 = scmp.eq.s32.totalorder %s19, 1
      %p84 = por %p82, %p83
      %p85 = scmp.ne.s32.totalorder %s76, %s77
      %p86 = scmp.eq.s32.totalorder %s19, 0
      %p87 = por %p85, %p86
      %p88 = scmp.ne.s32.totalorder %s76, %s77
      %p89 = scmp.eq.s32.totalorder %s20, 1
      %p90 = por %p88, %p89
      %p92 = scmp.ne.s32.totalorder %s77, %s91
      %p93 = scmp.eq.s32.totalorder %s20, 0
      %p94 = por %p92, %p93
      %s96 = sadd.s32 %s95, 1
      %p99 = scmp.eq.s32.totalorder %s14, 1
      %p100 = scmp.ne.s32.totalorder %s95, %s97
      %p101 = scmp.eq.s32.totalorder %s14, 0
      %p102 = por %p100, %p101
      %p103 = scmp.ne.s32.totalorder %s95, %s97
      %p104 = scmp.eq.s32.totalorder %s19, 1
      %p105 = por %p103, %p104
      %p106 = scmp.ne.s32.totalorder %s97, %s98
      %p107 = scmp.eq.s32.totalorder %s19, 0
      %p108 = por %p106, %p107
      %p109 = scmp.ne.s32.totalorder %s97, %s98
      %p110 = scmp.eq.s32.totalorder %s20, 1
      %p111 = por %p109, %p110
      %p113 = scmp.ne.s32.totalorder %s98, %s112
      %p114 = scmp.eq.s32.totalorder %s20, 0
      %p115 = por %p113, %p114
      %s117 = sadd.s32 %s116, 1
      %p120 = scmp.eq.s32.totalorder %s14, 1
      %p121 = scmp.ne.s32.totalorder %s116, %s118
      %p122 = scmp.eq.s32.totalorder %s14, 0
      %p123 = por %p121, %p122
      %p124 = scmp.ne.s32.totalorder %s116, %s118
      %p125 = scmp.eq.s32.totalorder %s19, 1
      %p126 = por %p124, %p125
      %p127 = scmp.ne.s32.totalorder %s118, %s119
      %p128 = scmp.eq.s32.totalorder %s19, 0
      %p129 = por %p127, %p128
      %p130 = scmp.ne.s32.totalorder %s118, %s119
      %p131 = scmp.eq.s32.totalorder %s20, 1
      %p132 = por %p130, %p131
      %p134 = scmp.ne.s32.totalorder %s119, %s133
      %p135 = scmp.eq.s32.totalorder %s20, 0
      %p136 = por %p134, %p135
      %s138 = sadd.s32 %s137, 1
      %p141 = scmp.eq.s32.totalorder %s14, 1
      %p142 = scmp.ne.s32.totalorder %s137, %s139
      %p143 = scmp.eq.s32.totalorder %s14, 0
      %p144 = por %p142, %p143
      %p145 = scmp.ne.s32.totalorder %s137, %s139
      %p146 = scmp.eq.s32.totalorder %s19, 1
      %p147 = por %p145, %p146
      %p148 = scmp.ne.s32.totalorder %s139, %s140
      %p149 = scmp.eq.s32.totalorder %s19, 0
      %p150 = por %p148, %p149
      %p151 = scmp.ne.s32.totalorder %s139, %s140
      %p152 = scmp.eq.s32.totalorder %s20, 1
      %p153 = por %p151, %p152
      %p155 = scmp.ne.s32.totalorder %s140, %s154
      %p156 = scmp.eq.s32.totalorder %s20, 0
      %p157 = por %p155, %p156
      %s158 = ssub.s32 %s14, %s21
      %p159 = scmp.eq.s32.totalorder %s158, 0
      %s161 = sadd.s32 %s160, 1
      %s162 = scalar_select %p159, %s160, %s161
      %p165 = pneg %p159
      %p166 = scmp.eq.s32.totalorder %s14, 1
      %p167 = por %p165, %p166
      %p168 = scmp.ne.s32.totalorder %s160, %s163
      %p169 = scmp.eq.s32.totalorder %s14, 0
      %p170 = por %p168, %p169
      %p171 = scmp.ne.s32.totalorder %s160, %s163
      %p172 = scmp.eq.s32.totalorder %s19, 1
      %p173 = por %p171, %p172
      %p174 = scmp.ne.s32.totalorder %s163, %s164
      %p175 = scmp.eq.s32.totalorder %s19, 0
      %p176 = por %p174, %p175
      %p177 = scmp.ne.s32.totalorder %s163, %s164
      %p178 = scmp.eq.s32.totalorder %s20, 1
      %p179 = por %p177, %p178
      %p181 = scmp.ne.s32.totalorder %s164, %s180
      %p182 = scmp.eq.s32.totalorder %s20, 0
      %p183 = por %p181, %p182
      %p184 = scmp.le.s32.totalorder 1, %s14
      %p185 = scmp.lt.s32.totalorder %s14, 3
      %p186 = pnand %p184, %p185
      %p187 = pneg %p186
      // Predicated region
      $region9: #{unet_forward.10} parent=5 // pred_check
        _
      $region10: #{unet_forward.10} parent=5 // pred_check_branch
        %189 = sbr.rel (%p186) target = $region12
      $region11: #{unet_forward.10} parent=5 // pred_region
        %s190 = ssub.s32 %s14, 1
        // Predicated region
        $region13: #{unet_forward.10} parent=11 // pred_check
          %p191 = pneg %p87
        $region14: #{unet_forward.10} parent=11 // pred_check_branch
          %193 = sbr.rel (%p191) target = $region16
        $region15: #{unet_forward.10} parent=11 // pred_region
          _
        $region16: #{unet_forward.10} parent=11 // pred_fallthru
          _
        // Predicated region
        $region17: #{unet_forward.10} parent=11 // pred_check
          %p194 = pneg %p108
        $region18: #{unet_forward.10} parent=11 // pred_check_branch
          %196 = sbr.rel (%p194) target = $region20
        $region19: #{unet_forward.10} parent=11 // pred_region
          %198 = vsyncadd [#allocation6], 0
          %s200 = sshll.u32 %s3, 4
          %s201 = int_to_ptr.hbm [resolvable:$true] %s200
          %s202 = sshll.u32 [#allocation5], 4
          %s203 = int_to_ptr.vmem [resolvable:$true] %s202
          %205 = dma.hbm_to_vmem [thread:$0]  %s201, 128, %s203, [#allocation6]
        $region20: #{unet_forward.10} parent=11 // pred_fallthru
          _
        // Predicated region
        $region21: #{unet_forward.10} parent=11 // pred_check
          %p206 = pneg %p129
        $region22: #{unet_forward.10} parent=11 // pred_check_branch
          %208 = sbr.rel (%p206) target = $region24
        $region23: #{unet_forward.10} parent=11 // pred_region
          %210 = vsyncadd [#allocation8], 0
          %s212 = sshll.u32 %s4, 4
          %s213 = int_to_ptr.hbm [resolvable:$true] %s212
          %s214 = sshll.u32 [#allocation7], 4
          %s215 = int_to_ptr.vmem [resolvable:$true] %s214
          %217 = dma.hbm_to_vmem [thread:$0]  %s213, 64, %s215, [#allocation8]
        $region24: #{unet_forward.10} parent=11 // pred_fallthru
          _
        // Predicated region
        $region25: #{unet_forward.10} parent=11 // pred_check
          %p218 = pneg %p150
        $region26: #{unet_forward.10} parent=11 // pred_check_branch
          %220 = sbr.rel (%p218) target = $region28
        $region27: #{unet_forward.10} parent=11 // pred_region
          _
        $region28: #{unet_forward.10} parent=11 // pred_fallthru
          _
      $region12: #{unet_forward.10} parent=5 // pred_fallthru
        _
      %p221 = scmp.lt.s32.totalorder %s14, 2
      // Predicated region
      $region29: #{unet_forward.10} parent=5 // pred_check
        %p222 = pneg %p221
      $region30: #{unet_forward.10} parent=5 // pred_check_branch
        %224 = sbr.rel (%p222) target = $region32
      $region31: #{unet_forward.10} parent=5 // pred_region
        // Predicated region
        $region33: #{unet_forward.10} parent=31 // pred_check
          %p225 = pneg %p34
        $region34: #{unet_forward.10} parent=31 // pred_check_branch
          %227 = sbr.rel (%p225) target = $region36
        $region35: #{unet_forward.10} parent=31 // pred_region
          %p228 = scmp.lt.s32.totalorder %s14, 1
          %s229 = scalar_select %p228, %s14, 1
          %s230 = smul.addr %s229, 4
          %s231 = scalar_lea.vmem %s0, %s230
        $region36: #{unet_forward.10} parent=31 // pred_fallthru
          _
        // Predicated region
        $region37: #{unet_forward.10} parent=31 // pred_check
          %p232 = pneg %p60
        $region38: #{unet_forward.10} parent=31 // pred_check_branch
          %234 = sbr.rel (%p232) target = $region40
        $region39: #{unet_forward.10} parent=31 // pred_region
          %p235 = scmp.lt.s32.totalorder %s14, 1
          %s236 = scalar_select %p235, %s14, 1
          %s237 = smul.addr %s236, 3
          %s238 = smul.addr %s237, 4
          %s239 = scalar_lea.vmem %s1, %s238
        $region40: #{unet_forward.10} parent=31 // pred_fallthru
          _
      $region32: #{unet_forward.10} parent=5 // pred_fallthru
        _
      %p240 = scmp.le.s32.totalorder 1, %s14
      %p241 = scmp.lt.s32.totalorder %s14, 3
      %p242 = pnand %p240, %p241
      %p243 = pneg %p242
      // Predicated region
      $region41: #{unet_forward.10} parent=5 // pred_check
        _
      $region42: #{unet_forward.10} parent=5 // pred_check_branch
        %245 = sbr.rel (%p242) target = $region44
      $region43: #{unet_forward.10} parent=5 // pred_region
        %s246 = ssub.s32 %s14, 1
        // Predicated region
        $region45: #{unet_forward.10} parent=43 // pred_check
          %p247 = pneg %p108
        $region46: #{unet_forward.10} parent=43 // pred_check_branch
          %249 = sbr.rel (%p247) target = $region48
        $region47: #{unet_forward.10} parent=43 // pred_region
          %251 = dma.done [#allocation6], 128
        $region48: #{unet_forward.10} parent=43 // pred_fallthru
          _
        // Predicated region
        $region49: #{unet_forward.10} parent=43 // pred_check
          %p252 = pneg %p129
        $region50: #{unet_forward.10} parent=43 // pred_check_branch
          %254 = sbr.rel (%p252) target = $region52
        $region51: #{unet_forward.10} parent=43 // pred_region
          %256 = dma.done [#allocation8], 64
        $region52: #{unet_forward.10} parent=43 // pred_fallthru
          _
        %p257 = scmp.lt.s32.totalorder %s19, 1
        %s258 = scalar_select %p257, %s19, 1
        %s259 = smul.addr %s258, 4
        %s260 = scalar_lea.vmem %s0, %s259
        %p261 = pneg %p40
        %p262 = pneg %p37
        %p263 = scmp.lt.s32.totalorder %s19, 1
        %s264 = scalar_select %p263, %s19, 1
        %s265 = smul.addr %s264, 3
        %s266 = smul.addr %s265, 4
        %s267 = scalar_lea.vmem %s1, %s266
        %p268 = pneg %p66
        %p269 = pneg %p63
        %p270 = pneg %p87
        %p271 = pneg %p84
        %p272 = pneg %p108
        %p273 = pneg %p105
        %p274 = pneg %p129
        %p275 = pneg %p126
        %p276 = pneg %p150
        %p277 = pneg %p147
        %p278 = pneg %p176
        %p279 = pneg %p173
        %p280 = scmp.lt.s32.totalorder %s19, 1
        %s281 = scalar_select %p280, %s19, 1
        %s282 = smul.addr %s281, 3
        %s283 = smul.addr %s282, 4
        %s284 = scalar_lea.vmem %s6, %s283
        %p285 = scmp.lt.s32.totalorder %s19, 1
        %s286 = scalar_select %p285, %s19, 1
        %s287 = smul.addr %s286, 4
        %s288 = scalar_lea.vmem %s0, %s287
        %p289 = scmp.lt.s32.totalorder %s19, 1
        %s290 = scalar_select %p289, %s19, 1
        %s291 = smul.addr %s290, 3
        %s292 = smul.addr %s291, 4
        %s293 = scalar_lea.vmem %s1, %s292
        %p294 = scmp.lt.s32.totalorder %s19, 1
        %s295 = scalar_select %p294, %s19, 1
        %s296 = smul.addr %s295, 3
        %s297 = smul.addr %s296, 4
        %s298 = scalar_lea.vmem %s6, %s297
        %v300 = vld [vmem:[%s5] sm:$0x7]
        %v301 = vld [vmem:[%s288] sm:$0xf]
        %v302 = vld [vmem:[%s2] sm:$0xff]
        %v303 = vld [vmem:[%s2 + $0x8] sm:$0xf]
        %v304 = vld [vmem:[%s2 + $0xc] sm:$0xff]
        %v305 = vld [vmem:[%s2 + $0x14] sm:$0xf]
        %v306 = vld [vmem:[%s2 + $0x18] sm:$0xff]
        %v307 = vld [vmem:[%s2 + $0x20] sm:$0xf]
        %v308 = vld [vmem:[%s2 + $0x24] sm:$0xff]
        %v309 = vld [vmem:[%s2 + $0x2c] sm:$0xf]
        %v310 = vld [vmem:[%s2 + $0x30] sm:$0xff]
        %v311 = vld [vmem:[%s2 + $0x38] sm:$0xf]
        %v312 = vld [vmem:[%s2 + $0x3c] sm:$0xff]
        %v313 = vld [vmem:[%s2 + $0x44] sm:$0xf]
        %v314 = vld [vmem:[%s2 + $0x48] sm:$0xff]
        %v315 = vld [vmem:[%s2 + $0x50] sm:$0xf]
        %v316 = vld [vmem:[%s2 + $0x54] sm:$0xff]
        %v317 = vld [vmem:[%s2 + $0x5c] sm:$0xf]
        %v318 = vld [vmem:[%s2 + $0x60] sm:$0xff]
        %v319 = vld [vmem:[%s2 + $0x68] sm:$0xf]
        %v320 = vld [vmem:[%s2 + $0x6c] sm:$0xff]
        %v321 = vld [vmem:[%s2 + $0x74] sm:$0xf]
        %v322 = vld [vmem:[%s2 + $0x78] sm:$0xff]
        %v323 = vld [vmem:[%s2 + $0x80] sm:$0xf]
        %v324 = vld [vmem:[%s2 + $0x84] sm:$0xff]
        %v325 = vld [vmem:[%s2 + $0x8c] sm:$0xf]
        %v326 = vld [vmem:[%s2 + $0x90] sm:$0xff]
        %v327 = vld [vmem:[%s2 + $0x98] sm:$0xf]
        %v328 = vld [vmem:[%s2 + $0x9c] sm:$0x77]
        %v329 = vld [vmem:[%s2 + $0xa4] sm:$0x7]
        %v358 = vunpack.c.l.b16 %v302
        %v359 = vunpack.c.h.b16 %v302
        %v360 = vunpack.c.l.b16 %v303
        %v361 = vunpack.c.l.b16 %v304
        %v362 = vunpack.c.h.b16 %v304
        %v363 = vunpack.c.l.b16 %v305
        %v364 = vunpack.c.l.b16 %v306
        %v365 = vunpack.c.h.b16 %v306
        %v366 = vunpack.c.l.b16 %v307
        %v367 = vunpack.c.l.b16 %v308
        %v368 = vunpack.c.h.b16 %v308
        %v369 = vunpack.c.l.b16 %v309
        %v370 = vunpack.c.l.b16 %v310
        %v371 = vunpack.c.h.b16 %v310
        %v372 = vunpack.c.l.b16 %v311
        %v373 = vunpack.c.l.b16 %v312
        %v374 = vunpack.c.h.b16 %v312
        %v375 = vunpack.c.l.b16 %v313
        %v376 = vunpack.c.l.b16 %v314
        %v377 = vunpack.c.h.b16 %v314
        %v378 = vunpack.c.l.b16 %v315
        %v379 = vunpack.c.l.b16 %v316
        %v380 = vunpack.c.h.b16 %v316
        %v381 = vunpack.c.l.b16 %v317
        %v382 = vunpack.c.l.b16 %v318
        %v383 = vunpack.c.h.b16 %v318
        %v384 = vunpack.c.l.b16 %v319
        %v385 = vunpack.c.l.b16 %v320
        %v386 = vunpack.c.h.b16 %v320
        %v387 = vunpack.c.l.b16 %v321
        %v388 = vunpack.c.l.b16 %v322
        %v389 = vunpack.c.h.b16 %v322
        %v390 = vunpack.c.l.b16 %v323
        %v391 = vunpack.c.l.b16 %v324
        %v392 = vunpack.c.h.b16 %v324
        %v393 = vunpack.c.l.b16 %v325
        %v394 = vunpack.c.l.b16 %v326
        %v395 = vunpack.c.h.b16 %v326
        %v396 = vunpack.c.l.b16 %v327
        %v397 = vunpack.c.l.b16 %v328
        %v398 = vunpack.c.h.b16 %v328
        %v399 = vunpack.c.l.b16 %v329
        %v400 = vpack.c.b16 %v361, %v358
        %v401 = vpack.c.b16 %v362, %v359
        %v402 = vpack.c.b16 %v363, %v360
        %v403 = vpack.c.b16 %v367, %v364
        %v404 = vpack.c.b16 %v368, %v365
        %v405 = vpack.c.b16 %v369, %v366
        %v406 = vpack.c.b16 %v373, %v370
        %v407 = vpack.c.b16 %v374, %v371
        %v408 = vpack.c.b16 %v375, %v372
        %v409 = vpack.c.b16 %v379, %v376
        %v410 = vpack.c.b16 %v380, %v377
        %v411 = vpack.c.b16 %v381, %v378
        %v412 = vpack.c.b16 %v385, %v382
        %v413 = vpack.c.b16 %v386, %v383
        %v414 = vpack.c.b16 %v387, %v384
        %v415 = vpack.c.b16 %v391, %v388
        %v416 = vpack.c.b16 %v392, %v389
        %v417 = vpack.c.b16 %v393, %v390
        %v418 = vpack.c.b16 %v397, %v394
        %v419 = vpack.c.b16 %v398, %v395
        %v420 = vpack.c.b16 %v399, %v396
        %vm439 = vcmask 900096
        %v441 = vsel %vm439, %v301, 0
        %vm443 = vcmask 1046528
        %v445 = vsel %vm443, %v418, 0
        %v448 = vsel %vm443, %v419, 0
        %v451 = vsel %vm443, %v420, 0
        %453 = vmatpush.bf16.msra.mxu0 0
        %454 = vmatpush.bf16.msra.mxu0 %v445
        %455 = vmatpush.bf16.msra.mxu0 %v415
        %456 = vmatpush.bf16.msra.mxu0 %v412
        %457 = vmatpush.bf16.msra.mxu0 %v409
        %458 = vmatpush.bf16.msra.mxu0 %v406
        %459 = vmatpush.bf16.msra.mxu0 %v403
        %460 = vmatpush.bf16.msra.mxu0 %v400
        %461 = vmatmul.bf16.gmra.mxu0 %v441
        %v462 = vpop.f32.mrf.mxu0
        %v463 = vadd.f32 0.0, %v462
        %v464 = vpop.f32.mrf.mxu0
        %465 = vdwg.mxu0
        %466 = vmatpush.bf16.msra.mxu0 0
        %467 = vmatpush.bf16.msra.mxu0 %v448
        %468 = vmatpush.bf16.msra.mxu0 %v416
        %469 = vmatpush.bf16.msra.mxu0 %v413
        %470 = vmatpush.bf16.msra.mxu0 %v410
        %471 = vmatpush.bf16.msra.mxu0 %v407
        %472 = vmatpush.bf16.msra.mxu0 %v404
        %473 = vmatpush.bf16.msra.mxu0 %v401
        %474 = vmatmul.bf16.gmra.mxu0 %v441
        %v475 = vpop.f32.mrf.mxu0
        %v476 = vadd.f32 0.0, %v475
        %v477 = vpop.f32.mrf.mxu0
        %478 = vdwg.mxu0
        %479 = vmatpush.bf16.msra.mxu0 0
        %480 = vmatpush.bf16.msra.mxu0 %v451
        %481 = vmatpush.bf16.msra.mxu0 %v417
        %482 = vmatpush.bf16.msra.mxu0 %v414
        %483 = vmatpush.bf16.msra.mxu0 %v411
        %484 = vmatpush.bf16.msra.mxu0 %v408
        %485 = vmatpush.bf16.msra.mxu0 %v405
        %486 = vmatpush.bf16.msra.mxu0 %v402
        %487 = vmatmul.bf16.gmra.mxu0 %v441
        %v488 = vpop.f32.mrf.mxu0
        %v489 = vadd.f32 0.0, %v488
        %v490 = vpop.f32.mrf.mxu0
        %491 = vdwg.mxu0
        %v492 = vpack.c.bf16 %v476, %v463
        %v493 = vpack.c.bf16 %v489, %v489
        %494 = vst [vmem:[#allocation2] sm:$0xff] %v492
        %vm495 = vcmask 257024
        %496 = vst.msk [vmem:[#allocation2 + $0x8] sm:$0xf] %vm495, %v493
        %499 = vrot.lane.b32.xlu0 %v492, 127
        %v500 = vpop.permute.xlu0 %499
        %501 = vrot.lane.b32.xlu0 %v493, 127
        %v502 = vpop.permute.xlu0 %501
        %v503 = vrot.slane %v500, 4
        %v504 = vrot.slane %v502, 4
        %vm505 = vcmask 1043456
        %v506 = vsel %vm505, %v503, %v504
        %vm507 = vcmask 1039360
        %v508 = vsel %vm507, %v500, %v506
        %511 = vst [vmem:[#allocation2 + $0xc] sm:$0xff] %v508
        %512 = vst.msk [vmem:[#allocation2 + $0x14] sm:$0xf] %vm495, %v502
        %513 = vrot.lane.b32.xlu0 %v492, 126
        %v514 = vpop.permute.xlu0 %513
        %515 = vrot.lane.b32.xlu0 %v493, 126
        %v516 = vpop.permute.xlu0 %515
        %v517 = vrot.slane %v514, 4
        %v518 = vrot.slane %v516, 4
        %v519 = vsel %vm505, %v517, %v518
        %vm520 = vcmask 1031168
        %v521 = vsel %vm520, %v514, %v519
        %524 = vst [vmem:[#allocation2 + $0x18] sm:$0xff] %v521
        %525 = vst.msk [vmem:[#allocation2 + $0x20] sm:$0xf] %vm495, %v516
        %526 = vrot.lane.b32.xlu0 %v492, 110
        %v527 = vpop.permute.xlu0 %526
        %528 = vrot.lane.b32.xlu0 %v493, 110
        %v529 = vpop.permute.xlu0 %528
        %v530 = vrot.slane %v527, 4
        %v531 = vrot.slane %v529, 4
        %v532 = vsel %vm505, %v530, %v531
        %vm533 = vcmask 900096
        %v534 = vsel %vm533, %v527, %v532
        %537 = vst [vmem:[#allocation2 + $0x24] sm:$0xff] %v534
        %538 = vst.msk [vmem:[#allocation2 + $0x2c] sm:$0xf] %vm495, %v529
        %539 = vrot.lane.b32.xlu0 %v492, 109
        %v540 = vpop.permute.xlu0 %539
        %541 = vrot.lane.b32.xlu0 %v493, 109
        %v542 = vpop.permute.xlu0 %541
        %v543 = vrot.slane %v540, 4
        %v544 = vrot.slane %v542, 4
        %v545 = vsel %vm505, %v543, %v544
        %vm546 = vcmask 891904
        %v547 = vsel %vm546, %v540, %v545
        %550 = vst [vmem:[#allocation2 + $0x30] sm:$0xff] %v547
        %551 = vst.msk [vmem:[#allocation2 + $0x38] sm:$0xf] %vm495, %v542
        %552 = vrot.lane.b32.xlu0 %v492, 108
        %v553 = vpop.permute.xlu0 %552
        %554 = vrot.lane.b32.xlu0 %v493, 108
        %v555 = vpop.permute.xlu0 %554
        %v556 = vrot.slane %v553, 4
        %v557 = vrot.slane %v555, 4
        %v558 = vsel %vm505, %v556, %v557
        %vm559 = vcmask 883712
        %v560 = vsel %vm559, %v553, %v558
        %563 = vst [vmem:[#allocation2 + $0x3c] sm:$0xff] %v560
        %564 = vst.msk [vmem:[#allocation2 + $0x44] sm:$0xf] %vm495, %v555
        %565 = vrot.lane.b32.xlu0 %v492, 92
        %v566 = vpop.permute.xlu0 %565
        %567 = vrot.lane.b32.xlu0 %v493, 92
        %v568 = vpop.permute.xlu0 %567
        %v569 = vrot.slane %v566, 4
        %v570 = vrot.slane %v568, 4
        %v571 = vsel %vm505, %v569, %v570
        %vm572 = vcmask 752640
        %v573 = vsel %vm572, %v566, %v571
        %576 = vst [vmem:[#allocation2 + $0x48] sm:$0xff] %v573
        %577 = vst.msk [vmem:[#allocation2 + $0x50] sm:$0xf] %vm495, %v568
        %578 = vrot.lane.b32.xlu0 %v492, 91
        %v579 = vpop.permute.xlu0 %578
        %580 = vrot.lane.b32.xlu0 %v493, 91
        %v581 = vpop.permute.xlu0 %580
        %v582 = vrot.slane %v579, 4
        %v583 = vrot.slane %v581, 4
        %v584 = vsel %vm505, %v582, %v583
        %vm585 = vcmask 744448
        %v586 = vsel %vm585, %v579, %v584
        %589 = vst [vmem:[#allocation2 + $0x54] sm:$0xff] %v586
        %590 = vst.msk [vmem:[#allocation2 + $0x5c] sm:$0xf] %vm495, %v581
        %591 = vrot.lane.b32.xlu0 %v492, 90
        %v592 = vpop.permute.xlu0 %591
        %593 = vrot.lane.b32.xlu0 %v493, 90
        %v594 = vpop.permute.xlu0 %593
        %v595 = vrot.slane %v592, 4
        %v596 = vrot.slane %v594, 4
        %v597 = vsel %vm505, %v595, %v596
        %vm598 = vcmask 736256
        %v599 = vsel %vm598, %v592, %v597
        %602 = vst [vmem:[#allocation2 + $0x60] sm:$0xff] %v599
        %603 = vst.msk [vmem:[#allocation2 + $0x68] sm:$0xf] %vm495, %v594
        %v604 = vld [vmem:[%s293] sm:$0xff]
        %v605 = vld [vmem:[%s293 + $0x8] sm:$0xf]
        %606 = vst [vmem:[#allocation2 + $0x6c] sm:$0xff] %v604
        %607 = vst.msk [vmem:[#allocation2 + $0x74] sm:$0xf] %vm495, %v605
        %v608 = vld [vmem:[%s293] sm:$0xff]
        %v609 = vld [vmem:[%s293 + $0x8] sm:$0xf]
        %612 = vrot.lane.b32.xlu0 %v608, 127
        %v613 = vpop.permute.xlu0 %612
        %614 = vrot.lane.b32.xlu0 %v609, 127
        %v615 = vpop.permute.xlu0 %614
        %v616 = vrot.slane %v613, 4
        %v617 = vrot.slane %v615, 4
        %v618 = vsel %vm505, %v616, %v617
        %v619 = vsel %vm507, %v613, %v618
        %622 = vst [vmem:[#allocation2 + $0x78] sm:$0xff] %v619
        %623 = vst.msk [vmem:[#allocation2 + $0x80] sm:$0xf] %vm495, %v615
        %v624 = vld [vmem:[%s293] sm:$0xff]
        %v625 = vld [vmem:[%s293 + $0x8] sm:$0xf]
        %628 = vrot.lane.b32.xlu0 %v624, 126
        %v629 = vpop.permute.xlu0 %628
        %630 = vrot.lane.b32.xlu0 %v625, 126
        %v631 = vpop.permute.xlu0 %630
        %v632 = vrot.slane %v629, 4
        %v633 = vrot.slane %v631, 4
        %v634 = vsel %vm505, %v632, %v633
        %v635 = vsel %vm520, %v629, %v634
        %638 = vst [vmem:[#allocation2 + $0x84] sm:$0xff] %v635
        %639 = vst.msk [vmem:[#allocation2 + $0x8c] sm:$0xf] %vm495, %v631
        %v640 = vld [vmem:[%s293] sm:$0xff]
        %v641 = vld [vmem:[%s293 + $0x8] sm:$0xf]
        %644 = vrot.lane.b32.xlu0 %v640, 110
        %v645 = vpop.permute.xlu0 %644
        %646 = vrot.lane.b32.xlu0 %v641, 110
        %v647 = vpop.permute.xlu0 %646
        %v648 = vrot.slane %v645, 4
        %v649 = vrot.slane %v647, 4
        %v650 = vsel %vm505, %v648, %v649
        %v651 = vsel %vm533, %v645, %v650
        %654 = vst [vmem:[#allocation2 + $0x90] sm:$0xff] %v651
        %655 = vst.msk [vmem:[#allocation2 + $0x98] sm:$0xf] %vm495, %v647
        %v656 = vld [vmem:[%s293] sm:$0xff]
        %v657 = vld [vmem:[%s293 + $0x8] sm:$0xf]
        %660 = vrot.lane.b32.xlu0 %v656, 109
        %v661 = vpop.permute.xlu0 %660
        %662 = vrot.lane.b32.xlu0 %v657, 109
        %v663 = vpop.permute.xlu0 %662
        %v664 = vrot.slane %v661, 4
        %v665 = vrot.slane %v663, 4
        %v666 = vsel %vm505, %v664, %v665
        %v667 = vsel %vm546, %v661, %v666
        %670 = vst [vmem:[#allocation2 + $0x9c] sm:$0xff] %v667
        %671 = vst.msk [vmem:[#allocation2 + $0xa4] sm:$0xf] %vm495, %v663
        %v672 = vld [vmem:[%s293] sm:$0xff]
        %v673 = vld [vmem:[%s293 + $0x8] sm:$0xf]
        %676 = vrot.lane.b32.xlu0 %v672, 108
        %v677 = vpop.permute.xlu0 %676
        %678 = vrot.lane.b32.xlu0 %v673, 108
        %v679 = vpop.permute.xlu0 %678
        %v680 = vrot.slane %v677, 4
        %v681 = vrot.slane %v679, 4
        %v682 = vsel %vm505, %v680, %v681
        %v683 = vsel %vm559, %v677, %v682
        %686 = vst [vmem:[#allocation2 + $0xa8] sm:$0xff] %v683
        %687 = vst.msk [vmem:[#allocation2 + $0xb0] sm:$0xf] %vm495, %v679
        %v688 = vld [vmem:[%s293] sm:$0xff]
        %v689 = vld [vmem:[%s293 + $0x8] sm:$0xf]
        %692 = vrot.lane.b32.xlu0 %v688, 92
        %v693 = vpop.permute.xlu0 %692
        %694 = vrot.lane.b32.xlu0 %v689, 92
        %v695 = vpop.permute.xlu0 %694
        %v696 = vrot.slane %v693, 4
        %v697 = vrot.slane %v695, 4
        %v698 = vsel %vm505, %v696, %v697
        %v699 = vsel %vm572, %v693, %v698
        %702 = vst [vmem:[#allocation2 + $0xb4] sm:$0xff] %v699
        %703 = vst.msk [vmem:[#allocation2 + $0xbc] sm:$0xf] %vm495, %v695
        %v704 = vld [vmem:[%s293] sm:$0xff]
        %v705 = vld [vmem:[%s293 + $0x8] sm:$0xf]
        %708 = vrot.lane.b32.xlu0 %v704, 91
        %v709 = vpop.permute.xlu0 %708
        %710 = vrot.lane.b32.xlu0 %v705, 91
        %v711 = vpop.permute.xlu0 %710
        %v712 = vrot.slane %v709, 4
        %v713 = vrot.slane %v711, 4
        %v714 = vsel %vm505, %v712, %v713
        %v715 = vsel %vm585, %v709, %v714
        %718 = vst [vmem:[#allocation2 + $0xc0] sm:$0xff] %v715
        %719 = vst.msk [vmem:[#allocation2 + $0xc8] sm:$0xf] %vm495, %v711
        %v720 = vld [vmem:[%s293] sm:$0xff]
        %v721 = vld [vmem:[%s293 + $0x8] sm:$0xf]
        %724 = vrot.lane.b32.xlu0 %v720, 90
        %v725 = vpop.permute.xlu0 %724
        %726 = vrot.lane.b32.xlu0 %v721, 90
        %v727 = vpop.permute.xlu0 %726
        %v728 = vrot.slane %v725, 4
        %v729 = vrot.slane %v727, 4
        %v730 = vsel %vm505, %v728, %v729
        %v731 = vsel %vm598, %v725, %v730
        %734 = vst [vmem:[#allocation2 + $0xcc] sm:$0xff] %v731
        %735 = vst.msk [vmem:[#allocation2 + $0xd4] sm:$0xf] %vm495, %v727
        %v736 = vld [vmem:[#allocation5] sm:$0xff]
        %v737 = vld [vmem:[#allocation2] sm:$0xff]
        %v738 = vld [vmem:[#allocation2 + $0x8] sm:$0xf]
        %v739 = vld [vmem:[#allocation2 + $0xc] sm:$0xff]
        %v740 = vld [vmem:[#allocation2 + $0x14] sm:$0xf]
        %v741 = vld [vmem:[#allocation2 + $0x18] sm:$0xff]
        %v742 = vld [vmem:[#allocation2 + $0x20] sm:$0xf]
        %v743 = vld [vmem:[#allocation2 + $0x24] sm:$0xff]
        %v744 = vld [vmem:[#allocation2 + $0x2c] sm:$0xf]
        %v745 = vld [vmem:[#allocation2 + $0x30] sm:$0xff]
        %v746 = vld [vmem:[#allocation2 + $0x38] sm:$0xf]
        %v747 = vld [vmem:[#allocation2 + $0x3c] sm:$0xff]
        %v748 = vld [vmem:[#allocation2 + $0x44] sm:$0xf]
        %v749 = vld [vmem:[#allocation2 + $0x48] sm:$0xff]
        %v750 = vld [vmem:[#allocation2 + $0x50] sm:$0xf]
        %v751 = vld [vmem:[#allocation2 + $0x54] sm:$0xff]
        %v752 = vld [vmem:[#allocation2 + $0x5c] sm:$0xf]
        %v753 = vld [vmem:[#allocation2 + $0x60] sm:$0xff]
        %v754 = vld [vmem:[#allocation2 + $0x68] sm:$0xf]
        %v755 = vld [vmem:[#allocation2 + $0x6c] sm:$0xff]
        %v756 = vld [vmem:[#allocation2 + $0x74] sm:$0xf]
        %v757 = vld [vmem:[#allocation2 + $0x78] sm:$0xff]
        %v758 = vld [vmem:[#allocation2 + $0x80] sm:$0xf]
        %v759 = vld [vmem:[#allocation2 + $0x84] sm:$0xff]
        %v760 = vld [vmem:[#allocation2 + $0x8c] sm:$0xf]
        %v761 = vld [vmem:[#allocation2 + $0x90] sm:$0xff]
        %v762 = vld [vmem:[#allocation2 + $0x98] sm:$0xf]
        %v763 = vld [vmem:[#allocation2 + $0x9c] sm:$0xff]
        %v764 = vld [vmem:[#allocation2 + $0xa4] sm:$0xf]
        %v765 = vld [vmem:[#allocation2 + $0xa8] sm:$0xff]
        %v766 = vld [vmem:[#allocation2 + $0xb0] sm:$0xf]
        %v767 = vld [vmem:[#allocation2 + $0xb4] sm:$0xff]
        %v768 = vld [vmem:[#allocation2 + $0xbc] sm:$0xf]
        %v769 = vld [vmem:[#allocation2 + $0xc0] sm:$0xff]
        %v770 = vld [vmem:[#allocation2 + $0xc8] sm:$0xf]
        %v771 = vld [vmem:[#allocation2 + $0xcc] sm:$0xff]
        %v772 = vld [vmem:[#allocation2 + $0xd4] sm:$0xf]
        %v774 = vunpack.c.l.b16 %v736
        %v775 = vunpack.c.h.b16 %v736
        %v776 = vpack.c.b16 %v774, %v774
        %v777 = vpack.c.b16 %v775, %v775
        %v815 = vunpack.c.l.b16 %v737
        %v816 = vunpack.c.h.b16 %v737
        %v817 = vunpack.c.l.b16 %v738
        %v818 = vunpack.c.l.b16 %v739
        %v819 = vunpack.c.h.b16 %v739
        %v820 = vunpack.c.l.b16 %v740
        %v821 = vunpack.c.l.b16 %v741
        %v822 = vunpack.c.h.b16 %v741
        %v823 = vunpack.c.l.b16 %v742
        %v824 = vunpack.c.l.b16 %v743
        %v825 = vunpack.c.h.b16 %v743
        %v826 = vunpack.c.l.b16 %v744
        %v827 = vunpack.c.l.b16 %v745
        %v828 = vunpack.c.h.b16 %v745
        %v829 = vunpack.c.l.b16 %v746
        %v830 = vunpack.c.l.b16 %v747
        %v831 = vunpack.c.h.b16 %v747
        %v832 = vunpack.c.l.b16 %v748
        %v833 = vunpack.c.l.b16 %v749
        %v834 = vunpack.c.h.b16 %v749
        %v835 = vunpack.c.l.b16 %v750
        %v836 = vunpack.c.l.b16 %v751
        %v837 = vunpack.c.h.b16 %v751
        %v838 = vunpack.c.l.b16 %v752
        %v839 = vunpack.c.l.b16 %v753
        %v840 = vunpack.c.h.b16 %v753
        %v841 = vunpack.c.l.b16 %v754
        %v842 = vunpack.c.l.b16 %v755
        %v843 = vunpack.c.h.b16 %v755
        %v844 = vunpack.c.l.b16 %v756
        %v845 = vunpack.c.l.b16 %v757
        %v846 = vunpack.c.h.b16 %v757
        %v847 = vunpack.c.l.b16 %v758
        %v848 = vunpack.c.l.b16 %v759
        %v849 = vunpack.c.h.b16 %v759
        %v850 = vunpack.c.l.b16 %v760
        %v851 = vunpack.c.l.b16 %v761
        %v852 = vunpack.c.h.b16 %v761
        %v853 = vunpack.c.l.b16 %v762
        %v854 = vunpack.c.l.b16 %v763
        %v855 = vunpack.c.h.b16 %v763
        %v856 = vunpack.c.l.b16 %v764
        %v857 = vunpack.c.l.b16 %v765
        %v858 = vunpack.c.h.b16 %v765
        %v859 = vunpack.c.l.b16 %v766
        %v860 = vunpack.c.l.b16 %v767
        %v861 = vunpack.c.h.b16 %v767
        %v862 = vunpack.c.l.b16 %v768
        %v863 = vunpack.c.l.b16 %v769
        %v864 = vunpack.c.h.b16 %v769
        %v865 = vunpack.c.l.b16 %v770
        %v866 = vunpack.c.l.b16 %v771
        %v867 = vunpack.c.h.b16 %v771
        %v868 = vunpack.c.l.b16 %v772
        %v869 = vpack.c.b16 %v818, %v815
        %v870 = vpack.c.b16 %v819, %v816
        %v871 = vpack.c.b16 %v820, %v817
        %v872 = vpack.c.b16 %v824, %v821
        %v873 = vpack.c.b16 %v825, %v822
        %v874 = vpack.c.b16 %v826, %v823
        %v875 = vpack.c.b16 %v830, %v827
        %v876 = vpack.c.b16 %v831, %v828
        %v877 = vpack.c.b16 %v832, %v829
        %v878 = vpack.c.b16 %v836, %v833
        %v879 = vpack.c.b16 %v837, %v834
        %v880 = vpack.c.b16 %v838, %v835
        %v881 = vpack.c.b16 %v842, %v839
        %v882 = vpack.c.b16 %v843, %v840
        %v883 = vpack.c.b16 %v844, %v841
        %v884 = vpack.c.b16 %v848, %v845
        %v885 = vpack.c.b16 %v849, %v846
        %v886 = vpack.c.b16 %v850, %v847
        %v887 = vpack.c.b16 %v854, %v851
        %v888 = vpack.c.b16 %v855, %v852
        %v889 = vpack.c.b16 %v856, %v853
        %v890 = vpack.c.b16 %v860, %v857
        %v891 = vpack.c.b16 %v861, %v858
        %v892 = vpack.c.b16 %v862, %v859
        %v893 = vpack.c.b16 %v866, %v863
        %v894 = vpack.c.b16 %v867, %v864
        %v895 = vpack.c.b16 %v868, %v865
        %vm923 = vcmask 130048
        %v925 = vsel %vm923, %v777, 0
        %927 = vmatpush.bf16.msra.mxu0 %v890
        %928 = vmatpush.bf16.msra.mxu0 %v887
        %929 = vmatpush.bf16.msra.mxu0 %v884
        %930 = vmatpush.bf16.msra.mxu0 %v881
        %931 = vmatpush.bf16.msra.mxu0 %v878
        %932 = vmatpush.bf16.msra.mxu0 %v875
        %933 = vmatpush.bf16.msra.mxu0 %v872
        %934 = vmatpush.bf16.msra.mxu0 %v869
        %935 = vmatmul.bf16.gmra.mxu0 %v776
        %v936 = vpop.f32.mrf.mxu0
        %v937 = vadd.f32 0.0, %v936
        %v938 = vpop.f32.mrf.mxu0
        %939 = vdwg.mxu0
        %940 = vmatpush.bf16.msra.mxu0 0
        %941 = vmatpush.bf16.msra.mxu0 0
        %942 = vmatpush.bf16.msra.mxu0 0
        %943 = vmatpush.bf16.msra.mxu0 0
        %944 = vmatpush.bf16.msra.mxu0 0
        %945 = vmatpush.bf16.msra.mxu0 0
        %946 = vmatpush.bf16.msra.mxu0 0
        %947 = vmatpush.bf16.msra.mxu0 %v893
        %948 = vmatmul.bf16.gmra.mxu0 %v925
        %v949 = vpop.f32.mrf.mxu0
        %v950 = vadd.f32 %v937, %v949
        %v951 = vpop.f32.mrf.mxu0
        %952 = vdwg.mxu0
        %953 = vmatpush.bf16.msra.mxu0 %v891
        %954 = vmatpush.bf16.msra.mxu0 %v888
        %955 = vmatpush.bf16.msra.mxu0 %v885
        %956 = vmatpush.bf16.msra.mxu0 %v882
        %957 = vmatpush.bf16.msra.mxu0 %v879
        %958 = vmatpush.bf16.msra.mxu0 %v876
        %959 = vmatpush.bf16.msra.mxu0 %v873
        %960 = vmatpush.bf16.msra.mxu0 %v870
        %961 = vmatmul.bf16.gmra.mxu0 %v776
        %v962 = vpop.f32.mrf.mxu0
        %v963 = vadd.f32 0.0, %v962
        %v964 = vpop.f32.mrf.mxu0
        %965 = vdwg.mxu0
        %966 = vmatpush.bf16.msra.mxu0 0
        %967 = vmatpush.bf16.msra.mxu0 0
        %968 = vmatpush.bf16.msra.mxu0 0
        %969 = vmatpush.bf16.msra.mxu0 0
        %970 = vmatpush.bf16.msra.mxu0 0
        %971 = vmatpush.bf16.msra.mxu0 0
        %972 = vmatpush.bf16.msra.mxu0 0
        %973 = vmatpush.bf16.msra.mxu0 %v894
        %974 = vmatmul.bf16.gmra.mxu0 %v925
        %v975 = vpop.f32.mrf.mxu0
        %v976 = vadd.f32 %v963, %v975
        %v977 = vpop.f32.mrf.mxu0
        %978 = vdwg.mxu0
        %979 = vmatpush.bf16.msra.mxu0 %v892
        %980 = vmatpush.bf16.msra.mxu0 %v889
        %981 = vmatpush.bf16.msra.mxu0 %v886
        %982 = vmatpush.bf16.msra.mxu0 %v883
        %983 = vmatpush.bf16.msra.mxu0 %v880
        %984 = vmatpush.bf16.msra.mxu0 %v877
        %985 = vmatpush.bf16.msra.mxu0 %v874
        %986 = vmatpush.bf16.msra.mxu0 %v871
        %987 = vmatmul.bf16.gmra.mxu0 %v776
        %v988 = vpop.f32.mrf.mxu0
        %v989 = vadd.f32 0.0, %v988
        %v990 = vpop.f32.mrf.mxu0
        %991 = vdwg.mxu0
        %992 = vmatpush.bf16.msra.mxu0 0
        %993 = vmatpush.bf16.msra.mxu0 0
        %994 = vmatpush.bf16.msra.mxu0 0
        %995 = vmatpush.bf16.msra.mxu0 0
        %996 = vmatpush.bf16.msra.mxu0 0
        %997 = vmatpush.bf16.msra.mxu0 0
        %998 = vmatpush.bf16.msra.mxu0 0
        %999 = vmatpush.bf16.msra.mxu0 %v895
        %1000 = vmatmul.bf16.gmra.mxu0 %v925
        %v1001 = vpop.f32.mrf.mxu0
        %v1002 = vadd.f32 %v989, %v1001
        %v1003 = vpop.f32.mrf.mxu0
        %1004 = vdwg.mxu0
        %v1006 = vperm.slane %v300, 0
        %v1007 = vperm.slane %v300, 1
        %v1008 = vperm.slane %v300, 2
        %v1012 = vmul.f32 %v950, %v1006
        %v1013 = vmul.f32 %v976, %v1007
        %v1014 = vmul.f32 %v1002, %v1008
        %v1015 = vadd.f32 %v1012, %v1013
        %vm1016 = vcmask 261120
        %v1017 = vsel %vm1016, %v1014, 0.0
        %v1018 = vadd.f32 %v1015, %v1017
        %1019 = vadd.xlane.f32.xlu0 %v1018
        %v1020 = vpop.xlane.xlu0 %1019
        %v1021 = vmul.f32 %v1020, 0.00390625
        %v1022 = vmul.f32 %v1012, %v1012
        %v1023 = vmul.f32 %v1013, %v1013
        %v1024 = vmul.f32 %v1014, %v1014
        %v1025 = vadd.f32 %v1022, %v1023
        %v1026 = vsel %vm1016, %v1024, 0.0
        %v1027 = vadd.f32 %v1025, %v1026
        %1028 = vadd.xlane.f32.xlu0 %v1027
        %v1029 = vpop.xlane.xlu0 %1028
        %v1030 = vmul.f32 %v1029, 0.00390625
        %v1031 = vmul.f32 %v1021, %v1021
        %v1032 = vsub.f32 %v1030, %v1031
        %v1033 = vmax.f32 %v1032, 0.0
        %v1034 = vsub.f32 %v1012, %v1021
        %v1035 = vsub.f32 %v1013, %v1021
        %v1036 = vsub.f32 %v1014, %v1021
        %v1037 = vadd.f32 %v1033, 1e-05
        %v1038 = vrsqrt.pop %v1037
        %v1039 = vmul.f32 %v1038, %v1037
        %v1040 = vmul.f32 %v1039, %v1038
        %v1041 = vmul.f32 0.5, %v1040
        %v1042 = vsub.f32 1.5, %v1041
        %v1043 = vmul.f32 %v1038, %v1042
        %vm1044 = vweird.f32 %v1037
        %vm1045 = vweird.f32 %v1038
        %vm1046 = vmor %vm1044, %vm1045
        %v1047 = vsel %vm1046, %v1038, %v1043
        %v1048 = vmul.f32 %v1034, %v1047
        %v1049 = vmul.f32 %v1035, %v1047
        %v1050 = vmul.f32 %v1036, %v1047
        %v1051 = vmax.f32 %v1048, 0.0
        %v1052 = vmax.f32 %v1049, 0.0
        %v1053 = vmax.f32 %v1050, 0.0
        %v1054 = vmul.f32 %v1051, %v1006
        %v1055 = vmul.f32 %v1052, %v1007
        %v1056 = vmul.f32 %v1053, %v1008
        %1057 = vst [vmem:[#allocation3] sm:$0xff] 0
        %vm1058 = vcmask 699392
        %1059 = vst.msk [vmem:[#allocation3 + $0x8] sm:$0xf] %vm1058, 0
        %v1060 = vpack.c.bf16 %v1055, %v1054
        %v1061 = vpack.c.bf16 %v1056, %v1056
        %1064 = vrot.lane.b32.xlu0 %v1060, 19
        %v1065 = vpop.permute.xlu0 %1064
        %1066 = vrot.lane.b32.xlu0 %v1061, 19
        %v1067 = vpop.permute.xlu0 %1066
        %v1068 = vrot.slane %v1065, 4
        %vm1069 = vcmask 154624
        %v1070 = vsel %vm1069, %v1068, %v1065
        %v1071 = vsel %vm1069, %v1068, %v1067
        %vm1074 = vcmask 1043608
        %vm1075 = vcmask 1047556
        %vm1076 = vmor %vm1075, %vm1074
        %1077 = vst.msk [vmem:[#allocation3] sm:$0xff] %vm1076, %v1070
        %vm1078 = vcmask 412672
        %1079 = vst.msk [vmem:[#allocation3 + $0x8] sm:$0xf] %vm1078, %v1071
        %v1080 = vld [vmem:[#allocation3] sm:$0xff]
        %v1081 = vld [vmem:[#allocation3 + $0x8] sm:$0xf]
        %1082 = vst [vmem:[#allocation4] sm:$0xff] %v1080
        %1083 = vst.msk [vmem:[#allocation4 + $0x8] sm:$0xf] %vm495, %v1081
        %v1084 = vld [vmem:[#allocation3] sm:$0xff]
        %v1085 = vld [vmem:[#allocation3 + $0x8] sm:$0xf]
        %1088 = vrot.lane.b32.xlu0 %v1084, 127
        %v1089 = vpop.permute.xlu0 %1088
        %1090 = vrot.lane.b32.xlu0 %v1085, 127
        %v1091 = vpop.permute.xlu0 %1090
        %v1092 = vrot.slane %v1089, 4
        %v1093 = vrot.slane %v1091, 4
        %v1094 = vsel %vm505, %v1092, %v1093
        %v1095 = vsel %vm507, %v1089, %v1094
        %1098 = vst [vmem:[#allocation4 + $0xc] sm:$0xff] %v1095
        %1099 = vst.msk [vmem:[#allocation4 + $0x14] sm:$0xf] %vm495, %v1091
        %v1100 = vld [vmem:[#allocation3] sm:$0xff]
        %v1101 = vld [vmem:[#allocation3 + $0x8] sm:$0xf]
        %1104 = vrot.lane.b32.xlu0 %v1100, 126
        %v1105 = vpop.permute.xlu0 %1104
        %1106 = vrot.lane.b32.xlu0 %v1101, 126
        %v1107 = vpop.permute.xlu0 %1106
        %v1108 = vrot.slane %v1105, 4
        %v1109 = vrot.slane %v1107, 4
        %v1110 = vsel %vm505, %v1108, %v1109
        %v1111 = vsel %vm520, %v1105, %v1110
        %1114 = vst [vmem:[#allocation4 + $0x18] sm:$0xff] %v1111
        %1115 = vst.msk [vmem:[#allocation4 + $0x20] sm:$0xf] %vm495, %v1107
        %v1116 = vld [vmem:[#allocation3] sm:$0xff]
        %v1117 = vld [vmem:[#allocation3 + $0x8] sm:$0xf]
        %1120 = vrot.lane.b32.xlu0 %v1116, 110
        %v1121 = vpop.permute.xlu0 %1120
        %1122 = vrot.lane.b32.xlu0 %v1117, 110
        %v1123 = vpop.permute.xlu0 %1122
        %v1124 = vrot.slane %v1121, 4
        %v1125 = vrot.slane %v1123, 4
        %v1126 = vsel %vm505, %v1124, %v1125
        %v1127 = vsel %vm533, %v1121, %v1126
        %1130 = vst [vmem:[#allocation4 + $0x24] sm:$0xff] %v1127
        %1131 = vst.msk [vmem:[#allocation4 + $0x2c] sm:$0xf] %vm495, %v1123
        %v1132 = vld [vmem:[#allocation3] sm:$0xff]
        %v1133 = vld [vmem:[#allocation3 + $0x8] sm:$0xf]
        %1136 = vrot.lane.b32.xlu0 %v1132, 109
        %v1137 = vpop.permute.xlu0 %1136
        %1138 = vrot.lane.b32.xlu0 %v1133, 109
        %v1139 = vpop.permute.xlu0 %1138
        %v1140 = vrot.slane %v1137, 4
        %v1141 = vrot.slane %v1139, 4
        %v1142 = vsel %vm505, %v1140, %v1141
        %v1143 = vsel %vm546, %v1137, %v1142
        %1146 = vst [vmem:[#allocation4 + $0x30] sm:$0xff] %v1143
        %1147 = vst.msk [vmem:[#allocation4 + $0x38] sm:$0xf] %vm495, %v1139
        %v1148 = vld [vmem:[#allocation3] sm:$0xff]
        %v1149 = vld [vmem:[#allocation3 + $0x8] sm:$0xf]
        %1152 = vrot.lane.b32.xlu0 %v1148, 108
        %v1153 = vpop.permute.xlu0 %1152
        %1154 = vrot.lane.b32.xlu0 %v1149, 108
        %v1155 = vpop.permute.xlu0 %1154
        %v1156 = vrot.slane %v1153, 4
        %v1157 = vrot.slane %v1155, 4
        %v1158 = vsel %vm505, %v1156, %v1157
        %v1159 = vsel %vm559, %v1153, %v1158
        %1162 = vst [vmem:[#allocation4 + $0x3c] sm:$0xff] %v1159
        %1163 = vst.msk [vmem:[#allocation4 + $0x44] sm:$0xf] %vm495, %v1155
        %v1164 = vld [vmem:[#allocation3] sm:$0xff]
        %v1165 = vld [vmem:[#allocation3 + $0x8] sm:$0xf]
        %1168 = vrot.lane.b32.xlu0 %v1164, 92
        %v1169 = vpop.permute.xlu0 %1168
        %1170 = vrot.lane.b32.xlu0 %v1165, 92
        %v1171 = vpop.permute.xlu0 %1170
        %v1172 = vrot.slane %v1169, 4
        %v1173 = vrot.slane %v1171, 4
        %v1174 = vsel %vm505, %v1172, %v1173
        %v1175 = vsel %vm572, %v1169, %v1174
        %1178 = vst [vmem:[#allocation4 + $0x48] sm:$0xff] %v1175
        %1179 = vst.msk [vmem:[#allocation4 + $0x50] sm:$0xf] %vm495, %v1171
        %v1180 = vld [vmem:[#allocation3] sm:$0xff]
        %v1181 = vld [vmem:[#allocation3 + $0x8] sm:$0xf]
        %1184 = vrot.lane.b32.xlu0 %v1180, 91
        %v1185 = vpop.permute.xlu0 %1184
        %1186 = vrot.lane.b32.xlu0 %v1181, 91
        %v1187 = vpop.permute.xlu0 %1186
        %v1188 = vrot.slane %v1185, 4
        %v1189 = vrot.slane %v1187, 4
        %v1190 = vsel %vm505, %v1188, %v1189
        %v1191 = vsel %vm585, %v1185, %v1190
        %1194 = vst [vmem:[#allocation4 + $0x54] sm:$0xff] %v1191
        %1195 = vst.msk [vmem:[#allocation4 + $0x5c] sm:$0xf] %vm495, %v1187
        %v1196 = vld [vmem:[#allocation3] sm:$0xff]
        %v1197 = vld [vmem:[#allocation3 + $0x8] sm:$0xf]
        %1200 = vrot.lane.b32.xlu0 %v1196, 90
        %v1201 = vpop.permute.xlu0 %1200
        %1202 = vrot.lane.b32.xlu0 %v1197, 90
        %v1203 = vpop.permute.xlu0 %1202
        %v1204 = vrot.slane %v1201, 4
        %v1205 = vrot.slane %v1203, 4
        %v1206 = vsel %vm505, %v1204, %v1205
        %v1207 = vsel %vm598, %v1201, %v1206
        %1210 = vst [vmem:[#allocation4 + $0x60] sm:$0xff] %v1207
        %1211 = vst.msk [vmem:[#allocation4 + $0x68] sm:$0xf] %vm495, %v1203
        %v1212 = vld [vmem:[#allocation7] sm:$0xf]
        %v1213 = vld [vmem:[#allocation4] sm:$0xff]
        %v1214 = vld [vmem:[#allocation4 + $0x8] sm:$0xf]
        %v1215 = vld [vmem:[#allocation4 + $0xc] sm:$0xff]
        %v1216 = vld [vmem:[#allocation4 + $0x14] sm:$0xf]
        %v1217 = vld [vmem:[#allocation4 + $0x18] sm:$0xff]
        %v1218 = vld [vmem:[#allocation4 + $0x20] sm:$0xf]
        %v1219 = vld [vmem:[#allocation4 + $0x24] sm:$0xff]
        %v1220 = vld [vmem:[#allocation4 + $0x2c] sm:$0xf]
        %v1221 = vld [vmem:[#allocation4 + $0x30] sm:$0xff]
        %v1222 = vld [vmem:[#allocation4 + $0x38] sm:$0xf]
        %v1223 = vld [vmem:[#allocation4 + $0x3c] sm:$0xff]
        %v1224 = vld [vmem:[#allocation4 + $0x44] sm:$0xf]
        %v1225 = vld [vmem:[#allocation4 + $0x48] sm:$0xff]
        %v1226 = vld [vmem:[#allocation4 + $0x50] sm:$0xf]
        %v1227 = vld [vmem:[#allocation4 + $0x54] sm:$0xff]
        %v1228 = vld [vmem:[#allocation4 + $0x5c] sm:$0xf]
        %v1229 = vld [vmem:[#allocation4 + $0x60] sm:$0xff]
        %v1230 = vld [vmem:[#allocation4 + $0x68] sm:$0xf]
        %v1249 = vunpack.c.l.b16 %v1213
        %v1250 = vunpack.c.h.b16 %v1213
        %v1251 = vunpack.c.l.b16 %v1214
        %v1252 = vunpack.c.l.b16 %v1215
        %v1253 = vunpack.c.h.b16 %v1215
        %v1254 = vunpack.c.l.b16 %v1216
        %v1255 = vunpack.c.l.b16 %v1217
        %v1256 = vunpack.c.h.b16 %v1217
        %v1257 = vunpack.c.l.b16 %v1218
        %v1258 = vunpack.c.l.b16 %v1219
        %v1259 = vunpack.c.h.b16 %v1219
        %v1260 = vunpack.c.l.b16 %v1220
        %v1261 = vunpack.c.l.b16 %v1221
        %v1262 = vunpack.c.h.b16 %v1221
        %v1263 = vunpack.c.l.b16 %v1222
        %v1264 = vunpack.c.l.b16 %v1223
        %v1265 = vunpack.c.h.b16 %v1223
        %v1266 = vunpack.c.l.b16 %v1224
        %v1267 = vunpack.c.l.b16 %v1225
        %v1268 = vunpack.c.h.b16 %v1225
        %v1269 = vunpack.c.l.b16 %v1226
        %v1270 = vunpack.c.l.b16 %v1227
        %v1271 = vunpack.c.h.b16 %v1227
        %v1272 = vunpack.c.l.b16 %v1228
        %v1273 = vunpack.c.l.b16 %v1229
        %v1274 = vunpack.c.h.b16 %v1229
        %v1275 = vunpack.c.l.b16 %v1230
        %v1276 = vpack.c.b16 %v1252, %v1249
        %v1277 = vpack.c.b16 %v1253, %v1250
        %v1278 = vpack.c.b16 %v1254, %v1251
        %v1279 = vpack.c.b16 %v1258, %v1255
        %v1280 = vpack.c.b16 %v1259, %v1256
        %v1281 = vpack.c.b16 %v1260, %v1257
        %v1282 = vpack.c.b16 %v1264, %v1261
        %v1283 = vpack.c.b16 %v1265, %v1262
        %v1284 = vpack.c.b16 %v1266, %v1263
        %v1285 = vpack.c.b16 %v1270, %v1267
        %v1286 = vpack.c.b16 %v1271, %v1268
        %v1287 = vpack.c.b16 %v1272, %v1269
        %v1288 = vpack.c.b16 %v1273, %v1273
        %v1289 = vpack.c.b16 %v1274, %v1274
        %v1290 = vpack.c.b16 %v1275, %v1275
        %vm1303 = vcmask 588800
        %v1305 = vsel %vm1303, %v1212, 0
        %vm1307 = vcmask 1043456
        %v1309 = vsel %vm1307, %v1288, 0
        %v1312 = vsel %vm1307, %v1289, 0
        %v1315 = vsel %vm1307, %v1290, 0
        %1317 = vmatpush.bf16.msra.mxu0 0
        %1318 = vmatpush.bf16.msra.mxu0 0
        %1319 = vmatpush.bf16.msra.mxu0 0
        %1320 = vmatpush.bf16.msra.mxu0 %v1309
        %1321 = vmatpush.bf16.msra.mxu0 %v1285
        %1322 = vmatpush.bf16.msra.mxu0 %v1282
        %1323 = vmatpush.bf16.msra.mxu0 %v1279
        %1324 = vmatpush.bf16.msra.mxu0 %v1276
        %1325 = vmatmul.bf16.gmra.mxu0 %v1305
        %v1326 = vpop.f32.mrf.mxu0
        %v1327 = vadd.f32 0.0, %v1326
        %v1328 = vpop.f32.mrf.mxu0
        %1329 = vdwg.mxu0
        %1330 = vmatpush.bf16.msra.mxu0 0
        %1331 = vmatpush.bf16.msra.mxu0 0
        %1332 = vmatpush.bf16.msra.mxu0 0
        %1333 = vmatpush.bf16.msra.mxu0 %v1312
        %1334 = vmatpush.bf16.msra.mxu0 %v1286
        %1335 = vmatpush.bf16.msra.mxu0 %v1283
        %1336 = vmatpush.bf16.msra.mxu0 %v1280
        %1337 = vmatpush.bf16.msra.mxu0 %v1277
        %1338 = vmatmul.bf16.gmra.mxu0 %v1305
        %v1339 = vpop.f32.mrf.mxu0
        %v1340 = vadd.f32 0.0, %v1339
        %v1341 = vpop.f32.mrf.mxu0
        %1342 = vdwg.mxu0
        %1343 = vmatpush.bf16.msra.mxu0 0
        %1344 = vmatpush.bf16.msra.mxu0 0
        %1345 = vmatpush.bf16.msra.mxu0 0
        %1346 = vmatpush.bf16.msra.mxu0 %v1315
        %1347 = vmatpush.bf16.msra.mxu0 %v1287
        %1348 = vmatpush.bf16.msra.mxu0 %v1284
        %1349 = vmatpush.bf16.msra.mxu0 %v1281
        %1350 = vmatpush.bf16.msra.mxu0 %v1278
        %1351 = vmatmul.bf16.gmra.mxu0 %v1305
        %v1352 = vpop.f32.mrf.mxu0
        %v1353 = vadd.f32 0.0, %v1352
        %v1354 = vpop.f32.mrf.mxu0
        %1355 = vdwg.mxu0
        %v1356 = vmul.f32 %v1327, %v1006
        %v1357 = vmul.f32 %v1340, %v1007
        %v1358 = vmul.f32 %v1353, %v1008
        %v1359 = vadd.f32 %v1356, %v1357
        %v1360 = vsel %vm1016, %v1358, 0.0
        %v1361 = vadd.f32 %v1359, %v1360
        %1362 = vadd.xlane.f32.xlu0 %v1361
        %v1363 = vpop.xlane.xlu0 %1362
        %v1364 = vmul.f32 %v1363, 0.00390625
        %v1365 = vmul.f32 %v1356, %v1356
        %v1366 = vmul.f32 %v1357, %v1357
        %v1367 = vmul.f32 %v1358, %v1358
        %v1368 = vadd.f32 %v1365, %v1366
        %v1369 = vsel %vm1016, %v1367, 0.0
        %v1370 = vadd.f32 %v1368, %v1369
        %1371 = vadd.xlane.f32.xlu0 %v1370
        %v1372 = vpop.xlane.xlu0 %1371
        %v1373 = vmul.f32 %v1372, 0.00390625
        %v1374 = vmul.f32 %v1364, %v1364
        %v1375 = vsub.f32 %v1373, %v1374
        %v1376 = vmax.f32 %v1375, 0.0
        %v1377 = vsub.f32 %v1356, %v1364
        %v1378 = vsub.f32 %v1357, %v1364
        %v1379 = vsub.f32 %v1358, %v1364
        %v1380 = vadd.f32 %v1376, 1e-05
        %v1381 = vrsqrt.pop %v1380
        %v1382 = vmul.f32 %v1381, %v1380
        %v1383 = vmul.f32 %v1382, %v1381
        %v1384 = vmul.f32 0.5, %v1383
        %v1385 = vsub.f32 1.5, %v1384
        %v1386 = vmul.f32 %v1381, %v1385
        %vm1387 = vweird.f32 %v1380
        %vm1388 = vweird.f32 %v1381
        %vm1389 = vmor %vm1387, %vm1388
        %v1390 = vsel %vm1389, %v1381, %v1386
        %v1391 = vmul.f32 %v1377, %v1390
        %v1392 = vmul.f32 %v1378, %v1390
        %v1393 = vmul.f32 %v1379, %v1390
        %v1394 = vmax.f32 %v1391, 0.0
        %v1395 = vmax.f32 %v1392, 0.0
        %v1396 = vmax.f32 %v1393, 0.0
        %v1397 = vmul.f32 %v1394, %v1006
        %v1398 = vmul.f32 %v1395, %v1007
        %v1399 = vmul.f32 %v1396, %v1008
        %1400 = vst [vmem:[%s298] sm:$0xff] 0
        %1401 = vst.msk [vmem:[%s298 + $0x8] sm:$0xf] %vm1058, 0
        %v1402 = vpack.c.bf16 %v1398, %v1397
        %v1403 = vpack.c.bf16 %v1399, %v1399
        %1406 = vrot.lane.b32.xlu0 %v1402, 19
        %v1407 = vpop.permute.xlu0 %1406
        %1408 = vrot.lane.b32.xlu0 %v1403, 19
        %v1409 = vpop.permute.xlu0 %1408
        %v1410 = vrot.slane %v1407, 4
        %v1411 = vsel %vm1069, %v1410, %v1407
        %v1412 = vsel %vm1069, %v1410, %v1409
        %1415 = vst.msk [vmem:[%s298] sm:$0xff] %vm1076, %v1411
        %1416 = vst.msk [vmem:[%s298 + $0x8] sm:$0xf] %vm1078, %v1412
        %p1417 = scmp.lt.s32.totalorder %s19, 1
        %s1418 = scalar_select %p1417, %s19, 1
        %s1419 = smul.addr %s1418, 3
        %s1420 = smul.addr %s1419, 4
        %s1421 = scalar_lea.vmem %s6, %s1420
        // Predicated region
        $region53: #{unet_forward.10} parent=43 // pred_check
          %p1422 = pneg %p173
        $region54: #{unet_forward.10} parent=43 // pred_check_branch
          %1424 = sbr.rel (%p1422) target = $region56
        $region55: #{unet_forward.10} parent=43 // pred_region
          _
        $region56: #{unet_forward.10} parent=43 // pred_fallthru
          _
      $region44: #{unet_forward.10} parent=5 // pred_fallthru
        _
      %p1425 = scmp.le.s32.totalorder 2, %s14
      // Predicated region
      $region57: #{unet_forward.10} parent=5 // pred_check
        %p1426 = pneg %p1425
      $region58: #{unet_forward.10} parent=5 // pred_check_branch
        %1428 = sbr.rel (%p1426) target = $region60
      $region59: #{unet_forward.10} parent=5 // pred_region
        %s1429 = ssub.s32 %s14, 2
        // Predicated region
        $region61: #{unet_forward.10} parent=59 // pred_check
          %p1430 = pneg %p179
        $region62: #{unet_forward.10} parent=59 // pred_check_branch
          %1432 = sbr.rel (%p1430) target = $region64
        $region63: #{unet_forward.10} parent=59 // pred_region
          %p1433 = scmp.lt.s32.totalorder %s20, 1
          %s1434 = scalar_select %p1433, %s20, 1
          %s1435 = smul.addr %s1434, 3
          %s1436 = smul.addr %s1435, 4
          %s1437 = scalar_lea.vmem %s6, %s1436
        $region64: #{unet_forward.10} parent=59 // pred_fallthru
          _
      $region60: #{unet_forward.10} parent=5 // pred_fallthru
        _
    $region6: #{unet_forward.10} parent=1 // loop_footer
      %s18 = sadd.s32 1, %s14
    $region7: #{unet_forward.10} parent=1 // loop_footer_branch
      %13 = sbr.rel target = $region3
    $region8: #{unet_forward.10} parent=1 // loop_exit
      _
    %1438 = vsyncpa [#allocation6], 1
    %s1439 = scalar_lea.sflag [#allocation6], 1
    %1440 = vsyncpa %s1439, 1
    %1441 = vsyncpa [#allocation8], 1

</llo_original>
